<compile_context>
chip_gen: v6e
topology: v6e:2x2x1
jax: 0.10.0
libtpu: 0.0.40
codegen_flags: <defaults>
</compile_context>

<pallas_src>
import jax
import jax.numpy as jnp
from jax.experimental import pallas as pl
from jax.experimental.pallas import tpu as pltpu


# ----------------------------------------------------------------------------
# Fully fused LBF forward kernel (single grid step, everything VMEM-resident)
# ----------------------------------------------------------------------------
def _lbf_kernel(x_ref, eps_ref,
                w1_ref, b1_ref, wh_ref, bh_ref,
                wd1_ref, bd1_ref, wd2_ref, bd2_ref,
                beta_ref, mean_ref, logstd_ref, pred_ref):
    bd = mean_ref.shape[1]

    # ---- Encoder: h = relu(x @ W1 + b1) ------------------------------------
    h = jnp.dot(x_ref[...], w1_ref[...], preferred_element_type=jnp.float32)
    h = jnp.maximum(h + b1_ref[...].astype(jnp.float32), 0.0)

    # ---- Fused mean|logstd heads: (B, 2*beta_dim) --------------------------
    heads = jnp.dot(h.astype(wh_ref.dtype), wh_ref[...],
                    preferred_element_type=jnp.float32)
    heads = heads + bh_ref[...].astype(jnp.float32)
    mean = heads[:, :bd]
    logstd = heads[:, bd:]

    # ---- Reparameterized sample (exp goes to the EUP slot) -----------------
    beta = mean + jnp.exp(logstd) * eps_ref[...]

    mean_ref[...] = mean
    logstd_ref[...] = logstd
    beta_ref[...] = beta

    # ---- Decoder: pred = relu(beta @ Wd1 + bd1) @ Wd2 + bd2 ----------------
    hd = jnp.dot(beta.astype(wd1_ref.dtype), wd1_ref[...],
                 preferred_element_type=jnp.float32)
    hd = jnp.maximum(hd + bd1_ref[...].astype(jnp.float32), 0.0)
    pred = jnp.dot(hd.astype(wd2_ref.dtype), wd2_ref[...],
                   preferred_element_type=jnp.float32)
    pred_ref[...] = pred + bd2_ref[...].astype(jnp.float32)


def lbf_forward(m, z, eps, kparams):
    """Returns (beta, mean, logstd, pred_z_seq), matching LBF.forward."""
    (w1, b1, w_heads, b_heads, wd1, bd1, wd2, bd2,
     beta_dim, pred_z_steps, z_dim) = kparams

    B = m.shape[0]
    x = jnp.concatenate([m, z], axis=1).astype(w1.dtype)   # glue
    eps = eps.astype(jnp.float32)

    # Pad batch to a multiple of 8 so every tile is a full sublane tile.
    pad = (-B) % 8
    if pad:
        x = jnp.pad(x, ((0, pad), (0, 0)))
        eps = jnp.pad(eps, ((0, pad), (0, 0)))
    Bp, F = x.shape
    H = w1.shape[1]
    O = wd2.shape[1]

    def full2d(shape):
        return pl.BlockSpec(shape, lambda k: (0, 0))

    beta, mean, logstd, pred = pl.pallas_call(
        _lbf_kernel,
        out_shape=(
            jax.ShapeDtypeStruct((Bp, beta_dim), jnp.float32),  # beta
            jax.ShapeDtypeStruct((Bp, beta_dim), jnp.float32),  # mean
            jax.ShapeDtypeStruct((Bp, beta_dim), jnp.float32),  # logstd
            jax.ShapeDtypeStruct((Bp, O), jnp.float32),         # pred (flat)
        ),
        grid_spec=pltpu.PrefetchScalarGridSpec(
            num_scalar_prefetch=0,
            grid=(1,),
            in_specs=[
                full2d((Bp, F)),               # x
                full2d((Bp, beta_dim)),        # eps
                full2d((F, H)),                # W1
                full2d((1, H)),                # b1
                full2d((H, 2 * beta_dim)),     # W_heads (mean|logstd)
                full2d((1, 2 * beta_dim)),     # b_heads
                full2d((beta_dim, H)),         # Wd1
                full2d((1, H)),                # bd1
                full2d((H, O)),                # Wd2
                full2d((1, O)),                # bd2
            ],
            out_specs=[
                full2d((Bp, beta_dim)),
                full2d((Bp, beta_dim)),
                full2d((Bp, beta_dim)),
                full2d((Bp, O)),
            ],
        ),
        compiler_params=pltpu.CompilerParams(
            dimension_semantics=("arbitrary",)),
    )(x, eps, w1, b1, w_heads, b_heads, wd1, bd1, wd2, bd2)

    pred_z_seq = pred[:B].reshape(B, pred_z_steps, z_dim)   # glue
    return beta[:B], mean[:B], logstd[:B], pred_z_seq


# ----------------------------------------------------------------------------
# Parameters
# ----------------------------------------------------------------------------
def init_params(key, m_dim, z_dim, beta_dim, pred_z_steps, hidden_dim=4096,
                dtype=jnp.float32):
    """PyTorch-style uniform init; weights stored as (in, out) == W.T."""
    in_dim = m_dim + z_dim
    ks = jax.random.split(key, 10)

    def lin(kw, kb, fan_in, fan_out):
        bound = 1.0 / (fan_in ** 0.5)
        w = jax.random.uniform(kw, (fan_in, fan_out), dtype, -bound, bound)
        b = jax.random.uniform(kb, (1, fan_out), dtype, -bound, bound)
        return w, b

    w1, b1 = lin(ks[0], ks[1], in_dim, hidden_dim)
    wm, bm = lin(ks[2], ks[3], hidden_dim, beta_dim)
    wl, bl = lin(ks[4], ks[5], hidden_dim, beta_dim)
    wd1, bd1 = lin(ks[6], ks[7], beta_dim, hidden_dim)
    wd2, bd2 = lin(ks[8], ks[9], hidden_dim, pred_z_steps * z_dim)
    return dict(w1=w1, b1=b1, wm=wm, bm=bm, wl=wl, bl=bl,
                wd1=wd1, bd1=bd1, wd2=wd2, bd2=bd2)


def prepare_kernel_params(p, beta_dim, pred_z_steps, z_dim,
                          dtype=jnp.bfloat16):
    """Fuse the mean/logstd heads and cast weights to the streaming dtype."""
    w_heads = jnp.concatenate([p["wm"], p["wl"]], axis=1).astype(dtype)
    b_heads = jnp.concatenate([p["bm"], p["bl"]], axis=1).astype(dtype)
    return (p["w1"].astype(dtype), p["b1"].astype(dtype), w_heads, b_heads,
            p["wd1"].astype(dtype), p["bd1"].astype(dtype),
            p["wd2"].astype(dtype), p["bd2"].astype(dtype),
            beta_dim, pred_z_steps, z_dim)


# ----------------------------------------------------------------------------
# References
# ----------------------------------------------------------------------------
def reference_forward_f32(m, z, eps, p, pred_z_steps, z_dim):
    """Full-precision reference == the PyTorch module."""
    x = jnp.concatenate([m, z], axis=1)
    h = jax.nn.relu(x @ p["w1"] + p["b1"])
    mean = h @ p["wm"] + p["bm"]
    logstd = h @ p["wl"] + p["bl"]
    beta = mean + jnp.exp(logstd) * eps
    hd = jax.nn.relu(beta @ p["wd1"] + p["bd1"])
    out = hd @ p["wd2"] + p["bd2"]
    return beta, mean, logstd, out.reshape(out.shape[0], pred_z_steps, z_dim)


def reference_forward_bf16(m, z, eps, kparams, pred_z_steps, z_dim):
    """Mirrors the kernel's mixed-precision math exactly (tight check)."""
    (w1, b1, w_heads, b_heads, wd1, bd1, wd2, bd2, beta_dim, _, _) = kparams

    def mlp2(x, wa, ba, wb, bb):
        h = jnp.dot(x, wa, preferred_element_type=jnp.float32)
        h = jnp.maximum(h + ba.astype(jnp.float32), 0.0)
        return (jnp.dot(h.astype(wb.dtype), wb,
                        preferred_element_type=jnp.float32)
                + bb.astype(jnp.float32))

    x = jnp.concatenate([m, z], axis=1).astype(w1.dtype)
    heads = mlp2(x, w1, b1, w_heads, b_heads)
    mean, logstd = heads[:, :beta_dim], heads[:, beta_dim:]
    beta = mean + jnp.exp(logstd) * eps
    dec = mlp2(beta.astype(wd1.dtype), wd1, bd1, wd2, bd2)
    return beta, mean, logstd, dec.reshape(dec.shape[0], pred_z_steps, z_dim)


# ----------------------------------------------------------------------------
if __name__ == "__main__":
    B, m_dim, z_dim, beta_dim, pred_z_steps = 8, 16, 16, 32, 4

    key = jax.random.PRNGKey(0)
    k_m, k_z, k_p, k_eps = jax.random.split(key, 4)
    m = jax.random.normal(k_m, (B, m_dim), jnp.float32)
    z = jax.random.normal(k_z, (B, z_dim), jnp.float32)
    eps = jax.random.normal(k_eps, (B, beta_dim), jnp.float32)

    params = init_params(k_p, m_dim, z_dim, beta_dim, pred_z_steps)
    kparams = prepare_kernel_params(params, beta_dim, pred_z_steps, z_dim)

    beta, mean, logstd, pred = lbf_forward(m, z, eps, kparams)
    jax.block_until_ready((beta, mean, logstd, pred))

    # Tight check: kernel vs. identical bf16-weight / f32-accumulation math.
    rb, rm, rl, rp = reference_forward_bf16(m, z, eps, kparams,
                                            pred_z_steps, z_dim)
    for got, ref in ((beta, rb), (mean, rm), (logstd, rl), (pred, rp)):
        assert jnp.allclose(got, ref, atol=2e-3, rtol=2e-3)

    # Loose check: kernel vs. the full-f32 PyTorch-equivalent math
    # (only difference is bf16 weight/activation quantization).
    fb, fm, fl, fp = reference_forward_f32(m, z, eps, params,
                                           pred_z_steps, z_dim)
    for got, ref in ((beta, fb), (mean, fm), (logstd, fl), (pred, fp)):
        assert jnp.allclose(got, ref, atol=5e-2, rtol=5e-2)

    print("KERNEL_OK")
</pallas_src>

<mosaic_0001>
module attributes {stable_mosaic.version = 11 : i64} {
  func.func @_lbf_kernel(%arg0: i32, %arg1: memref<8x32xbf16, #tpu.memory_space<vmem>>, %arg2: memref<8x32xf32, #tpu.memory_space<vmem>>, %arg3: memref<32x4096xbf16, #tpu.memory_space<vmem>>, %arg4: memref<1x4096xbf16, #tpu.memory_space<vmem>>, %arg5: memref<4096x64xbf16, #tpu.memory_space<vmem>>, %arg6: memref<1x64xbf16, #tpu.memory_space<vmem>>, %arg7: memref<32x4096xbf16, #tpu.memory_space<vmem>>, %arg8: memref<1x4096xbf16, #tpu.memory_space<vmem>>, %arg9: memref<4096x64xbf16, #tpu.memory_space<vmem>>, %arg10: memref<1x64xbf16, #tpu.memory_space<vmem>>, %arg11: memref<8x32xf32, #tpu.memory_space<vmem>>, %arg12: memref<8x32xf32, #tpu.memory_space<vmem>>, %arg13: memref<8x32xf32, #tpu.memory_space<vmem>>, %arg14: memref<8x64xf32, #tpu.memory_space<vmem>>) attributes {dimension_semantics = [#tpu.dimension_semantics<arbitrary>], iteration_bounds = array<i64: 1>, scalar_prefetch = 0 : i64, scratch_operands = 0 : i64, tpu.core_type = #tpu.core_type<tc>, window_params = [{pipeline_mode = #tpu.pipeline_mode<synchronous>, transform_indices = @transform_0, window_bounds = array<i64: 8, 32>}, {pipeline_mode = #tpu.pipeline_mode<synchronous>, transform_indices = @transform_1, window_bounds = array<i64: 8, 32>}, {pipeline_mode = #tpu.pipeline_mode<synchronous>, transform_indices = @transform_2, window_bounds = array<i64: 32, 4096>}, {pipeline_mode = #tpu.pipeline_mode<synchronous>, transform_indices = @transform_3, window_bounds = array<i64: 1, 4096>}, {pipeline_mode = #tpu.pipeline_mode<synchronous>, transform_indices = @transform_4, window_bounds = array<i64: 4096, 64>}, {pipeline_mode = #tpu.pipeline_mode<synchronous>, transform_indices = @transform_5, window_bounds = array<i64: 1, 64>}, {pipeline_mode = #tpu.pipeline_mode<synchronous>, transform_indices = @transform_6, window_bounds = array<i64: 32, 4096>}, {pipeline_mode = #tpu.pipeline_mode<synchronous>, transform_indices = @transform_7, window_bounds = array<i64: 1, 4096>}, {pipeline_mode = #tpu.pipeline_mode<synchronous>, transform_indices = @transform_8, window_bounds = array<i64: 4096, 64>}, {pipeline_mode = #tpu.pipeline_mode<synchronous>, transform_indices = @transform_9, window_bounds = array<i64: 1, 64>}, {pipeline_mode = #tpu.pipeline_mode<synchronous>, transform_indices = @transform_10, window_bounds = array<i64: 8, 32>}, {pipeline_mode = #tpu.pipeline_mode<synchronous>, transform_indices = @transform_11, window_bounds = array<i64: 8, 32>}, {pipeline_mode = #tpu.pipeline_mode<synchronous>, transform_indices = @transform_12, window_bounds = array<i64: 8, 32>}, {pipeline_mode = #tpu.pipeline_mode<synchronous>, transform_indices = @transform_13, window_bounds = array<i64: 8, 64>}]} {
    %c0 = arith.constant 0 : index
    %c0_0 = arith.constant 0 : index
    %0 = vector.load %arg1[%c0, %c0_0] : memref<8x32xbf16, #tpu.memory_space<vmem>>, vector<8x32xbf16>
    %c0_1 = arith.constant 0 : index
    %c0_2 = arith.constant 0 : index
    %1 = vector.load %arg3[%c0_1, %c0_2] : memref<32x4096xbf16, #tpu.memory_space<vmem>>, vector<32x4096xbf16>
    %cst = arith.constant dense<0.000000e+00> : vector<8x4096xf32>
    %2 = tpu.matmul %0, %1, %cst {dimension_numbers = #tpu.dot_dimension_numbers<[1], [0], [0], [1], [0, 0, 1, 1], [], []>} : vector<8x32xbf16>, vector<32x4096xbf16>, vector<8x4096xf32> -> vector<8x4096xf32>
    %c0_3 = arith.constant 0 : index
    %c0_4 = arith.constant 0 : index
    %3 = vector.load %arg4[%c0_3, %c0_4] : memref<1x4096xbf16, #tpu.memory_space<vmem>>, vector<1x4096xbf16>
    %4 = arith.extf %3 : vector<1x4096xbf16> to vector<1x4096xf32>
    %5 = vector.broadcast %4 : vector<1x4096xf32> to vector<8x4096xf32>
    %6 = arith.addf %2, %5 : vector<8x4096xf32>
    %cst_5 = arith.constant 0.000000e+00 : f32
    %7 = vector.broadcast %cst_5 : f32 to vector<8x4096xf32>
    %8 = arith.maximumf %6, %7 : vector<8x4096xf32>
    %9 = arith.truncf %8 : vector<8x4096xf32> to vector<8x4096xbf16>
    %c0_6 = arith.constant 0 : index
    %c0_7 = arith.constant 0 : index
    %10 = vector.load %arg5[%c0_6, %c0_7] : memref<4096x64xbf16, #tpu.memory_space<vmem>>, vector<4096x64xbf16>
    %cst_8 = arith.constant dense<0.000000e+00> : vector<8x64xf32>
    %11 = tpu.matmul %9, %10, %cst_8 {dimension_numbers = #tpu.dot_dimension_numbers<[1], [0], [0], [1], [0, 0, 1, 1], [], []>} : vector<8x4096xbf16>, vector<4096x64xbf16>, vector<8x64xf32> -> vector<8x64xf32>
    %c0_9 = arith.constant 0 : index
    %c0_10 = arith.constant 0 : index
    %12 = vector.load %arg6[%c0_9, %c0_10] : memref<1x64xbf16, #tpu.memory_space<vmem>>, vector<1x64xbf16>
    %13 = arith.extf %12 : vector<1x64xbf16> to vector<1x64xf32>
    %14 = vector.broadcast %13 : vector<1x64xf32> to vector<8x64xf32>
    %15 = arith.addf %11, %14 : vector<8x64xf32>
    %16 = vector.extract_strided_slice %15 {offsets = [0, 0], sizes = [8, 32], strides = [1, 1]} : vector<8x64xf32> to vector<8x32xf32>
    %17 = vector.extract_strided_slice %15 {offsets = [0, 32], sizes = [8, 32], strides = [1, 1]} : vector<8x64xf32> to vector<8x32xf32>
    %18 = math.exp %17 : vector<8x32xf32>
    %c0_11 = arith.constant 0 : index
    %c0_12 = arith.constant 0 : index
    %19 = vector.load %arg2[%c0_11, %c0_12] : memref<8x32xf32, #tpu.memory_space<vmem>>, vector<8x32xf32>
    %20 = arith.mulf %18, %19 : vector<8x32xf32>
    %21 = arith.addf %16, %20 : vector<8x32xf32>
    %c0_13 = arith.constant 0 : index
    %c0_14 = arith.constant 0 : index
    %22 = vector.load %arg12[%c0_13, %c0_14] : memref<8x32xf32, #tpu.memory_space<vmem>>, vector<8x32xf32>
    tpu.vector_store %arg12[%c0_13, %c0_14], %16 {strides = array<i32>} : memref<8x32xf32, #tpu.memory_space<vmem>>, vector<8x32xf32>,
    %c0_15 = arith.constant 0 : index
    %c0_16 = arith.constant 0 : index
    %23 = vector.load %arg13[%c0_15, %c0_16] : memref<8x32xf32, #tpu.memory_space<vmem>>, vector<8x32xf32>
    tpu.vector_store %arg13[%c0_15, %c0_16], %17 {strides = array<i32>} : memref<8x32xf32, #tpu.memory_space<vmem>>, vector<8x32xf32>,
    %c0_17 = arith.constant 0 : index
    %c0_18 = arith.constant 0 : index
    %24 = vector.load %arg11[%c0_17, %c0_18] : memref<8x32xf32, #tpu.memory_space<vmem>>, vector<8x32xf32>
    tpu.vector_store %arg11[%c0_17, %c0_18], %21 {strides = array<i32>} : memref<8x32xf32, #tpu.memory_space<vmem>>, vector<8x32xf32>,
    %25 = arith.truncf %21 : vector<8x32xf32> to vector<8x32xbf16>
    %c0_19 = arith.constant 0 : index
    %c0_20 = arith.constant 0 : index
    %26 = vector.load %arg7[%c0_19, %c0_20] : memref<32x4096xbf16, #tpu.memory_space<vmem>>, vector<32x4096xbf16>
    %cst_21 = arith.constant dense<0.000000e+00> : vector<8x4096xf32>
    %27 = tpu.matmul %25, %26, %cst_21 {dimension_numbers = #tpu.dot_dimension_numbers<[1], [0], [0], [1], [0, 0, 1, 1], [], []>} : vector<8x32xbf16>, vector<32x4096xbf16>, vector<8x4096xf32> -> vector<8x4096xf32>
    %c0_22 = arith.constant 0 : index
    %c0_23 = arith.constant 0 : index
    %28 = vector.load %arg8[%c0_22, %c0_23] : memref<1x4096xbf16, #tpu.memory_space<vmem>>, vector<1x4096xbf16>
    %29 = arith.extf %28 : vector<1x4096xbf16> to vector<1x4096xf32>
    %30 = vector.broadcast %29 : vector<1x4096xf32> to vector<8x4096xf32>
    %31 = arith.addf %27, %30 : vector<8x4096xf32>
    %cst_24 = arith.constant 0.000000e+00 : f32
    %32 = vector.broadcast %cst_24 : f32 to vector<8x4096xf32>
    %33 = arith.maximumf %31, %32 : vector<8x4096xf32>
    %34 = arith.truncf %33 : vector<8x4096xf32> to vector<8x4096xbf16>
    %c0_25 = arith.constant 0 : index
    %c0_26 = arith.constant 0 : index
    %35 = vector.load %arg9[%c0_25, %c0_26] : memref<4096x64xbf16, #tpu.memory_space<vmem>>, vector<4096x64xbf16>
    %cst_27 = arith.constant dense<0.000000e+00> : vector<8x64xf32>
    %36 = tpu.matmul %34, %35, %cst_27 {dimension_numbers = #tpu.dot_dimension_numbers<[1], [0], [0], [1], [0, 0, 1, 1], [], []>} : vector<8x4096xbf16>, vector<4096x64xbf16>, vector<8x64xf32> -> vector<8x64xf32>
    %c0_28 = arith.constant 0 : index
    %c0_29 = arith.constant 0 : index
    %37 = vector.load %arg10[%c0_28, %c0_29] : memref<1x64xbf16, #tpu.memory_space<vmem>>, vector<1x64xbf16>
    %38 = arith.extf %37 : vector<1x64xbf16> to vector<1x64xf32>
    %39 = vector.broadcast %38 : vector<1x64xf32> to vector<8x64xf32>
    %40 = arith.addf %36, %39 : vector<8x64xf32>
    %c0_30 = arith.constant 0 : index
    %c0_31 = arith.constant 0 : index
    %41 = vector.load %arg14[%c0_30, %c0_31] : memref<8x64xf32, #tpu.memory_space<vmem>>, vector<8x64xf32>
    tpu.vector_store %arg14[%c0_30, %c0_31], %40 {strides = array<i32>} : memref<8x64xf32, #tpu.memory_space<vmem>>, vector<8x64xf32>,
    return
  }
  func.func @transform_0(%arg0: i32) -> (i32, i32) {
    %c0_i32 = arith.constant 0 : i32
    %c0_i32_0 = arith.constant 0 : i32
    %c0_i32_1 = arith.constant 0 : i32
    return %c0_i32, %c0_i32_0 : i32, i32
  }
  func.func @transform_1(%arg0: i32) -> (i32, i32) {
    %c0_i32 = arith.constant 0 : i32
    %c0_i32_0 = arith.constant 0 : i32
    %c0_i32_1 = arith.constant 0 : i32
    return %c0_i32, %c0_i32_0 : i32, i32
  }
  func.func @transform_2(%arg0: i32) -> (i32, i32) {
    %c0_i32 = arith.constant 0 : i32
    %c0_i32_0 = arith.constant 0 : i32
    %c0_i32_1 = arith.constant 0 : i32
    return %c0_i32, %c0_i32_0 : i32, i32
  }
  func.func @transform_3(%arg0: i32) -> (i32, i32) {
    %c0_i32 = arith.constant 0 : i32
    %c0_i32_0 = arith.constant 0 : i32
    %c0_i32_1 = arith.constant 0 : i32
    return %c0_i32, %c0_i32_0 : i32, i32
  }
  func.func @transform_4(%arg0: i32) -> (i32, i32) {
    %c0_i32 = arith.constant 0 : i32
    %c0_i32_0 = arith.constant 0 : i32
    %c0_i32_1 = arith.constant 0 : i32
    return %c0_i32, %c0_i32_0 : i32, i32
  }
  func.func @transform_5(%arg0: i32) -> (i32, i32) {
    %c0_i32 = arith.constant 0 : i32
    %c0_i32_0 = arith.constant 0 : i32
    %c0_i32_1 = arith.constant 0 : i32
    return %c0_i32, %c0_i32_0 : i32, i32
  }
  func.func @transform_6(%arg0: i32) -> (i32, i32) {
    %c0_i32 = arith.constant 0 : i32
    %c0_i32_0 = arith.constant 0 : i32
    %c0_i32_1 = arith.constant 0 : i32
    return %c0_i32, %c0_i32_0 : i32, i32
  }
  func.func @transform_7(%arg0: i32) -> (i32, i32) {
    %c0_i32 = arith.constant 0 : i32
    %c0_i32_0 = arith.constant 0 : i32
    %c0_i32_1 = arith.constant 0 : i32
    return %c0_i32, %c0_i32_0 : i32, i32
  }
  func.func @transform_8(%arg0: i32) -> (i32, i32) {
    %c0_i32 = arith.constant 0 : i32
    %c0_i32_0 = arith.constant 0 : i32
    %c0_i32_1 = arith.constant 0 : i32
    return %c0_i32, %c0_i32_0 : i32, i32
  }
  func.func @transform_9(%arg0: i32) -> (i32, i32) {
    %c0_i32 = arith.constant 0 : i32
    %c0_i32_0 = arith.constant 0 : i32
    %c0_i32_1 = arith.constant 0 : i32
    return %c0_i32, %c0_i32_0 : i32, i32
  }
  func.func @transform_10(%arg0: i32) -> (i32, i32) {
    %c0_i32 = arith.constant 0 : i32
    %c0_i32_0 = arith.constant 0 : i32
    %c0_i32_1 = arith.constant 0 : i32
    return %c0_i32, %c0_i32_0 : i32, i32
  }
  func.func @transform_11(%arg0: i32) -> (i32, i32) {
    %c0_i32 = arith.constant 0 : i32
    %c0_i32_0 = arith.constant 0 : i32
    %c0_i32_1 = arith.constant 0 : i32
    return %c0_i32, %c0_i32_0 : i32, i32
  }
  func.func @transform_12(%arg0: i32) -> (i32, i32) {
    %c0_i32 = arith.constant 0 : i32
    %c0_i32_0 = arith.constant 0 : i32
    %c0_i32_1 = arith.constant 0 : i32
    return %c0_i32, %c0_i32_0 : i32, i32
  }
  func.func @transform_13(%arg0: i32) -> (i32, i32) {
    %c0_i32 = arith.constant 0 : i32
    %c0_i32_0 = arith.constant 0 : i32
    %c0_i32_1 = arith.constant 0 : i32
    return %c0_i32, %c0_i32_0 : i32, i32
  }
}

</mosaic_0001>

<llo_original>
// kernel: tpu_custom_call.1
$region0: #{tpu_custom_call.1}
  #allocation0 [shape = 'u32[]', space=smem, size = 0x4, offset = 0x4, fixed_abs, tag = 'smem constant byte address 0x4 - core index']
  #allocation1 [shape = 'u32[144,128]{1,0:T(1,128)}', space=vmem, size = 0x12000, scoped, tag = 'internal scratch']
  %s0 = inlined_call_operand.vmem [shape: bf16[8,32], index: 0, kind: input, shape index: {}]
  %s1 = inlined_call_operand.vmem [shape: f32[8,32], index: 1, kind: input, shape index: {}]
  %s2 = inlined_call_operand.vmem [shape: bf16[32,4096], index: 2, kind: input, shape index: {}]
  %s3 = inlined_call_operand.vmem [shape: bf16[1,4096], index: 3, kind: input, shape index: {}]
  %s4 = inlined_call_operand.vmem [shape: bf16[4096,64], index: 4, kind: input, shape index: {}]
  %s5 = inlined_call_operand.vmem [shape: bf16[1,64], index: 5, kind: input, shape index: {}]
  %s6 = inlined_call_operand.vmem [shape: bf16[32,4096], index: 6, kind: input, shape index: {}]
  %s7 = inlined_call_operand.vmem [shape: bf16[1,4096], index: 7, kind: input, shape index: {}]
  %s8 = inlined_call_operand.vmem [shape: bf16[4096,64], index: 8, kind: input, shape index: {}]
  %s9 = inlined_call_operand.vmem [shape: bf16[1,64], index: 9, kind: input, shape index: {}]
  %s10 = inlined_call_operand.hbm [shape: f32[8,32], index: 10, kind: output, shape index: {0}]
  %s11 = inlined_call_operand.hbm [shape: f32[8,32], index: 11, kind: output, shape index: {1}]
  %s12 = inlined_call_operand.hbm [shape: f32[8,32], index: 12, kind: output, shape index: {2}]
  %s13 = inlined_call_operand.hbm [shape: f32[8,64], index: 13, kind: output, shape index: {3}]
  %14 = xla_tuple %s10, %s11, %s12, %s13
  %s15 = sld [smem:[#allocation0]]
  $region74: #{tpu_custom_call.1} parent=0
    _
  %s17 = ssub.s32 1, %s15
  %s18 = scalar_select 0, %s17, %s15
  $region1: #{tpu_custom_call.1} parent=0
    #allocation2 [shape = 'u8[4096]{0}', space=vmem, size = 0x1000, scoped, tag = 'output window, operand 0, single buffered']
    #allocation3 [shape = 's32[1]{0}', space=sflag, size = 0x4, scoped, tag = 'scoped memory for tpu_custom_call.1']
    #allocation4 [shape = 'u8[4096]{0}', space=vmem, size = 0x1000, scoped, tag = 'output window, operand 1, single buffered']
    #allocation5 [shape = 's32[1]{0}', space=sflag, size = 0x4, scoped, tag = 'scoped memory for tpu_custom_call.1']
    #allocation6 [shape = 'u8[4096]{0}', space=vmem, size = 0x1000, scoped, tag = 'output window, operand 2, single buffered']
    #allocation7 [shape = 'u8[4096]{0}', space=vmem, size = 0x1000, scoped, tag = 'output window, operand 3, single buffered']
    #allocation8 [shape = 's32[1]{0}', space=sflag, size = 0x4, scoped, tag = 'scoped memory for tpu_custom_call.1']
    %19 = vsyncpa [#allocation3], 0
    %20 = vsyncpa [#allocation5], 0
    %21 = vsyncpa [#allocation8], 0
    // Predicated region
    $region2: #{tpu_custom_call.1} parent=1 // pred_check
      _
    $region3: #{tpu_custom_call.1} parent=1 // pred_check_branch
      %23 = sbr.rel (0) target = $region5
    $region4: #{tpu_custom_call.1} parent=1 // pred_region
      _
    $region5: #{tpu_custom_call.1} parent=1 // pred_fallthru
      _
    // Predicated region
    $region6: #{tpu_custom_call.1} parent=1 // pred_check
      _
    $region7: #{tpu_custom_call.1} parent=1 // pred_check_branch
      %25 = sbr.rel (0) target = $region9
    $region8: #{tpu_custom_call.1} parent=1 // pred_region
      _
    $region9: #{tpu_custom_call.1} parent=1 // pred_fallthru
      _
    // Predicated region
    $region10: #{tpu_custom_call.1} parent=1 // pred_check
      _
    $region11: #{tpu_custom_call.1} parent=1 // pred_check_branch
      %27 = sbr.rel (0) target = $region13
    $region12: #{tpu_custom_call.1} parent=1 // pred_region
      _
    $region13: #{tpu_custom_call.1} parent=1 // pred_fallthru
      _
    // Predicated region
    $region14: #{tpu_custom_call.1} parent=1 // pred_check
      _
    $region15: #{tpu_custom_call.1} parent=1 // pred_check_branch
      %29 = sbr.rel (0) target = $region17
    $region16: #{tpu_custom_call.1} parent=1 // pred_region
      _
    $region17: #{tpu_custom_call.1} parent=1 // pred_fallthru
      _
    // Predicated region
    $region18: #{tpu_custom_call.1} parent=1 // pred_check
      _
    $region19: #{tpu_custom_call.1} parent=1 // pred_check_branch
      %31 = sbr.rel (0) target = $region21
    $region20: #{tpu_custom_call.1} parent=1 // pred_region
      _
    $region21: #{tpu_custom_call.1} parent=1 // pred_fallthru
      _
    // Predicated region
    $region22: #{tpu_custom_call.1} parent=1 // pred_check
      _
    $region23: #{tpu_custom_call.1} parent=1 // pred_check_branch
      %33 = sbr.rel (0) target = $region25
    $region24: #{tpu_custom_call.1} parent=1 // pred_region
      _
    $region25: #{tpu_custom_call.1} parent=1 // pred_fallthru
      _
    // Predicated region
    $region26: #{tpu_custom_call.1} parent=1 // pred_check
      _
    $region27: #{tpu_custom_call.1} parent=1 // pred_check_branch
      %35 = sbr.rel (0) target = $region29
    $region28: #{tpu_custom_call.1} parent=1 // pred_region
      _
    $region29: #{tpu_custom_call.1} parent=1 // pred_fallthru
      _
    // Predicated region
    $region30: #{tpu_custom_call.1} parent=1 // pred_check
      _
    $region31: #{tpu_custom_call.1} parent=1 // pred_check_branch
      %37 = sbr.rel (0) target = $region33
    $region32: #{tpu_custom_call.1} parent=1 // pred_region
      _
    $region33: #{tpu_custom_call.1} parent=1 // pred_fallthru
      _
    // Predicated region
    $region34: #{tpu_custom_call.1} parent=1 // pred_check
      _
    $region35: #{tpu_custom_call.1} parent=1 // pred_check_branch
      %39 = sbr.rel (0) target = $region37
    $region36: #{tpu_custom_call.1} parent=1 // pred_region
      _
    $region37: #{tpu_custom_call.1} parent=1 // pred_fallthru
      _
    // Predicated region
    $region38: #{tpu_custom_call.1} parent=1 // pred_check
      _
    $region39: #{tpu_custom_call.1} parent=1 // pred_check_branch
      %41 = sbr.rel (0) target = $region41
    $region40: #{tpu_custom_call.1} parent=1 // pred_region
      _
    $region41: #{tpu_custom_call.1} parent=1 // pred_fallthru
      _
    %v43 = vld [vmem:[%s0] sm:$0xf]
    %v44 = vld [vmem:[%s2] sm:$0xff]
    %v45 = vld [vmem:[%s2 + $0x8] sm:$0xff]
    %v46 = vld [vmem:[%s2 + $0x10] sm:$0xff]
    %v47 = vld [vmem:[%s2 + $0x18] sm:$0xff]
    %v48 = vld [vmem:[%s2 + $0x20] sm:$0xff]
    %v49 = vld [vmem:[%s2 + $0x28] sm:$0xff]
    %v50 = vld [vmem:[%s2 + $0x30] sm:$0xff]
    %v51 = vld [vmem:[%s2 + $0x38] sm:$0xff]
    %v52 = vld [vmem:[%s2 + $0x40] sm:$0xff]
    %v53 = vld [vmem:[%s2 + $0x48] sm:$0xff]
    %v54 = vld [vmem:[%s2 + $0x50] sm:$0xff]
    %v55 = vld [vmem:[%s2 + $0x58] sm:$0xff]
    %v56 = vld [vmem:[%s2 + $0x60] sm:$0xff]
    %v57 = vld [vmem:[%s2 + $0x68] sm:$0xff]
    %v58 = vld [vmem:[%s2 + $0x70] sm:$0xff]
    %v59 = vld [vmem:[%s2 + $0x78] sm:$0xff]
    %v60 = vld [vmem:[%s2 + $0x80] sm:$0xff]
    %v61 = vld [vmem:[%s2 + $0x88] sm:$0xff]
    %v62 = vld [vmem:[%s2 + $0x90] sm:$0xff]
    %v63 = vld [vmem:[%s2 + $0x98] sm:$0xff]
    %v64 = vld [vmem:[%s2 + $0xa0] sm:$0xff]
    %v65 = vld [vmem:[%s2 + $0xa8] sm:$0xff]
    %v66 = vld [vmem:[%s2 + $0xb0] sm:$0xff]
    %v67 = vld [vmem:[%s2 + $0xb8] sm:$0xff]
    %v68 = vld [vmem:[%s2 + $0xc0] sm:$0xff]
    %v69 = vld [vmem:[%s2 + $0xc8] sm:$0xff]
    %v70 = vld [vmem:[%s2 + $0xd0] sm:$0xff]
    %v71 = vld [vmem:[%s2 + $0xd8] sm:$0xff]
    %v72 = vld [vmem:[%s2 + $0xe0] sm:$0xff]
    %v73 = vld [vmem:[%s2 + $0xe8] sm:$0xff]
    %v74 = vld [vmem:[%s2 + $0xf0] sm:$0xff]
    %v75 = vld [vmem:[%s2 + $0xf8] sm:$0xff]
    %v76 = vld [vmem:[%s2 + $0x100] sm:$0xff]
    %v77 = vld [vmem:[%s2 + $0x108] sm:$0xff]
    %v78 = vld [vmem:[%s2 + $0x110] sm:$0xff]
    %v79 = vld [vmem:[%s2 + $0x118] sm:$0xff]
    %v80 = vld [vmem:[%s2 + $0x120] sm:$0xff]
    %v81 = vld [vmem:[%s2 + $0x128] sm:$0xff]
    %v82 = vld [vmem:[%s2 + $0x130] sm:$0xff]
    %v83 = vld [vmem:[%s2 + $0x138] sm:$0xff]
    %v84 = vld [vmem:[%s2 + $0x140] sm:$0xff]
    %v85 = vld [vmem:[%s2 + $0x148] sm:$0xff]
    %v86 = vld [vmem:[%s2 + $0x150] sm:$0xff]
    %v87 = vld [vmem:[%s2 + $0x158] sm:$0xff]
    %v88 = vld [vmem:[%s2 + $0x160] sm:$0xff]
    %v89 = vld [vmem:[%s2 + $0x168] sm:$0xff]
    %v90 = vld [vmem:[%s2 + $0x170] sm:$0xff]
    %v91 = vld [vmem:[%s2 + $0x178] sm:$0xff]
    %v92 = vld [vmem:[%s2 + $0x180] sm:$0xff]
    %v93 = vld [vmem:[%s2 + $0x188] sm:$0xff]
    %v94 = vld [vmem:[%s2 + $0x190] sm:$0xff]
    %v95 = vld [vmem:[%s2 + $0x198] sm:$0xff]
    %v96 = vld [vmem:[%s2 + $0x1a0] sm:$0xff]
    %v97 = vld [vmem:[%s2 + $0x1a8] sm:$0xff]
    %v98 = vld [vmem:[%s2 + $0x1b0] sm:$0xff]
    %v99 = vld [vmem:[%s2 + $0x1b8] sm:$0xff]
    %v100 = vld [vmem:[%s2 + $0x1c0] sm:$0xff]
    %v101 = vld [vmem:[%s2 + $0x1c8] sm:$0xff]
    %v102 = vld [vmem:[%s2 + $0x1d0] sm:$0xff]
    %v103 = vld [vmem:[%s2 + $0x1d8] sm:$0xff]
    %v104 = vld [vmem:[%s2 + $0x1e0] sm:$0xff]
    %v105 = vld [vmem:[%s2 + $0x1e8] sm:$0xff]
    %v106 = vld [vmem:[%s2 + $0x1f0] sm:$0xff]
    %v107 = vld [vmem:[%s2 + $0x1f8] sm:$0xff]
    %v108 = vld [vmem:[%s3] sm:$0xff]
    %v109 = vld [vmem:[%s3 + $0x8] sm:$0xff]
    %v110 = vld [vmem:[%s3 + $0x10] sm:$0xff]
    %v111 = vld [vmem:[%s3 + $0x18] sm:$0xff]
    %v112 = vunpack.c.l.bf16 %v108
    %v113 = vunpack.c.h.bf16 %v108
    %v114 = vunpack.c.l.bf16 %v109
    %v115 = vunpack.c.h.bf16 %v109
    %v116 = vunpack.c.l.bf16 %v110
    %v117 = vunpack.c.h.bf16 %v110
    %v118 = vunpack.c.l.bf16 %v111
    %v119 = vunpack.c.h.bf16 %v111
    %v128 = vlaneseq
    %v129 = vshrl.u32 %v128, 7
    %v130 = vsub.s32 0, %v129
    %v131 = vrot.slane %v112, %v130
    %v132 = vlaneseq
    %v133 = vshrl.u32 %v132, 7
    %v134 = vsub.s32 2, %v133
    %v135 = vrot.slane %v112, %v134
    %v136 = vlaneseq
    %v137 = vshrl.u32 %v136, 7
    %v138 = vsub.s32 4, %v137
    %v139 = vrot.slane %v112, %v138
    %v140 = vlaneseq
    %v141 = vshrl.u32 %v140, 7
    %v142 = vsub.s32 6, %v141
    %v143 = vrot.slane %v112, %v142
    %v144 = vlaneseq
    %v145 = vshrl.u32 %v144, 7
    %v146 = vsub.s32 0, %v145
    %v147 = vrot.slane %v113, %v146
    %v148 = vlaneseq
    %v149 = vshrl.u32 %v148, 7
    %v150 = vsub.s32 2, %v149
    %v151 = vrot.slane %v113, %v150
    %v152 = vlaneseq
    %v153 = vshrl.u32 %v152, 7
    %v154 = vsub.s32 4, %v153
    %v155 = vrot.slane %v113, %v154
    %v156 = vlaneseq
    %v157 = vshrl.u32 %v156, 7
    %v158 = vsub.s32 6, %v157
    %v159 = vrot.slane %v113, %v158
    %v160 = vlaneseq
    %v161 = vshrl.u32 %v160, 7
    %v162 = vsub.s32 0, %v161
    %v163 = vrot.slane %v114, %v162
    %v164 = vlaneseq
    %v165 = vshrl.u32 %v164, 7
    %v166 = vsub.s32 2, %v165
    %v167 = vrot.slane %v114, %v166
    %v168 = vlaneseq
    %v169 = vshrl.u32 %v168, 7
    %v170 = vsub.s32 4, %v169
    %v171 = vrot.slane %v114, %v170
    %v172 = vlaneseq
    %v173 = vshrl.u32 %v172, 7
    %v174 = vsub.s32 6, %v173
    %v175 = vrot.slane %v114, %v174
    %v176 = vlaneseq
    %v177 = vshrl.u32 %v176, 7
    %v178 = vsub.s32 0, %v177
    %v179 = vrot.slane %v115, %v178
    %v180 = vlaneseq
    %v181 = vshrl.u32 %v180, 7
    %v182 = vsub.s32 2, %v181
    %v183 = vrot.slane %v115, %v182
    %v184 = vlaneseq
    %v185 = vshrl.u32 %v184, 7
    %v186 = vsub.s32 4, %v185
    %v187 = vrot.slane %v115, %v186
    %v188 = vlaneseq
    %v189 = vshrl.u32 %v188, 7
    %v190 = vsub.s32 6, %v189
    %v191 = vrot.slane %v115, %v190
    %v192 = vlaneseq
    %v193 = vshrl.u32 %v192, 7
    %v194 = vsub.s32 0, %v193
    %v195 = vrot.slane %v116, %v194
    %v196 = vlaneseq
    %v197 = vshrl.u32 %v196, 7
    %v198 = vsub.s32 2, %v197
    %v199 = vrot.slane %v116, %v198
    %v200 = vlaneseq
    %v201 = vshrl.u32 %v200, 7
    %v202 = vsub.s32 4, %v201
    %v203 = vrot.slane %v116, %v202
    %v204 = vlaneseq
    %v205 = vshrl.u32 %v204, 7
    %v206 = vsub.s32 6, %v205
    %v207 = vrot.slane %v116, %v206
    %v208 = vlaneseq
    %v209 = vshrl.u32 %v208, 7
    %v210 = vsub.s32 0, %v209
    %v211 = vrot.slane %v117, %v210
    %v212 = vlaneseq
    %v213 = vshrl.u32 %v212, 7
    %v214 = vsub.s32 2, %v213
    %v215 = vrot.slane %v117, %v214
    %v216 = vlaneseq
    %v217 = vshrl.u32 %v216, 7
    %v218 = vsub.s32 4, %v217
    %v219 = vrot.slane %v117, %v218
    %v220 = vlaneseq
    %v221 = vshrl.u32 %v220, 7
    %v222 = vsub.s32 6, %v221
    %v223 = vrot.slane %v117, %v222
    %v224 = vlaneseq
    %v225 = vshrl.u32 %v224, 7
    %v226 = vsub.s32 0, %v225
    %v227 = vrot.slane %v118, %v226
    %v228 = vlaneseq
    %v229 = vshrl.u32 %v228, 7
    %v230 = vsub.s32 2, %v229
    %v231 = vrot.slane %v118, %v230
    %v232 = vlaneseq
    %v233 = vshrl.u32 %v232, 7
    %v234 = vsub.s32 4, %v233
    %v235 = vrot.slane %v118, %v234
    %v236 = vlaneseq
    %v237 = vshrl.u32 %v236, 7
    %v238 = vsub.s32 6, %v237
    %v239 = vrot.slane %v118, %v238
    %v240 = vlaneseq
    %v241 = vshrl.u32 %v240, 7
    %v242 = vsub.s32 0, %v241
    %v243 = vrot.slane %v119, %v242
    %v244 = vlaneseq
    %v245 = vshrl.u32 %v244, 7
    %v246 = vsub.s32 2, %v245
    %v247 = vrot.slane %v119, %v246
    %v248 = vlaneseq
    %v249 = vshrl.u32 %v248, 7
    %v250 = vsub.s32 4, %v249
    %v251 = vrot.slane %v119, %v250
    %v252 = vlaneseq
    %v253 = vshrl.u32 %v252, 7
    %v254 = vsub.s32 6, %v253
    %v255 = vrot.slane %v119, %v254
    %v288 = vlaneseq
    %v289 = vshrl.u32 %v288, 7
    %v290 = vsub.s32 0, %v289
    %v291 = vrot.slane %v131, %v290
    %v292 = vlaneseq
    %v293 = vshrl.u32 %v292, 7
    %v294 = vsub.s32 0, %v293
    %v295 = vrot.slane %v135, %v294
    %v296 = vlaneseq
    %v297 = vshrl.u32 %v296, 7
    %v298 = vsub.s32 0, %v297
    %v299 = vrot.slane %v139, %v298
    %v300 = vlaneseq
    %v301 = vshrl.u32 %v300, 7
    %v302 = vsub.s32 0, %v301
    %v303 = vrot.slane %v143, %v302
    %v304 = vlaneseq
    %v305 = vshrl.u32 %v304, 7
    %v306 = vsub.s32 0, %v305
    %v307 = vrot.slane %v147, %v306
    %v308 = vlaneseq
    %v309 = vshrl.u32 %v308, 7
    %v310 = vsub.s32 0, %v309
    %v311 = vrot.slane %v151, %v310
    %v312 = vlaneseq
    %v313 = vshrl.u32 %v312, 7
    %v314 = vsub.s32 0, %v313
    %v315 = vrot.slane %v155, %v314
    %v316 = vlaneseq
    %v317 = vshrl.u32 %v316, 7
    %v318 = vsub.s32 0, %v317
    %v319 = vrot.slane %v159, %v318
    %v320 = vlaneseq
    %v321 = vshrl.u32 %v320, 7
    %v322 = vsub.s32 0, %v321
    %v323 = vrot.slane %v163, %v322
    %v324 = vlaneseq
    %v325 = vshrl.u32 %v324, 7
    %v326 = vsub.s32 0, %v325
    %v327 = vrot.slane %v167, %v326
    %v328 = vlaneseq
    %v329 = vshrl.u32 %v328, 7
    %v330 = vsub.s32 0, %v329
    %v331 = vrot.slane %v171, %v330
    %v332 = vlaneseq
    %v333 = vshrl.u32 %v332, 7
    %v334 = vsub.s32 0, %v333
    %v335 = vrot.slane %v175, %v334
    %v336 = vlaneseq
    %v337 = vshrl.u32 %v336, 7
    %v338 = vsub.s32 0, %v337
    %v339 = vrot.slane %v179, %v338
    %v340 = vlaneseq
    %v341 = vshrl.u32 %v340, 7
    %v342 = vsub.s32 0, %v341
    %v343 = vrot.slane %v183, %v342
    %v344 = vlaneseq
    %v345 = vshrl.u32 %v344, 7
    %v346 = vsub.s32 0, %v345
    %v347 = vrot.slane %v187, %v346
    %v348 = vlaneseq
    %v349 = vshrl.u32 %v348, 7
    %v350 = vsub.s32 0, %v349
    %v351 = vrot.slane %v191, %v350
    %v352 = vlaneseq
    %v353 = vshrl.u32 %v352, 7
    %v354 = vsub.s32 0, %v353
    %v355 = vrot.slane %v195, %v354
    %v356 = vlaneseq
    %v357 = vshrl.u32 %v356, 7
    %v358 = vsub.s32 0, %v357
    %v359 = vrot.slane %v199, %v358
    %v360 = vlaneseq
    %v361 = vshrl.u32 %v360, 7
    %v362 = vsub.s32 0, %v361
    %v363 = vrot.slane %v203, %v362
    %v364 = vlaneseq
    %v365 = vshrl.u32 %v364, 7
    %v366 = vsub.s32 0, %v365
    %v367 = vrot.slane %v207, %v366
    %v368 = vlaneseq
    %v369 = vshrl.u32 %v368, 7
    %v370 = vsub.s32 0, %v369
    %v371 = vrot.slane %v211, %v370
    %v372 = vlaneseq
    %v373 = vshrl.u32 %v372, 7
    %v374 = vsub.s32 0, %v373
    %v375 = vrot.slane %v215, %v374
    %v376 = vlaneseq
    %v377 = vshrl.u32 %v376, 7
    %v378 = vsub.s32 0, %v377
    %v379 = vrot.slane %v219, %v378
    %v380 = vlaneseq
    %v381 = vshrl.u32 %v380, 7
    %v382 = vsub.s32 0, %v381
    %v383 = vrot.slane %v223, %v382
    %v384 = vlaneseq
    %v385 = vshrl.u32 %v384, 7
    %v386 = vsub.s32 0, %v385
    %v387 = vrot.slane %v227, %v386
    %v388 = vlaneseq
    %v389 = vshrl.u32 %v388, 7
    %v390 = vsub.s32 0, %v389
    %v391 = vrot.slane %v231, %v390
    %v392 = vlaneseq
    %v393 = vshrl.u32 %v392, 7
    %v394 = vsub.s32 0, %v393
    %v395 = vrot.slane %v235, %v394
    %v396 = vlaneseq
    %v397 = vshrl.u32 %v396, 7
    %v398 = vsub.s32 0, %v397
    %v399 = vrot.slane %v239, %v398
    %v400 = vlaneseq
    %v401 = vshrl.u32 %v400, 7
    %v402 = vsub.s32 0, %v401
    %v403 = vrot.slane %v243, %v402
    %v404 = vlaneseq
    %v405 = vshrl.u32 %v404, 7
    %v406 = vsub.s32 0, %v405
    %v407 = vrot.slane %v247, %v406
    %v408 = vlaneseq
    %v409 = vshrl.u32 %v408, 7
    %v410 = vsub.s32 0, %v409
    %v411 = vrot.slane %v251, %v410
    %v412 = vlaneseq
    %v413 = vshrl.u32 %v412, 7
    %v414 = vsub.s32 0, %v413
    %v415 = vrot.slane %v255, %v414
    %v480 = vunpack.c.l.b16 %v44
    %v481 = vunpack.c.h.b16 %v44
    %v482 = vunpack.c.l.b16 %v45
    %v483 = vunpack.c.h.b16 %v45
    %v484 = vunpack.c.l.b16 %v46
    %v485 = vunpack.c.h.b16 %v46
    %v486 = vunpack.c.l.b16 %v47
    %v487 = vunpack.c.h.b16 %v47
    %v488 = vunpack.c.l.b16 %v48
    %v489 = vunpack.c.h.b16 %v48
    %v490 = vunpack.c.l.b16 %v49
    %v491 = vunpack.c.h.b16 %v49
    %v492 = vunpack.c.l.b16 %v50
    %v493 = vunpack.c.h.b16 %v50
    %v494 = vunpack.c.l.b16 %v51
    %v495 = vunpack.c.h.b16 %v51
    %v496 = vunpack.c.l.b16 %v52
    %v497 = vunpack.c.h.b16 %v52
    %v498 = vunpack.c.l.b16 %v53
    %v499 = vunpack.c.h.b16 %v53
    %v500 = vunpack.c.l.b16 %v54
    %v501 = vunpack.c.h.b16 %v54
    %v502 = vunpack.c.l.b16 %v55
    %v503 = vunpack.c.h.b16 %v55
    %v504 = vunpack.c.l.b16 %v56
    %v505 = vunpack.c.h.b16 %v56
    %v506 = vunpack.c.l.b16 %v57
    %v507 = vunpack.c.h.b16 %v57
    %v508 = vunpack.c.l.b16 %v58
    %v509 = vunpack.c.h.b16 %v58
    %v510 = vunpack.c.l.b16 %v59
    %v511 = vunpack.c.h.b16 %v59
    %v512 = vunpack.c.l.b16 %v60
    %v513 = vunpack.c.h.b16 %v60
    %v514 = vunpack.c.l.b16 %v61
    %v515 = vunpack.c.h.b16 %v61
    %v516 = vunpack.c.l.b16 %v62
    %v517 = vunpack.c.h.b16 %v62
    %v518 = vunpack.c.l.b16 %v63
    %v519 = vunpack.c.h.b16 %v63
    %v520 = vunpack.c.l.b16 %v64
    %v521 = vunpack.c.h.b16 %v64
    %v522 = vunpack.c.l.b16 %v65
    %v523 = vunpack.c.h.b16 %v65
    %v524 = vunpack.c.l.b16 %v66
    %v525 = vunpack.c.h.b16 %v66
    %v526 = vunpack.c.l.b16 %v67
    %v527 = vunpack.c.h.b16 %v67
    %v528 = vunpack.c.l.b16 %v68
    %v529 = vunpack.c.h.b16 %v68
    %v530 = vunpack.c.l.b16 %v69
    %v531 = vunpack.c.h.b16 %v69
    %v532 = vunpack.c.l.b16 %v70
    %v533 = vunpack.c.h.b16 %v70
    %v534 = vunpack.c.l.b16 %v71
    %v535 = vunpack.c.h.b16 %v71
    %v536 = vunpack.c.l.b16 %v72
    %v537 = vunpack.c.h.b16 %v72
    %v538 = vunpack.c.l.b16 %v73
    %v539 = vunpack.c.h.b16 %v73
    %v540 = vunpack.c.l.b16 %v74
    %v541 = vunpack.c.h.b16 %v74
    %v542 = vunpack.c.l.b16 %v75
    %v543 = vunpack.c.h.b16 %v75
    %v544 = vunpack.c.l.b16 %v76
    %v545 = vunpack.c.h.b16 %v76
    %v546 = vunpack.c.l.b16 %v77
    %v547 = vunpack.c.h.b16 %v77
    %v548 = vunpack.c.l.b16 %v78
    %v549 = vunpack.c.h.b16 %v78
    %v550 = vunpack.c.l.b16 %v79
    %v551 = vunpack.c.h.b16 %v79
    %v552 = vunpack.c.l.b16 %v80
    %v553 = vunpack.c.h.b16 %v80
    %v554 = vunpack.c.l.b16 %v81
    %v555 = vunpack.c.h.b16 %v81
    %v556 = vunpack.c.l.b16 %v82
    %v557 = vunpack.c.h.b16 %v82
    %v558 = vunpack.c.l.b16 %v83
    %v559 = vunpack.c.h.b16 %v83
    %v560 = vunpack.c.l.b16 %v84
    %v561 = vunpack.c.h.b16 %v84
    %v562 = vunpack.c.l.b16 %v85
    %v563 = vunpack.c.h.b16 %v85
    %v564 = vunpack.c.l.b16 %v86
    %v565 = vunpack.c.h.b16 %v86
    %v566 = vunpack.c.l.b16 %v87
    %v567 = vunpack.c.h.b16 %v87
    %v568 = vunpack.c.l.b16 %v88
    %v569 = vunpack.c.h.b16 %v88
    %v570 = vunpack.c.l.b16 %v89
    %v571 = vunpack.c.h.b16 %v89
    %v572 = vunpack.c.l.b16 %v90
    %v573 = vunpack.c.h.b16 %v90
    %v574 = vunpack.c.l.b16 %v91
    %v575 = vunpack.c.h.b16 %v91
    %v576 = vunpack.c.l.b16 %v92
    %v577 = vunpack.c.h.b16 %v92
    %v578 = vunpack.c.l.b16 %v93
    %v579 = vunpack.c.h.b16 %v93
    %v580 = vunpack.c.l.b16 %v94
    %v581 = vunpack.c.h.b16 %v94
    %v582 = vunpack.c.l.b16 %v95
    %v583 = vunpack.c.h.b16 %v95
    %v584 = vunpack.c.l.b16 %v96
    %v585 = vunpack.c.h.b16 %v96
    %v586 = vunpack.c.l.b16 %v97
    %v587 = vunpack.c.h.b16 %v97
    %v588 = vunpack.c.l.b16 %v98
    %v589 = vunpack.c.h.b16 %v98
    %v590 = vunpack.c.l.b16 %v99
    %v591 = vunpack.c.h.b16 %v99
    %v592 = vunpack.c.l.b16 %v100
    %v593 = vunpack.c.h.b16 %v100
    %v594 = vunpack.c.l.b16 %v101
    %v595 = vunpack.c.h.b16 %v101
    %v596 = vunpack.c.l.b16 %v102
    %v597 = vunpack.c.h.b16 %v102
    %v598 = vunpack.c.l.b16 %v103
    %v599 = vunpack.c.h.b16 %v103
    %v600 = vunpack.c.l.b16 %v104
    %v601 = vunpack.c.h.b16 %v104
    %v602 = vunpack.c.l.b16 %v105
    %v603 = vunpack.c.h.b16 %v105
    %v604 = vunpack.c.l.b16 %v106
    %v605 = vunpack.c.h.b16 %v106
    %v606 = vunpack.c.l.b16 %v107
    %v607 = vunpack.c.h.b16 %v107
    %v608 = vpack.c.b16 %v512, %v480
    %v609 = vpack.c.b16 %v513, %v481
    %v610 = vpack.c.b16 %v514, %v482
    %v611 = vpack.c.b16 %v515, %v483
    %v612 = vpack.c.b16 %v516, %v484
    %v613 = vpack.c.b16 %v517, %v485
    %v614 = vpack.c.b16 %v518, %v486
    %v615 = vpack.c.b16 %v519, %v487
    %v616 = vpack.c.b16 %v520, %v488
    %v617 = vpack.c.b16 %v521, %v489
    %v618 = vpack.c.b16 %v522, %v490
    %v619 = vpack.c.b16 %v523, %v491
    %v620 = vpack.c.b16 %v524, %v492
    %v621 = vpack.c.b16 %v525, %v493
    %v622 = vpack.c.b16 %v526, %v494
    %v623 = vpack.c.b16 %v527, %v495
    %v624 = vpack.c.b16 %v528, %v496
    %v625 = vpack.c.b16 %v529, %v497
    %v626 = vpack.c.b16 %v530, %v498
    %v627 = vpack.c.b16 %v531, %v499
    %v628 = vpack.c.b16 %v532, %v500
    %v629 = vpack.c.b16 %v533, %v501
    %v630 = vpack.c.b16 %v534, %v502
    %v631 = vpack.c.b16 %v535, %v503
    %v632 = vpack.c.b16 %v536, %v504
    %v633 = vpack.c.b16 %v537, %v505
    %v634 = vpack.c.b16 %v538, %v506
    %v635 = vpack.c.b16 %v539, %v507
    %v636 = vpack.c.b16 %v540, %v508
    %v637 = vpack.c.b16 %v541, %v509
    %v638 = vpack.c.b16 %v542, %v510
    %v639 = vpack.c.b16 %v543, %v511
    %v640 = vpack.c.b16 %v576, %v544
    %v641 = vpack.c.b16 %v577, %v545
    %v642 = vpack.c.b16 %v578, %v546
    %v643 = vpack.c.b16 %v579, %v547
    %v644 = vpack.c.b16 %v580, %v548
    %v645 = vpack.c.b16 %v581, %v549
    %v646 = vpack.c.b16 %v582, %v550
    %v647 = vpack.c.b16 %v583, %v551
    %v648 = vpack.c.b16 %v584, %v552
    %v649 = vpack.c.b16 %v585, %v553
    %v650 = vpack.c.b16 %v586, %v554
    %v651 = vpack.c.b16 %v587, %v555
    %v652 = vpack.c.b16 %v588, %v556
    %v653 = vpack.c.b16 %v589, %v557
    %v654 = vpack.c.b16 %v590, %v558
    %v655 = vpack.c.b16 %v591, %v559
    %v656 = vpack.c.b16 %v592, %v560
    %v657 = vpack.c.b16 %v593, %v561
    %v658 = vpack.c.b16 %v594, %v562
    %v659 = vpack.c.b16 %v595, %v563
    %v660 = vpack.c.b16 %v596, %v564
    %v661 = vpack.c.b16 %v597, %v565
    %v662 = vpack.c.b16 %v598, %v566
    %v663 = vpack.c.b16 %v599, %v567
    %v664 = vpack.c.b16 %v600, %v568
    %v665 = vpack.c.b16 %v601, %v569
    %v666 = vpack.c.b16 %v602, %v570
    %v667 = vpack.c.b16 %v603, %v571
    %v668 = vpack.c.b16 %v604, %v572
    %v669 = vpack.c.b16 %v605, %v573
    %v670 = vpack.c.b16 %v606, %v574
    %v671 = vpack.c.b16 %v607, %v575
    %vm736 = vcmask 261120
    %v738 = vsel %vm736, %v43, 0
    %740 = vmatprep.subr.bf16.mxu0 0
    %741 = vmatpush1.bf16.msra.mxu0 0
    %742 = vmatprep.subr.bf16.mxu0 0
    %743 = vmatpush1.bf16.msra.mxu0 0
    %744 = vmatprep.subr.bf16.mxu0 0
    %745 = vmatpush1.bf16.msra.mxu0 0
    %746 = vmatprep.subr.bf16.mxu0 0
    %747 = vmatpush1.bf16.msra.mxu0 0
    %748 = vmatprep.subr.bf16.mxu0 0
    %749 = vmatpush1.bf16.msra.mxu0 0
    %750 = vmatprep.subr.bf16.mxu0 0
    %751 = vmatpush1.bf16.msra.mxu0 0
    %752 = vmatprep.subr.bf16.mxu0 %v641
    %753 = vmatpush1.bf16.msra.mxu0 %v640
    %754 = vmatprep.subr.bf16.mxu0 %v609
    %755 = vmatpush1.bf16.msra.mxu0 %v608
    %756 = vmatprep.subr.bf16.mxu0 0
    %757 = vmatpush2.bf16.msra.mxu0 0
    %758 = vmatprep.subr.bf16.mxu0 0
    %759 = vmatpush2.bf16.msra.mxu0 0
    %760 = vmatprep.subr.bf16.mxu0 0
    %761 = vmatpush2.bf16.msra.mxu0 0
    %762 = vmatprep.subr.bf16.mxu0 0
    %763 = vmatpush2.bf16.msra.mxu0 0
    %764 = vmatprep.subr.bf16.mxu0 0
    %765 = vmatpush2.bf16.msra.mxu0 0
    %766 = vmatprep.subr.bf16.mxu0 0
    %767 = vmatpush2.bf16.msra.mxu0 0
    %768 = vmatprep.subr.bf16.mxu0 0
    %769 = vmatpush2.bf16.msra.mxu0 0
    %770 = vmatprep.subr.bf16.mxu0 0
    %771 = vmatpush2.bf16.msra.mxu0 0
    %772 = vmatprep.mubr.bf16.mxu0 0
    %773 = vmatmul.mubr.bf16.gmra.mxu0 %v738
    %v774 = vpop.f32.mrf.mxu0
    %v775 = vadd.f32 %v291, %v774
    %v776 = vpop.f32.mrf.mxu0
    %v777 = vadd.f32 %v295, %v776
    %v778 = vpop.f32.mrf.mxu0
    %v779 = vpop.f32.mrf.mxu0
    %780 = vdwg.mxu0
    %781 = vmatprep.subr.bf16.mxu0 0
    %782 = vmatpush1.bf16.msra.mxu0 0
    %783 = vmatprep.subr.bf16.mxu0 0
    %784 = vmatpush1.bf16.msra.mxu0 0
    %785 = vmatprep.subr.bf16.mxu0 0
    %786 = vmatpush1.bf16.msra.mxu0 0
    %787 = vmatprep.subr.bf16.mxu0 0
    %788 = vmatpush1.bf16.msra.mxu0 0
    %789 = vmatprep.subr.bf16.mxu0 0
    %790 = vmatpush1.bf16.msra.mxu0 0
    %791 = vmatprep.subr.bf16.mxu0 0
    %792 = vmatpush1.bf16.msra.mxu0 0
    %793 = vmatprep.subr.bf16.mxu0 %v643
    %794 = vmatpush1.bf16.msra.mxu0 %v642
    %795 = vmatprep.subr.bf16.mxu0 %v611
    %796 = vmatpush1.bf16.msra.mxu0 %v610
    %797 = vmatprep.subr.bf16.mxu0 0
    %798 = vmatpush2.bf16.msra.mxu0 0
    %799 = vmatprep.subr.bf16.mxu0 0
    %800 = vmatpush2.bf16.msra.mxu0 0
    %801 = vmatprep.subr.bf16.mxu0 0
    %802 = vmatpush2.bf16.msra.mxu0 0
    %803 = vmatprep.subr.bf16.mxu0 0
    %804 = vmatpush2.bf16.msra.mxu0 0
    %805 = vmatprep.subr.bf16.mxu0 0
    %806 = vmatpush2.bf16.msra.mxu0 0
    %807 = vmatprep.subr.bf16.mxu0 0
    %808 = vmatpush2.bf16.msra.mxu0 0
    %809 = vmatprep.subr.bf16.mxu0 0
    %810 = vmatpush2.bf16.msra.mxu0 0
    %811 = vmatprep.subr.bf16.mxu0 0
    %812 = vmatpush2.bf16.msra.mxu0 0
    %813 = vmatprep.mubr.bf16.mxu0 0
    %814 = vmatmul.mubr.bf16.gmra.mxu0 %v738
    %v815 = vpop.f32.mrf.mxu0
    %v816 = vadd.f32 %v299, %v815
    %v817 = vpop.f32.mrf.mxu0
    %v818 = vadd.f32 %v303, %v817
    %v819 = vpop.f32.mrf.mxu0
    %v820 = vpop.f32.mrf.mxu0
    %821 = vdwg.mxu0
    %822 = vmatprep.subr.bf16.mxu0 0
    %823 = vmatpush1.bf16.msra.mxu0 0
    %824 = vmatprep.subr.bf16.mxu0 0
    %825 = vmatpush1.bf16.msra.mxu0 0
    %826 = vmatprep.subr.bf16.mxu0 0
    %827 = vmatpush1.bf16.msra.mxu0 0
    %828 = vmatprep.subr.bf16.mxu0 0
    %829 = vmatpush1.bf16.msra.mxu0 0
    %830 = vmatprep.subr.bf16.mxu0 0
    %831 = vmatpush1.bf16.msra.mxu0 0
    %832 = vmatprep.subr.bf16.mxu0 0
    %833 = vmatpush1.bf16.msra.mxu0 0
    %834 = vmatprep.subr.bf16.mxu0 %v645
    %835 = vmatpush1.bf16.msra.mxu0 %v644
    %836 = vmatprep.subr.bf16.mxu0 %v613
    %837 = vmatpush1.bf16.msra.mxu0 %v612
    %838 = vmatprep.subr.bf16.mxu0 0
    %839 = vmatpush2.bf16.msra.mxu0 0
    %840 = vmatprep.subr.bf16.mxu0 0
    %841 = vmatpush2.bf16.msra.mxu0 0
    %842 = vmatprep.subr.bf16.mxu0 0
    %843 = vmatpush2.bf16.msra.mxu0 0
    %844 = vmatprep.subr.bf16.mxu0 0
    %845 = vmatpush2.bf16.msra.mxu0 0
    %846 = vmatprep.subr.bf16.mxu0 0
    %847 = vmatpush2.bf16.msra.mxu0 0
    %848 = vmatprep.subr.bf16.mxu0 0
    %849 = vmatpush2.bf16.msra.mxu0 0
    %850 = vmatprep.subr.bf16.mxu0 0
    %851 = vmatpush2.bf16.msra.mxu0 0
    %852 = vmatprep.subr.bf16.mxu0 0
    %853 = vmatpush2.bf16.msra.mxu0 0
    %854 = vmatprep.mubr.bf16.mxu0 0
    %855 = vmatmul.mubr.bf16.gmra.mxu0 %v738
    %v856 = vpop.f32.mrf.mxu0
    %v857 = vadd.f32 %v307, %v856
    %v858 = vpop.f32.mrf.mxu0
    %v859 = vadd.f32 %v311, %v858
    %v860 = vpop.f32.mrf.mxu0
    %v861 = vpop.f32.mrf.mxu0
    %862 = vdwg.mxu0
    %863 = vmatprep.subr.bf16.mxu0 0
    %864 = vmatpush1.bf16.msra.mxu0 0
    %865 = vmatprep.subr.bf16.mxu0 0
    %866 = vmatpush1.bf16.msra.mxu0 0
    %867 = vmatprep.subr.bf16.mxu0 0
    %868 = vmatpush1.bf16.msra.mxu0 0
    %869 = vmatprep.subr.bf16.mxu0 0
    %870 = vmatpush1.bf16.msra.mxu0 0
    %871 = vmatprep.subr.bf16.mxu0 0
    %872 = vmatpush1.bf16.msra.mxu0 0
    %873 = vmatprep.subr.bf16.mxu0 0
    %874 = vmatpush1.bf16.msra.mxu0 0
    %875 = vmatprep.subr.bf16.mxu0 %v647
    %876 = vmatpush1.bf16.msra.mxu0 %v646
    %877 = vmatprep.subr.bf16.mxu0 %v615
    %878 = vmatpush1.bf16.msra.mxu0 %v614
    %879 = vmatprep.subr.bf16.mxu0 0
    %880 = vmatpush2.bf16.msra.mxu0 0
    %881 = vmatprep.subr.bf16.mxu0 0
    %882 = vmatpush2.bf16.msra.mxu0 0
    %883 = vmatprep.subr.bf16.mxu0 0
    %884 = vmatpush2.bf16.msra.mxu0 0
    %885 = vmatprep.subr.bf16.mxu0 0
    %886 = vmatpush2.bf16.msra.mxu0 0
    %887 = vmatprep.subr.bf16.mxu0 0
    %888 = vmatpush2.bf16.msra.mxu0 0
    %889 = vmatprep.subr.bf16.mxu0 0
    %890 = vmatpush2.bf16.msra.mxu0 0
    %891 = vmatprep.subr.bf16.mxu0 0
    %892 = vmatpush2.bf16.msra.mxu0 0
    %893 = vmatprep.subr.bf16.mxu0 0
    %894 = vmatpush2.bf16.msra.mxu0 0
    %895 = vmatprep.mubr.bf16.mxu0 0
    %896 = vmatmul.mubr.bf16.gmra.mxu0 %v738
    %v897 = vpop.f32.mrf.mxu0
    %v898 = vadd.f32 %v315, %v897
    %v899 = vpop.f32.mrf.mxu0
    %v900 = vadd.f32 %v319, %v899
    %v901 = vpop.f32.mrf.mxu0
    %v902 = vpop.f32.mrf.mxu0
    %903 = vdwg.mxu0
    %904 = vmatprep.subr.bf16.mxu0 0
    %905 = vmatpush1.bf16.msra.mxu0 0
    %906 = vmatprep.subr.bf16.mxu0 0
    %907 = vmatpush1.bf16.msra.mxu0 0
    %908 = vmatprep.subr.bf16.mxu0 0
    %909 = vmatpush1.bf16.msra.mxu0 0
    %910 = vmatprep.subr.bf16.mxu0 0
    %911 = vmatpush1.bf16.msra.mxu0 0
    %912 = vmatprep.subr.bf16.mxu0 0
    %913 = vmatpush1.bf16.msra.mxu0 0
    %914 = vmatprep.subr.bf16.mxu0 0
    %915 = vmatpush1.bf16.msra.mxu0 0
    %916 = vmatprep.subr.bf16.mxu0 %v649
    %917 = vmatpush1.bf16.msra.mxu0 %v648
    %918 = vmatprep.subr.bf16.mxu0 %v617
    %919 = vmatpush1.bf16.msra.mxu0 %v616
    %920 = vmatprep.subr.bf16.mxu0 0
    %921 = vmatpush2.bf16.msra.mxu0 0
    %922 = vmatprep.subr.bf16.mxu0 0
    %923 = vmatpush2.bf16.msra.mxu0 0
    %924 = vmatprep.subr.bf16.mxu0 0
    %925 = vmatpush2.bf16.msra.mxu0 0
    %926 = vmatprep.subr.bf16.mxu0 0
    %927 = vmatpush2.bf16.msra.mxu0 0
    %928 = vmatprep.subr.bf16.mxu0 0
    %929 = vmatpush2.bf16.msra.mxu0 0
    %930 = vmatprep.subr.bf16.mxu0 0
    %931 = vmatpush2.bf16.msra.mxu0 0
    %932 = vmatprep.subr.bf16.mxu0 0
    %933 = vmatpush2.bf16.msra.mxu0 0
    %934 = vmatprep.subr.bf16.mxu0 0
    %935 = vmatpush2.bf16.msra.mxu0 0
    %936 = vmatprep.mubr.bf16.mxu0 0
    %937 = vmatmul.mubr.bf16.gmra.mxu0 %v738
    %v938 = vpop.f32.mrf.mxu0
    %v939 = vadd.f32 %v323, %v938
    %v940 = vpop.f32.mrf.mxu0
    %v941 = vadd.f32 %v327, %v940
    %v942 = vpop.f32.mrf.mxu0
    %v943 = vpop.f32.mrf.mxu0
    %944 = vdwg.mxu0
    %945 = vmatprep.subr.bf16.mxu0 0
    %946 = vmatpush1.bf16.msra.mxu0 0
    %947 = vmatprep.subr.bf16.mxu0 0
    %948 = vmatpush1.bf16.msra.mxu0 0
    %949 = vmatprep.subr.bf16.mxu0 0
    %950 = vmatpush1.bf16.msra.mxu0 0
    %951 = vmatprep.subr.bf16.mxu0 0
    %952 = vmatpush1.bf16.msra.mxu0 0
    %953 = vmatprep.subr.bf16.mxu0 0
    %954 = vmatpush1.bf16.msra.mxu0 0
    %955 = vmatprep.subr.bf16.mxu0 0
    %956 = vmatpush1.bf16.msra.mxu0 0
    %957 = vmatprep.subr.bf16.mxu0 %v651
    %958 = vmatpush1.bf16.msra.mxu0 %v650
    %959 = vmatprep.subr.bf16.mxu0 %v619
    %960 = vmatpush1.bf16.msra.mxu0 %v618
    %961 = vmatprep.subr.bf16.mxu0 0
    %962 = vmatpush2.bf16.msra.mxu0 0
    %963 = vmatprep.subr.bf16.mxu0 0
    %964 = vmatpush2.bf16.msra.mxu0 0
    %965 = vmatprep.subr.bf16.mxu0 0
    %966 = vmatpush2.bf16.msra.mxu0 0
    %967 = vmatprep.subr.bf16.mxu0 0
    %968 = vmatpush2.bf16.msra.mxu0 0
    %969 = vmatprep.subr.bf16.mxu0 0
    %970 = vmatpush2.bf16.msra.mxu0 0
    %971 = vmatprep.subr.bf16.mxu0 0
    %972 = vmatpush2.bf16.msra.mxu0 0
    %973 = vmatprep.subr.bf16.mxu0 0
    %974 = vmatpush2.bf16.msra.mxu0 0
    %975 = vmatprep.subr.bf16.mxu0 0
    %976 = vmatpush2.bf16.msra.mxu0 0
    %977 = vmatprep.mubr.bf16.mxu0 0
    %978 = vmatmul.mubr.bf16.gmra.mxu0 %v738
    %v979 = vpop.f32.mrf.mxu0
    %v980 = vadd.f32 %v331, %v979
    %v981 = vpop.f32.mrf.mxu0
    %v982 = vadd.f32 %v335, %v981
    %v983 = vpop.f32.mrf.mxu0
    %v984 = vpop.f32.mrf.mxu0
    %985 = vdwg.mxu0
    %986 = vmatprep.subr.bf16.mxu0 0
    %987 = vmatpush1.bf16.msra.mxu0 0
    %988 = vmatprep.subr.bf16.mxu0 0
    %989 = vmatpush1.bf16.msra.mxu0 0
    %990 = vmatprep.subr.bf16.mxu0 0
    %991 = vmatpush1.bf16.msra.mxu0 0
    %992 = vmatprep.subr.bf16.mxu0 0
    %993 = vmatpush1.bf16.msra.mxu0 0
    %994 = vmatprep.subr.bf16.mxu0 0
    %995 = vmatpush1.bf16.msra.mxu0 0
    %996 = vmatprep.subr.bf16.mxu0 0
    %997 = vmatpush1.bf16.msra.mxu0 0
    %998 = vmatprep.subr.bf16.mxu0 %v653
    %999 = vmatpush1.bf16.msra.mxu0 %v652
    %1000 = vmatprep.subr.bf16.mxu0 %v621
    %1001 = vmatpush1.bf16.msra.mxu0 %v620
    %1002 = vmatprep.subr.bf16.mxu0 0
    %1003 = vmatpush2.bf16.msra.mxu0 0
    %1004 = vmatprep.subr.bf16.mxu0 0
    %1005 = vmatpush2.bf16.msra.mxu0 0
    %1006 = vmatprep.subr.bf16.mxu0 0
    %1007 = vmatpush2.bf16.msra.mxu0 0
    %1008 = vmatprep.subr.bf16.mxu0 0
    %1009 = vmatpush2.bf16.msra.mxu0 0
    %1010 = vmatprep.subr.bf16.mxu0 0
    %1011 = vmatpush2.bf16.msra.mxu0 0
    %1012 = vmatprep.subr.bf16.mxu0 0
    %1013 = vmatpush2.bf16.msra.mxu0 0
    %1014 = vmatprep.subr.bf16.mxu0 0
    %1015 = vmatpush2.bf16.msra.mxu0 0
    %1016 = vmatprep.subr.bf16.mxu0 0
    %1017 = vmatpush2.bf16.msra.mxu0 0
    %1018 = vmatprep.mubr.bf16.mxu0 0
    %1019 = vmatmul.mubr.bf16.gmra.mxu0 %v738
    %v1020 = vpop.f32.mrf.mxu0
    %v1021 = vadd.f32 %v339, %v1020
    %v1022 = vpop.f32.mrf.mxu0
    %v1023 = vadd.f32 %v343, %v1022
    %v1024 = vpop.f32.mrf.mxu0
    %v1025 = vpop.f32.mrf.mxu0
    %1026 = vdwg.mxu0
    %1027 = vmatprep.subr.bf16.mxu0 0
    %1028 = vmatpush1.bf16.msra.mxu0 0
    %1029 = vmatprep.subr.bf16.mxu0 0
    %1030 = vmatpush1.bf16.msra.mxu0 0
    %1031 = vmatprep.subr.bf16.mxu0 0
    %1032 = vmatpush1.bf16.msra.mxu0 0
    %1033 = vmatprep.subr.bf16.mxu0 0
    %1034 = vmatpush1.bf16.msra.mxu0 0
    %1035 = vmatprep.subr.bf16.mxu0 0
    %1036 = vmatpush1.bf16.msra.mxu0 0
    %1037 = vmatprep.subr.bf16.mxu0 0
    %1038 = vmatpush1.bf16.msra.mxu0 0
    %1039 = vmatprep.subr.bf16.mxu0 %v655
    %1040 = vmatpush1.bf16.msra.mxu0 %v654
    %1041 = vmatprep.subr.bf16.mxu0 %v623
    %1042 = vmatpush1.bf16.msra.mxu0 %v622
    %1043 = vmatprep.subr.bf16.mxu0 0
    %1044 = vmatpush2.bf16.msra.mxu0 0
    %1045 = vmatprep.subr.bf16.mxu0 0
    %1046 = vmatpush2.bf16.msra.mxu0 0
    %1047 = vmatprep.subr.bf16.mxu0 0
    %1048 = vmatpush2.bf16.msra.mxu0 0
    %1049 = vmatprep.subr.bf16.mxu0 0
    %1050 = vmatpush2.bf16.msra.mxu0 0
    %1051 = vmatprep.subr.bf16.mxu0 0
    %1052 = vmatpush2.bf16.msra.mxu0 0
    %1053 = vmatprep.subr.bf16.mxu0 0
    %1054 = vmatpush2.bf16.msra.mxu0 0
    %1055 = vmatprep.subr.bf16.mxu0 0
    %1056 = vmatpush2.bf16.msra.mxu0 0
    %1057 = vmatprep.subr.bf16.mxu0 0
    %1058 = vmatpush2.bf16.msra.mxu0 0
    %1059 = vmatprep.mubr.bf16.mxu0 0
    %1060 = vmatmul.mubr.bf16.gmra.mxu0 %v738
    %v1061 = vpop.f32.mrf.mxu0
    %v1062 = vadd.f32 %v347, %v1061
    %v1063 = vpop.f32.mrf.mxu0
    %v1064 = vadd.f32 %v351, %v1063
    %v1065 = vpop.f32.mrf.mxu0
    %v1066 = vpop.f32.mrf.mxu0
    %1067 = vdwg.mxu0
    %1068 = vmatprep.subr.bf16.mxu0 0
    %1069 = vmatpush1.bf16.msra.mxu0 0
    %1070 = vmatprep.subr.bf16.mxu0 0
    %1071 = vmatpush1.bf16.msra.mxu0 0
    %1072 = vmatprep.subr.bf16.mxu0 0
    %1073 = vmatpush1.bf16.msra.mxu0 0
    %1074 = vmatprep.subr.bf16.mxu0 0
    %1075 = vmatpush1.bf16.msra.mxu0 0
    %1076 = vmatprep.subr.bf16.mxu0 0
    %1077 = vmatpush1.bf16.msra.mxu0 0
    %1078 = vmatprep.subr.bf16.mxu0 0
    %1079 = vmatpush1.bf16.msra.mxu0 0
    %1080 = vmatprep.subr.bf16.mxu0 %v657
    %1081 = vmatpush1.bf16.msra.mxu0 %v656
    %1082 = vmatprep.subr.bf16.mxu0 %v625
    %1083 = vmatpush1.bf16.msra.mxu0 %v624
    %1084 = vmatprep.subr.bf16.mxu0 0
    %1085 = vmatpush2.bf16.msra.mxu0 0
    %1086 = vmatprep.subr.bf16.mxu0 0
    %1087 = vmatpush2.bf16.msra.mxu0 0
    %1088 = vmatprep.subr.bf16.mxu0 0
    %1089 = vmatpush2.bf16.msra.mxu0 0
    %1090 = vmatprep.subr.bf16.mxu0 0
    %1091 = vmatpush2.bf16.msra.mxu0 0
    %1092 = vmatprep.subr.bf16.mxu0 0
    %1093 = vmatpush2.bf16.msra.mxu0 0
    %1094 = vmatprep.subr.bf16.mxu0 0
    %1095 = vmatpush2.bf16.msra.mxu0 0
    %1096 = vmatprep.subr.bf16.mxu0 0
    %1097 = vmatpush2.bf16.msra.mxu0 0
    %1098 = vmatprep.subr.bf16.mxu0 0
    %1099 = vmatpush2.bf16.msra.mxu0 0
    %1100 = vmatprep.mubr.bf16.mxu0 0
    %1101 = vmatmul.mubr.bf16.gmra.mxu0 %v738
    %v1102 = vpop.f32.mrf.mxu0
    %v1103 = vadd.f32 %v355, %v1102
    %v1104 = vpop.f32.mrf.mxu0
    %v1105 = vadd.f32 %v359, %v1104
    %v1106 = vpop.f32.mrf.mxu0
    %v1107 = vpop.f32.mrf.mxu0
    %1108 = vdwg.mxu0
    %1109 = vmatprep.subr.bf16.mxu0 0
    %1110 = vmatpush1.bf16.msra.mxu0 0
    %1111 = vmatprep.subr.bf16.mxu0 0
    %1112 = vmatpush1.bf16.msra.mxu0 0
    %1113 = vmatprep.subr.bf16.mxu0 0
    %1114 = vmatpush1.bf16.msra.mxu0 0
    %1115 = vmatprep.subr.bf16.mxu0 0
    %1116 = vmatpush1.bf16.msra.mxu0 0
    %1117 = vmatprep.subr.bf16.mxu0 0
    %1118 = vmatpush1.bf16.msra.mxu0 0
    %1119 = vmatprep.subr.bf16.mxu0 0
    %1120 = vmatpush1.bf16.msra.mxu0 0
    %1121 = vmatprep.subr.bf16.mxu0 %v659
    %1122 = vmatpush1.bf16.msra.mxu0 %v658
    %1123 = vmatprep.subr.bf16.mxu0 %v627
    %1124 = vmatpush1.bf16.msra.mxu0 %v626
    %1125 = vmatprep.subr.bf16.mxu0 0
    %1126 = vmatpush2.bf16.msra.mxu0 0
    %1127 = vmatprep.subr.bf16.mxu0 0
    %1128 = vmatpush2.bf16.msra.mxu0 0
    %1129 = vmatprep.subr.bf16.mxu0 0
    %1130 = vmatpush2.bf16.msra.mxu0 0
    %1131 = vmatprep.subr.bf16.mxu0 0
    %1132 = vmatpush2.bf16.msra.mxu0 0
    %1133 = vmatprep.subr.bf16.mxu0 0
    %1134 = vmatpush2.bf16.msra.mxu0 0
    %1135 = vmatprep.subr.bf16.mxu0 0
    %1136 = vmatpush2.bf16.msra.mxu0 0
    %1137 = vmatprep.subr.bf16.mxu0 0
    %1138 = vmatpush2.bf16.msra.mxu0 0
    %1139 = vmatprep.subr.bf16.mxu0 0
    %1140 = vmatpush2.bf16.msra.mxu0 0
    %1141 = vmatprep.mubr.bf16.mxu0 0
    %1142 = vmatmul.mubr.bf16.gmra.mxu0 %v738
    %v1143 = vpop.f32.mrf.mxu0
    %v1144 = vadd.f32 %v363, %v1143
    %v1145 = vpop.f32.mrf.mxu0
    %v1146 = vadd.f32 %v367, %v1145
    %v1147 = vpop.f32.mrf.mxu0
    %v1148 = vpop.f32.mrf.mxu0
    %1149 = vdwg.mxu0
    %1150 = vmatprep.subr.bf16.mxu0 0
    %1151 = vmatpush1.bf16.msra.mxu0 0
    %1152 = vmatprep.subr.bf16.mxu0 0
    %1153 = vmatpush1.bf16.msra.mxu0 0
    %1154 = vmatprep.subr.bf16.mxu0 0
    %1155 = vmatpush1.bf16.msra.mxu0 0
    %1156 = vmatprep.subr.bf16.mxu0 0
    %1157 = vmatpush1.bf16.msra.mxu0 0
    %1158 = vmatprep.subr.bf16.mxu0 0
    %1159 = vmatpush1.bf16.msra.mxu0 0
    %1160 = vmatprep.subr.bf16.mxu0 0
    %1161 = vmatpush1.bf16.msra.mxu0 0
    %1162 = vmatprep.subr.bf16.mxu0 %v661
    %1163 = vmatpush1.bf16.msra.mxu0 %v660
    %1164 = vmatprep.subr.bf16.mxu0 %v629
    %1165 = vmatpush1.bf16.msra.mxu0 %v628
    %1166 = vmatprep.subr.bf16.mxu0 0
    %1167 = vmatpush2.bf16.msra.mxu0 0
    %1168 = vmatprep.subr.bf16.mxu0 0
    %1169 = vmatpush2.bf16.msra.mxu0 0
    %1170 = vmatprep.subr.bf16.mxu0 0
    %1171 = vmatpush2.bf16.msra.mxu0 0
    %1172 = vmatprep.subr.bf16.mxu0 0
    %1173 = vmatpush2.bf16.msra.mxu0 0
    %1174 = vmatprep.subr.bf16.mxu0 0
    %1175 = vmatpush2.bf16.msra.mxu0 0
    %1176 = vmatprep.subr.bf16.mxu0 0
    %1177 = vmatpush2.bf16.msra.mxu0 0
    %1178 = vmatprep.subr.bf16.mxu0 0
    %1179 = vmatpush2.bf16.msra.mxu0 0
    %1180 = vmatprep.subr.bf16.mxu0 0
    %1181 = vmatpush2.bf16.msra.mxu0 0
    %1182 = vmatprep.mubr.bf16.mxu0 0
    %1183 = vmatmul.mubr.bf16.gmra.mxu0 %v738
    %v1184 = vpop.f32.mrf.mxu0
    %v1185 = vadd.f32 %v371, %v1184
    %v1186 = vpop.f32.mrf.mxu0
    %v1187 = vadd.f32 %v375, %v1186
    %v1188 = vpop.f32.mrf.mxu0
    %v1189 = vpop.f32.mrf.mxu0
    %1190 = vdwg.mxu0
    %1191 = vmatprep.subr.bf16.mxu0 0
    %1192 = vmatpush1.bf16.msra.mxu0 0
    %1193 = vmatprep.subr.bf16.mxu0 0
    %1194 = vmatpush1.bf16.msra.mxu0 0
    %1195 = vmatprep.subr.bf16.mxu0 0
    %1196 = vmatpush1.bf16.msra.mxu0 0
    %1197 = vmatprep.subr.bf16.mxu0 0
    %1198 = vmatpush1.bf16.msra.mxu0 0
    %1199 = vmatprep.subr.bf16.mxu0 0
    %1200 = vmatpush1.bf16.msra.mxu0 0
    %1201 = vmatprep.subr.bf16.mxu0 0
    %1202 = vmatpush1.bf16.msra.mxu0 0
    %1203 = vmatprep.subr.bf16.mxu0 %v663
    %1204 = vmatpush1.bf16.msra.mxu0 %v662
    %1205 = vmatprep.subr.bf16.mxu0 %v631
    %1206 = vmatpush1.bf16.msra.mxu0 %v630
    %1207 = vmatprep.subr.bf16.mxu0 0
    %1208 = vmatpush2.bf16.msra.mxu0 0
    %1209 = vmatprep.subr.bf16.mxu0 0
    %1210 = vmatpush2.bf16.msra.mxu0 0
    %1211 = vmatprep.subr.bf16.mxu0 0
    %1212 = vmatpush2.bf16.msra.mxu0 0
    %1213 = vmatprep.subr.bf16.mxu0 0
    %1214 = vmatpush2.bf16.msra.mxu0 0
    %1215 = vmatprep.subr.bf16.mxu0 0
    %1216 = vmatpush2.bf16.msra.mxu0 0
    %1217 = vmatprep.subr.bf16.mxu0 0
    %1218 = vmatpush2.bf16.msra.mxu0 0
    %1219 = vmatprep.subr.bf16.mxu0 0
    %1220 = vmatpush2.bf16.msra.mxu0 0
    %1221 = vmatprep.subr.bf16.mxu0 0
    %1222 = vmatpush2.bf16.msra.mxu0 0
    %1223 = vmatprep.mubr.bf16.mxu0 0
    %1224 = vmatmul.mubr.bf16.gmra.mxu0 %v738
    %v1225 = vpop.f32.mrf.mxu0
    %v1226 = vadd.f32 %v379, %v1225
    %v1227 = vpop.f32.mrf.mxu0
    %v1228 = vadd.f32 %v383, %v1227
    %v1229 = vpop.f32.mrf.mxu0
    %v1230 = vpop.f32.mrf.mxu0
    %1231 = vdwg.mxu0
    %1232 = vmatprep.subr.bf16.mxu0 0
    %1233 = vmatpush1.bf16.msra.mxu0 0
    %1234 = vmatprep.subr.bf16.mxu0 0
    %1235 = vmatpush1.bf16.msra.mxu0 0
    %1236 = vmatprep.subr.bf16.mxu0 0
    %1237 = vmatpush1.bf16.msra.mxu0 0
    %1238 = vmatprep.subr.bf16.mxu0 0
    %1239 = vmatpush1.bf16.msra.mxu0 0
    %1240 = vmatprep.subr.bf16.mxu0 0
    %1241 = vmatpush1.bf16.msra.mxu0 0
    %1242 = vmatprep.subr.bf16.mxu0 0
    %1243 = vmatpush1.bf16.msra.mxu0 0
    %1244 = vmatprep.subr.bf16.mxu0 %v665
    %1245 = vmatpush1.bf16.msra.mxu0 %v664
    %1246 = vmatprep.subr.bf16.mxu0 %v633
    %1247 = vmatpush1.bf16.msra.mxu0 %v632
    %1248 = vmatprep.subr.bf16.mxu0 0
    %1249 = vmatpush2.bf16.msra.mxu0 0
    %1250 = vmatprep.subr.bf16.mxu0 0
    %1251 = vmatpush2.bf16.msra.mxu0 0
    %1252 = vmatprep.subr.bf16.mxu0 0
    %1253 = vmatpush2.bf16.msra.mxu0 0
    %1254 = vmatprep.subr.bf16.mxu0 0
    %1255 = vmatpush2.bf16.msra.mxu0 0
    %1256 = vmatprep.subr.bf16.mxu0 0
    %1257 = vmatpush2.bf16.msra.mxu0 0
    %1258 = vmatprep.subr.bf16.mxu0 0
    %1259 = vmatpush2.bf16.msra.mxu0 0
    %1260 = vmatprep.subr.bf16.mxu0 0
    %1261 = vmatpush2.bf16.msra.mxu0 0
    %1262 = vmatprep.subr.bf16.mxu0 0
    %1263 = vmatpush2.bf16.msra.mxu0 0
    %1264 = vmatprep.mubr.bf16.mxu0 0
    %1265 = vmatmul.mubr.bf16.gmra.mxu0 %v738
    %v1266 = vpop.f32.mrf.mxu0
    %v1267 = vadd.f32 %v387, %v1266
    %v1268 = vpop.f32.mrf.mxu0
    %v1269 = vadd.f32 %v391, %v1268
    %v1270 = vpop.f32.mrf.mxu0
    %v1271 = vpop.f32.mrf.mxu0
    %1272 = vdwg.mxu0
    %1273 = vmatprep.subr.bf16.mxu0 0
    %1274 = vmatpush1.bf16.msra.mxu0 0
    %1275 = vmatprep.subr.bf16.mxu0 0
    %1276 = vmatpush1.bf16.msra.mxu0 0
    %1277 = vmatprep.subr.bf16.mxu0 0
    %1278 = vmatpush1.bf16.msra.mxu0 0
    %1279 = vmatprep.subr.bf16.mxu0 0
    %1280 = vmatpush1.bf16.msra.mxu0 0
    %1281 = vmatprep.subr.bf16.mxu0 0
    %1282 = vmatpush1.bf16.msra.mxu0 0
    %1283 = vmatprep.subr.bf16.mxu0 0
    %1284 = vmatpush1.bf16.msra.mxu0 0
    %1285 = vmatprep.subr.bf16.mxu0 %v667
    %1286 = vmatpush1.bf16.msra.mxu0 %v666
    %1287 = vmatprep.subr.bf16.mxu0 %v635
    %1288 = vmatpush1.bf16.msra.mxu0 %v634
    %1289 = vmatprep.subr.bf16.mxu0 0
    %1290 = vmatpush2.bf16.msra.mxu0 0
    %1291 = vmatprep.subr.bf16.mxu0 0
    %1292 = vmatpush2.bf16.msra.mxu0 0
    %1293 = vmatprep.subr.bf16.mxu0 0
    %1294 = vmatpush2.bf16.msra.mxu0 0
    %1295 = vmatprep.subr.bf16.mxu0 0
    %1296 = vmatpush2.bf16.msra.mxu0 0
    %1297 = vmatprep.subr.bf16.mxu0 0
    %1298 = vmatpush2.bf16.msra.mxu0 0
    %1299 = vmatprep.subr.bf16.mxu0 0
    %1300 = vmatpush2.bf16.msra.mxu0 0
    %1301 = vmatprep.subr.bf16.mxu0 0
    %1302 = vmatpush2.bf16.msra.mxu0 0
    %1303 = vmatprep.subr.bf16.mxu0 0
    %1304 = vmatpush2.bf16.msra.mxu0 0
    %1305 = vmatprep.mubr.bf16.mxu0 0
    %1306 = vmatmul.mubr.bf16.gmra.mxu0 %v738
    %v1307 = vpop.f32.mrf.mxu0
    %v1308 = vadd.f32 %v395, %v1307
    %v1309 = vpop.f32.mrf.mxu0
    %v1310 = vadd.f32 %v399, %v1309
    %v1311 = vpop.f32.mrf.mxu0
    %v1312 = vpop.f32.mrf.mxu0
    %1313 = vdwg.mxu0
    %1314 = vmatprep.subr.bf16.mxu0 0
    %1315 = vmatpush1.bf16.msra.mxu0 0
    %1316 = vmatprep.subr.bf16.mxu0 0
    %1317 = vmatpush1.bf16.msra.mxu0 0
    %1318 = vmatprep.subr.bf16.mxu0 0
    %1319 = vmatpush1.bf16.msra.mxu0 0
    %1320 = vmatprep.subr.bf16.mxu0 0
    %1321 = vmatpush1.bf16.msra.mxu0 0
    %1322 = vmatprep.subr.bf16.mxu0 0
    %1323 = vmatpush1.bf16.msra.mxu0 0
    %1324 = vmatprep.subr.bf16.mxu0 0
    %1325 = vmatpush1.bf16.msra.mxu0 0
    %1326 = vmatprep.subr.bf16.mxu0 %v669
    %1327 = vmatpush1.bf16.msra.mxu0 %v668
    %1328 = vmatprep.subr.bf16.mxu0 %v637
    %1329 = vmatpush1.bf16.msra.mxu0 %v636
    %1330 = vmatprep.subr.bf16.mxu0 0
    %1331 = vmatpush2.bf16.msra.mxu0 0
    %1332 = vmatprep.subr.bf16.mxu0 0
    %1333 = vmatpush2.bf16.msra.mxu0 0
    %1334 = vmatprep.subr.bf16.mxu0 0
    %1335 = vmatpush2.bf16.msra.mxu0 0
    %1336 = vmatprep.subr.bf16.mxu0 0
    %1337 = vmatpush2.bf16.msra.mxu0 0
    %1338 = vmatprep.subr.bf16.mxu0 0
    %1339 = vmatpush2.bf16.msra.mxu0 0
    %1340 = vmatprep.subr.bf16.mxu0 0
    %1341 = vmatpush2.bf16.msra.mxu0 0
    %1342 = vmatprep.subr.bf16.mxu0 0
    %1343 = vmatpush2.bf16.msra.mxu0 0
    %1344 = vmatprep.subr.bf16.mxu0 0
    %1345 = vmatpush2.bf16.msra.mxu0 0
    %1346 = vmatprep.mubr.bf16.mxu0 0
    %1347 = vmatmul.mubr.bf16.gmra.mxu0 %v738
    %v1348 = vpop.f32.mrf.mxu0
    %v1349 = vadd.f32 %v403, %v1348
    %v1350 = vpop.f32.mrf.mxu0
    %v1351 = vadd.f32 %v407, %v1350
    %v1352 = vpop.f32.mrf.mxu0
    %v1353 = vpop.f32.mrf.mxu0
    %1354 = vdwg.mxu0
    %1355 = vmatprep.subr.bf16.mxu0 0
    %1356 = vmatpush1.bf16.msra.mxu0 0
    %1357 = vmatprep.subr.bf16.mxu0 0
    %1358 = vmatpush1.bf16.msra.mxu0 0
    %1359 = vmatprep.subr.bf16.mxu0 0
    %1360 = vmatpush1.bf16.msra.mxu0 0
    %1361 = vmatprep.subr.bf16.mxu0 0
    %1362 = vmatpush1.bf16.msra.mxu0 0
    %1363 = vmatprep.subr.bf16.mxu0 0
    %1364 = vmatpush1.bf16.msra.mxu0 0
    %1365 = vmatprep.subr.bf16.mxu0 0
    %1366 = vmatpush1.bf16.msra.mxu0 0
    %1367 = vmatprep.subr.bf16.mxu0 %v671
    %1368 = vmatpush1.bf16.msra.mxu0 %v670
    %1369 = vmatprep.subr.bf16.mxu0 %v639
    %1370 = vmatpush1.bf16.msra.mxu0 %v638
    %1371 = vmatprep.subr.bf16.mxu0 0
    %1372 = vmatpush2.bf16.msra.mxu0 0
    %1373 = vmatprep.subr.bf16.mxu0 0
    %1374 = vmatpush2.bf16.msra.mxu0 0
    %1375 = vmatprep.subr.bf16.mxu0 0
    %1376 = vmatpush2.bf16.msra.mxu0 0
    %1377 = vmatprep.subr.bf16.mxu0 0
    %1378 = vmatpush2.bf16.msra.mxu0 0
    %1379 = vmatprep.subr.bf16.mxu0 0
    %1380 = vmatpush2.bf16.msra.mxu0 0
    %1381 = vmatprep.subr.bf16.mxu0 0
    %1382 = vmatpush2.bf16.msra.mxu0 0
    %1383 = vmatprep.subr.bf16.mxu0 0
    %1384 = vmatpush2.bf16.msra.mxu0 0
    %1385 = vmatprep.subr.bf16.mxu0 0
    %1386 = vmatpush2.bf16.msra.mxu0 0
    %1387 = vmatprep.mubr.bf16.mxu0 0
    %1388 = vmatmul.mubr.bf16.gmra.mxu0 %v738
    %v1389 = vpop.f32.mrf.mxu0
    %v1390 = vadd.f32 %v411, %v1389
    %v1391 = vpop.f32.mrf.mxu0
    %v1392 = vadd.f32 %v415, %v1391
    %v1393 = vpop.f32.mrf.mxu0
    %v1394 = vpop.f32.mrf.mxu0
    %1395 = vdwg.mxu0
    %v1396 = vmax.f32 %v775, 0.0
    %v1397 = vmax.f32 %v777, 0.0
    %v1398 = vmax.f32 %v816, 0.0
    %v1399 = vmax.f32 %v818, 0.0
    %v1400 = vmax.f32 %v857, 0.0
    %v1401 = vmax.f32 %v859, 0.0
    %v1402 = vmax.f32 %v898, 0.0
    %v1403 = vmax.f32 %v900, 0.0
    %v1404 = vmax.f32 %v939, 0.0
    %v1405 = vmax.f32 %v941, 0.0
    %v1406 = vmax.f32 %v980, 0.0
    %v1407 = vmax.f32 %v982, 0.0
    %v1408 = vmax.f32 %v1021, 0.0
    %v1409 = vmax.f32 %v1023, 0.0
    %v1410 = vmax.f32 %v1062, 0.0
    %v1411 = vmax.f32 %v1064, 0.0
    %v1412 = vmax.f32 %v1103, 0.0
    %v1413 = vmax.f32 %v1105, 0.0
    %v1414 = vmax.f32 %v1144, 0.0
    %v1415 = vmax.f32 %v1146, 0.0
    %v1416 = vmax.f32 %v1185, 0.0
    %v1417 = vmax.f32 %v1187, 0.0
    %v1418 = vmax.f32 %v1226, 0.0
    %v1419 = vmax.f32 %v1228, 0.0
    %v1420 = vmax.f32 %v1267, 0.0
    %v1421 = vmax.f32 %v1269, 0.0
    %v1422 = vmax.f32 %v1308, 0.0
    %v1423 = vmax.f32 %v1310, 0.0
    %v1424 = vmax.f32 %v1349, 0.0
    %v1425 = vmax.f32 %v1351, 0.0
    %v1426 = vmax.f32 %v1390, 0.0
    %v1427 = vmax.f32 %v1392, 0.0
    %v1428 = vpack.c.bf16 %v1396, %v1396
    %v1429 = vpack.c.bf16 %v1397, %v1397
    %v1430 = vpack.c.bf16 %v1398, %v1398
    %v1431 = vpack.c.bf16 %v1399, %v1399
    %v1432 = vpack.c.bf16 %v1400, %v1400
    %v1433 = vpack.c.bf16 %v1401, %v1401
    %v1434 = vpack.c.bf16 %v1402, %v1402
    %v1435 = vpack.c.bf16 %v1403, %v1403
    %v1436 = vpack.c.bf16 %v1404, %v1404
    %v1437 = vpack.c.bf16 %v1405, %v1405
    %v1438 = vpack.c.bf16 %v1406, %v1406
    %v1439 = vpack.c.bf16 %v1407, %v1407
    %v1440 = vpack.c.bf16 %v1408, %v1408
    %v1441 = vpack.c.bf16 %v1409, %v1409
    %v1442 = vpack.c.bf16 %v1410, %v1410
    %v1443 = vpack.c.bf16 %v1411, %v1411
    %v1444 = vpack.c.bf16 %v1412, %v1412
    %v1445 = vpack.c.bf16 %v1413, %v1413
    %v1446 = vpack.c.bf16 %v1414, %v1414
    %v1447 = vpack.c.bf16 %v1415, %v1415
    %v1448 = vpack.c.bf16 %v1416, %v1416
    %v1449 = vpack.c.bf16 %v1417, %v1417
    %v1450 = vpack.c.bf16 %v1418, %v1418
    %v1451 = vpack.c.bf16 %v1419, %v1419
    %v1452 = vpack.c.bf16 %v1420, %v1420
    %v1453 = vpack.c.bf16 %v1421, %v1421
    %v1454 = vpack.c.bf16 %v1422, %v1422
    %v1455 = vpack.c.bf16 %v1423, %v1423
    %v1456 = vpack.c.bf16 %v1424, %v1424
    %v1457 = vpack.c.bf16 %v1425, %v1425
    %v1458 = vpack.c.bf16 %v1426, %v1426
    %v1459 = vpack.c.bf16 %v1427, %v1427
    %v1460 = vld [vmem:[%s4] sm:$0xf]
    %v1461 = vld [vmem:[%s4 + $0x4] sm:$0xf]
    %v1462 = vld [vmem:[%s4 + $0x8] sm:$0xf]
    %v1463 = vld [vmem:[%s4 + $0xc] sm:$0xf]
    %v1464 = vld [vmem:[%s4 + $0x10] sm:$0xf]
    %v1465 = vld [vmem:[%s4 + $0x14] sm:$0xf]
    %v1466 = vld [vmem:[%s4 + $0x18] sm:$0xf]
    %v1467 = vld [vmem:[%s4 + $0x1c] sm:$0xf]
    %v1468 = vld [vmem:[%s4 + $0x20] sm:$0xf]
    %v1469 = vld [vmem:[%s4 + $0x24] sm:$0xf]
    %v1470 = vld [vmem:[%s4 + $0x28] sm:$0xf]
    %v1471 = vld [vmem:[%s4 + $0x2c] sm:$0xf]
    %v1472 = vld [vmem:[%s4 + $0x30] sm:$0xf]
    %v1473 = vld [vmem:[%s4 + $0x34] sm:$0xf]
    %v1474 = vld [vmem:[%s4 + $0x38] sm:$0xf]
    %v1475 = vld [vmem:[%s4 + $0x3c] sm:$0xf]
    %v1476 = vld [vmem:[%s4 + $0x40] sm:$0xf]
    %v1477 = vld [vmem:[%s4 + $0x44] sm:$0xf]
    %v1478 = vld [vmem:[%s4 + $0x48] sm:$0xf]
    %v1479 = vld [vmem:[%s4 + $0x4c] sm:$0xf]
    %v1480 = vld [vmem:[%s4 + $0x50] sm:$0xf]
    %v1481 = vld [vmem:[%s4 + $0x54] sm:$0xf]
    %v1482 = vld [vmem:[%s4 + $0x58] sm:$0xf]
    %v1483 = vld [vmem:[%s4 + $0x5c] sm:$0xf]
    %v1484 = vld [vmem:[%s4 + $0x60] sm:$0xf]
    %v1485 = vld [vmem:[%s4 + $0x64] sm:$0xf]
    %v1486 = vld [vmem:[%s4 + $0x68] sm:$0xf]
    %v1487 = vld [vmem:[%s4 + $0x6c] sm:$0xf]
    %v1488 = vld [vmem:[%s4 + $0x70] sm:$0xf]
    %v1489 = vld [vmem:[%s4 + $0x74] sm:$0xf]
    %v1490 = vld [vmem:[%s4 + $0x78] sm:$0xf]
    %v1491 = vld [vmem:[%s4 + $0x7c] sm:$0xf]
    %v1492 = vld [vmem:[%s4 + $0x80] sm:$0xf]
    %v1493 = vld [vmem:[%s4 + $0x84] sm:$0xf]
    %v1494 = vld [vmem:[%s4 + $0x88] sm:$0xf]
    %v1495 = vld [vmem:[%s4 + $0x8c] sm:$0xf]
    %v1496 = vld [vmem:[%s4 + $0x90] sm:$0xf]
    %v1497 = vld [vmem:[%s4 + $0x94] sm:$0xf]
    %v1498 = vld [vmem:[%s4 + $0x98] sm:$0xf]
    %v1499 = vld [vmem:[%s4 + $0x9c] sm:$0xf]
    %v1500 = vld [vmem:[%s4 + $0xa0] sm:$0xf]
    %v1501 = vld [vmem:[%s4 + $0xa4] sm:$0xf]
    %v1502 = vld [vmem:[%s4 + $0xa8] sm:$0xf]
    %v1503 = vld [vmem:[%s4 + $0xac] sm:$0xf]
    %v1504 = vld [vmem:[%s4 + $0xb0] sm:$0xf]
    %v1505 = vld [vmem:[%s4 + $0xb4] sm:$0xf]
    %v1506 = vld [vmem:[%s4 + $0xb8] sm:$0xf]
    %v1507 = vld [vmem:[%s4 + $0xbc] sm:$0xf]
    %v1508 = vld [vmem:[%s4 + $0xc0] sm:$0xf]
    %v1509 = vld [vmem:[%s4 + $0xc4] sm:$0xf]
    %v1510 = vld [vmem:[%s4 + $0xc8] sm:$0xf]
    %v1511 = vld [vmem:[%s4 + $0xcc] sm:$0xf]
    %v1512 = vld [vmem:[%s4 + $0xd0] sm:$0xf]
    %v1513 = vld [vmem:[%s4 + $0xd4] sm:$0xf]
    %v1514 = vld [vmem:[%s4 + $0xd8] sm:$0xf]
    %v1515 = vld [vmem:[%s4 + $0xdc] sm:$0xf]
    %v1516 = vld [vmem:[%s4 + $0xe0] sm:$0xf]
    %v1517 = vld [vmem:[%s4 + $0xe4] sm:$0xf]
    %v1518 = vld [vmem:[%s4 + $0xe8] sm:$0xf]
    %v1519 = vld [vmem:[%s4 + $0xec] sm:$0xf]
    %v1520 = vld [vmem:[%s4 + $0xf0] sm:$0xf]
    %v1521 = vld [vmem:[%s4 + $0xf4] sm:$0xf]
    %v1522 = vld [vmem:[%s4 + $0xf8] sm:$0xf]
    %v1523 = vld [vmem:[%s4 + $0xfc] sm:$0xf]
    %v1524 = vld [vmem:[%s4 + $0x100] sm:$0xf]
    %v1525 = vld [vmem:[%s4 + $0x104] sm:$0xf]
    %v1526 = vld [vmem:[%s4 + $0x108] sm:$0xf]
    %v1527 = vld [vmem:[%s4 + $0x10c] sm:$0xf]
    %v1528 = vld [vmem:[%s4 + $0x110] sm:$0xf]
    %v1529 = vld [vmem:[%s4 + $0x114] sm:$0xf]
    %v1530 = vld [vmem:[%s4 + $0x118] sm:$0xf]
    %v1531 = vld [vmem:[%s4 + $0x11c] sm:$0xf]
    %v1532 = vld [vmem:[%s4 + $0x120] sm:$0xf]
    %v1533 = vld [vmem:[%s4 + $0x124] sm:$0xf]
    %v1534 = vld [vmem:[%s4 + $0x128] sm:$0xf]
    %v1535 = vld [vmem:[%s4 + $0x12c] sm:$0xf]
    %v1536 = vld [vmem:[%s4 + $0x130] sm:$0xf]
    %v1537 = vld [vmem:[%s4 + $0x134] sm:$0xf]
    %v1538 = vld [vmem:[%s4 + $0x138] sm:$0xf]
    %v1539 = vld [vmem:[%s4 + $0x13c] sm:$0xf]
    %v1540 = vld [vmem:[%s4 + $0x140] sm:$0xf]
    %v1541 = vld [vmem:[%s4 + $0x144] sm:$0xf]
    %v1542 = vld [vmem:[%s4 + $0x148] sm:$0xf]
    %v1543 = vld [vmem:[%s4 + $0x14c] sm:$0xf]
    %v1544 = vld [vmem:[%s4 + $0x150] sm:$0xf]
    %v1545 = vld [vmem:[%s4 + $0x154] sm:$0xf]
    %v1546 = vld [vmem:[%s4 + $0x158] sm:$0xf]
    %v1547 = vld [vmem:[%s4 + $0x15c] sm:$0xf]
    %v1548 = vld [vmem:[%s4 + $0x160] sm:$0xf]
    %v1549 = vld [vmem:[%s4 + $0x164] sm:$0xf]
    %v1550 = vld [vmem:[%s4 + $0x168] sm:$0xf]
    %v1551 = vld [vmem:[%s4 + $0x16c] sm:$0xf]
    %v1552 = vld [vmem:[%s4 + $0x170] sm:$0xf]
    %v1553 = vld [vmem:[%s4 + $0x174] sm:$0xf]
    %v1554 = vld [vmem:[%s4 + $0x178] sm:$0xf]
    %v1555 = vld [vmem:[%s4 + $0x17c] sm:$0xf]
    %v1556 = vld [vmem:[%s4 + $0x180] sm:$0xf]
    %v1557 = vld [vmem:[%s4 + $0x184] sm:$0xf]
    %v1558 = vld [vmem:[%s4 + $0x188] sm:$0xf]
    %v1559 = vld [vmem:[%s4 + $0x18c] sm:$0xf]
    %v1560 = vld [vmem:[%s4 + $0x190] sm:$0xf]
    %v1561 = vld [vmem:[%s4 + $0x194] sm:$0xf]
    %v1562 = vld [vmem:[%s4 + $0x198] sm:$0xf]
    %v1563 = vld [vmem:[%s4 + $0x19c] sm:$0xf]
    %v1564 = vld [vmem:[%s4 + $0x1a0] sm:$0xf]
    %v1565 = vld [vmem:[%s4 + $0x1a4] sm:$0xf]
    %v1566 = vld [vmem:[%s4 + $0x1a8] sm:$0xf]
    %v1567 = vld [vmem:[%s4 + $0x1ac] sm:$0xf]
    %v1568 = vld [vmem:[%s4 + $0x1b0] sm:$0xf]
    %v1569 = vld [vmem:[%s4 + $0x1b4] sm:$0xf]
    %v1570 = vld [vmem:[%s4 + $0x1b8] sm:$0xf]
    %v1571 = vld [vmem:[%s4 + $0x1bc] sm:$0xf]
    %v1572 = vld [vmem:[%s4 + $0x1c0] sm:$0xf]
    %v1573 = vld [vmem:[%s4 + $0x1c4] sm:$0xf]
    %v1574 = vld [vmem:[%s4 + $0x1c8] sm:$0xf]
    %v1575 = vld [vmem:[%s4 + $0x1cc] sm:$0xf]
    %v1576 = vld [vmem:[%s4 + $0x1d0] sm:$0xf]
    %v1577 = vld [vmem:[%s4 + $0x1d4] sm:$0xf]
    %v1578 = vld [vmem:[%s4 + $0x1d8] sm:$0xf]
    %v1579 = vld [vmem:[%s4 + $0x1dc] sm:$0xf]
    %v1580 = vld [vmem:[%s4 + $0x1e0] sm:$0xf]
    %v1581 = vld [vmem:[%s4 + $0x1e4] sm:$0xf]
    %v1582 = vld [vmem:[%s4 + $0x1e8] sm:$0xf]
    %v1583 = vld [vmem:[%s4 + $0x1ec] sm:$0xf]
    %v1584 = vld [vmem:[%s4 + $0x1f0] sm:$0xf]
    %v1585 = vld [vmem:[%s4 + $0x1f4] sm:$0xf]
    %v1586 = vld [vmem:[%s4 + $0x1f8] sm:$0xf]
    %v1587 = vld [vmem:[%s4 + $0x1fc] sm:$0xf]
    %v1588 = vld [vmem:[%s4 + $0x200] sm:$0xf]
    %v1589 = vld [vmem:[%s4 + $0x204] sm:$0xf]
    %v1590 = vld [vmem:[%s4 + $0x208] sm:$0xf]
    %v1591 = vld [vmem:[%s4 + $0x20c] sm:$0xf]
    %v1592 = vld [vmem:[%s4 + $0x210] sm:$0xf]
    %v1593 = vld [vmem:[%s4 + $0x214] sm:$0xf]
    %v1594 = vld [vmem:[%s4 + $0x218] sm:$0xf]
    %v1595 = vld [vmem:[%s4 + $0x21c] sm:$0xf]
    %v1596 = vld [vmem:[%s4 + $0x220] sm:$0xf]
    %v1597 = vld [vmem:[%s4 + $0x224] sm:$0xf]
    %v1598 = vld [vmem:[%s4 + $0x228] sm:$0xf]
    %v1599 = vld [vmem:[%s4 + $0x22c] sm:$0xf]
    %v1600 = vld [vmem:[%s4 + $0x230] sm:$0xf]
    %v1601 = vld [vmem:[%s4 + $0x234] sm:$0xf]
    %v1602 = vld [vmem:[%s4 + $0x238] sm:$0xf]
    %v1603 = vld [vmem:[%s4 + $0x23c] sm:$0xf]
    %v1604 = vld [vmem:[%s4 + $0x240] sm:$0xf]
    %v1605 = vld [vmem:[%s4 + $0x244] sm:$0xf]
    %v1606 = vld [vmem:[%s4 + $0x248] sm:$0xf]
    %v1607 = vld [vmem:[%s4 + $0x24c] sm:$0xf]
    %v1608 = vld [vmem:[%s4 + $0x250] sm:$0xf]
    %v1609 = vld [vmem:[%s4 + $0x254] sm:$0xf]
    %v1610 = vld [vmem:[%s4 + $0x258] sm:$0xf]
    %v1611 = vld [vmem:[%s4 + $0x25c] sm:$0xf]
    %v1612 = vld [vmem:[%s4 + $0x260] sm:$0xf]
    %v1613 = vld [vmem:[%s4 + $0x264] sm:$0xf]
    %v1614 = vld [vmem:[%s4 + $0x268] sm:$0xf]
    %v1615 = vld [vmem:[%s4 + $0x26c] sm:$0xf]
    %v1616 = vld [vmem:[%s4 + $0x270] sm:$0xf]
    %v1617 = vld [vmem:[%s4 + $0x274] sm:$0xf]
    %v1618 = vld [vmem:[%s4 + $0x278] sm:$0xf]
    %v1619 = vld [vmem:[%s4 + $0x27c] sm:$0xf]
    %v1620 = vld [vmem:[%s4 + $0x280] sm:$0xf]
    %v1621 = vld [vmem:[%s4 + $0x284] sm:$0xf]
    %v1622 = vld [vmem:[%s4 + $0x288] sm:$0xf]
    %v1623 = vld [vmem:[%s4 + $0x28c] sm:$0xf]
    %v1624 = vld [vmem:[%s4 + $0x290] sm:$0xf]
    %v1625 = vld [vmem:[%s4 + $0x294] sm:$0xf]
    %v1626 = vld [vmem:[%s4 + $0x298] sm:$0xf]
    %v1627 = vld [vmem:[%s4 + $0x29c] sm:$0xf]
    %v1628 = vld [vmem:[%s4 + $0x2a0] sm:$0xf]
    %v1629 = vld [vmem:[%s4 + $0x2a4] sm:$0xf]
    %v1630 = vld [vmem:[%s4 + $0x2a8] sm:$0xf]
    %v1631 = vld [vmem:[%s4 + $0x2ac] sm:$0xf]
    %v1632 = vld [vmem:[%s4 + $0x2b0] sm:$0xf]
    %v1633 = vld [vmem:[%s4 + $0x2b4] sm:$0xf]
    %v1634 = vld [vmem:[%s4 + $0x2b8] sm:$0xf]
    %v1635 = vld [vmem:[%s4 + $0x2bc] sm:$0xf]
    %v1636 = vld [vmem:[%s4 + $0x2c0] sm:$0xf]
    %v1637 = vld [vmem:[%s4 + $0x2c4] sm:$0xf]
    %v1638 = vld [vmem:[%s4 + $0x2c8] sm:$0xf]
    %v1639 = vld [vmem:[%s4 + $0x2cc] sm:$0xf]
    %v1640 = vld [vmem:[%s4 + $0x2d0] sm:$0xf]
    %v1641 = vld [vmem:[%s4 + $0x2d4] sm:$0xf]
    %v1642 = vld [vmem:[%s4 + $0x2d8] sm:$0xf]
    %v1643 = vld [vmem:[%s4 + $0x2dc] sm:$0xf]
    %v1644 = vld [vmem:[%s4 + $0x2e0] sm:$0xf]
    %v1645 = vld [vmem:[%s4 + $0x2e4] sm:$0xf]
    %v1646 = vld [vmem:[%s4 + $0x2e8] sm:$0xf]
    %v1647 = vld [vmem:[%s4 + $0x2ec] sm:$0xf]
    %v1648 = vld [vmem:[%s4 + $0x2f0] sm:$0xf]
    %v1649 = vld [vmem:[%s4 + $0x2f4] sm:$0xf]
    %v1650 = vld [vmem:[%s4 + $0x2f8] sm:$0xf]
    %v1651 = vld [vmem:[%s4 + $0x2fc] sm:$0xf]
    %v1652 = vld [vmem:[%s4 + $0x300] sm:$0xf]
    %v1653 = vld [vmem:[%s4 + $0x304] sm:$0xf]
    %v1654 = vld [vmem:[%s4 + $0x308] sm:$0xf]
    %v1655 = vld [vmem:[%s4 + $0x30c] sm:$0xf]
    %v1656 = vld [vmem:[%s4 + $0x310] sm:$0xf]
    %v1657 = vld [vmem:[%s4 + $0x314] sm:$0xf]
    %v1658 = vld [vmem:[%s4 + $0x318] sm:$0xf]
    %v1659 = vld [vmem:[%s4 + $0x31c] sm:$0xf]
    %v1660 = vld [vmem:[%s4 + $0x320] sm:$0xf]
    %v1661 = vld [vmem:[%s4 + $0x324] sm:$0xf]
    %v1662 = vld [vmem:[%s4 + $0x328] sm:$0xf]
    %v1663 = vld [vmem:[%s4 + $0x32c] sm:$0xf]
    %v1664 = vld [vmem:[%s4 + $0x330] sm:$0xf]
    %v1665 = vld [vmem:[%s4 + $0x334] sm:$0xf]
    %v1666 = vld [vmem:[%s4 + $0x338] sm:$0xf]
    %v1667 = vld [vmem:[%s4 + $0x33c] sm:$0xf]
    %v1668 = vld [vmem:[%s4 + $0x340] sm:$0xf]
    %v1669 = vld [vmem:[%s4 + $0x344] sm:$0xf]
    %v1670 = vld [vmem:[%s4 + $0x348] sm:$0xf]
    %v1671 = vld [vmem:[%s4 + $0x34c] sm:$0xf]
    %v1672 = vld [vmem:[%s4 + $0x350] sm:$0xf]
    %v1673 = vld [vmem:[%s4 + $0x354] sm:$0xf]
    %v1674 = vld [vmem:[%s4 + $0x358] sm:$0xf]
    %v1675 = vld [vmem:[%s4 + $0x35c] sm:$0xf]
    %v1676 = vld [vmem:[%s4 + $0x360] sm:$0xf]
    %v1677 = vld [vmem:[%s4 + $0x364] sm:$0xf]
    %v1678 = vld [vmem:[%s4 + $0x368] sm:$0xf]
    %v1679 = vld [vmem:[%s4 + $0x36c] sm:$0xf]
    %v1680 = vld [vmem:[%s4 + $0x370] sm:$0xf]
    %v1681 = vld [vmem:[%s4 + $0x374] sm:$0xf]
    %v1682 = vld [vmem:[%s4 + $0x378] sm:$0xf]
    %v1683 = vld [vmem:[%s4 + $0x37c] sm:$0xf]
    %v1684 = vld [vmem:[%s4 + $0x380] sm:$0xf]
    %v1685 = vld [vmem:[%s4 + $0x384] sm:$0xf]
    %v1686 = vld [vmem:[%s4 + $0x388] sm:$0xf]
    %v1687 = vld [vmem:[%s4 + $0x38c] sm:$0xf]
    %v1688 = vld [vmem:[%s4 + $0x390] sm:$0xf]
    %v1689 = vld [vmem:[%s4 + $0x394] sm:$0xf]
    %v1690 = vld [vmem:[%s4 + $0x398] sm:$0xf]
    %v1691 = vld [vmem:[%s4 + $0x39c] sm:$0xf]
    %v1692 = vld [vmem:[%s4 + $0x3a0] sm:$0xf]
    %v1693 = vld [vmem:[%s4 + $0x3a4] sm:$0xf]
    %v1694 = vld [vmem:[%s4 + $0x3a8] sm:$0xf]
    %v1695 = vld [vmem:[%s4 + $0x3ac] sm:$0xf]
    %v1696 = vld [vmem:[%s4 + $0x3b0] sm:$0xf]
    %v1697 = vld [vmem:[%s4 + $0x3b4] sm:$0xf]
    %v1698 = vld [vmem:[%s4 + $0x3b8] sm:$0xf]
    %v1699 = vld [vmem:[%s4 + $0x3bc] sm:$0xf]
    %v1700 = vld [vmem:[%s4 + $0x3c0] sm:$0xf]
    %v1701 = vld [vmem:[%s4 + $0x3c4] sm:$0xf]
    %v1702 = vld [vmem:[%s4 + $0x3c8] sm:$0xf]
    %v1703 = vld [vmem:[%s4 + $0x3cc] sm:$0xf]
    %v1704 = vld [vmem:[%s4 + $0x3d0] sm:$0xf]
    %v1705 = vld [vmem:[%s4 + $0x3d4] sm:$0xf]
    %v1706 = vld [vmem:[%s4 + $0x3d8] sm:$0xf]
    %v1707 = vld [vmem:[%s4 + $0x3dc] sm:$0xf]
    %v1708 = vld [vmem:[%s4 + $0x3e0] sm:$0xf]
    %v1709 = vld [vmem:[%s4 + $0x3e4] sm:$0xf]
    %v1710 = vld [vmem:[%s4 + $0x3e8] sm:$0xf]
    %v1711 = vld [vmem:[%s4 + $0x3ec] sm:$0xf]
    %v1712 = vld [vmem:[%s4 + $0x3f0] sm:$0xf]
    %v1713 = vld [vmem:[%s4 + $0x3f4] sm:$0xf]
    %v1714 = vld [vmem:[%s4 + $0x3f8] sm:$0xf]
    %v1715 = vld [vmem:[%s4 + $0x3fc] sm:$0xf]
    %v1716 = vld [vmem:[%s4 + $0x400] sm:$0xf]
    %v1717 = vld [vmem:[%s4 + $0x404] sm:$0xf]
    %v1718 = vld [vmem:[%s4 + $0x408] sm:$0xf]
    %v1719 = vld [vmem:[%s4 + $0x40c] sm:$0xf]
    %v1720 = vld [vmem:[%s4 + $0x410] sm:$0xf]
    %v1721 = vld [vmem:[%s4 + $0x414] sm:$0xf]
    %v1722 = vld [vmem:[%s4 + $0x418] sm:$0xf]
    %v1723 = vld [vmem:[%s4 + $0x41c] sm:$0xf]
    %v1724 = vld [vmem:[%s4 + $0x420] sm:$0xf]
    %v1725 = vld [vmem:[%s4 + $0x424] sm:$0xf]
    %v1726 = vld [vmem:[%s4 + $0x428] sm:$0xf]
    %v1727 = vld [vmem:[%s4 + $0x42c] sm:$0xf]
    %v1728 = vld [vmem:[%s4 + $0x430] sm:$0xf]
    %v1729 = vld [vmem:[%s4 + $0x434] sm:$0xf]
    %v1730 = vld [vmem:[%s4 + $0x438] sm:$0xf]
    %v1731 = vld [vmem:[%s4 + $0x43c] sm:$0xf]
    %v1732 = vld [vmem:[%s4 + $0x440] sm:$0xf]
    %v1733 = vld [vmem:[%s4 + $0x444] sm:$0xf]
    %v1734 = vld [vmem:[%s4 + $0x448] sm:$0xf]
    %v1735 = vld [vmem:[%s4 + $0x44c] sm:$0xf]
    %v1736 = vld [vmem:[%s4 + $0x450] sm:$0xf]
    %v1737 = vld [vmem:[%s4 + $0x454] sm:$0xf]
    %v1738 = vld [vmem:[%s4 + $0x458] sm:$0xf]
    %v1739 = vld [vmem:[%s4 + $0x45c] sm:$0xf]
    %v1740 = vld [vmem:[%s4 + $0x460] sm:$0xf]
    %v1741 = vld [vmem:[%s4 + $0x464] sm:$0xf]
    %v1742 = vld [vmem:[%s4 + $0x468] sm:$0xf]
    %v1743 = vld [vmem:[%s4 + $0x46c] sm:$0xf]
    %v1744 = vld [vmem:[%s4 + $0x470] sm:$0xf]
    %v1745 = vld [vmem:[%s4 + $0x474] sm:$0xf]
    %v1746 = vld [vmem:[%s4 + $0x478] sm:$0xf]
    %v1747 = vld [vmem:[%s4 + $0x47c] sm:$0xf]
    %v1748 = vld [vmem:[%s4 + $0x480] sm:$0xf]
    %v1749 = vld [vmem:[%s4 + $0x484] sm:$0xf]
    %v1750 = vld [vmem:[%s4 + $0x488] sm:$0xf]
    %v1751 = vld [vmem:[%s4 + $0x48c] sm:$0xf]
    %v1752 = vld [vmem:[%s4 + $0x490] sm:$0xf]
    %v1753 = vld [vmem:[%s4 + $0x494] sm:$0xf]
    %v1754 = vld [vmem:[%s4 + $0x498] sm:$0xf]
    %v1755 = vld [vmem:[%s4 + $0x49c] sm:$0xf]
    %v1756 = vld [vmem:[%s4 + $0x4a0] sm:$0xf]
    %v1757 = vld [vmem:[%s4 + $0x4a4] sm:$0xf]
    %v1758 = vld [vmem:[%s4 + $0x4a8] sm:$0xf]
    %v1759 = vld [vmem:[%s4 + $0x4ac] sm:$0xf]
    %v1760 = vld [vmem:[%s4 + $0x4b0] sm:$0xf]
    %v1761 = vld [vmem:[%s4 + $0x4b4] sm:$0xf]
    %v1762 = vld [vmem:[%s4 + $0x4b8] sm:$0xf]
    %v1763 = vld [vmem:[%s4 + $0x4bc] sm:$0xf]
    %v1764 = vld [vmem:[%s4 + $0x4c0] sm:$0xf]
    %v1765 = vld [vmem:[%s4 + $0x4c4] sm:$0xf]
    %v1766 = vld [vmem:[%s4 + $0x4c8] sm:$0xf]
    %v1767 = vld [vmem:[%s4 + $0x4cc] sm:$0xf]
    %v1768 = vld [vmem:[%s4 + $0x4d0] sm:$0xf]
    %v1769 = vld [vmem:[%s4 + $0x4d4] sm:$0xf]
    %v1770 = vld [vmem:[%s4 + $0x4d8] sm:$0xf]
    %v1771 = vld [vmem:[%s4 + $0x4dc] sm:$0xf]
    %v1772 = vld [vmem:[%s4 + $0x4e0] sm:$0xf]
    %v1773 = vld [vmem:[%s4 + $0x4e4] sm:$0xf]
    %v1774 = vld [vmem:[%s4 + $0x4e8] sm:$0xf]
    %v1775 = vld [vmem:[%s4 + $0x4ec] sm:$0xf]
    %v1776 = vld [vmem:[%s4 + $0x4f0] sm:$0xf]
    %v1777 = vld [vmem:[%s4 + $0x4f4] sm:$0xf]
    %v1778 = vld [vmem:[%s4 + $0x4f8] sm:$0xf]
    %v1779 = vld [vmem:[%s4 + $0x4fc] sm:$0xf]
    %v1780 = vld [vmem:[%s4 + $0x500] sm:$0xf]
    %v1781 = vld [vmem:[%s4 + $0x504] sm:$0xf]
    %v1782 = vld [vmem:[%s4 + $0x508] sm:$0xf]
    %v1783 = vld [vmem:[%s4 + $0x50c] sm:$0xf]
    %v1784 = vld [vmem:[%s4 + $0x510] sm:$0xf]
    %v1785 = vld [vmem:[%s4 + $0x514] sm:$0xf]
    %v1786 = vld [vmem:[%s4 + $0x518] sm:$0xf]
    %v1787 = vld [vmem:[%s4 + $0x51c] sm:$0xf]
    %v1788 = vld [vmem:[%s4 + $0x520] sm:$0xf]
    %v1789 = vld [vmem:[%s4 + $0x524] sm:$0xf]
    %v1790 = vld [vmem:[%s4 + $0x528] sm:$0xf]
    %v1791 = vld [vmem:[%s4 + $0x52c] sm:$0xf]
    %v1792 = vld [vmem:[%s4 + $0x530] sm:$0xf]
    %v1793 = vld [vmem:[%s4 + $0x534] sm:$0xf]
    %v1794 = vld [vmem:[%s4 + $0x538] sm:$0xf]
    %v1795 = vld [vmem:[%s4 + $0x53c] sm:$0xf]
    %v1796 = vld [vmem:[%s4 + $0x540] sm:$0xf]
    %v1797 = vld [vmem:[%s4 + $0x544] sm:$0xf]
    %v1798 = vld [vmem:[%s4 + $0x548] sm:$0xf]
    %v1799 = vld [vmem:[%s4 + $0x54c] sm:$0xf]
    %v1800 = vld [vmem:[%s4 + $0x550] sm:$0xf]
    %v1801 = vld [vmem:[%s4 + $0x554] sm:$0xf]
    %v1802 = vld [vmem:[%s4 + $0x558] sm:$0xf]
    %v1803 = vld [vmem:[%s4 + $0x55c] sm:$0xf]
    %v1804 = vld [vmem:[%s4 + $0x560] sm:$0xf]
    %v1805 = vld [vmem:[%s4 + $0x564] sm:$0xf]
    %v1806 = vld [vmem:[%s4 + $0x568] sm:$0xf]
    %v1807 = vld [vmem:[%s4 + $0x56c] sm:$0xf]
    %v1808 = vld [vmem:[%s4 + $0x570] sm:$0xf]
    %v1809 = vld [vmem:[%s4 + $0x574] sm:$0xf]
    %v1810 = vld [vmem:[%s4 + $0x578] sm:$0xf]
    %v1811 = vld [vmem:[%s4 + $0x57c] sm:$0xf]
    %v1812 = vld [vmem:[%s4 + $0x580] sm:$0xf]
    %v1813 = vld [vmem:[%s4 + $0x584] sm:$0xf]
    %v1814 = vld [vmem:[%s4 + $0x588] sm:$0xf]
    %v1815 = vld [vmem:[%s4 + $0x58c] sm:$0xf]
    %v1816 = vld [vmem:[%s4 + $0x590] sm:$0xf]
    %v1817 = vld [vmem:[%s4 + $0x594] sm:$0xf]
    %v1818 = vld [vmem:[%s4 + $0x598] sm:$0xf]
    %v1819 = vld [vmem:[%s4 + $0x59c] sm:$0xf]
    %v1820 = vld [vmem:[%s4 + $0x5a0] sm:$0xf]
    %v1821 = vld [vmem:[%s4 + $0x5a4] sm:$0xf]
    %v1822 = vld [vmem:[%s4 + $0x5a8] sm:$0xf]
    %v1823 = vld [vmem:[%s4 + $0x5ac] sm:$0xf]
    %v1824 = vld [vmem:[%s4 + $0x5b0] sm:$0xf]
    %v1825 = vld [vmem:[%s4 + $0x5b4] sm:$0xf]
    %v1826 = vld [vmem:[%s4 + $0x5b8] sm:$0xf]
    %v1827 = vld [vmem:[%s4 + $0x5bc] sm:$0xf]
    %v1828 = vld [vmem:[%s4 + $0x5c0] sm:$0xf]
    %v1829 = vld [vmem:[%s4 + $0x5c4] sm:$0xf]
    %v1830 = vld [vmem:[%s4 + $0x5c8] sm:$0xf]
    %v1831 = vld [vmem:[%s4 + $0x5cc] sm:$0xf]
    %v1832 = vld [vmem:[%s4 + $0x5d0] sm:$0xf]
    %v1833 = vld [vmem:[%s4 + $0x5d4] sm:$0xf]
    %v1834 = vld [vmem:[%s4 + $0x5d8] sm:$0xf]
    %v1835 = vld [vmem:[%s4 + $0x5dc] sm:$0xf]
    %v1836 = vld [vmem:[%s4 + $0x5e0] sm:$0xf]
    %v1837 = vld [vmem:[%s4 + $0x5e4] sm:$0xf]
    %v1838 = vld [vmem:[%s4 + $0x5e8] sm:$0xf]
    %v1839 = vld [vmem:[%s4 + $0x5ec] sm:$0xf]
    %v1840 = vld [vmem:[%s4 + $0x5f0] sm:$0xf]
    %v1841 = vld [vmem:[%s4 + $0x5f4] sm:$0xf]
    %v1842 = vld [vmem:[%s4 + $0x5f8] sm:$0xf]
    %v1843 = vld [vmem:[%s4 + $0x5fc] sm:$0xf]
    %v1844 = vld [vmem:[%s4 + $0x600] sm:$0xf]
    %v1845 = vld [vmem:[%s4 + $0x604] sm:$0xf]
    %v1846 = vld [vmem:[%s4 + $0x608] sm:$0xf]
    %v1847 = vld [vmem:[%s4 + $0x60c] sm:$0xf]
    %v1848 = vld [vmem:[%s4 + $0x610] sm:$0xf]
    %v1849 = vld [vmem:[%s4 + $0x614] sm:$0xf]
    %v1850 = vld [vmem:[%s4 + $0x618] sm:$0xf]
    %v1851 = vld [vmem:[%s4 + $0x61c] sm:$0xf]
    %v1852 = vld [vmem:[%s4 + $0x620] sm:$0xf]
    %v1853 = vld [vmem:[%s4 + $0x624] sm:$0xf]
    %v1854 = vld [vmem:[%s4 + $0x628] sm:$0xf]
    %v1855 = vld [vmem:[%s4 + $0x62c] sm:$0xf]
    %v1856 = vld [vmem:[%s4 + $0x630] sm:$0xf]
    %v1857 = vld [vmem:[%s4 + $0x634] sm:$0xf]
    %v1858 = vld [vmem:[%s4 + $0x638] sm:$0xf]
    %v1859 = vld [vmem:[%s4 + $0x63c] sm:$0xf]
    %v1860 = vld [vmem:[%s4 + $0x640] sm:$0xf]
    %v1861 = vld [vmem:[%s4 + $0x644] sm:$0xf]
    %v1862 = vld [vmem:[%s4 + $0x648] sm:$0xf]
    %v1863 = vld [vmem:[%s4 + $0x64c] sm:$0xf]
    %v1864 = vld [vmem:[%s4 + $0x650] sm:$0xf]
    %v1865 = vld [vmem:[%s4 + $0x654] sm:$0xf]
    %v1866 = vld [vmem:[%s4 + $0x658] sm:$0xf]
    %v1867 = vld [vmem:[%s4 + $0x65c] sm:$0xf]
    %v1868 = vld [vmem:[%s4 + $0x660] sm:$0xf]
    %v1869 = vld [vmem:[%s4 + $0x664] sm:$0xf]
    %v1870 = vld [vmem:[%s4 + $0x668] sm:$0xf]
    %v1871 = vld [vmem:[%s4 + $0x66c] sm:$0xf]
    %v1872 = vld [vmem:[%s4 + $0x670] sm:$0xf]
    %v1873 = vld [vmem:[%s4 + $0x674] sm:$0xf]
    %v1874 = vld [vmem:[%s4 + $0x678] sm:$0xf]
    %v1875 = vld [vmem:[%s4 + $0x67c] sm:$0xf]
    %v1876 = vld [vmem:[%s4 + $0x680] sm:$0xf]
    %v1877 = vld [vmem:[%s4 + $0x684] sm:$0xf]
    %v1878 = vld [vmem:[%s4 + $0x688] sm:$0xf]
    %v1879 = vld [vmem:[%s4 + $0x68c] sm:$0xf]
    %v1880 = vld [vmem:[%s4 + $0x690] sm:$0xf]
    %v1881 = vld [vmem:[%s4 + $0x694] sm:$0xf]
    %v1882 = vld [vmem:[%s4 + $0x698] sm:$0xf]
    %v1883 = vld [vmem:[%s4 + $0x69c] sm:$0xf]
    %v1884 = vld [vmem:[%s4 + $0x6a0] sm:$0xf]
    %v1885 = vld [vmem:[%s4 + $0x6a4] sm:$0xf]
    %v1886 = vld [vmem:[%s4 + $0x6a8] sm:$0xf]
    %v1887 = vld [vmem:[%s4 + $0x6ac] sm:$0xf]
    %v1888 = vld [vmem:[%s4 + $0x6b0] sm:$0xf]
    %v1889 = vld [vmem:[%s4 + $0x6b4] sm:$0xf]
    %v1890 = vld [vmem:[%s4 + $0x6b8] sm:$0xf]
    %v1891 = vld [vmem:[%s4 + $0x6bc] sm:$0xf]
    %v1892 = vld [vmem:[%s4 + $0x6c0] sm:$0xf]
    %v1893 = vld [vmem:[%s4 + $0x6c4] sm:$0xf]
    %v1894 = vld [vmem:[%s4 + $0x6c8] sm:$0xf]
    %v1895 = vld [vmem:[%s4 + $0x6cc] sm:$0xf]
    %v1896 = vld [vmem:[%s4 + $0x6d0] sm:$0xf]
    %v1897 = vld [vmem:[%s4 + $0x6d4] sm:$0xf]
    %v1898 = vld [vmem:[%s4 + $0x6d8] sm:$0xf]
    %v1899 = vld [vmem:[%s4 + $0x6dc] sm:$0xf]
    %v1900 = vld [vmem:[%s4 + $0x6e0] sm:$0xf]
    %v1901 = vld [vmem:[%s4 + $0x6e4] sm:$0xf]
    %v1902 = vld [vmem:[%s4 + $0x6e8] sm:$0xf]
    %v1903 = vld [vmem:[%s4 + $0x6ec] sm:$0xf]
    %v1904 = vld [vmem:[%s4 + $0x6f0] sm:$0xf]
    %v1905 = vld [vmem:[%s4 + $0x6f4] sm:$0xf]
    %v1906 = vld [vmem:[%s4 + $0x6f8] sm:$0xf]
    %v1907 = vld [vmem:[%s4 + $0x6fc] sm:$0xf]
    %v1908 = vld [vmem:[%s4 + $0x700] sm:$0xf]
    %v1909 = vld [vmem:[%s4 + $0x704] sm:$0xf]
    %v1910 = vld [vmem:[%s4 + $0x708] sm:$0xf]
    %v1911 = vld [vmem:[%s4 + $0x70c] sm:$0xf]
    %v1912 = vld [vmem:[%s4 + $0x710] sm:$0xf]
    %v1913 = vld [vmem:[%s4 + $0x714] sm:$0xf]
    %v1914 = vld [vmem:[%s4 + $0x718] sm:$0xf]
    %v1915 = vld [vmem:[%s4 + $0x71c] sm:$0xf]
    %v1916 = vld [vmem:[%s4 + $0x720] sm:$0xf]
    %v1917 = vld [vmem:[%s4 + $0x724] sm:$0xf]
    %v1918 = vld [vmem:[%s4 + $0x728] sm:$0xf]
    %v1919 = vld [vmem:[%s4 + $0x72c] sm:$0xf]
    %v1920 = vld [vmem:[%s4 + $0x730] sm:$0xf]
    %v1921 = vld [vmem:[%s4 + $0x734] sm:$0xf]
    %v1922 = vld [vmem:[%s4 + $0x738] sm:$0xf]
    %v1923 = vld [vmem:[%s4 + $0x73c] sm:$0xf]
    %v1924 = vld [vmem:[%s4 + $0x740] sm:$0xf]
    %v1925 = vld [vmem:[%s4 + $0x744] sm:$0xf]
    %v1926 = vld [vmem:[%s4 + $0x748] sm:$0xf]
    %v1927 = vld [vmem:[%s4 + $0x74c] sm:$0xf]
    %v1928 = vld [vmem:[%s4 + $0x750] sm:$0xf]
    %v1929 = vld [vmem:[%s4 + $0x754] sm:$0xf]
    %v1930 = vld [vmem:[%s4 + $0x758] sm:$0xf]
    %v1931 = vld [vmem:[%s4 + $0x75c] sm:$0xf]
    %v1932 = vld [vmem:[%s4 + $0x760] sm:$0xf]
    %v1933 = vld [vmem:[%s4 + $0x764] sm:$0xf]
    %v1934 = vld [vmem:[%s4 + $0x768] sm:$0xf]
    %v1935 = vld [vmem:[%s4 + $0x76c] sm:$0xf]
    %v1936 = vld [vmem:[%s4 + $0x770] sm:$0xf]
    %v1937 = vld [vmem:[%s4 + $0x774] sm:$0xf]
    %v1938 = vld [vmem:[%s4 + $0x778] sm:$0xf]
    %v1939 = vld [vmem:[%s4 + $0x77c] sm:$0xf]
    %v1940 = vld [vmem:[%s4 + $0x780] sm:$0xf]
    %v1941 = vld [vmem:[%s4 + $0x784] sm:$0xf]
    %v1942 = vld [vmem:[%s4 + $0x788] sm:$0xf]
    %v1943 = vld [vmem:[%s4 + $0x78c] sm:$0xf]
    %v1944 = vld [vmem:[%s4 + $0x790] sm:$0xf]
    %v1945 = vld [vmem:[%s4 + $0x794] sm:$0xf]
    %v1946 = vld [vmem:[%s4 + $0x798] sm:$0xf]
    %v1947 = vld [vmem:[%s4 + $0x79c] sm:$0xf]
    %v1948 = vld [vmem:[%s4 + $0x7a0] sm:$0xf]
    %v1949 = vld [vmem:[%s4 + $0x7a4] sm:$0xf]
    %v1950 = vld [vmem:[%s4 + $0x7a8] sm:$0xf]
    %v1951 = vld [vmem:[%s4 + $0x7ac] sm:$0xf]
    %v1952 = vld [vmem:[%s4 + $0x7b0] sm:$0xf]
    %v1953 = vld [vmem:[%s4 + $0x7b4] sm:$0xf]
    %v1954 = vld [vmem:[%s4 + $0x7b8] sm:$0xf]
    %v1955 = vld [vmem:[%s4 + $0x7bc] sm:$0xf]
    %v1956 = vld [vmem:[%s4 + $0x7c0] sm:$0xf]
    %v1957 = vld [vmem:[%s4 + $0x7c4] sm:$0xf]
    %v1958 = vld [vmem:[%s4 + $0x7c8] sm:$0xf]
    %v1959 = vld [vmem:[%s4 + $0x7cc] sm:$0xf]
    %v1960 = vld [vmem:[%s4 + $0x7d0] sm:$0xf]
    %v1961 = vld [vmem:[%s4 + $0x7d4] sm:$0xf]
    %v1962 = vld [vmem:[%s4 + $0x7d8] sm:$0xf]
    %v1963 = vld [vmem:[%s4 + $0x7dc] sm:$0xf]
    %v1964 = vld [vmem:[%s4 + $0x7e0] sm:$0xf]
    %v1965 = vld [vmem:[%s4 + $0x7e4] sm:$0xf]
    %v1966 = vld [vmem:[%s4 + $0x7e8] sm:$0xf]
    %v1967 = vld [vmem:[%s4 + $0x7ec] sm:$0xf]
    %v1968 = vld [vmem:[%s4 + $0x7f0] sm:$0xf]
    %v1969 = vld [vmem:[%s4 + $0x7f4] sm:$0xf]
    %v1970 = vld [vmem:[%s4 + $0x7f8] sm:$0xf]
    %v1971 = vld [vmem:[%s4 + $0x7fc] sm:$0xf]
    %v1972 = vld [vmem:[%s5] sm:$0x1]
    %v1973 = vunpack.c.l.bf16 %v1972
    %v1974 = vlaneseq
    %v1975 = vshrl.u32 %v1974, 7
    %v1976 = vsub.s32 0, %v1975
    %v1977 = vrot.slane %v1973, %v1976
    %v2490 = vunpack.c.l.b16 %v1460
    %v2491 = vunpack.c.l.b16 %v1461
    %v2492 = vunpack.c.l.b16 %v1462
    %v2493 = vunpack.c.l.b16 %v1463
    %v2494 = vunpack.c.l.b16 %v1464
    %v2495 = vunpack.c.l.b16 %v1465
    %v2496 = vunpack.c.l.b16 %v1466
    %v2497 = vunpack.c.l.b16 %v1467
    %v2498 = vunpack.c.l.b16 %v1468
    %v2499 = vunpack.c.l.b16 %v1469
    %v2500 = vunpack.c.l.b16 %v1470
    %v2501 = vunpack.c.l.b16 %v1471
    %v2502 = vunpack.c.l.b16 %v1472
    %v2503 = vunpack.c.l.b16 %v1473
    %v2504 = vunpack.c.l.b16 %v1474
    %v2505 = vunpack.c.l.b16 %v1475
    %v2506 = vunpack.c.l.b16 %v1476
    %v2507 = vunpack.c.l.b16 %v1477
    %v2508 = vunpack.c.l.b16 %v1478
    %v2509 = vunpack.c.l.b16 %v1479
    %v2510 = vunpack.c.l.b16 %v1480
    %v2511 = vunpack.c.l.b16 %v1481
    %v2512 = vunpack.c.l.b16 %v1482
    %v2513 = vunpack.c.l.b16 %v1483
    %v2514 = vunpack.c.l.b16 %v1484
    %v2515 = vunpack.c.l.b16 %v1485
    %v2516 = vunpack.c.l.b16 %v1486
    %v2517 = vunpack.c.l.b16 %v1487
    %v2518 = vunpack.c.l.b16 %v1488
    %v2519 = vunpack.c.l.b16 %v1489
    %v2520 = vunpack.c.l.b16 %v1490
    %v2521 = vunpack.c.l.b16 %v1491
    %v2522 = vunpack.c.l.b16 %v1492
    %v2523 = vunpack.c.l.b16 %v1493
    %v2524 = vunpack.c.l.b16 %v1494
    %v2525 = vunpack.c.l.b16 %v1495
    %v2526 = vunpack.c.l.b16 %v1496
    %v2527 = vunpack.c.l.b16 %v1497
    %v2528 = vunpack.c.l.b16 %v1498
    %v2529 = vunpack.c.l.b16 %v1499
    %v2530 = vunpack.c.l.b16 %v1500
    %v2531 = vunpack.c.l.b16 %v1501
    %v2532 = vunpack.c.l.b16 %v1502
    %v2533 = vunpack.c.l.b16 %v1503
    %v2534 = vunpack.c.l.b16 %v1504
    %v2535 = vunpack.c.l.b16 %v1505
    %v2536 = vunpack.c.l.b16 %v1506
    %v2537 = vunpack.c.l.b16 %v1507
    %v2538 = vunpack.c.l.b16 %v1508
    %v2539 = vunpack.c.l.b16 %v1509
    %v2540 = vunpack.c.l.b16 %v1510
    %v2541 = vunpack.c.l.b16 %v1511
    %v2542 = vunpack.c.l.b16 %v1512
    %v2543 = vunpack.c.l.b16 %v1513
    %v2544 = vunpack.c.l.b16 %v1514
    %v2545 = vunpack.c.l.b16 %v1515
    %v2546 = vunpack.c.l.b16 %v1516
    %v2547 = vunpack.c.l.b16 %v1517
    %v2548 = vunpack.c.l.b16 %v1518
    %v2549 = vunpack.c.l.b16 %v1519
    %v2550 = vunpack.c.l.b16 %v1520
    %v2551 = vunpack.c.l.b16 %v1521
    %v2552 = vunpack.c.l.b16 %v1522
    %v2553 = vunpack.c.l.b16 %v1523
    %v2554 = vunpack.c.l.b16 %v1524
    %v2555 = vunpack.c.l.b16 %v1525
    %v2556 = vunpack.c.l.b16 %v1526
    %v2557 = vunpack.c.l.b16 %v1527
    %v2558 = vunpack.c.l.b16 %v1528
    %v2559 = vunpack.c.l.b16 %v1529
    %v2560 = vunpack.c.l.b16 %v1530
    %v2561 = vunpack.c.l.b16 %v1531
    %v2562 = vunpack.c.l.b16 %v1532
    %v2563 = vunpack.c.l.b16 %v1533
    %v2564 = vunpack.c.l.b16 %v1534
    %v2565 = vunpack.c.l.b16 %v1535
    %v2566 = vunpack.c.l.b16 %v1536
    %v2567 = vunpack.c.l.b16 %v1537
    %v2568 = vunpack.c.l.b16 %v1538
    %v2569 = vunpack.c.l.b16 %v1539
    %v2570 = vunpack.c.l.b16 %v1540
    %v2571 = vunpack.c.l.b16 %v1541
    %v2572 = vunpack.c.l.b16 %v1542
    %v2573 = vunpack.c.l.b16 %v1543
    %v2574 = vunpack.c.l.b16 %v1544
    %v2575 = vunpack.c.l.b16 %v1545
    %v2576 = vunpack.c.l.b16 %v1546
    %v2577 = vunpack.c.l.b16 %v1547
    %v2578 = vunpack.c.l.b16 %v1548
    %v2579 = vunpack.c.l.b16 %v1549
    %v2580 = vunpack.c.l.b16 %v1550
    %v2581 = vunpack.c.l.b16 %v1551
    %v2582 = vunpack.c.l.b16 %v1552
    %v2583 = vunpack.c.l.b16 %v1553
    %v2584 = vunpack.c.l.b16 %v1554
    %v2585 = vunpack.c.l.b16 %v1555
    %v2586 = vunpack.c.l.b16 %v1556
    %v2587 = vunpack.c.l.b16 %v1557
    %v2588 = vunpack.c.l.b16 %v1558
    %v2589 = vunpack.c.l.b16 %v1559
    %v2590 = vunpack.c.l.b16 %v1560
    %v2591 = vunpack.c.l.b16 %v1561
    %v2592 = vunpack.c.l.b16 %v1562
    %v2593 = vunpack.c.l.b16 %v1563
    %v2594 = vunpack.c.l.b16 %v1564
    %v2595 = vunpack.c.l.b16 %v1565
    %v2596 = vunpack.c.l.b16 %v1566
    %v2597 = vunpack.c.l.b16 %v1567
    %v2598 = vunpack.c.l.b16 %v1568
    %v2599 = vunpack.c.l.b16 %v1569
    %v2600 = vunpack.c.l.b16 %v1570
    %v2601 = vunpack.c.l.b16 %v1571
    %v2602 = vunpack.c.l.b16 %v1572
    %v2603 = vunpack.c.l.b16 %v1573
    %v2604 = vunpack.c.l.b16 %v1574
    %v2605 = vunpack.c.l.b16 %v1575
    %v2606 = vunpack.c.l.b16 %v1576
    %v2607 = vunpack.c.l.b16 %v1577
    %v2608 = vunpack.c.l.b16 %v1578
    %v2609 = vunpack.c.l.b16 %v1579
    %v2610 = vunpack.c.l.b16 %v1580
    %v2611 = vunpack.c.l.b16 %v1581
    %v2612 = vunpack.c.l.b16 %v1582
    %v2613 = vunpack.c.l.b16 %v1583
    %v2614 = vunpack.c.l.b16 %v1584
    %v2615 = vunpack.c.l.b16 %v1585
    %v2616 = vunpack.c.l.b16 %v1586
    %v2617 = vunpack.c.l.b16 %v1587
    %v2618 = vunpack.c.l.b16 %v1588
    %v2619 = vunpack.c.l.b16 %v1589
    %v2620 = vunpack.c.l.b16 %v1590
    %v2621 = vunpack.c.l.b16 %v1591
    %v2622 = vunpack.c.l.b16 %v1592
    %v2623 = vunpack.c.l.b16 %v1593
    %v2624 = vunpack.c.l.b16 %v1594
    %v2625 = vunpack.c.l.b16 %v1595
    %v2626 = vunpack.c.l.b16 %v1596
    %v2627 = vunpack.c.l.b16 %v1597
    %v2628 = vunpack.c.l.b16 %v1598
    %v2629 = vunpack.c.l.b16 %v1599
    %v2630 = vunpack.c.l.b16 %v1600
    %v2631 = vunpack.c.l.b16 %v1601
    %v2632 = vunpack.c.l.b16 %v1602
    %v2633 = vunpack.c.l.b16 %v1603
    %v2634 = vunpack.c.l.b16 %v1604
    %v2635 = vunpack.c.l.b16 %v1605
    %v2636 = vunpack.c.l.b16 %v1606
    %v2637 = vunpack.c.l.b16 %v1607
    %v2638 = vunpack.c.l.b16 %v1608
    %v2639 = vunpack.c.l.b16 %v1609
    %v2640 = vunpack.c.l.b16 %v1610
    %v2641 = vunpack.c.l.b16 %v1611
    %v2642 = vunpack.c.l.b16 %v1612
    %v2643 = vunpack.c.l.b16 %v1613
    %v2644 = vunpack.c.l.b16 %v1614
    %v2645 = vunpack.c.l.b16 %v1615
    %v2646 = vunpack.c.l.b16 %v1616
    %v2647 = vunpack.c.l.b16 %v1617
    %v2648 = vunpack.c.l.b16 %v1618
    %v2649 = vunpack.c.l.b16 %v1619
    %v2650 = vunpack.c.l.b16 %v1620
    %v2651 = vunpack.c.l.b16 %v1621
    %v2652 = vunpack.c.l.b16 %v1622
    %v2653 = vunpack.c.l.b16 %v1623
    %v2654 = vunpack.c.l.b16 %v1624
    %v2655 = vunpack.c.l.b16 %v1625
    %v2656 = vunpack.c.l.b16 %v1626
    %v2657 = vunpack.c.l.b16 %v1627
    %v2658 = vunpack.c.l.b16 %v1628
    %v2659 = vunpack.c.l.b16 %v1629
    %v2660 = vunpack.c.l.b16 %v1630
    %v2661 = vunpack.c.l.b16 %v1631
    %v2662 = vunpack.c.l.b16 %v1632
    %v2663 = vunpack.c.l.b16 %v1633
    %v2664 = vunpack.c.l.b16 %v1634
    %v2665 = vunpack.c.l.b16 %v1635
    %v2666 = vunpack.c.l.b16 %v1636
    %v2667 = vunpack.c.l.b16 %v1637
    %v2668 = vunpack.c.l.b16 %v1638
    %v2669 = vunpack.c.l.b16 %v1639
    %v2670 = vunpack.c.l.b16 %v1640
    %v2671 = vunpack.c.l.b16 %v1641
    %v2672 = vunpack.c.l.b16 %v1642
    %v2673 = vunpack.c.l.b16 %v1643
    %v2674 = vunpack.c.l.b16 %v1644
    %v2675 = vunpack.c.l.b16 %v1645
    %v2676 = vunpack.c.l.b16 %v1646
    %v2677 = vunpack.c.l.b16 %v1647
    %v2678 = vunpack.c.l.b16 %v1648
    %v2679 = vunpack.c.l.b16 %v1649
    %v2680 = vunpack.c.l.b16 %v1650
    %v2681 = vunpack.c.l.b16 %v1651
    %v2682 = vunpack.c.l.b16 %v1652
    %v2683 = vunpack.c.l.b16 %v1653
    %v2684 = vunpack.c.l.b16 %v1654
    %v2685 = vunpack.c.l.b16 %v1655
    %v2686 = vunpack.c.l.b16 %v1656
    %v2687 = vunpack.c.l.b16 %v1657
    %v2688 = vunpack.c.l.b16 %v1658
    %v2689 = vunpack.c.l.b16 %v1659
    %v2690 = vunpack.c.l.b16 %v1660
    %v2691 = vunpack.c.l.b16 %v1661
    %v2692 = vunpack.c.l.b16 %v1662
    %v2693 = vunpack.c.l.b16 %v1663
    %v2694 = vunpack.c.l.b16 %v1664
    %v2695 = vunpack.c.l.b16 %v1665
    %v2696 = vunpack.c.l.b16 %v1666
    %v2697 = vunpack.c.l.b16 %v1667
    %v2698 = vunpack.c.l.b16 %v1668
    %v2699 = vunpack.c.l.b16 %v1669
    %v2700 = vunpack.c.l.b16 %v1670
    %v2701 = vunpack.c.l.b16 %v1671
    %v2702 = vunpack.c.l.b16 %v1672
    %v2703 = vunpack.c.l.b16 %v1673
    %v2704 = vunpack.c.l.b16 %v1674
    %v2705 = vunpack.c.l.b16 %v1675
    %v2706 = vunpack.c.l.b16 %v1676
    %v2707 = vunpack.c.l.b16 %v1677
    %v2708 = vunpack.c.l.b16 %v1678
    %v2709 = vunpack.c.l.b16 %v1679
    %v2710 = vunpack.c.l.b16 %v1680
    %v2711 = vunpack.c.l.b16 %v1681
    %v2712 = vunpack.c.l.b16 %v1682
    %v2713 = vunpack.c.l.b16 %v1683
    %v2714 = vunpack.c.l.b16 %v1684
    %v2715 = vunpack.c.l.b16 %v1685
    %v2716 = vunpack.c.l.b16 %v1686
    %v2717 = vunpack.c.l.b16 %v1687
    %v2718 = vunpack.c.l.b16 %v1688
    %v2719 = vunpack.c.l.b16 %v1689
    %v2720 = vunpack.c.l.b16 %v1690
    %v2721 = vunpack.c.l.b16 %v1691
    %v2722 = vunpack.c.l.b16 %v1692
    %v2723 = vunpack.c.l.b16 %v1693
    %v2724 = vunpack.c.l.b16 %v1694
    %v2725 = vunpack.c.l.b16 %v1695
    %v2726 = vunpack.c.l.b16 %v1696
    %v2727 = vunpack.c.l.b16 %v1697
    %v2728 = vunpack.c.l.b16 %v1698
    %v2729 = vunpack.c.l.b16 %v1699
    %v2730 = vunpack.c.l.b16 %v1700
    %v2731 = vunpack.c.l.b16 %v1701
    %v2732 = vunpack.c.l.b16 %v1702
    %v2733 = vunpack.c.l.b16 %v1703
    %v2734 = vunpack.c.l.b16 %v1704
    %v2735 = vunpack.c.l.b16 %v1705
    %v2736 = vunpack.c.l.b16 %v1706
    %v2737 = vunpack.c.l.b16 %v1707
    %v2738 = vunpack.c.l.b16 %v1708
    %v2739 = vunpack.c.l.b16 %v1709
    %v2740 = vunpack.c.l.b16 %v1710
    %v2741 = vunpack.c.l.b16 %v1711
    %v2742 = vunpack.c.l.b16 %v1712
    %v2743 = vunpack.c.l.b16 %v1713
    %v2744 = vunpack.c.l.b16 %v1714
    %v2745 = vunpack.c.l.b16 %v1715
    %v2746 = vunpack.c.l.b16 %v1716
    %v2747 = vunpack.c.l.b16 %v1717
    %v2748 = vunpack.c.l.b16 %v1718
    %v2749 = vunpack.c.l.b16 %v1719
    %v2750 = vunpack.c.l.b16 %v1720
    %v2751 = vunpack.c.l.b16 %v1721
    %v2752 = vunpack.c.l.b16 %v1722
    %v2753 = vunpack.c.l.b16 %v1723
    %v2754 = vunpack.c.l.b16 %v1724
    %v2755 = vunpack.c.l.b16 %v1725
    %v2756 = vunpack.c.l.b16 %v1726
    %v2757 = vunpack.c.l.b16 %v1727
    %v2758 = vunpack.c.l.b16 %v1728
    %v2759 = vunpack.c.l.b16 %v1729
    %v2760 = vunpack.c.l.b16 %v1730
    %v2761 = vunpack.c.l.b16 %v1731
    %v2762 = vunpack.c.l.b16 %v1732
    %v2763 = vunpack.c.l.b16 %v1733
    %v2764 = vunpack.c.l.b16 %v1734
    %v2765 = vunpack.c.l.b16 %v1735
    %v2766 = vunpack.c.l.b16 %v1736
    %v2767 = vunpack.c.l.b16 %v1737
    %v2768 = vunpack.c.l.b16 %v1738
    %v2769 = vunpack.c.l.b16 %v1739
    %v2770 = vunpack.c.l.b16 %v1740
    %v2771 = vunpack.c.l.b16 %v1741
    %v2772 = vunpack.c.l.b16 %v1742
    %v2773 = vunpack.c.l.b16 %v1743
    %v2774 = vunpack.c.l.b16 %v1744
    %v2775 = vunpack.c.l.b16 %v1745
    %v2776 = vunpack.c.l.b16 %v1746
    %v2777 = vunpack.c.l.b16 %v1747
    %v2778 = vunpack.c.l.b16 %v1748
    %v2779 = vunpack.c.l.b16 %v1749
    %v2780 = vunpack.c.l.b16 %v1750
    %v2781 = vunpack.c.l.b16 %v1751
    %v2782 = vunpack.c.l.b16 %v1752
    %v2783 = vunpack.c.l.b16 %v1753
    %v2784 = vunpack.c.l.b16 %v1754
    %v2785 = vunpack.c.l.b16 %v1755
    %v2786 = vunpack.c.l.b16 %v1756
    %v2787 = vunpack.c.l.b16 %v1757
    %v2788 = vunpack.c.l.b16 %v1758
    %v2789 = vunpack.c.l.b16 %v1759
    %v2790 = vunpack.c.l.b16 %v1760
    %v2791 = vunpack.c.l.b16 %v1761
    %v2792 = vunpack.c.l.b16 %v1762
    %v2793 = vunpack.c.l.b16 %v1763
    %v2794 = vunpack.c.l.b16 %v1764
    %v2795 = vunpack.c.l.b16 %v1765
    %v2796 = vunpack.c.l.b16 %v1766
    %v2797 = vunpack.c.l.b16 %v1767
    %v2798 = vunpack.c.l.b16 %v1768
    %v2799 = vunpack.c.l.b16 %v1769
    %v2800 = vunpack.c.l.b16 %v1770
    %v2801 = vunpack.c.l.b16 %v1771
    %v2802 = vunpack.c.l.b16 %v1772
    %v2803 = vunpack.c.l.b16 %v1773
    %v2804 = vunpack.c.l.b16 %v1774
    %v2805 = vunpack.c.l.b16 %v1775
    %v2806 = vunpack.c.l.b16 %v1776
    %v2807 = vunpack.c.l.b16 %v1777
    %v2808 = vunpack.c.l.b16 %v1778
    %v2809 = vunpack.c.l.b16 %v1779
    %v2810 = vunpack.c.l.b16 %v1780
    %v2811 = vunpack.c.l.b16 %v1781
    %v2812 = vunpack.c.l.b16 %v1782
    %v2813 = vunpack.c.l.b16 %v1783
    %v2814 = vunpack.c.l.b16 %v1784
    %v2815 = vunpack.c.l.b16 %v1785
    %v2816 = vunpack.c.l.b16 %v1786
    %v2817 = vunpack.c.l.b16 %v1787
    %v2818 = vunpack.c.l.b16 %v1788
    %v2819 = vunpack.c.l.b16 %v1789
    %v2820 = vunpack.c.l.b16 %v1790
    %v2821 = vunpack.c.l.b16 %v1791
    %v2822 = vunpack.c.l.b16 %v1792
    %v2823 = vunpack.c.l.b16 %v1793
    %v2824 = vunpack.c.l.b16 %v1794
    %v2825 = vunpack.c.l.b16 %v1795
    %v2826 = vunpack.c.l.b16 %v1796
    %v2827 = vunpack.c.l.b16 %v1797
    %v2828 = vunpack.c.l.b16 %v1798
    %v2829 = vunpack.c.l.b16 %v1799
    %v2830 = vunpack.c.l.b16 %v1800
    %v2831 = vunpack.c.l.b16 %v1801
    %v2832 = vunpack.c.l.b16 %v1802
    %v2833 = vunpack.c.l.b16 %v1803
    %v2834 = vunpack.c.l.b16 %v1804
    %v2835 = vunpack.c.l.b16 %v1805
    %v2836 = vunpack.c.l.b16 %v1806
    %v2837 = vunpack.c.l.b16 %v1807
    %v2838 = vunpack.c.l.b16 %v1808
    %v2839 = vunpack.c.l.b16 %v1809
    %v2840 = vunpack.c.l.b16 %v1810
    %v2841 = vunpack.c.l.b16 %v1811
    %v2842 = vunpack.c.l.b16 %v1812
    %v2843 = vunpack.c.l.b16 %v1813
    %v2844 = vunpack.c.l.b16 %v1814
    %v2845 = vunpack.c.l.b16 %v1815
    %v2846 = vunpack.c.l.b16 %v1816
    %v2847 = vunpack.c.l.b16 %v1817
    %v2848 = vunpack.c.l.b16 %v1818
    %v2849 = vunpack.c.l.b16 %v1819
    %v2850 = vunpack.c.l.b16 %v1820
    %v2851 = vunpack.c.l.b16 %v1821
    %v2852 = vunpack.c.l.b16 %v1822
    %v2853 = vunpack.c.l.b16 %v1823
    %v2854 = vunpack.c.l.b16 %v1824
    %v2855 = vunpack.c.l.b16 %v1825
    %v2856 = vunpack.c.l.b16 %v1826
    %v2857 = vunpack.c.l.b16 %v1827
    %v2858 = vunpack.c.l.b16 %v1828
    %v2859 = vunpack.c.l.b16 %v1829
    %v2860 = vunpack.c.l.b16 %v1830
    %v2861 = vunpack.c.l.b16 %v1831
    %v2862 = vunpack.c.l.b16 %v1832
    %v2863 = vunpack.c.l.b16 %v1833
    %v2864 = vunpack.c.l.b16 %v1834
    %v2865 = vunpack.c.l.b16 %v1835
    %v2866 = vunpack.c.l.b16 %v1836
    %v2867 = vunpack.c.l.b16 %v1837
    %v2868 = vunpack.c.l.b16 %v1838
    %v2869 = vunpack.c.l.b16 %v1839
    %v2870 = vunpack.c.l.b16 %v1840
    %v2871 = vunpack.c.l.b16 %v1841
    %v2872 = vunpack.c.l.b16 %v1842
    %v2873 = vunpack.c.l.b16 %v1843
    %v2874 = vunpack.c.l.b16 %v1844
    %v2875 = vunpack.c.l.b16 %v1845
    %v2876 = vunpack.c.l.b16 %v1846
    %v2877 = vunpack.c.l.b16 %v1847
    %v2878 = vunpack.c.l.b16 %v1848
    %v2879 = vunpack.c.l.b16 %v1849
    %v2880 = vunpack.c.l.b16 %v1850
    %v2881 = vunpack.c.l.b16 %v1851
    %v2882 = vunpack.c.l.b16 %v1852
    %v2883 = vunpack.c.l.b16 %v1853
    %v2884 = vunpack.c.l.b16 %v1854
    %v2885 = vunpack.c.l.b16 %v1855
    %v2886 = vunpack.c.l.b16 %v1856
    %v2887 = vunpack.c.l.b16 %v1857
    %v2888 = vunpack.c.l.b16 %v1858
    %v2889 = vunpack.c.l.b16 %v1859
    %v2890 = vunpack.c.l.b16 %v1860
    %v2891 = vunpack.c.l.b16 %v1861
    %v2892 = vunpack.c.l.b16 %v1862
    %v2893 = vunpack.c.l.b16 %v1863
    %v2894 = vunpack.c.l.b16 %v1864
    %v2895 = vunpack.c.l.b16 %v1865
    %v2896 = vunpack.c.l.b16 %v1866
    %v2897 = vunpack.c.l.b16 %v1867
    %v2898 = vunpack.c.l.b16 %v1868
    %v2899 = vunpack.c.l.b16 %v1869
    %v2900 = vunpack.c.l.b16 %v1870
    %v2901 = vunpack.c.l.b16 %v1871
    %v2902 = vunpack.c.l.b16 %v1872
    %v2903 = vunpack.c.l.b16 %v1873
    %v2904 = vunpack.c.l.b16 %v1874
    %v2905 = vunpack.c.l.b16 %v1875
    %v2906 = vunpack.c.l.b16 %v1876
    %v2907 = vunpack.c.l.b16 %v1877
    %v2908 = vunpack.c.l.b16 %v1878
    %v2909 = vunpack.c.l.b16 %v1879
    %v2910 = vunpack.c.l.b16 %v1880
    %v2911 = vunpack.c.l.b16 %v1881
    %v2912 = vunpack.c.l.b16 %v1882
    %v2913 = vunpack.c.l.b16 %v1883
    %v2914 = vunpack.c.l.b16 %v1884
    %v2915 = vunpack.c.l.b16 %v1885
    %v2916 = vunpack.c.l.b16 %v1886
    %v2917 = vunpack.c.l.b16 %v1887
    %v2918 = vunpack.c.l.b16 %v1888
    %v2919 = vunpack.c.l.b16 %v1889
    %v2920 = vunpack.c.l.b16 %v1890
    %v2921 = vunpack.c.l.b16 %v1891
    %v2922 = vunpack.c.l.b16 %v1892
    %v2923 = vunpack.c.l.b16 %v1893
    %v2924 = vunpack.c.l.b16 %v1894
    %v2925 = vunpack.c.l.b16 %v1895
    %v2926 = vunpack.c.l.b16 %v1896
    %v2927 = vunpack.c.l.b16 %v1897
    %v2928 = vunpack.c.l.b16 %v1898
    %v2929 = vunpack.c.l.b16 %v1899
    %v2930 = vunpack.c.l.b16 %v1900
    %v2931 = vunpack.c.l.b16 %v1901
    %v2932 = vunpack.c.l.b16 %v1902
    %v2933 = vunpack.c.l.b16 %v1903
    %v2934 = vunpack.c.l.b16 %v1904
    %v2935 = vunpack.c.l.b16 %v1905
    %v2936 = vunpack.c.l.b16 %v1906
    %v2937 = vunpack.c.l.b16 %v1907
    %v2938 = vunpack.c.l.b16 %v1908
    %v2939 = vunpack.c.l.b16 %v1909
    %v2940 = vunpack.c.l.b16 %v1910
    %v2941 = vunpack.c.l.b16 %v1911
    %v2942 = vunpack.c.l.b16 %v1912
    %v2943 = vunpack.c.l.b16 %v1913
    %v2944 = vunpack.c.l.b16 %v1914
    %v2945 = vunpack.c.l.b16 %v1915
    %v2946 = vunpack.c.l.b16 %v1916
    %v2947 = vunpack.c.l.b16 %v1917
    %v2948 = vunpack.c.l.b16 %v1918
    %v2949 = vunpack.c.l.b16 %v1919
    %v2950 = vunpack.c.l.b16 %v1920
    %v2951 = vunpack.c.l.b16 %v1921
    %v2952 = vunpack.c.l.b16 %v1922
    %v2953 = vunpack.c.l.b16 %v1923
    %v2954 = vunpack.c.l.b16 %v1924
    %v2955 = vunpack.c.l.b16 %v1925
    %v2956 = vunpack.c.l.b16 %v1926
    %v2957 = vunpack.c.l.b16 %v1927
    %v2958 = vunpack.c.l.b16 %v1928
    %v2959 = vunpack.c.l.b16 %v1929
    %v2960 = vunpack.c.l.b16 %v1930
    %v2961 = vunpack.c.l.b16 %v1931
    %v2962 = vunpack.c.l.b16 %v1932
    %v2963 = vunpack.c.l.b16 %v1933
    %v2964 = vunpack.c.l.b16 %v1934
    %v2965 = vunpack.c.l.b16 %v1935
    %v2966 = vunpack.c.l.b16 %v1936
    %v2967 = vunpack.c.l.b16 %v1937
    %v2968 = vunpack.c.l.b16 %v1938
    %v2969 = vunpack.c.l.b16 %v1939
    %v2970 = vunpack.c.l.b16 %v1940
    %v2971 = vunpack.c.l.b16 %v1941
    %v2972 = vunpack.c.l.b16 %v1942
    %v2973 = vunpack.c.l.b16 %v1943
    %v2974 = vunpack.c.l.b16 %v1944
    %v2975 = vunpack.c.l.b16 %v1945
    %v2976 = vunpack.c.l.b16 %v1946
    %v2977 = vunpack.c.l.b16 %v1947
    %v2978 = vunpack.c.l.b16 %v1948
    %v2979 = vunpack.c.l.b16 %v1949
    %v2980 = vunpack.c.l.b16 %v1950
    %v2981 = vunpack.c.l.b16 %v1951
    %v2982 = vunpack.c.l.b16 %v1952
    %v2983 = vunpack.c.l.b16 %v1953
    %v2984 = vunpack.c.l.b16 %v1954
    %v2985 = vunpack.c.l.b16 %v1955
    %v2986 = vunpack.c.l.b16 %v1956
    %v2987 = vunpack.c.l.b16 %v1957
    %v2988 = vunpack.c.l.b16 %v1958
    %v2989 = vunpack.c.l.b16 %v1959
    %v2990 = vunpack.c.l.b16 %v1960
    %v2991 = vunpack.c.l.b16 %v1961
    %v2992 = vunpack.c.l.b16 %v1962
    %v2993 = vunpack.c.l.b16 %v1963
    %v2994 = vunpack.c.l.b16 %v1964
    %v2995 = vunpack.c.l.b16 %v1965
    %v2996 = vunpack.c.l.b16 %v1966
    %v2997 = vunpack.c.l.b16 %v1967
    %v2998 = vunpack.c.l.b16 %v1968
    %v2999 = vunpack.c.l.b16 %v1969
    %v3000 = vunpack.c.l.b16 %v1970
    %v3001 = vunpack.c.l.b16 %v1971
    %v3002 = vpack.c.b16 %v2491, %v2490
    %v3003 = vpack.c.b16 %v2493, %v2492
    %v3004 = vpack.c.b16 %v2495, %v2494
    %v3005 = vpack.c.b16 %v2497, %v2496
    %v3006 = vpack.c.b16 %v2499, %v2498
    %v3007 = vpack.c.b16 %v2501, %v2500
    %v3008 = vpack.c.b16 %v2503, %v2502
    %v3009 = vpack.c.b16 %v2505, %v2504
    %v3010 = vpack.c.b16 %v2507, %v2506
    %v3011 = vpack.c.b16 %v2509, %v2508
    %v3012 = vpack.c.b16 %v2511, %v2510
    %v3013 = vpack.c.b16 %v2513, %v2512
    %v3014 = vpack.c.b16 %v2515, %v2514
    %v3015 = vpack.c.b16 %v2517, %v2516
    %v3016 = vpack.c.b16 %v2519, %v2518
    %v3017 = vpack.c.b16 %v2521, %v2520
    %v3018 = vpack.c.b16 %v2523, %v2522
    %v3019 = vpack.c.b16 %v2525, %v2524
    %v3020 = vpack.c.b16 %v2527, %v2526
    %v3021 = vpack.c.b16 %v2529, %v2528
    %v3022 = vpack.c.b16 %v2531, %v2530
    %v3023 = vpack.c.b16 %v2533, %v2532
    %v3024 = vpack.c.b16 %v2535, %v2534
    %v3025 = vpack.c.b16 %v2537, %v2536
    %v3026 = vpack.c.b16 %v2539, %v2538
    %v3027 = vpack.c.b16 %v2541, %v2540
    %v3028 = vpack.c.b16 %v2543, %v2542
    %v3029 = vpack.c.b16 %v2545, %v2544
    %v3030 = vpack.c.b16 %v2547, %v2546
    %v3031 = vpack.c.b16 %v2549, %v2548
    %v3032 = vpack.c.b16 %v2551, %v2550
    %v3033 = vpack.c.b16 %v2553, %v2552
    %v3034 = vpack.c.b16 %v2555, %v2554
    %v3035 = vpack.c.b16 %v2557, %v2556
    %v3036 = vpack.c.b16 %v2559, %v2558
    %v3037 = vpack.c.b16 %v2561, %v2560
    %v3038 = vpack.c.b16 %v2563, %v2562
    %v3039 = vpack.c.b16 %v2565, %v2564
    %v3040 = vpack.c.b16 %v2567, %v2566
    %v3041 = vpack.c.b16 %v2569, %v2568
    %v3042 = vpack.c.b16 %v2571, %v2570
    %v3043 = vpack.c.b16 %v2573, %v2572
    %v3044 = vpack.c.b16 %v2575, %v2574
    %v3045 = vpack.c.b16 %v2577, %v2576
    %v3046 = vpack.c.b16 %v2579, %v2578
    %v3047 = vpack.c.b16 %v2581, %v2580
    %v3048 = vpack.c.b16 %v2583, %v2582
    %v3049 = vpack.c.b16 %v2585, %v2584
    %v3050 = vpack.c.b16 %v2587, %v2586
    %v3051 = vpack.c.b16 %v2589, %v2588
    %v3052 = vpack.c.b16 %v2591, %v2590
    %v3053 = vpack.c.b16 %v2593, %v2592
    %v3054 = vpack.c.b16 %v2595, %v2594
    %v3055 = vpack.c.b16 %v2597, %v2596
    %v3056 = vpack.c.b16 %v2599, %v2598
    %v3057 = vpack.c.b16 %v2601, %v2600
    %v3058 = vpack.c.b16 %v2603, %v2602
    %v3059 = vpack.c.b16 %v2605, %v2604
    %v3060 = vpack.c.b16 %v2607, %v2606
    %v3061 = vpack.c.b16 %v2609, %v2608
    %v3062 = vpack.c.b16 %v2611, %v2610
    %v3063 = vpack.c.b16 %v2613, %v2612
    %v3064 = vpack.c.b16 %v2615, %v2614
    %v3065 = vpack.c.b16 %v2617, %v2616
    %v3066 = vpack.c.b16 %v2619, %v2618
    %v3067 = vpack.c.b16 %v2621, %v2620
    %v3068 = vpack.c.b16 %v2623, %v2622
    %v3069 = vpack.c.b16 %v2625, %v2624
    %v3070 = vpack.c.b16 %v2627, %v2626
    %v3071 = vpack.c.b16 %v2629, %v2628
    %v3072 = vpack.c.b16 %v2631, %v2630
    %v3073 = vpack.c.b16 %v2633, %v2632
    %v3074 = vpack.c.b16 %v2635, %v2634
    %v3075 = vpack.c.b16 %v2637, %v2636
    %v3076 = vpack.c.b16 %v2639, %v2638
    %v3077 = vpack.c.b16 %v2641, %v2640
    %v3078 = vpack.c.b16 %v2643, %v2642
    %v3079 = vpack.c.b16 %v2645, %v2644
    %v3080 = vpack.c.b16 %v2647, %v2646
    %v3081 = vpack.c.b16 %v2649, %v2648
    %v3082 = vpack.c.b16 %v2651, %v2650
    %v3083 = vpack.c.b16 %v2653, %v2652
    %v3084 = vpack.c.b16 %v2655, %v2654
    %v3085 = vpack.c.b16 %v2657, %v2656
    %v3086 = vpack.c.b16 %v2659, %v2658
    %v3087 = vpack.c.b16 %v2661, %v2660
    %v3088 = vpack.c.b16 %v2663, %v2662
    %v3089 = vpack.c.b16 %v2665, %v2664
    %v3090 = vpack.c.b16 %v2667, %v2666
    %v3091 = vpack.c.b16 %v2669, %v2668
    %v3092 = vpack.c.b16 %v2671, %v2670
    %v3093 = vpack.c.b16 %v2673, %v2672
    %v3094 = vpack.c.b16 %v2675, %v2674
    %v3095 = vpack.c.b16 %v2677, %v2676
    %v3096 = vpack.c.b16 %v2679, %v2678
    %v3097 = vpack.c.b16 %v2681, %v2680
    %v3098 = vpack.c.b16 %v2683, %v2682
    %v3099 = vpack.c.b16 %v2685, %v2684
    %v3100 = vpack.c.b16 %v2687, %v2686
    %v3101 = vpack.c.b16 %v2689, %v2688
    %v3102 = vpack.c.b16 %v2691, %v2690
    %v3103 = vpack.c.b16 %v2693, %v2692
    %v3104 = vpack.c.b16 %v2695, %v2694
    %v3105 = vpack.c.b16 %v2697, %v2696
    %v3106 = vpack.c.b16 %v2699, %v2698
    %v3107 = vpack.c.b16 %v2701, %v2700
    %v3108 = vpack.c.b16 %v2703, %v2702
    %v3109 = vpack.c.b16 %v2705, %v2704
    %v3110 = vpack.c.b16 %v2707, %v2706
    %v3111 = vpack.c.b16 %v2709, %v2708
    %v3112 = vpack.c.b16 %v2711, %v2710
    %v3113 = vpack.c.b16 %v2713, %v2712
    %v3114 = vpack.c.b16 %v2715, %v2714
    %v3115 = vpack.c.b16 %v2717, %v2716
    %v3116 = vpack.c.b16 %v2719, %v2718
    %v3117 = vpack.c.b16 %v2721, %v2720
    %v3118 = vpack.c.b16 %v2723, %v2722
    %v3119 = vpack.c.b16 %v2725, %v2724
    %v3120 = vpack.c.b16 %v2727, %v2726
    %v3121 = vpack.c.b16 %v2729, %v2728
    %v3122 = vpack.c.b16 %v2731, %v2730
    %v3123 = vpack.c.b16 %v2733, %v2732
    %v3124 = vpack.c.b16 %v2735, %v2734
    %v3125 = vpack.c.b16 %v2737, %v2736
    %v3126 = vpack.c.b16 %v2739, %v2738
    %v3127 = vpack.c.b16 %v2741, %v2740
    %v3128 = vpack.c.b16 %v2743, %v2742
    %v3129 = vpack.c.b16 %v2745, %v2744
    %v3130 = vpack.c.b16 %v2747, %v2746
    %v3131 = vpack.c.b16 %v2749, %v2748
    %v3132 = vpack.c.b16 %v2751, %v2750
    %v3133 = vpack.c.b16 %v2753, %v2752
    %v3134 = vpack.c.b16 %v2755, %v2754
    %v3135 = vpack.c.b16 %v2757, %v2756
    %v3136 = vpack.c.b16 %v2759, %v2758
    %v3137 = vpack.c.b16 %v2761, %v2760
    %v3138 = vpack.c.b16 %v2763, %v2762
    %v3139 = vpack.c.b16 %v2765, %v2764
    %v3140 = vpack.c.b16 %v2767, %v2766
    %v3141 = vpack.c.b16 %v2769, %v2768
    %v3142 = vpack.c.b16 %v2771, %v2770
    %v3143 = vpack.c.b16 %v2773, %v2772
    %v3144 = vpack.c.b16 %v2775, %v2774
    %v3145 = vpack.c.b16 %v2777, %v2776
    %v3146 = vpack.c.b16 %v2779, %v2778
    %v3147 = vpack.c.b16 %v2781, %v2780
    %v3148 = vpack.c.b16 %v2783, %v2782
    %v3149 = vpack.c.b16 %v2785, %v2784
    %v3150 = vpack.c.b16 %v2787, %v2786
    %v3151 = vpack.c.b16 %v2789, %v2788
    %v3152 = vpack.c.b16 %v2791, %v2790
    %v3153 = vpack.c.b16 %v2793, %v2792
    %v3154 = vpack.c.b16 %v2795, %v2794
    %v3155 = vpack.c.b16 %v2797, %v2796
    %v3156 = vpack.c.b16 %v2799, %v2798
    %v3157 = vpack.c.b16 %v2801, %v2800
    %v3158 = vpack.c.b16 %v2803, %v2802
    %v3159 = vpack.c.b16 %v2805, %v2804
    %v3160 = vpack.c.b16 %v2807, %v2806
    %v3161 = vpack.c.b16 %v2809, %v2808
    %v3162 = vpack.c.b16 %v2811, %v2810
    %v3163 = vpack.c.b16 %v2813, %v2812
    %v3164 = vpack.c.b16 %v2815, %v2814
    %v3165 = vpack.c.b16 %v2817, %v2816
    %v3166 = vpack.c.b16 %v2819, %v2818
    %v3167 = vpack.c.b16 %v2821, %v2820
    %v3168 = vpack.c.b16 %v2823, %v2822
    %v3169 = vpack.c.b16 %v2825, %v2824
    %v3170 = vpack.c.b16 %v2827, %v2826
    %v3171 = vpack.c.b16 %v2829, %v2828
    %v3172 = vpack.c.b16 %v2831, %v2830
    %v3173 = vpack.c.b16 %v2833, %v2832
    %v3174 = vpack.c.b16 %v2835, %v2834
    %v3175 = vpack.c.b16 %v2837, %v2836
    %v3176 = vpack.c.b16 %v2839, %v2838
    %v3177 = vpack.c.b16 %v2841, %v2840
    %v3178 = vpack.c.b16 %v2843, %v2842
    %v3179 = vpack.c.b16 %v2845, %v2844
    %v3180 = vpack.c.b16 %v2847, %v2846
    %v3181 = vpack.c.b16 %v2849, %v2848
    %v3182 = vpack.c.b16 %v2851, %v2850
    %v3183 = vpack.c.b16 %v2853, %v2852
    %v3184 = vpack.c.b16 %v2855, %v2854
    %v3185 = vpack.c.b16 %v2857, %v2856
    %v3186 = vpack.c.b16 %v2859, %v2858
    %v3187 = vpack.c.b16 %v2861, %v2860
    %v3188 = vpack.c.b16 %v2863, %v2862
    %v3189 = vpack.c.b16 %v2865, %v2864
    %v3190 = vpack.c.b16 %v2867, %v2866
    %v3191 = vpack.c.b16 %v2869, %v2868
    %v3192 = vpack.c.b16 %v2871, %v2870
    %v3193 = vpack.c.b16 %v2873, %v2872
    %v3194 = vpack.c.b16 %v2875, %v2874
    %v3195 = vpack.c.b16 %v2877, %v2876
    %v3196 = vpack.c.b16 %v2879, %v2878
    %v3197 = vpack.c.b16 %v2881, %v2880
    %v3198 = vpack.c.b16 %v2883, %v2882
    %v3199 = vpack.c.b16 %v2885, %v2884
    %v3200 = vpack.c.b16 %v2887, %v2886
    %v3201 = vpack.c.b16 %v2889, %v2888
    %v3202 = vpack.c.b16 %v2891, %v2890
    %v3203 = vpack.c.b16 %v2893, %v2892
    %v3204 = vpack.c.b16 %v2895, %v2894
    %v3205 = vpack.c.b16 %v2897, %v2896
    %v3206 = vpack.c.b16 %v2899, %v2898
    %v3207 = vpack.c.b16 %v2901, %v2900
    %v3208 = vpack.c.b16 %v2903, %v2902
    %v3209 = vpack.c.b16 %v2905, %v2904
    %v3210 = vpack.c.b16 %v2907, %v2906
    %v3211 = vpack.c.b16 %v2909, %v2908
    %v3212 = vpack.c.b16 %v2911, %v2910
    %v3213 = vpack.c.b16 %v2913, %v2912
    %v3214 = vpack.c.b16 %v2915, %v2914
    %v3215 = vpack.c.b16 %v2917, %v2916
    %v3216 = vpack.c.b16 %v2919, %v2918
    %v3217 = vpack.c.b16 %v2921, %v2920
    %v3218 = vpack.c.b16 %v2923, %v2922
    %v3219 = vpack.c.b16 %v2925, %v2924
    %v3220 = vpack.c.b16 %v2927, %v2926
    %v3221 = vpack.c.b16 %v2929, %v2928
    %v3222 = vpack.c.b16 %v2931, %v2930
    %v3223 = vpack.c.b16 %v2933, %v2932
    %v3224 = vpack.c.b16 %v2935, %v2934
    %v3225 = vpack.c.b16 %v2937, %v2936
    %v3226 = vpack.c.b16 %v2939, %v2938
    %v3227 = vpack.c.b16 %v2941, %v2940
    %v3228 = vpack.c.b16 %v2943, %v2942
    %v3229 = vpack.c.b16 %v2945, %v2944
    %v3230 = vpack.c.b16 %v2947, %v2946
    %v3231 = vpack.c.b16 %v2949, %v2948
    %v3232 = vpack.c.b16 %v2951, %v2950
    %v3233 = vpack.c.b16 %v2953, %v2952
    %v3234 = vpack.c.b16 %v2955, %v2954
    %v3235 = vpack.c.b16 %v2957, %v2956
    %v3236 = vpack.c.b16 %v2959, %v2958
    %v3237 = vpack.c.b16 %v2961, %v2960
    %v3238 = vpack.c.b16 %v2963, %v2962
    %v3239 = vpack.c.b16 %v2965, %v2964
    %v3240 = vpack.c.b16 %v2967, %v2966
    %v3241 = vpack.c.b16 %v2969, %v2968
    %v3242 = vpack.c.b16 %v2971, %v2970
    %v3243 = vpack.c.b16 %v2973, %v2972
    %v3244 = vpack.c.b16 %v2975, %v2974
    %v3245 = vpack.c.b16 %v2977, %v2976
    %v3246 = vpack.c.b16 %v2979, %v2978
    %v3247 = vpack.c.b16 %v2981, %v2980
    %v3248 = vpack.c.b16 %v2983, %v2982
    %v3249 = vpack.c.b16 %v2985, %v2984
    %v3250 = vpack.c.b16 %v2987, %v2986
    %v3251 = vpack.c.b16 %v2989, %v2988
    %v3252 = vpack.c.b16 %v2991, %v2990
    %v3253 = vpack.c.b16 %v2993, %v2992
    %v3254 = vpack.c.b16 %v2995, %v2994
    %v3255 = vpack.c.b16 %v2997, %v2996
    %v3256 = vpack.c.b16 %v2999, %v2998
    %v3257 = vpack.c.b16 %v3001, %v3000
    %3514 = vmatprep.subr.bf16.mxu0 0
    %3515 = vmatpush1.bf16.msra.mxu0 %v3009
    %3516 = vmatprep.subr.bf16.mxu0 0
    %3517 = vmatpush1.bf16.msra.mxu0 %v3008
    %3518 = vmatprep.subr.bf16.mxu0 0
    %3519 = vmatpush1.bf16.msra.mxu0 %v3007
    %3520 = vmatprep.subr.bf16.mxu0 0
    %3521 = vmatpush1.bf16.msra.mxu0 %v3006
    %3522 = vmatprep.subr.bf16.mxu0 0
    %3523 = vmatpush1.bf16.msra.mxu0 %v3005
    %3524 = vmatprep.subr.bf16.mxu0 0
    %3525 = vmatpush1.bf16.msra.mxu0 %v3004
    %3526 = vmatprep.subr.bf16.mxu0 0
    %3527 = vmatpush1.bf16.msra.mxu0 %v3003
    %3528 = vmatprep.subr.bf16.mxu0 0
    %3529 = vmatpush1.bf16.msra.mxu0 %v3002
    %3530 = vmatprep.subr.bf16.mxu0 0
    %3531 = vmatpush2.bf16.msra.mxu0 %v3017
    %3532 = vmatprep.subr.bf16.mxu0 0
    %3533 = vmatpush2.bf16.msra.mxu0 %v3016
    %3534 = vmatprep.subr.bf16.mxu0 0
    %3535 = vmatpush2.bf16.msra.mxu0 %v3015
    %3536 = vmatprep.subr.bf16.mxu0 0
    %3537 = vmatpush2.bf16.msra.mxu0 %v3014
    %3538 = vmatprep.subr.bf16.mxu0 0
    %3539 = vmatpush2.bf16.msra.mxu0 %v3013
    %3540 = vmatprep.subr.bf16.mxu0 0
    %3541 = vmatpush2.bf16.msra.mxu0 %v3012
    %3542 = vmatprep.subr.bf16.mxu0 0
    %3543 = vmatpush2.bf16.msra.mxu0 %v3011
    %3544 = vmatprep.subr.bf16.mxu0 0
    %3545 = vmatpush2.bf16.msra.mxu0 %v3010
    %3546 = vmatprep.mubr.bf16.mxu0 %v1429
    %3547 = vmatmul.mubr.bf16.gmra.mxu0 %v1428
    %v3548 = vpop.f32.mrf.mxu0
    %v3549 = vadd.f32 %v1977, %v3548
    %v3550 = vpop.f32.mrf.mxu0
    %v3551 = vpop.f32.mrf.mxu0
    %v3552 = vpop.f32.mrf.mxu0
    %3553 = vdwg.mxu0
    %3554 = vmatprep.subr.bf16.mxu0 0
    %3555 = vmatpush1.bf16.msra.mxu0 %v3025
    %3556 = vmatprep.subr.bf16.mxu0 0
    %3557 = vmatpush1.bf16.msra.mxu0 %v3024
    %3558 = vmatprep.subr.bf16.mxu0 0
    %3559 = vmatpush1.bf16.msra.mxu0 %v3023
    %3560 = vmatprep.subr.bf16.mxu0 0
    %3561 = vmatpush1.bf16.msra.mxu0 %v3022
    %3562 = vmatprep.subr.bf16.mxu0 0
    %3563 = vmatpush1.bf16.msra.mxu0 %v3021
    %3564 = vmatprep.subr.bf16.mxu0 0
    %3565 = vmatpush1.bf16.msra.mxu0 %v3020
    %3566 = vmatprep.subr.bf16.mxu0 0
    %3567 = vmatpush1.bf16.msra.mxu0 %v3019
    %3568 = vmatprep.subr.bf16.mxu0 0
    %3569 = vmatpush1.bf16.msra.mxu0 %v3018
    %3570 = vmatprep.subr.bf16.mxu0 0
    %3571 = vmatpush2.bf16.msra.mxu0 %v3033
    %3572 = vmatprep.subr.bf16.mxu0 0
    %3573 = vmatpush2.bf16.msra.mxu0 %v3032
    %3574 = vmatprep.subr.bf16.mxu0 0
    %3575 = vmatpush2.bf16.msra.mxu0 %v3031
    %3576 = vmatprep.subr.bf16.mxu0 0
    %3577 = vmatpush2.bf16.msra.mxu0 %v3030
    %3578 = vmatprep.subr.bf16.mxu0 0
    %3579 = vmatpush2.bf16.msra.mxu0 %v3029
    %3580 = vmatprep.subr.bf16.mxu0 0
    %3581 = vmatpush2.bf16.msra.mxu0 %v3028
    %3582 = vmatprep.subr.bf16.mxu0 0
    %3583 = vmatpush2.bf16.msra.mxu0 %v3027
    %3584 = vmatprep.subr.bf16.mxu0 0
    %3585 = vmatpush2.bf16.msra.mxu0 %v3026
    %3586 = vmatprep.mubr.bf16.mxu0 %v1431
    %3587 = vmatmul.mubr.bf16.gmra.mxu0 %v1430
    %v3588 = vpop.f32.mrf.mxu0
    %v3589 = vadd.f32 %v3549, %v3588
    %v3590 = vpop.f32.mrf.mxu0
    %v3591 = vpop.f32.mrf.mxu0
    %v3592 = vpop.f32.mrf.mxu0
    %3593 = vdwg.mxu0
    %3594 = vmatprep.subr.bf16.mxu0 0
    %3595 = vmatpush1.bf16.msra.mxu0 %v3041
    %3596 = vmatprep.subr.bf16.mxu0 0
    %3597 = vmatpush1.bf16.msra.mxu0 %v3040
    %3598 = vmatprep.subr.bf16.mxu0 0
    %3599 = vmatpush1.bf16.msra.mxu0 %v3039
    %3600 = vmatprep.subr.bf16.mxu0 0
    %3601 = vmatpush1.bf16.msra.mxu0 %v3038
    %3602 = vmatprep.subr.bf16.mxu0 0
    %3603 = vmatpush1.bf16.msra.mxu0 %v3037
    %3604 = vmatprep.subr.bf16.mxu0 0
    %3605 = vmatpush1.bf16.msra.mxu0 %v3036
    %3606 = vmatprep.subr.bf16.mxu0 0
    %3607 = vmatpush1.bf16.msra.mxu0 %v3035
    %3608 = vmatprep.subr.bf16.mxu0 0
    %3609 = vmatpush1.bf16.msra.mxu0 %v3034
    %3610 = vmatprep.subr.bf16.mxu0 0
    %3611 = vmatpush2.bf16.msra.mxu0 %v3049
    %3612 = vmatprep.subr.bf16.mxu0 0
    %3613 = vmatpush2.bf16.msra.mxu0 %v3048
    %3614 = vmatprep.subr.bf16.mxu0 0
    %3615 = vmatpush2.bf16.msra.mxu0 %v3047
    %3616 = vmatprep.subr.bf16.mxu0 0
    %3617 = vmatpush2.bf16.msra.mxu0 %v3046
    %3618 = vmatprep.subr.bf16.mxu0 0
    %3619 = vmatpush2.bf16.msra.mxu0 %v3045
    %3620 = vmatprep.subr.bf16.mxu0 0
    %3621 = vmatpush2.bf16.msra.mxu0 %v3044
    %3622 = vmatprep.subr.bf16.mxu0 0
    %3623 = vmatpush2.bf16.msra.mxu0 %v3043
    %3624 = vmatprep.subr.bf16.mxu0 0
    %3625 = vmatpush2.bf16.msra.mxu0 %v3042
    %3626 = vmatprep.mubr.bf16.mxu0 %v1433
    %3627 = vmatmul.mubr.bf16.gmra.mxu0 %v1432
    %v3628 = vpop.f32.mrf.mxu0
    %v3629 = vadd.f32 %v3589, %v3628
    %v3630 = vpop.f32.mrf.mxu0
    %v3631 = vpop.f32.mrf.mxu0
    %v3632 = vpop.f32.mrf.mxu0
    %3633 = vdwg.mxu0
    %3634 = vmatprep.subr.bf16.mxu0 0
    %3635 = vmatpush1.bf16.msra.mxu0 %v3057
    %3636 = vmatprep.subr.bf16.mxu0 0
    %3637 = vmatpush1.bf16.msra.mxu0 %v3056
    %3638 = vmatprep.subr.bf16.mxu0 0
    %3639 = vmatpush1.bf16.msra.mxu0 %v3055
    %3640 = vmatprep.subr.bf16.mxu0 0
    %3641 = vmatpush1.bf16.msra.mxu0 %v3054
    %3642 = vmatprep.subr.bf16.mxu0 0
    %3643 = vmatpush1.bf16.msra.mxu0 %v3053
    %3644 = vmatprep.subr.bf16.mxu0 0
    %3645 = vmatpush1.bf16.msra.mxu0 %v3052
    %3646 = vmatprep.subr.bf16.mxu0 0
    %3647 = vmatpush1.bf16.msra.mxu0 %v3051
    %3648 = vmatprep.subr.bf16.mxu0 0
    %3649 = vmatpush1.bf16.msra.mxu0 %v3050
    %3650 = vmatprep.subr.bf16.mxu0 0
    %3651 = vmatpush2.bf16.msra.mxu0 %v3065
    %3652 = vmatprep.subr.bf16.mxu0 0
    %3653 = vmatpush2.bf16.msra.mxu0 %v3064
    %3654 = vmatprep.subr.bf16.mxu0 0
    %3655 = vmatpush2.bf16.msra.mxu0 %v3063
    %3656 = vmatprep.subr.bf16.mxu0 0
    %3657 = vmatpush2.bf16.msra.mxu0 %v3062
    %3658 = vmatprep.subr.bf16.mxu0 0
    %3659 = vmatpush2.bf16.msra.mxu0 %v3061
    %3660 = vmatprep.subr.bf16.mxu0 0
    %3661 = vmatpush2.bf16.msra.mxu0 %v3060
    %3662 = vmatprep.subr.bf16.mxu0 0
    %3663 = vmatpush2.bf16.msra.mxu0 %v3059
    %3664 = vmatprep.subr.bf16.mxu0 0
    %3665 = vmatpush2.bf16.msra.mxu0 %v3058
    %3666 = vmatprep.mubr.bf16.mxu0 %v1435
    %3667 = vmatmul.mubr.bf16.gmra.mxu0 %v1434
    %v3668 = vpop.f32.mrf.mxu0
    %v3669 = vadd.f32 %v3629, %v3668
    %v3670 = vpop.f32.mrf.mxu0
    %v3671 = vpop.f32.mrf.mxu0
    %v3672 = vpop.f32.mrf.mxu0
    %3673 = vdwg.mxu0
    %3674 = vmatprep.subr.bf16.mxu0 0
    %3675 = vmatpush1.bf16.msra.mxu0 %v3073
    %3676 = vmatprep.subr.bf16.mxu0 0
    %3677 = vmatpush1.bf16.msra.mxu0 %v3072
    %3678 = vmatprep.subr.bf16.mxu0 0
    %3679 = vmatpush1.bf16.msra.mxu0 %v3071
    %3680 = vmatprep.subr.bf16.mxu0 0
    %3681 = vmatpush1.bf16.msra.mxu0 %v3070
    %3682 = vmatprep.subr.bf16.mxu0 0
    %3683 = vmatpush1.bf16.msra.mxu0 %v3069
    %3684 = vmatprep.subr.bf16.mxu0 0
    %3685 = vmatpush1.bf16.msra.mxu0 %v3068
    %3686 = vmatprep.subr.bf16.mxu0 0
    %3687 = vmatpush1.bf16.msra.mxu0 %v3067
    %3688 = vmatprep.subr.bf16.mxu0 0
    %3689 = vmatpush1.bf16.msra.mxu0 %v3066
    %3690 = vmatprep.subr.bf16.mxu0 0
    %3691 = vmatpush2.bf16.msra.mxu0 %v3081
    %3692 = vmatprep.subr.bf16.mxu0 0
    %3693 = vmatpush2.bf16.msra.mxu0 %v3080
    %3694 = vmatprep.subr.bf16.mxu0 0
    %3695 = vmatpush2.bf16.msra.mxu0 %v3079
    %3696 = vmatprep.subr.bf16.mxu0 0
    %3697 = vmatpush2.bf16.msra.mxu0 %v3078
    %3698 = vmatprep.subr.bf16.mxu0 0
    %3699 = vmatpush2.bf16.msra.mxu0 %v3077
    %3700 = vmatprep.subr.bf16.mxu0 0
    %3701 = vmatpush2.bf16.msra.mxu0 %v3076
    %3702 = vmatprep.subr.bf16.mxu0 0
    %3703 = vmatpush2.bf16.msra.mxu0 %v3075
    %3704 = vmatprep.subr.bf16.mxu0 0
    %3705 = vmatpush2.bf16.msra.mxu0 %v3074
    %3706 = vmatprep.mubr.bf16.mxu0 %v1437
    %3707 = vmatmul.mubr.bf16.gmra.mxu0 %v1436
    %v3708 = vpop.f32.mrf.mxu0
    %v3709 = vadd.f32 %v3669, %v3708
    %v3710 = vpop.f32.mrf.mxu0
    %v3711 = vpop.f32.mrf.mxu0
    %v3712 = vpop.f32.mrf.mxu0
    %3713 = vdwg.mxu0
    %3714 = vmatprep.subr.bf16.mxu0 0
    %3715 = vmatpush1.bf16.msra.mxu0 %v3089
    %3716 = vmatprep.subr.bf16.mxu0 0
    %3717 = vmatpush1.bf16.msra.mxu0 %v3088
    %3718 = vmatprep.subr.bf16.mxu0 0
    %3719 = vmatpush1.bf16.msra.mxu0 %v3087
    %3720 = vmatprep.subr.bf16.mxu0 0
    %3721 = vmatpush1.bf16.msra.mxu0 %v3086
    %3722 = vmatprep.subr.bf16.mxu0 0
    %3723 = vmatpush1.bf16.msra.mxu0 %v3085
    %3724 = vmatprep.subr.bf16.mxu0 0
    %3725 = vmatpush1.bf16.msra.mxu0 %v3084
    %3726 = vmatprep.subr.bf16.mxu0 0
    %3727 = vmatpush1.bf16.msra.mxu0 %v3083
    %3728 = vmatprep.subr.bf16.mxu0 0
    %3729 = vmatpush1.bf16.msra.mxu0 %v3082
    %3730 = vmatprep.subr.bf16.mxu0 0
    %3731 = vmatpush2.bf16.msra.mxu0 %v3097
    %3732 = vmatprep.subr.bf16.mxu0 0
    %3733 = vmatpush2.bf16.msra.mxu0 %v3096
    %3734 = vmatprep.subr.bf16.mxu0 0
    %3735 = vmatpush2.bf16.msra.mxu0 %v3095
    %3736 = vmatprep.subr.bf16.mxu0 0
    %3737 = vmatpush2.bf16.msra.mxu0 %v3094
    %3738 = vmatprep.subr.bf16.mxu0 0
    %3739 = vmatpush2.bf16.msra.mxu0 %v3093
    %3740 = vmatprep.subr.bf16.mxu0 0
    %3741 = vmatpush2.bf16.msra.mxu0 %v3092
    %3742 = vmatprep.subr.bf16.mxu0 0
    %3743 = vmatpush2.bf16.msra.mxu0 %v3091
    %3744 = vmatprep.subr.bf16.mxu0 0
    %3745 = vmatpush2.bf16.msra.mxu0 %v3090
    %3746 = vmatprep.mubr.bf16.mxu0 %v1439
    %3747 = vmatmul.mubr.bf16.gmra.mxu0 %v1438
    %v3748 = vpop.f32.mrf.mxu0
    %v3749 = vadd.f32 %v3709, %v3748
    %v3750 = vpop.f32.mrf.mxu0
    %v3751 = vpop.f32.mrf.mxu0
    %v3752 = vpop.f32.mrf.mxu0
    %3753 = vdwg.mxu0
    %3754 = vmatprep.subr.bf16.mxu0 0
    %3755 = vmatpush1.bf16.msra.mxu0 %v3105
    %3756 = vmatprep.subr.bf16.mxu0 0
    %3757 = vmatpush1.bf16.msra.mxu0 %v3104
    %3758 = vmatprep.subr.bf16.mxu0 0
    %3759 = vmatpush1.bf16.msra.mxu0 %v3103
    %3760 = vmatprep.subr.bf16.mxu0 0
    %3761 = vmatpush1.bf16.msra.mxu0 %v3102
    %3762 = vmatprep.subr.bf16.mxu0 0
    %3763 = vmatpush1.bf16.msra.mxu0 %v3101
    %3764 = vmatprep.subr.bf16.mxu0 0
    %3765 = vmatpush1.bf16.msra.mxu0 %v3100
    %3766 = vmatprep.subr.bf16.mxu0 0
    %3767 = vmatpush1.bf16.msra.mxu0 %v3099
    %3768 = vmatprep.subr.bf16.mxu0 0
    %3769 = vmatpush1.bf16.msra.mxu0 %v3098
    %3770 = vmatprep.subr.bf16.mxu0 0
    %3771 = vmatpush2.bf16.msra.mxu0 %v3113
    %3772 = vmatprep.subr.bf16.mxu0 0
    %3773 = vmatpush2.bf16.msra.mxu0 %v3112
    %3774 = vmatprep.subr.bf16.mxu0 0
    %3775 = vmatpush2.bf16.msra.mxu0 %v3111
    %3776 = vmatprep.subr.bf16.mxu0 0
    %3777 = vmatpush2.bf16.msra.mxu0 %v3110
    %3778 = vmatprep.subr.bf16.mxu0 0
    %3779 = vmatpush2.bf16.msra.mxu0 %v3109
    %3780 = vmatprep.subr.bf16.mxu0 0
    %3781 = vmatpush2.bf16.msra.mxu0 %v3108
    %3782 = vmatprep.subr.bf16.mxu0 0
    %3783 = vmatpush2.bf16.msra.mxu0 %v3107
    %3784 = vmatprep.subr.bf16.mxu0 0
    %3785 = vmatpush2.bf16.msra.mxu0 %v3106
    %3786 = vmatprep.mubr.bf16.mxu0 %v1441
    %3787 = vmatmul.mubr.bf16.gmra.mxu0 %v1440
    %v3788 = vpop.f32.mrf.mxu0
    %v3789 = vadd.f32 %v3749, %v3788
    %v3790 = vpop.f32.mrf.mxu0
    %v3791 = vpop.f32.mrf.mxu0
    %v3792 = vpop.f32.mrf.mxu0
    %3793 = vdwg.mxu0
    %3794 = vmatprep.subr.bf16.mxu0 0
    %3795 = vmatpush1.bf16.msra.mxu0 %v3121
    %3796 = vmatprep.subr.bf16.mxu0 0
    %3797 = vmatpush1.bf16.msra.mxu0 %v3120
    %3798 = vmatprep.subr.bf16.mxu0 0
    %3799 = vmatpush1.bf16.msra.mxu0 %v3119
    %3800 = vmatprep.subr.bf16.mxu0 0
    %3801 = vmatpush1.bf16.msra.mxu0 %v3118
    %3802 = vmatprep.subr.bf16.mxu0 0
    %3803 = vmatpush1.bf16.msra.mxu0 %v3117
    %3804 = vmatprep.subr.bf16.mxu0 0
    %3805 = vmatpush1.bf16.msra.mxu0 %v3116
    %3806 = vmatprep.subr.bf16.mxu0 0
    %3807 = vmatpush1.bf16.msra.mxu0 %v3115
    %3808 = vmatprep.subr.bf16.mxu0 0
    %3809 = vmatpush1.bf16.msra.mxu0 %v3114
    %3810 = vmatprep.subr.bf16.mxu0 0
    %3811 = vmatpush2.bf16.msra.mxu0 %v3129
    %3812 = vmatprep.subr.bf16.mxu0 0
    %3813 = vmatpush2.bf16.msra.mxu0 %v3128
    %3814 = vmatprep.subr.bf16.mxu0 0
    %3815 = vmatpush2.bf16.msra.mxu0 %v3127
    %3816 = vmatprep.subr.bf16.mxu0 0
    %3817 = vmatpush2.bf16.msra.mxu0 %v3126
    %3818 = vmatprep.subr.bf16.mxu0 0
    %3819 = vmatpush2.bf16.msra.mxu0 %v3125
    %3820 = vmatprep.subr.bf16.mxu0 0
    %3821 = vmatpush2.bf16.msra.mxu0 %v3124
    %3822 = vmatprep.subr.bf16.mxu0 0
    %3823 = vmatpush2.bf16.msra.mxu0 %v3123
    %3824 = vmatprep.subr.bf16.mxu0 0
    %3825 = vmatpush2.bf16.msra.mxu0 %v3122
    %3826 = vmatprep.mubr.bf16.mxu0 %v1443
    %3827 = vmatmul.mubr.bf16.gmra.mxu0 %v1442
    %v3828 = vpop.f32.mrf.mxu0
    %v3829 = vadd.f32 %v3789, %v3828
    %v3830 = vpop.f32.mrf.mxu0
    %v3831 = vpop.f32.mrf.mxu0
    %v3832 = vpop.f32.mrf.mxu0
    %3833 = vdwg.mxu0
    %3834 = vmatprep.subr.bf16.mxu0 0
    %3835 = vmatpush1.bf16.msra.mxu0 %v3137
    %3836 = vmatprep.subr.bf16.mxu0 0
    %3837 = vmatpush1.bf16.msra.mxu0 %v3136
    %3838 = vmatprep.subr.bf16.mxu0 0
    %3839 = vmatpush1.bf16.msra.mxu0 %v3135
    %3840 = vmatprep.subr.bf16.mxu0 0
    %3841 = vmatpush1.bf16.msra.mxu0 %v3134
    %3842 = vmatprep.subr.bf16.mxu0 0
    %3843 = vmatpush1.bf16.msra.mxu0 %v3133
    %3844 = vmatprep.subr.bf16.mxu0 0
    %3845 = vmatpush1.bf16.msra.mxu0 %v3132
    %3846 = vmatprep.subr.bf16.mxu0 0
    %3847 = vmatpush1.bf16.msra.mxu0 %v3131
    %3848 = vmatprep.subr.bf16.mxu0 0
    %3849 = vmatpush1.bf16.msra.mxu0 %v3130
    %3850 = vmatprep.subr.bf16.mxu0 0
    %3851 = vmatpush2.bf16.msra.mxu0 %v3145
    %3852 = vmatprep.subr.bf16.mxu0 0
    %3853 = vmatpush2.bf16.msra.mxu0 %v3144
    %3854 = vmatprep.subr.bf16.mxu0 0
    %3855 = vmatpush2.bf16.msra.mxu0 %v3143
    %3856 = vmatprep.subr.bf16.mxu0 0
    %3857 = vmatpush2.bf16.msra.mxu0 %v3142
    %3858 = vmatprep.subr.bf16.mxu0 0
    %3859 = vmatpush2.bf16.msra.mxu0 %v3141
    %3860 = vmatprep.subr.bf16.mxu0 0
    %3861 = vmatpush2.bf16.msra.mxu0 %v3140
    %3862 = vmatprep.subr.bf16.mxu0 0
    %3863 = vmatpush2.bf16.msra.mxu0 %v3139
    %3864 = vmatprep.subr.bf16.mxu0 0
    %3865 = vmatpush2.bf16.msra.mxu0 %v3138
    %3866 = vmatprep.mubr.bf16.mxu0 %v1445
    %3867 = vmatmul.mubr.bf16.gmra.mxu0 %v1444
    %v3868 = vpop.f32.mrf.mxu0
    %v3869 = vadd.f32 %v3829, %v3868
    %v3870 = vpop.f32.mrf.mxu0
    %v3871 = vpop.f32.mrf.mxu0
    %v3872 = vpop.f32.mrf.mxu0
    %3873 = vdwg.mxu0
    %3874 = vmatprep.subr.bf16.mxu0 0
    %3875 = vmatpush1.bf16.msra.mxu0 %v3153
    %3876 = vmatprep.subr.bf16.mxu0 0
    %3877 = vmatpush1.bf16.msra.mxu0 %v3152
    %3878 = vmatprep.subr.bf16.mxu0 0
    %3879 = vmatpush1.bf16.msra.mxu0 %v3151
    %3880 = vmatprep.subr.bf16.mxu0 0
    %3881 = vmatpush1.bf16.msra.mxu0 %v3150
    %3882 = vmatprep.subr.bf16.mxu0 0
    %3883 = vmatpush1.bf16.msra.mxu0 %v3149
    %3884 = vmatprep.subr.bf16.mxu0 0
    %3885 = vmatpush1.bf16.msra.mxu0 %v3148
    %3886 = vmatprep.subr.bf16.mxu0 0
    %3887 = vmatpush1.bf16.msra.mxu0 %v3147
    %3888 = vmatprep.subr.bf16.mxu0 0
    %3889 = vmatpush1.bf16.msra.mxu0 %v3146
    %3890 = vmatprep.subr.bf16.mxu0 0
    %3891 = vmatpush2.bf16.msra.mxu0 %v3161
    %3892 = vmatprep.subr.bf16.mxu0 0
    %3893 = vmatpush2.bf16.msra.mxu0 %v3160
    %3894 = vmatprep.subr.bf16.mxu0 0
    %3895 = vmatpush2.bf16.msra.mxu0 %v3159
    %3896 = vmatprep.subr.bf16.mxu0 0
    %3897 = vmatpush2.bf16.msra.mxu0 %v3158
    %3898 = vmatprep.subr.bf16.mxu0 0
    %3899 = vmatpush2.bf16.msra.mxu0 %v3157
    %3900 = vmatprep.subr.bf16.mxu0 0
    %3901 = vmatpush2.bf16.msra.mxu0 %v3156
    %3902 = vmatprep.subr.bf16.mxu0 0
    %3903 = vmatpush2.bf16.msra.mxu0 %v3155
    %3904 = vmatprep.subr.bf16.mxu0 0
    %3905 = vmatpush2.bf16.msra.mxu0 %v3154
    %3906 = vmatprep.mubr.bf16.mxu0 %v1447
    %3907 = vmatmul.mubr.bf16.gmra.mxu0 %v1446
    %v3908 = vpop.f32.mrf.mxu0
    %v3909 = vadd.f32 %v3869, %v3908
    %v3910 = vpop.f32.mrf.mxu0
    %v3911 = vpop.f32.mrf.mxu0
    %v3912 = vpop.f32.mrf.mxu0
    %3913 = vdwg.mxu0
    %3914 = vmatprep.subr.bf16.mxu0 0
    %3915 = vmatpush1.bf16.msra.mxu0 %v3169
    %3916 = vmatprep.subr.bf16.mxu0 0
    %3917 = vmatpush1.bf16.msra.mxu0 %v3168
    %3918 = vmatprep.subr.bf16.mxu0 0
    %3919 = vmatpush1.bf16.msra.mxu0 %v3167
    %3920 = vmatprep.subr.bf16.mxu0 0
    %3921 = vmatpush1.bf16.msra.mxu0 %v3166
    %3922 = vmatprep.subr.bf16.mxu0 0
    %3923 = vmatpush1.bf16.msra.mxu0 %v3165
    %3924 = vmatprep.subr.bf16.mxu0 0
    %3925 = vmatpush1.bf16.msra.mxu0 %v3164
    %3926 = vmatprep.subr.bf16.mxu0 0
    %3927 = vmatpush1.bf16.msra.mxu0 %v3163
    %3928 = vmatprep.subr.bf16.mxu0 0
    %3929 = vmatpush1.bf16.msra.mxu0 %v3162
    %3930 = vmatprep.subr.bf16.mxu0 0
    %3931 = vmatpush2.bf16.msra.mxu0 %v3177
    %3932 = vmatprep.subr.bf16.mxu0 0
    %3933 = vmatpush2.bf16.msra.mxu0 %v3176
    %3934 = vmatprep.subr.bf16.mxu0 0
    %3935 = vmatpush2.bf16.msra.mxu0 %v3175
    %3936 = vmatprep.subr.bf16.mxu0 0
    %3937 = vmatpush2.bf16.msra.mxu0 %v3174
    %3938 = vmatprep.subr.bf16.mxu0 0
    %3939 = vmatpush2.bf16.msra.mxu0 %v3173
    %3940 = vmatprep.subr.bf16.mxu0 0
    %3941 = vmatpush2.bf16.msra.mxu0 %v3172
    %3942 = vmatprep.subr.bf16.mxu0 0
    %3943 = vmatpush2.bf16.msra.mxu0 %v3171
    %3944 = vmatprep.subr.bf16.mxu0 0
    %3945 = vmatpush2.bf16.msra.mxu0 %v3170
    %3946 = vmatprep.mubr.bf16.mxu0 %v1449
    %3947 = vmatmul.mubr.bf16.gmra.mxu0 %v1448
    %v3948 = vpop.f32.mrf.mxu0
    %v3949 = vadd.f32 %v3909, %v3948
    %v3950 = vpop.f32.mrf.mxu0
    %v3951 = vpop.f32.mrf.mxu0
    %v3952 = vpop.f32.mrf.mxu0
    %3953 = vdwg.mxu0
    %3954 = vmatprep.subr.bf16.mxu0 0
    %3955 = vmatpush1.bf16.msra.mxu0 %v3185
    %3956 = vmatprep.subr.bf16.mxu0 0
    %3957 = vmatpush1.bf16.msra.mxu0 %v3184
    %3958 = vmatprep.subr.bf16.mxu0 0
    %3959 = vmatpush1.bf16.msra.mxu0 %v3183
    %3960 = vmatprep.subr.bf16.mxu0 0
    %3961 = vmatpush1.bf16.msra.mxu0 %v3182
    %3962 = vmatprep.subr.bf16.mxu0 0
    %3963 = vmatpush1.bf16.msra.mxu0 %v3181
    %3964 = vmatprep.subr.bf16.mxu0 0
    %3965 = vmatpush1.bf16.msra.mxu0 %v3180
    %3966 = vmatprep.subr.bf16.mxu0 0
    %3967 = vmatpush1.bf16.msra.mxu0 %v3179
    %3968 = vmatprep.subr.bf16.mxu0 0
    %3969 = vmatpush1.bf16.msra.mxu0 %v3178
    %3970 = vmatprep.subr.bf16.mxu0 0
    %3971 = vmatpush2.bf16.msra.mxu0 %v3193
    %3972 = vmatprep.subr.bf16.mxu0 0
    %3973 = vmatpush2.bf16.msra.mxu0 %v3192
    %3974 = vmatprep.subr.bf16.mxu0 0
    %3975 = vmatpush2.bf16.msra.mxu0 %v3191
    %3976 = vmatprep.subr.bf16.mxu0 0
    %3977 = vmatpush2.bf16.msra.mxu0 %v3190
    %3978 = vmatprep.subr.bf16.mxu0 0
    %3979 = vmatpush2.bf16.msra.mxu0 %v3189
    %3980 = vmatprep.subr.bf16.mxu0 0
    %3981 = vmatpush2.bf16.msra.mxu0 %v3188
    %3982 = vmatprep.subr.bf16.mxu0 0
    %3983 = vmatpush2.bf16.msra.mxu0 %v3187
    %3984 = vmatprep.subr.bf16.mxu0 0
    %3985 = vmatpush2.bf16.msra.mxu0 %v3186
    %3986 = vmatprep.mubr.bf16.mxu0 %v1451
    %3987 = vmatmul.mubr.bf16.gmra.mxu0 %v1450
    %v3988 = vpop.f32.mrf.mxu0
    %v3989 = vadd.f32 %v3949, %v3988
    %v3990 = vpop.f32.mrf.mxu0
    %v3991 = vpop.f32.mrf.mxu0
    %v3992 = vpop.f32.mrf.mxu0
    %3993 = vdwg.mxu0
    %3994 = vmatprep.subr.bf16.mxu0 0
    %3995 = vmatpush1.bf16.msra.mxu0 %v3201
    %3996 = vmatprep.subr.bf16.mxu0 0
    %3997 = vmatpush1.bf16.msra.mxu0 %v3200
    %3998 = vmatprep.subr.bf16.mxu0 0
    %3999 = vmatpush1.bf16.msra.mxu0 %v3199
    %4000 = vmatprep.subr.bf16.mxu0 0
    %4001 = vmatpush1.bf16.msra.mxu0 %v3198
    %4002 = vmatprep.subr.bf16.mxu0 0
    %4003 = vmatpush1.bf16.msra.mxu0 %v3197
    %4004 = vmatprep.subr.bf16.mxu0 0
    %4005 = vmatpush1.bf16.msra.mxu0 %v3196
    %4006 = vmatprep.subr.bf16.mxu0 0
    %4007 = vmatpush1.bf16.msra.mxu0 %v3195
    %4008 = vmatprep.subr.bf16.mxu0 0
    %4009 = vmatpush1.bf16.msra.mxu0 %v3194
    %4010 = vmatprep.subr.bf16.mxu0 0
    %4011 = vmatpush2.bf16.msra.mxu0 %v3209
    %4012 = vmatprep.subr.bf16.mxu0 0
    %4013 = vmatpush2.bf16.msra.mxu0 %v3208
    %4014 = vmatprep.subr.bf16.mxu0 0
    %4015 = vmatpush2.bf16.msra.mxu0 %v3207
    %4016 = vmatprep.subr.bf16.mxu0 0
    %4017 = vmatpush2.bf16.msra.mxu0 %v3206
    %4018 = vmatprep.subr.bf16.mxu0 0
    %4019 = vmatpush2.bf16.msra.mxu0 %v3205
    %4020 = vmatprep.subr.bf16.mxu0 0
    %4021 = vmatpush2.bf16.msra.mxu0 %v3204
    %4022 = vmatprep.subr.bf16.mxu0 0
    %4023 = vmatpush2.bf16.msra.mxu0 %v3203
    %4024 = vmatprep.subr.bf16.mxu0 0
    %4025 = vmatpush2.bf16.msra.mxu0 %v3202
    %4026 = vmatprep.mubr.bf16.mxu0 %v1453
    %4027 = vmatmul.mubr.bf16.gmra.mxu0 %v1452
    %v4028 = vpop.f32.mrf.mxu0
    %v4029 = vadd.f32 %v3989, %v4028
    %v4030 = vpop.f32.mrf.mxu0
    %v4031 = vpop.f32.mrf.mxu0
    %v4032 = vpop.f32.mrf.mxu0
    %4033 = vdwg.mxu0
    %4034 = vmatprep.subr.bf16.mxu0 0
    %4035 = vmatpush1.bf16.msra.mxu0 %v3217
    %4036 = vmatprep.subr.bf16.mxu0 0
    %4037 = vmatpush1.bf16.msra.mxu0 %v3216
    %4038 = vmatprep.subr.bf16.mxu0 0
    %4039 = vmatpush1.bf16.msra.mxu0 %v3215
    %4040 = vmatprep.subr.bf16.mxu0 0
    %4041 = vmatpush1.bf16.msra.mxu0 %v3214
    %4042 = vmatprep.subr.bf16.mxu0 0
    %4043 = vmatpush1.bf16.msra.mxu0 %v3213
    %4044 = vmatprep.subr.bf16.mxu0 0
    %4045 = vmatpush1.bf16.msra.mxu0 %v3212
    %4046 = vmatprep.subr.bf16.mxu0 0
    %4047 = vmatpush1.bf16.msra.mxu0 %v3211
    %4048 = vmatprep.subr.bf16.mxu0 0
    %4049 = vmatpush1.bf16.msra.mxu0 %v3210
    %4050 = vmatprep.subr.bf16.mxu0 0
    %4051 = vmatpush2.bf16.msra.mxu0 %v3225
    %4052 = vmatprep.subr.bf16.mxu0 0
    %4053 = vmatpush2.bf16.msra.mxu0 %v3224
    %4054 = vmatprep.subr.bf16.mxu0 0
    %4055 = vmatpush2.bf16.msra.mxu0 %v3223
    %4056 = vmatprep.subr.bf16.mxu0 0
    %4057 = vmatpush2.bf16.msra.mxu0 %v3222
    %4058 = vmatprep.subr.bf16.mxu0 0
    %4059 = vmatpush2.bf16.msra.mxu0 %v3221
    %4060 = vmatprep.subr.bf16.mxu0 0
    %4061 = vmatpush2.bf16.msra.mxu0 %v3220
    %4062 = vmatprep.subr.bf16.mxu0 0
    %4063 = vmatpush2.bf16.msra.mxu0 %v3219
    %4064 = vmatprep.subr.bf16.mxu0 0
    %4065 = vmatpush2.bf16.msra.mxu0 %v3218
    %4066 = vmatprep.mubr.bf16.mxu0 %v1455
    %4067 = vmatmul.mubr.bf16.gmra.mxu0 %v1454
    %v4068 = vpop.f32.mrf.mxu0
    %v4069 = vadd.f32 %v4029, %v4068
    %v4070 = vpop.f32.mrf.mxu0
    %v4071 = vpop.f32.mrf.mxu0
    %v4072 = vpop.f32.mrf.mxu0
    %4073 = vdwg.mxu0
    %4074 = vmatprep.subr.bf16.mxu0 0
    %4075 = vmatpush1.bf16.msra.mxu0 %v3233
    %4076 = vmatprep.subr.bf16.mxu0 0
    %4077 = vmatpush1.bf16.msra.mxu0 %v3232
    %4078 = vmatprep.subr.bf16.mxu0 0
    %4079 = vmatpush1.bf16.msra.mxu0 %v3231
    %4080 = vmatprep.subr.bf16.mxu0 0
    %4081 = vmatpush1.bf16.msra.mxu0 %v3230
    %4082 = vmatprep.subr.bf16.mxu0 0
    %4083 = vmatpush1.bf16.msra.mxu0 %v3229
    %4084 = vmatprep.subr.bf16.mxu0 0
    %4085 = vmatpush1.bf16.msra.mxu0 %v3228
    %4086 = vmatprep.subr.bf16.mxu0 0
    %4087 = vmatpush1.bf16.msra.mxu0 %v3227
    %4088 = vmatprep.subr.bf16.mxu0 0
    %4089 = vmatpush1.bf16.msra.mxu0 %v3226
    %4090 = vmatprep.subr.bf16.mxu0 0
    %4091 = vmatpush2.bf16.msra.mxu0 %v3241
    %4092 = vmatprep.subr.bf16.mxu0 0
    %4093 = vmatpush2.bf16.msra.mxu0 %v3240
    %4094 = vmatprep.subr.bf16.mxu0 0
    %4095 = vmatpush2.bf16.msra.mxu0 %v3239
    %4096 = vmatprep.subr.bf16.mxu0 0
    %4097 = vmatpush2.bf16.msra.mxu0 %v3238
    %4098 = vmatprep.subr.bf16.mxu0 0
    %4099 = vmatpush2.bf16.msra.mxu0 %v3237
    %4100 = vmatprep.subr.bf16.mxu0 0
    %4101 = vmatpush2.bf16.msra.mxu0 %v3236
    %4102 = vmatprep.subr.bf16.mxu0 0
    %4103 = vmatpush2.bf16.msra.mxu0 %v3235
    %4104 = vmatprep.subr.bf16.mxu0 0
    %4105 = vmatpush2.bf16.msra.mxu0 %v3234
    %4106 = vmatprep.mubr.bf16.mxu0 %v1457
    %4107 = vmatmul.mubr.bf16.gmra.mxu0 %v1456
    %v4108 = vpop.f32.mrf.mxu0
    %v4109 = vadd.f32 %v4069, %v4108
    %v4110 = vpop.f32.mrf.mxu0
    %v4111 = vpop.f32.mrf.mxu0
    %v4112 = vpop.f32.mrf.mxu0
    %4113 = vdwg.mxu0
    %4114 = vmatprep.subr.bf16.mxu0 0
    %4115 = vmatpush1.bf16.msra.mxu0 %v3249
    %4116 = vmatprep.subr.bf16.mxu0 0
    %4117 = vmatpush1.bf16.msra.mxu0 %v3248
    %4118 = vmatprep.subr.bf16.mxu0 0
    %4119 = vmatpush1.bf16.msra.mxu0 %v3247
    %4120 = vmatprep.subr.bf16.mxu0 0
    %4121 = vmatpush1.bf16.msra.mxu0 %v3246
    %4122 = vmatprep.subr.bf16.mxu0 0
    %4123 = vmatpush1.bf16.msra.mxu0 %v3245
    %4124 = vmatprep.subr.bf16.mxu0 0
    %4125 = vmatpush1.bf16.msra.mxu0 %v3244
    %4126 = vmatprep.subr.bf16.mxu0 0
    %4127 = vmatpush1.bf16.msra.mxu0 %v3243
    %4128 = vmatprep.subr.bf16.mxu0 0
    %4129 = vmatpush1.bf16.msra.mxu0 %v3242
    %4130 = vmatprep.subr.bf16.mxu0 0
    %4131 = vmatpush2.bf16.msra.mxu0 %v3257
    %4132 = vmatprep.subr.bf16.mxu0 0
    %4133 = vmatpush2.bf16.msra.mxu0 %v3256
    %4134 = vmatprep.subr.bf16.mxu0 0
    %4135 = vmatpush2.bf16.msra.mxu0 %v3255
    %4136 = vmatprep.subr.bf16.mxu0 0
    %4137 = vmatpush2.bf16.msra.mxu0 %v3254
    %4138 = vmatprep.subr.bf16.mxu0 0
    %4139 = vmatpush2.bf16.msra.mxu0 %v3253
    %4140 = vmatprep.subr.bf16.mxu0 0
    %4141 = vmatpush2.bf16.msra.mxu0 %v3252
    %4142 = vmatprep.subr.bf16.mxu0 0
    %4143 = vmatpush2.bf16.msra.mxu0 %v3251
    %4144 = vmatprep.subr.bf16.mxu0 0
    %4145 = vmatpush2.bf16.msra.mxu0 %v3250
    %4146 = vmatprep.mubr.bf16.mxu0 %v1459
    %4147 = vmatmul.mubr.bf16.gmra.mxu0 %v1458
    %v4148 = vpop.f32.mrf.mxu0
    %v4149 = vadd.f32 %v4109, %v4148
    %v4150 = vpop.f32.mrf.mxu0
    %v4151 = vpop.f32.mrf.mxu0
    %v4152 = vpop.f32.mrf.mxu0
    %4153 = vdwg.mxu0
    %v4154 = vmul.f32 %v4149, 1.442695
    %v4155 = vpow.pop %v4154
    %v4156 = vld [vmem:[%s1] sm:$0xff]
    %4158 = vrot.lane.b32.xlu0 %v4156, 32
    %v4159 = vpop.permute.xlu0 %4158
    %v4161 = vmul.f32 %v4155, %v4159
    %4163 = vrot.lane.b32.xlu0 %v4161, 96
    %v4164 = vpop.permute.xlu0 %4163
    %v4166 = vadd.f32 %v4149, %v4164
    %4167 = vst.msk [vmem:[#allocation4] sm:$0xff] %vm736, %v4149
    %4169 = vrot.lane.b32.xlu0 %v4149, 96
    %v4170 = vpop.permute.xlu0 %4169
    %4172 = vst.msk [vmem:[#allocation6] sm:$0xff] %vm736, %v4170
    %4173 = vst.msk [vmem:[#allocation2] sm:$0xff] %vm736, %v4166
    %v4174 = vpack.c.bf16 %v4166, %v4166
    %v4175 = vld [vmem:[%s6] sm:$0xff]
    %v4176 = vld [vmem:[%s6 + $0x8] sm:$0xff]
    %v4177 = vld [vmem:[%s6 + $0x10] sm:$0xff]
    %v4178 = vld [vmem:[%s6 + $0x18] sm:$0xff]
    %v4179 = vld [vmem:[%s6 + $0x20] sm:$0xff]
    %v4180 = vld [vmem:[%s6 + $0x28] sm:$0xff]
    %v4181 = vld [vmem:[%s6 + $0x30] sm:$0xff]
    %v4182 = vld [vmem:[%s6 + $0x38] sm:$0xff]
    %v4183 = vld [vmem:[%s6 + $0x40] sm:$0xff]
    %v4184 = vld [vmem:[%s6 + $0x48] sm:$0xff]
    %v4185 = vld [vmem:[%s6 + $0x50] sm:$0xff]
    %v4186 = vld [vmem:[%s6 + $0x58] sm:$0xff]
    %v4187 = vld [vmem:[%s6 + $0x60] sm:$0xff]
    %v4188 = vld [vmem:[%s6 + $0x68] sm:$0xff]
    %v4189 = vld [vmem:[%s6 + $0x70] sm:$0xff]
    %v4190 = vld [vmem:[%s6 + $0x78] sm:$0xff]
    %v4191 = vld [vmem:[%s6 + $0x80] sm:$0xff]
    %v4192 = vld [vmem:[%s6 + $0x88] sm:$0xff]
    %v4193 = vld [vmem:[%s6 + $0x90] sm:$0xff]
    %v4194 = vld [vmem:[%s6 + $0x98] sm:$0xff]
    %v4195 = vld [vmem:[%s6 + $0xa0] sm:$0xff]
    %v4196 = vld [vmem:[%s6 + $0xa8] sm:$0xff]
    %v4197 = vld [vmem:[%s6 + $0xb0] sm:$0xff]
    %v4198 = vld [vmem:[%s6 + $0xb8] sm:$0xff]
    %v4199 = vld [vmem:[%s6 + $0xc0] sm:$0xff]
    %v4200 = vld [vmem:[%s6 + $0xc8] sm:$0xff]
    %v4201 = vld [vmem:[%s6 + $0xd0] sm:$0xff]
    %v4202 = vld [vmem:[%s6 + $0xd8] sm:$0xff]
    %v4203 = vld [vmem:[%s6 + $0xe0] sm:$0xff]
    %v4204 = vld [vmem:[%s6 + $0xe8] sm:$0xff]
    %v4205 = vld [vmem:[%s6 + $0xf0] sm:$0xff]
    %v4206 = vld [vmem:[%s6 + $0xf8] sm:$0xff]
    %v4207 = vld [vmem:[%s6 + $0x100] sm:$0xff]
    %v4208 = vld [vmem:[%s6 + $0x108] sm:$0xff]
    %v4209 = vld [vmem:[%s6 + $0x110] sm:$0xff]
    %v4210 = vld [vmem:[%s6 + $0x118] sm:$0xff]
    %v4211 = vld [vmem:[%s6 + $0x120] sm:$0xff]
    %v4212 = vld [vmem:[%s6 + $0x128] sm:$0xff]
    %v4213 = vld [vmem:[%s6 + $0x130] sm:$0xff]
    %v4214 = vld [vmem:[%s6 + $0x138] sm:$0xff]
    %v4215 = vld [vmem:[%s6 + $0x140] sm:$0xff]
    %v4216 = vld [vmem:[%s6 + $0x148] sm:$0xff]
    %v4217 = vld [vmem:[%s6 + $0x150] sm:$0xff]
    %v4218 = vld [vmem:[%s6 + $0x158] sm:$0xff]
    %v4219 = vld [vmem:[%s6 + $0x160] sm:$0xff]
    %v4220 = vld [vmem:[%s6 + $0x168] sm:$0xff]
    %v4221 = vld [vmem:[%s6 + $0x170] sm:$0xff]
    %v4222 = vld [vmem:[%s6 + $0x178] sm:$0xff]
    %v4223 = vld [vmem:[%s6 + $0x180] sm:$0xff]
    %v4224 = vld [vmem:[%s6 + $0x188] sm:$0xff]
    %v4225 = vld [vmem:[%s6 + $0x190] sm:$0xff]
    %v4226 = vld [vmem:[%s6 + $0x198] sm:$0xff]
    %v4227 = vld [vmem:[%s6 + $0x1a0] sm:$0xff]
    %v4228 = vld [vmem:[%s6 + $0x1a8] sm:$0xff]
    %v4229 = vld [vmem:[%s6 + $0x1b0] sm:$0xff]
    %v4230 = vld [vmem:[%s6 + $0x1b8] sm:$0xff]
    %v4231 = vld [vmem:[%s6 + $0x1c0] sm:$0xff]
    %v4232 = vld [vmem:[%s6 + $0x1c8] sm:$0xff]
    %v4233 = vld [vmem:[%s6 + $0x1d0] sm:$0xff]
    %v4234 = vld [vmem:[%s6 + $0x1d8] sm:$0xff]
    %v4235 = vld [vmem:[%s6 + $0x1e0] sm:$0xff]
    %v4236 = vld [vmem:[%s6 + $0x1e8] sm:$0xff]
    %v4237 = vld [vmem:[%s6 + $0x1f0] sm:$0xff]
    %v4238 = vld [vmem:[%s6 + $0x1f8] sm:$0xff]
    %v4239 = vld [vmem:[%s7] sm:$0xff]
    %v4240 = vld [vmem:[%s7 + $0x8] sm:$0xff]
    %v4241 = vld [vmem:[%s7 + $0x10] sm:$0xff]
    %v4242 = vld [vmem:[%s7 + $0x18] sm:$0xff]
    %v4243 = vunpack.c.l.bf16 %v4239
    %v4244 = vunpack.c.h.bf16 %v4239
    %v4245 = vunpack.c.l.bf16 %v4240
    %v4246 = vunpack.c.h.bf16 %v4240
    %v4247 = vunpack.c.l.bf16 %v4241
    %v4248 = vunpack.c.h.bf16 %v4241
    %v4249 = vunpack.c.l.bf16 %v4242
    %v4250 = vunpack.c.h.bf16 %v4242
    %v4259 = vlaneseq
    %v4260 = vshrl.u32 %v4259, 7
    %v4261 = vsub.s32 0, %v4260
    %v4262 = vrot.slane %v4243, %v4261
    %v4263 = vlaneseq
    %v4264 = vshrl.u32 %v4263, 7
    %v4265 = vsub.s32 2, %v4264
    %v4266 = vrot.slane %v4243, %v4265
    %v4267 = vlaneseq
    %v4268 = vshrl.u32 %v4267, 7
    %v4269 = vsub.s32 4, %v4268
    %v4270 = vrot.slane %v4243, %v4269
    %v4271 = vlaneseq
    %v4272 = vshrl.u32 %v4271, 7
    %v4273 = vsub.s32 6, %v4272
    %v4274 = vrot.slane %v4243, %v4273
    %v4275 = vlaneseq
    %v4276 = vshrl.u32 %v4275, 7
    %v4277 = vsub.s32 0, %v4276
    %v4278 = vrot.slane %v4244, %v4277
    %v4279 = vlaneseq
    %v4280 = vshrl.u32 %v4279, 7
    %v4281 = vsub.s32 2, %v4280
    %v4282 = vrot.slane %v4244, %v4281
    %v4283 = vlaneseq
    %v4284 = vshrl.u32 %v4283, 7
    %v4285 = vsub.s32 4, %v4284
    %v4286 = vrot.slane %v4244, %v4285
    %v4287 = vlaneseq
    %v4288 = vshrl.u32 %v4287, 7
    %v4289 = vsub.s32 6, %v4288
    %v4290 = vrot.slane %v4244, %v4289
    %v4291 = vlaneseq
    %v4292 = vshrl.u32 %v4291, 7
    %v4293 = vsub.s32 0, %v4292
    %v4294 = vrot.slane %v4245, %v4293
    %v4295 = vlaneseq
    %v4296 = vshrl.u32 %v4295, 7
    %v4297 = vsub.s32 2, %v4296
    %v4298 = vrot.slane %v4245, %v4297
    %v4299 = vlaneseq
    %v4300 = vshrl.u32 %v4299, 7
    %v4301 = vsub.s32 4, %v4300
    %v4302 = vrot.slane %v4245, %v4301
    %v4303 = vlaneseq
    %v4304 = vshrl.u32 %v4303, 7
    %v4305 = vsub.s32 6, %v4304
    %v4306 = vrot.slane %v4245, %v4305
    %v4307 = vlaneseq
    %v4308 = vshrl.u32 %v4307, 7
    %v4309 = vsub.s32 0, %v4308
    %v4310 = vrot.slane %v4246, %v4309
    %v4311 = vlaneseq
    %v4312 = vshrl.u32 %v4311, 7
    %v4313 = vsub.s32 2, %v4312
    %v4314 = vrot.slane %v4246, %v4313
    %v4315 = vlaneseq
    %v4316 = vshrl.u32 %v4315, 7
    %v4317 = vsub.s32 4, %v4316
    %v4318 = vrot.slane %v4246, %v4317
    %v4319 = vlaneseq
    %v4320 = vshrl.u32 %v4319, 7
    %v4321 = vsub.s32 6, %v4320
    %v4322 = vrot.slane %v4246, %v4321
    %v4323 = vlaneseq
    %v4324 = vshrl.u32 %v4323, 7
    %v4325 = vsub.s32 0, %v4324
    %v4326 = vrot.slane %v4247, %v4325
    %v4327 = vlaneseq
    %v4328 = vshrl.u32 %v4327, 7
    %v4329 = vsub.s32 2, %v4328
    %v4330 = vrot.slane %v4247, %v4329
    %v4331 = vlaneseq
    %v4332 = vshrl.u32 %v4331, 7
    %v4333 = vsub.s32 4, %v4332
    %v4334 = vrot.slane %v4247, %v4333
    %v4335 = vlaneseq
    %v4336 = vshrl.u32 %v4335, 7
    %v4337 = vsub.s32 6, %v4336
    %v4338 = vrot.slane %v4247, %v4337
    %v4339 = vlaneseq
    %v4340 = vshrl.u32 %v4339, 7
    %v4341 = vsub.s32 0, %v4340
    %v4342 = vrot.slane %v4248, %v4341
    %v4343 = vlaneseq
    %v4344 = vshrl.u32 %v4343, 7
    %v4345 = vsub.s32 2, %v4344
    %v4346 = vrot.slane %v4248, %v4345
    %v4347 = vlaneseq
    %v4348 = vshrl.u32 %v4347, 7
    %v4349 = vsub.s32 4, %v4348
    %v4350 = vrot.slane %v4248, %v4349
    %v4351 = vlaneseq
    %v4352 = vshrl.u32 %v4351, 7
    %v4353 = vsub.s32 6, %v4352
    %v4354 = vrot.slane %v4248, %v4353
    %v4355 = vlaneseq
    %v4356 = vshrl.u32 %v4355, 7
    %v4357 = vsub.s32 0, %v4356
    %v4358 = vrot.slane %v4249, %v4357
    %v4359 = vlaneseq
    %v4360 = vshrl.u32 %v4359, 7
    %v4361 = vsub.s32 2, %v4360
    %v4362 = vrot.slane %v4249, %v4361
    %v4363 = vlaneseq
    %v4364 = vshrl.u32 %v4363, 7
    %v4365 = vsub.s32 4, %v4364
    %v4366 = vrot.slane %v4249, %v4365
    %v4367 = vlaneseq
    %v4368 = vshrl.u32 %v4367, 7
    %v4369 = vsub.s32 6, %v4368
    %v4370 = vrot.slane %v4249, %v4369
    %v4371 = vlaneseq
    %v4372 = vshrl.u32 %v4371, 7
    %v4373 = vsub.s32 0, %v4372
    %v4374 = vrot.slane %v4250, %v4373
    %v4375 = vlaneseq
    %v4376 = vshrl.u32 %v4375, 7
    %v4377 = vsub.s32 2, %v4376
    %v4378 = vrot.slane %v4250, %v4377
    %v4379 = vlaneseq
    %v4380 = vshrl.u32 %v4379, 7
    %v4381 = vsub.s32 4, %v4380
    %v4382 = vrot.slane %v4250, %v4381
    %v4383 = vlaneseq
    %v4384 = vshrl.u32 %v4383, 7
    %v4385 = vsub.s32 6, %v4384
    %v4386 = vrot.slane %v4250, %v4385
    %v4419 = vlaneseq
    %v4420 = vshrl.u32 %v4419, 7
    %v4421 = vsub.s32 0, %v4420
    %v4422 = vrot.slane %v4262, %v4421
    %v4423 = vlaneseq
    %v4424 = vshrl.u32 %v4423, 7
    %v4425 = vsub.s32 0, %v4424
    %v4426 = vrot.slane %v4266, %v4425
    %v4427 = vlaneseq
    %v4428 = vshrl.u32 %v4427, 7
    %v4429 = vsub.s32 0, %v4428
    %v4430 = vrot.slane %v4270, %v4429
    %v4431 = vlaneseq
    %v4432 = vshrl.u32 %v4431, 7
    %v4433 = vsub.s32 0, %v4432
    %v4434 = vrot.slane %v4274, %v4433
    %v4435 = vlaneseq
    %v4436 = vshrl.u32 %v4435, 7
    %v4437 = vsub.s32 0, %v4436
    %v4438 = vrot.slane %v4278, %v4437
    %v4439 = vlaneseq
    %v4440 = vshrl.u32 %v4439, 7
    %v4441 = vsub.s32 0, %v4440
    %v4442 = vrot.slane %v4282, %v4441
    %v4443 = vlaneseq
    %v4444 = vshrl.u32 %v4443, 7
    %v4445 = vsub.s32 0, %v4444
    %v4446 = vrot.slane %v4286, %v4445
    %v4447 = vlaneseq
    %v4448 = vshrl.u32 %v4447, 7
    %v4449 = vsub.s32 0, %v4448
    %v4450 = vrot.slane %v4290, %v4449
    %v4451 = vlaneseq
    %v4452 = vshrl.u32 %v4451, 7
    %v4453 = vsub.s32 0, %v4452
    %v4454 = vrot.slane %v4294, %v4453
    %v4455 = vlaneseq
    %v4456 = vshrl.u32 %v4455, 7
    %v4457 = vsub.s32 0, %v4456
    %v4458 = vrot.slane %v4298, %v4457
    %v4459 = vlaneseq
    %v4460 = vshrl.u32 %v4459, 7
    %v4461 = vsub.s32 0, %v4460
    %v4462 = vrot.slane %v4302, %v4461
    %v4463 = vlaneseq
    %v4464 = vshrl.u32 %v4463, 7
    %v4465 = vsub.s32 0, %v4464
    %v4466 = vrot.slane %v4306, %v4465
    %v4467 = vlaneseq
    %v4468 = vshrl.u32 %v4467, 7
    %v4469 = vsub.s32 0, %v4468
    %v4470 = vrot.slane %v4310, %v4469
    %v4471 = vlaneseq
    %v4472 = vshrl.u32 %v4471, 7
    %v4473 = vsub.s32 0, %v4472
    %v4474 = vrot.slane %v4314, %v4473
    %v4475 = vlaneseq
    %v4476 = vshrl.u32 %v4475, 7
    %v4477 = vsub.s32 0, %v4476
    %v4478 = vrot.slane %v4318, %v4477
    %v4479 = vlaneseq
    %v4480 = vshrl.u32 %v4479, 7
    %v4481 = vsub.s32 0, %v4480
    %v4482 = vrot.slane %v4322, %v4481
    %v4483 = vlaneseq
    %v4484 = vshrl.u32 %v4483, 7
    %v4485 = vsub.s32 0, %v4484
    %v4486 = vrot.slane %v4326, %v4485
    %v4487 = vlaneseq
    %v4488 = vshrl.u32 %v4487, 7
    %v4489 = vsub.s32 0, %v4488
    %v4490 = vrot.slane %v4330, %v4489
    %v4491 = vlaneseq
    %v4492 = vshrl.u32 %v4491, 7
    %v4493 = vsub.s32 0, %v4492
    %v4494 = vrot.slane %v4334, %v4493
    %v4495 = vlaneseq
    %v4496 = vshrl.u32 %v4495, 7
    %v4497 = vsub.s32 0, %v4496
    %v4498 = vrot.slane %v4338, %v4497
    %v4499 = vlaneseq
    %v4500 = vshrl.u32 %v4499, 7
    %v4501 = vsub.s32 0, %v4500
    %v4502 = vrot.slane %v4342, %v4501
    %v4503 = vlaneseq
    %v4504 = vshrl.u32 %v4503, 7
    %v4505 = vsub.s32 0, %v4504
    %v4506 = vrot.slane %v4346, %v4505
    %v4507 = vlaneseq
    %v4508 = vshrl.u32 %v4507, 7
    %v4509 = vsub.s32 0, %v4508
    %v4510 = vrot.slane %v4350, %v4509
    %v4511 = vlaneseq
    %v4512 = vshrl.u32 %v4511, 7
    %v4513 = vsub.s32 0, %v4512
    %v4514 = vrot.slane %v4354, %v4513
    %v4515 = vlaneseq
    %v4516 = vshrl.u32 %v4515, 7
    %v4517 = vsub.s32 0, %v4516
    %v4518 = vrot.slane %v4358, %v4517
    %v4519 = vlaneseq
    %v4520 = vshrl.u32 %v4519, 7
    %v4521 = vsub.s32 0, %v4520
    %v4522 = vrot.slane %v4362, %v4521
    %v4523 = vlaneseq
    %v4524 = vshrl.u32 %v4523, 7
    %v4525 = vsub.s32 0, %v4524
    %v4526 = vrot.slane %v4366, %v4525
    %v4527 = vlaneseq
    %v4528 = vshrl.u32 %v4527, 7
    %v4529 = vsub.s32 0, %v4528
    %v4530 = vrot.slane %v4370, %v4529
    %v4531 = vlaneseq
    %v4532 = vshrl.u32 %v4531, 7
    %v4533 = vsub.s32 0, %v4532
    %v4534 = vrot.slane %v4374, %v4533
    %v4535 = vlaneseq
    %v4536 = vshrl.u32 %v4535, 7
    %v4537 = vsub.s32 0, %v4536
    %v4538 = vrot.slane %v4378, %v4537
    %v4539 = vlaneseq
    %v4540 = vshrl.u32 %v4539, 7
    %v4541 = vsub.s32 0, %v4540
    %v4542 = vrot.slane %v4382, %v4541
    %v4543 = vlaneseq
    %v4544 = vshrl.u32 %v4543, 7
    %v4545 = vsub.s32 0, %v4544
    %v4546 = vrot.slane %v4386, %v4545
    %v4611 = vunpack.c.l.b16 %v4175
    %v4612 = vunpack.c.h.b16 %v4175
    %v4613 = vunpack.c.l.b16 %v4176
    %v4614 = vunpack.c.h.b16 %v4176
    %v4615 = vunpack.c.l.b16 %v4177
    %v4616 = vunpack.c.h.b16 %v4177
    %v4617 = vunpack.c.l.b16 %v4178
    %v4618 = vunpack.c.h.b16 %v4178
    %v4619 = vunpack.c.l.b16 %v4179
    %v4620 = vunpack.c.h.b16 %v4179
    %v4621 = vunpack.c.l.b16 %v4180
    %v4622 = vunpack.c.h.b16 %v4180
    %v4623 = vunpack.c.l.b16 %v4181
    %v4624 = vunpack.c.h.b16 %v4181
    %v4625 = vunpack.c.l.b16 %v4182
    %v4626 = vunpack.c.h.b16 %v4182
    %v4627 = vunpack.c.l.b16 %v4183
    %v4628 = vunpack.c.h.b16 %v4183
    %v4629 = vunpack.c.l.b16 %v4184
    %v4630 = vunpack.c.h.b16 %v4184
    %v4631 = vunpack.c.l.b16 %v4185
    %v4632 = vunpack.c.h.b16 %v4185
    %v4633 = vunpack.c.l.b16 %v4186
    %v4634 = vunpack.c.h.b16 %v4186
    %v4635 = vunpack.c.l.b16 %v4187
    %v4636 = vunpack.c.h.b16 %v4187
    %v4637 = vunpack.c.l.b16 %v4188
    %v4638 = vunpack.c.h.b16 %v4188
    %v4639 = vunpack.c.l.b16 %v4189
    %v4640 = vunpack.c.h.b16 %v4189
    %v4641 = vunpack.c.l.b16 %v4190
    %v4642 = vunpack.c.h.b16 %v4190
    %v4643 = vunpack.c.l.b16 %v4191
    %v4644 = vunpack.c.h.b16 %v4191
    %v4645 = vunpack.c.l.b16 %v4192
    %v4646 = vunpack.c.h.b16 %v4192
    %v4647 = vunpack.c.l.b16 %v4193
    %v4648 = vunpack.c.h.b16 %v4193
    %v4649 = vunpack.c.l.b16 %v4194
    %v4650 = vunpack.c.h.b16 %v4194
    %v4651 = vunpack.c.l.b16 %v4195
    %v4652 = vunpack.c.h.b16 %v4195
    %v4653 = vunpack.c.l.b16 %v4196
    %v4654 = vunpack.c.h.b16 %v4196
    %v4655 = vunpack.c.l.b16 %v4197
    %v4656 = vunpack.c.h.b16 %v4197
    %v4657 = vunpack.c.l.b16 %v4198
    %v4658 = vunpack.c.h.b16 %v4198
    %v4659 = vunpack.c.l.b16 %v4199
    %v4660 = vunpack.c.h.b16 %v4199
    %v4661 = vunpack.c.l.b16 %v4200
    %v4662 = vunpack.c.h.b16 %v4200
    %v4663 = vunpack.c.l.b16 %v4201
    %v4664 = vunpack.c.h.b16 %v4201
    %v4665 = vunpack.c.l.b16 %v4202
    %v4666 = vunpack.c.h.b16 %v4202
    %v4667 = vunpack.c.l.b16 %v4203
    %v4668 = vunpack.c.h.b16 %v4203
    %v4669 = vunpack.c.l.b16 %v4204
    %v4670 = vunpack.c.h.b16 %v4204
    %v4671 = vunpack.c.l.b16 %v4205
    %v4672 = vunpack.c.h.b16 %v4205
    %v4673 = vunpack.c.l.b16 %v4206
    %v4674 = vunpack.c.h.b16 %v4206
    %v4675 = vunpack.c.l.b16 %v4207
    %v4676 = vunpack.c.h.b16 %v4207
    %v4677 = vunpack.c.l.b16 %v4208
    %v4678 = vunpack.c.h.b16 %v4208
    %v4679 = vunpack.c.l.b16 %v4209
    %v4680 = vunpack.c.h.b16 %v4209
    %v4681 = vunpack.c.l.b16 %v4210
    %v4682 = vunpack.c.h.b16 %v4210
    %v4683 = vunpack.c.l.b16 %v4211
    %v4684 = vunpack.c.h.b16 %v4211
    %v4685 = vunpack.c.l.b16 %v4212
    %v4686 = vunpack.c.h.b16 %v4212
    %v4687 = vunpack.c.l.b16 %v4213
    %v4688 = vunpack.c.h.b16 %v4213
    %v4689 = vunpack.c.l.b16 %v4214
    %v4690 = vunpack.c.h.b16 %v4214
    %v4691 = vunpack.c.l.b16 %v4215
    %v4692 = vunpack.c.h.b16 %v4215
    %v4693 = vunpack.c.l.b16 %v4216
    %v4694 = vunpack.c.h.b16 %v4216
    %v4695 = vunpack.c.l.b16 %v4217
    %v4696 = vunpack.c.h.b16 %v4217
    %v4697 = vunpack.c.l.b16 %v4218
    %v4698 = vunpack.c.h.b16 %v4218
    %v4699 = vunpack.c.l.b16 %v4219
    %v4700 = vunpack.c.h.b16 %v4219
    %v4701 = vunpack.c.l.b16 %v4220
    %v4702 = vunpack.c.h.b16 %v4220
    %v4703 = vunpack.c.l.b16 %v4221
    %v4704 = vunpack.c.h.b16 %v4221
    %v4705 = vunpack.c.l.b16 %v4222
    %v4706 = vunpack.c.h.b16 %v4222
    %v4707 = vunpack.c.l.b16 %v4223
    %v4708 = vunpack.c.h.b16 %v4223
    %v4709 = vunpack.c.l.b16 %v4224
    %v4710 = vunpack.c.h.b16 %v4224
    %v4711 = vunpack.c.l.b16 %v4225
    %v4712 = vunpack.c.h.b16 %v4225
    %v4713 = vunpack.c.l.b16 %v4226
    %v4714 = vunpack.c.h.b16 %v4226
    %v4715 = vunpack.c.l.b16 %v4227
    %v4716 = vunpack.c.h.b16 %v4227
    %v4717 = vunpack.c.l.b16 %v4228
    %v4718 = vunpack.c.h.b16 %v4228
    %v4719 = vunpack.c.l.b16 %v4229
    %v4720 = vunpack.c.h.b16 %v4229
    %v4721 = vunpack.c.l.b16 %v4230
    %v4722 = vunpack.c.h.b16 %v4230
    %v4723 = vunpack.c.l.b16 %v4231
    %v4724 = vunpack.c.h.b16 %v4231
    %v4725 = vunpack.c.l.b16 %v4232
    %v4726 = vunpack.c.h.b16 %v4232
    %v4727 = vunpack.c.l.b16 %v4233
    %v4728 = vunpack.c.h.b16 %v4233
    %v4729 = vunpack.c.l.b16 %v4234
    %v4730 = vunpack.c.h.b16 %v4234
    %v4731 = vunpack.c.l.b16 %v4235
    %v4732 = vunpack.c.h.b16 %v4235
    %v4733 = vunpack.c.l.b16 %v4236
    %v4734 = vunpack.c.h.b16 %v4236
    %v4735 = vunpack.c.l.b16 %v4237
    %v4736 = vunpack.c.h.b16 %v4237
    %v4737 = vunpack.c.l.b16 %v4238
    %v4738 = vunpack.c.h.b16 %v4238
    %v4739 = vpack.c.b16 %v4643, %v4611
    %v4740 = vpack.c.b16 %v4644, %v4612
    %v4741 = vpack.c.b16 %v4645, %v4613
    %v4742 = vpack.c.b16 %v4646, %v4614
    %v4743 = vpack.c.b16 %v4647, %v4615
    %v4744 = vpack.c.b16 %v4648, %v4616
    %v4745 = vpack.c.b16 %v4649, %v4617
    %v4746 = vpack.c.b16 %v4650, %v4618
    %v4747 = vpack.c.b16 %v4651, %v4619
    %v4748 = vpack.c.b16 %v4652, %v4620
    %v4749 = vpack.c.b16 %v4653, %v4621
    %v4750 = vpack.c.b16 %v4654, %v4622
    %v4751 = vpack.c.b16 %v4655, %v4623
    %v4752 = vpack.c.b16 %v4656, %v4624
    %v4753 = vpack.c.b16 %v4657, %v4625
    %v4754 = vpack.c.b16 %v4658, %v4626
    %v4755 = vpack.c.b16 %v4659, %v4627
    %v4756 = vpack.c.b16 %v4660, %v4628
    %v4757 = vpack.c.b16 %v4661, %v4629
    %v4758 = vpack.c.b16 %v4662, %v4630
    %v4759 = vpack.c.b16 %v4663, %v4631
    %v4760 = vpack.c.b16 %v4664, %v4632
    %v4761 = vpack.c.b16 %v4665, %v4633
    %v4762 = vpack.c.b16 %v4666, %v4634
    %v4763 = vpack.c.b16 %v4667, %v4635
    %v4764 = vpack.c.b16 %v4668, %v4636
    %v4765 = vpack.c.b16 %v4669, %v4637
    %v4766 = vpack.c.b16 %v4670, %v4638
    %v4767 = vpack.c.b16 %v4671, %v4639
    %v4768 = vpack.c.b16 %v4672, %v4640
    %v4769 = vpack.c.b16 %v4673, %v4641
    %v4770 = vpack.c.b16 %v4674, %v4642
    %v4771 = vpack.c.b16 %v4707, %v4675
    %v4772 = vpack.c.b16 %v4708, %v4676
    %v4773 = vpack.c.b16 %v4709, %v4677
    %v4774 = vpack.c.b16 %v4710, %v4678
    %v4775 = vpack.c.b16 %v4711, %v4679
    %v4776 = vpack.c.b16 %v4712, %v4680
    %v4777 = vpack.c.b16 %v4713, %v4681
    %v4778 = vpack.c.b16 %v4714, %v4682
    %v4779 = vpack.c.b16 %v4715, %v4683
    %v4780 = vpack.c.b16 %v4716, %v4684
    %v4781 = vpack.c.b16 %v4717, %v4685
    %v4782 = vpack.c.b16 %v4718, %v4686
    %v4783 = vpack.c.b16 %v4719, %v4687
    %v4784 = vpack.c.b16 %v4720, %v4688
    %v4785 = vpack.c.b16 %v4721, %v4689
    %v4786 = vpack.c.b16 %v4722, %v4690
    %v4787 = vpack.c.b16 %v4723, %v4691
    %v4788 = vpack.c.b16 %v4724, %v4692
    %v4789 = vpack.c.b16 %v4725, %v4693
    %v4790 = vpack.c.b16 %v4726, %v4694
    %v4791 = vpack.c.b16 %v4727, %v4695
    %v4792 = vpack.c.b16 %v4728, %v4696
    %v4793 = vpack.c.b16 %v4729, %v4697
    %v4794 = vpack.c.b16 %v4730, %v4698
    %v4795 = vpack.c.b16 %v4731, %v4699
    %v4796 = vpack.c.b16 %v4732, %v4700
    %v4797 = vpack.c.b16 %v4733, %v4701
    %v4798 = vpack.c.b16 %v4734, %v4702
    %v4799 = vpack.c.b16 %v4735, %v4703
    %v4800 = vpack.c.b16 %v4736, %v4704
    %v4801 = vpack.c.b16 %v4737, %v4705
    %v4802 = vpack.c.b16 %v4738, %v4706
    %v4868 = vsel %vm736, %v4174, 0
    %4870 = vmatprep.subr.bf16.mxu0 0
    %4871 = vmatpush1.bf16.msra.mxu0 0
    %4872 = vmatprep.subr.bf16.mxu0 0
    %4873 = vmatpush1.bf16.msra.mxu0 0
    %4874 = vmatprep.subr.bf16.mxu0 0
    %4875 = vmatpush1.bf16.msra.mxu0 0
    %4876 = vmatprep.subr.bf16.mxu0 0
    %4877 = vmatpush1.bf16.msra.mxu0 0
    %4878 = vmatprep.subr.bf16.mxu0 0
    %4879 = vmatpush1.bf16.msra.mxu0 0
    %4880 = vmatprep.subr.bf16.mxu0 0
    %4881 = vmatpush1.bf16.msra.mxu0 0
    %4882 = vmatprep.subr.bf16.mxu0 %v4772
    %4883 = vmatpush1.bf16.msra.mxu0 %v4771
    %4884 = vmatprep.subr.bf16.mxu0 %v4740
    %4885 = vmatpush1.bf16.msra.mxu0 %v4739
    %4886 = vmatprep.subr.bf16.mxu0 0
    %4887 = vmatpush2.bf16.msra.mxu0 0
    %4888 = vmatprep.subr.bf16.mxu0 0
    %4889 = vmatpush2.bf16.msra.mxu0 0
    %4890 = vmatprep.subr.bf16.mxu0 0
    %4891 = vmatpush2.bf16.msra.mxu0 0
    %4892 = vmatprep.subr.bf16.mxu0 0
    %4893 = vmatpush2.bf16.msra.mxu0 0
    %4894 = vmatprep.subr.bf16.mxu0 0
    %4895 = vmatpush2.bf16.msra.mxu0 0
    %4896 = vmatprep.subr.bf16.mxu0 0
    %4897 = vmatpush2.bf16.msra.mxu0 0
    %4898 = vmatprep.subr.bf16.mxu0 0
    %4899 = vmatpush2.bf16.msra.mxu0 0
    %4900 = vmatprep.subr.bf16.mxu0 0
    %4901 = vmatpush2.bf16.msra.mxu0 0
    %4902 = vmatprep.mubr.bf16.mxu0 0
    %4903 = vmatmul.mubr.bf16.gmra.mxu0 %v4868
    %v4904 = vpop.f32.mrf.mxu0
    %v4905 = vadd.f32 %v4422, %v4904
    %v4906 = vpop.f32.mrf.mxu0
    %v4907 = vadd.f32 %v4426, %v4906
    %v4908 = vpop.f32.mrf.mxu0
    %v4909 = vpop.f32.mrf.mxu0
    %4910 = vdwg.mxu0
    %4911 = vmatprep.subr.bf16.mxu0 0
    %4912 = vmatpush1.bf16.msra.mxu0 0
    %4913 = vmatprep.subr.bf16.mxu0 0
    %4914 = vmatpush1.bf16.msra.mxu0 0
    %4915 = vmatprep.subr.bf16.mxu0 0
    %4916 = vmatpush1.bf16.msra.mxu0 0
    %4917 = vmatprep.subr.bf16.mxu0 0
    %4918 = vmatpush1.bf16.msra.mxu0 0
    %4919 = vmatprep.subr.bf16.mxu0 0
    %4920 = vmatpush1.bf16.msra.mxu0 0
    %4921 = vmatprep.subr.bf16.mxu0 0
    %4922 = vmatpush1.bf16.msra.mxu0 0
    %4923 = vmatprep.subr.bf16.mxu0 %v4774
    %4924 = vmatpush1.bf16.msra.mxu0 %v4773
    %4925 = vmatprep.subr.bf16.mxu0 %v4742
    %4926 = vmatpush1.bf16.msra.mxu0 %v4741
    %4927 = vmatprep.subr.bf16.mxu0 0
    %4928 = vmatpush2.bf16.msra.mxu0 0
    %4929 = vmatprep.subr.bf16.mxu0 0
    %4930 = vmatpush2.bf16.msra.mxu0 0
    %4931 = vmatprep.subr.bf16.mxu0 0
    %4932 = vmatpush2.bf16.msra.mxu0 0
    %4933 = vmatprep.subr.bf16.mxu0 0
    %4934 = vmatpush2.bf16.msra.mxu0 0
    %4935 = vmatprep.subr.bf16.mxu0 0
    %4936 = vmatpush2.bf16.msra.mxu0 0
    %4937 = vmatprep.subr.bf16.mxu0 0
    %4938 = vmatpush2.bf16.msra.mxu0 0
    %4939 = vmatprep.subr.bf16.mxu0 0
    %4940 = vmatpush2.bf16.msra.mxu0 0
    %4941 = vmatprep.subr.bf16.mxu0 0
    %4942 = vmatpush2.bf16.msra.mxu0 0
    %4943 = vmatprep.mubr.bf16.mxu0 0
    %4944 = vmatmul.mubr.bf16.gmra.mxu0 %v4868
    %v4945 = vpop.f32.mrf.mxu0
    %v4946 = vadd.f32 %v4430, %v4945
    %v4947 = vpop.f32.mrf.mxu0
    %v4948 = vadd.f32 %v4434, %v4947
    %v4949 = vpop.f32.mrf.mxu0
    %v4950 = vpop.f32.mrf.mxu0
    %4951 = vdwg.mxu0
    %4952 = vmatprep.subr.bf16.mxu0 0
    %4953 = vmatpush1.bf16.msra.mxu0 0
    %4954 = vmatprep.subr.bf16.mxu0 0
    %4955 = vmatpush1.bf16.msra.mxu0 0
    %4956 = vmatprep.subr.bf16.mxu0 0
    %4957 = vmatpush1.bf16.msra.mxu0 0
    %4958 = vmatprep.subr.bf16.mxu0 0
    %4959 = vmatpush1.bf16.msra.mxu0 0
    %4960 = vmatprep.subr.bf16.mxu0 0
    %4961 = vmatpush1.bf16.msra.mxu0 0
    %4962 = vmatprep.subr.bf16.mxu0 0
    %4963 = vmatpush1.bf16.msra.mxu0 0
    %4964 = vmatprep.subr.bf16.mxu0 %v4776
    %4965 = vmatpush1.bf16.msra.mxu0 %v4775
    %4966 = vmatprep.subr.bf16.mxu0 %v4744
    %4967 = vmatpush1.bf16.msra.mxu0 %v4743
    %4968 = vmatprep.subr.bf16.mxu0 0
    %4969 = vmatpush2.bf16.msra.mxu0 0
    %4970 = vmatprep.subr.bf16.mxu0 0
    %4971 = vmatpush2.bf16.msra.mxu0 0
    %4972 = vmatprep.subr.bf16.mxu0 0
    %4973 = vmatpush2.bf16.msra.mxu0 0
    %4974 = vmatprep.subr.bf16.mxu0 0
    %4975 = vmatpush2.bf16.msra.mxu0 0
    %4976 = vmatprep.subr.bf16.mxu0 0
    %4977 = vmatpush2.bf16.msra.mxu0 0
    %4978 = vmatprep.subr.bf16.mxu0 0
    %4979 = vmatpush2.bf16.msra.mxu0 0
    %4980 = vmatprep.subr.bf16.mxu0 0
    %4981 = vmatpush2.bf16.msra.mxu0 0
    %4982 = vmatprep.subr.bf16.mxu0 0
    %4983 = vmatpush2.bf16.msra.mxu0 0
    %4984 = vmatprep.mubr.bf16.mxu0 0
    %4985 = vmatmul.mubr.bf16.gmra.mxu0 %v4868
    %v4986 = vpop.f32.mrf.mxu0
    %v4987 = vadd.f32 %v4438, %v4986
    %v4988 = vpop.f32.mrf.mxu0
    %v4989 = vadd.f32 %v4442, %v4988
    %v4990 = vpop.f32.mrf.mxu0
    %v4991 = vpop.f32.mrf.mxu0
    %4992 = vdwg.mxu0
    %4993 = vmatprep.subr.bf16.mxu0 0
    %4994 = vmatpush1.bf16.msra.mxu0 0
    %4995 = vmatprep.subr.bf16.mxu0 0
    %4996 = vmatpush1.bf16.msra.mxu0 0
    %4997 = vmatprep.subr.bf16.mxu0 0
    %4998 = vmatpush1.bf16.msra.mxu0 0
    %4999 = vmatprep.subr.bf16.mxu0 0
    %5000 = vmatpush1.bf16.msra.mxu0 0
    %5001 = vmatprep.subr.bf16.mxu0 0
    %5002 = vmatpush1.bf16.msra.mxu0 0
    %5003 = vmatprep.subr.bf16.mxu0 0
    %5004 = vmatpush1.bf16.msra.mxu0 0
    %5005 = vmatprep.subr.bf16.mxu0 %v4778
    %5006 = vmatpush1.bf16.msra.mxu0 %v4777
    %5007 = vmatprep.subr.bf16.mxu0 %v4746
    %5008 = vmatpush1.bf16.msra.mxu0 %v4745
    %5009 = vmatprep.subr.bf16.mxu0 0
    %5010 = vmatpush2.bf16.msra.mxu0 0
    %5011 = vmatprep.subr.bf16.mxu0 0
    %5012 = vmatpush2.bf16.msra.mxu0 0
    %5013 = vmatprep.subr.bf16.mxu0 0
    %5014 = vmatpush2.bf16.msra.mxu0 0
    %5015 = vmatprep.subr.bf16.mxu0 0
    %5016 = vmatpush2.bf16.msra.mxu0 0
    %5017 = vmatprep.subr.bf16.mxu0 0
    %5018 = vmatpush2.bf16.msra.mxu0 0
    %5019 = vmatprep.subr.bf16.mxu0 0
    %5020 = vmatpush2.bf16.msra.mxu0 0
    %5021 = vmatprep.subr.bf16.mxu0 0
    %5022 = vmatpush2.bf16.msra.mxu0 0
    %5023 = vmatprep.subr.bf16.mxu0 0
    %5024 = vmatpush2.bf16.msra.mxu0 0
    %5025 = vmatprep.mubr.bf16.mxu0 0
    %5026 = vmatmul.mubr.bf16.gmra.mxu0 %v4868
    %v5027 = vpop.f32.mrf.mxu0
    %v5028 = vadd.f32 %v4446, %v5027
    %v5029 = vpop.f32.mrf.mxu0
    %v5030 = vadd.f32 %v4450, %v5029
    %v5031 = vpop.f32.mrf.mxu0
    %v5032 = vpop.f32.mrf.mxu0
    %5033 = vdwg.mxu0
    %5034 = vmatprep.subr.bf16.mxu0 0
    %5035 = vmatpush1.bf16.msra.mxu0 0
    %5036 = vmatprep.subr.bf16.mxu0 0
    %5037 = vmatpush1.bf16.msra.mxu0 0
    %5038 = vmatprep.subr.bf16.mxu0 0
    %5039 = vmatpush1.bf16.msra.mxu0 0
    %5040 = vmatprep.subr.bf16.mxu0 0
    %5041 = vmatpush1.bf16.msra.mxu0 0
    %5042 = vmatprep.subr.bf16.mxu0 0
    %5043 = vmatpush1.bf16.msra.mxu0 0
    %5044 = vmatprep.subr.bf16.mxu0 0
    %5045 = vmatpush1.bf16.msra.mxu0 0
    %5046 = vmatprep.subr.bf16.mxu0 %v4780
    %5047 = vmatpush1.bf16.msra.mxu0 %v4779
    %5048 = vmatprep.subr.bf16.mxu0 %v4748
    %5049 = vmatpush1.bf16.msra.mxu0 %v4747
    %5050 = vmatprep.subr.bf16.mxu0 0
    %5051 = vmatpush2.bf16.msra.mxu0 0
    %5052 = vmatprep.subr.bf16.mxu0 0
    %5053 = vmatpush2.bf16.msra.mxu0 0
    %5054 = vmatprep.subr.bf16.mxu0 0
    %5055 = vmatpush2.bf16.msra.mxu0 0
    %5056 = vmatprep.subr.bf16.mxu0 0
    %5057 = vmatpush2.bf16.msra.mxu0 0
    %5058 = vmatprep.subr.bf16.mxu0 0
    %5059 = vmatpush2.bf16.msra.mxu0 0
    %5060 = vmatprep.subr.bf16.mxu0 0
    %5061 = vmatpush2.bf16.msra.mxu0 0
    %5062 = vmatprep.subr.bf16.mxu0 0
    %5063 = vmatpush2.bf16.msra.mxu0 0
    %5064 = vmatprep.subr.bf16.mxu0 0
    %5065 = vmatpush2.bf16.msra.mxu0 0
    %5066 = vmatprep.mubr.bf16.mxu0 0
    %5067 = vmatmul.mubr.bf16.gmra.mxu0 %v4868
    %v5068 = vpop.f32.mrf.mxu0
    %v5069 = vadd.f32 %v4454, %v5068
    %v5070 = vpop.f32.mrf.mxu0
    %v5071 = vadd.f32 %v4458, %v5070
    %v5072 = vpop.f32.mrf.mxu0
    %v5073 = vpop.f32.mrf.mxu0
    %5074 = vdwg.mxu0
    %5075 = vmatprep.subr.bf16.mxu0 0
    %5076 = vmatpush1.bf16.msra.mxu0 0
    %5077 = vmatprep.subr.bf16.mxu0 0
    %5078 = vmatpush1.bf16.msra.mxu0 0
    %5079 = vmatprep.subr.bf16.mxu0 0
    %5080 = vmatpush1.bf16.msra.mxu0 0
    %5081 = vmatprep.subr.bf16.mxu0 0
    %5082 = vmatpush1.bf16.msra.mxu0 0
    %5083 = vmatprep.subr.bf16.mxu0 0
    %5084 = vmatpush1.bf16.msra.mxu0 0
    %5085 = vmatprep.subr.bf16.mxu0 0
    %5086 = vmatpush1.bf16.msra.mxu0 0
    %5087 = vmatprep.subr.bf16.mxu0 %v4782
    %5088 = vmatpush1.bf16.msra.mxu0 %v4781
    %5089 = vmatprep.subr.bf16.mxu0 %v4750
    %5090 = vmatpush1.bf16.msra.mxu0 %v4749
    %5091 = vmatprep.subr.bf16.mxu0 0
    %5092 = vmatpush2.bf16.msra.mxu0 0
    %5093 = vmatprep.subr.bf16.mxu0 0
    %5094 = vmatpush2.bf16.msra.mxu0 0
    %5095 = vmatprep.subr.bf16.mxu0 0
    %5096 = vmatpush2.bf16.msra.mxu0 0
    %5097 = vmatprep.subr.bf16.mxu0 0
    %5098 = vmatpush2.bf16.msra.mxu0 0
    %5099 = vmatprep.subr.bf16.mxu0 0
    %5100 = vmatpush2.bf16.msra.mxu0 0
    %5101 = vmatprep.subr.bf16.mxu0 0
    %5102 = vmatpush2.bf16.msra.mxu0 0
    %5103 = vmatprep.subr.bf16.mxu0 0
    %5104 = vmatpush2.bf16.msra.mxu0 0
    %5105 = vmatprep.subr.bf16.mxu0 0
    %5106 = vmatpush2.bf16.msra.mxu0 0
    %5107 = vmatprep.mubr.bf16.mxu0 0
    %5108 = vmatmul.mubr.bf16.gmra.mxu0 %v4868
    %v5109 = vpop.f32.mrf.mxu0
    %v5110 = vadd.f32 %v4462, %v5109
    %v5111 = vpop.f32.mrf.mxu0
    %v5112 = vadd.f32 %v4466, %v5111
    %v5113 = vpop.f32.mrf.mxu0
    %v5114 = vpop.f32.mrf.mxu0
    %5115 = vdwg.mxu0
    %5116 = vmatprep.subr.bf16.mxu0 0
    %5117 = vmatpush1.bf16.msra.mxu0 0
    %5118 = vmatprep.subr.bf16.mxu0 0
    %5119 = vmatpush1.bf16.msra.mxu0 0
    %5120 = vmatprep.subr.bf16.mxu0 0
    %5121 = vmatpush1.bf16.msra.mxu0 0
    %5122 = vmatprep.subr.bf16.mxu0 0
    %5123 = vmatpush1.bf16.msra.mxu0 0
    %5124 = vmatprep.subr.bf16.mxu0 0
    %5125 = vmatpush1.bf16.msra.mxu0 0
    %5126 = vmatprep.subr.bf16.mxu0 0
    %5127 = vmatpush1.bf16.msra.mxu0 0
    %5128 = vmatprep.subr.bf16.mxu0 %v4784
    %5129 = vmatpush1.bf16.msra.mxu0 %v4783
    %5130 = vmatprep.subr.bf16.mxu0 %v4752
    %5131 = vmatpush1.bf16.msra.mxu0 %v4751
    %5132 = vmatprep.subr.bf16.mxu0 0
    %5133 = vmatpush2.bf16.msra.mxu0 0
    %5134 = vmatprep.subr.bf16.mxu0 0
    %5135 = vmatpush2.bf16.msra.mxu0 0
    %5136 = vmatprep.subr.bf16.mxu0 0
    %5137 = vmatpush2.bf16.msra.mxu0 0
    %5138 = vmatprep.subr.bf16.mxu0 0
    %5139 = vmatpush2.bf16.msra.mxu0 0
    %5140 = vmatprep.subr.bf16.mxu0 0
    %5141 = vmatpush2.bf16.msra.mxu0 0
    %5142 = vmatprep.subr.bf16.mxu0 0
    %5143 = vmatpush2.bf16.msra.mxu0 0
    %5144 = vmatprep.subr.bf16.mxu0 0
    %5145 = vmatpush2.bf16.msra.mxu0 0
    %5146 = vmatprep.subr.bf16.mxu0 0
    %5147 = vmatpush2.bf16.msra.mxu0 0
    %5148 = vmatprep.mubr.bf16.mxu0 0
    %5149 = vmatmul.mubr.bf16.gmra.mxu0 %v4868
    %v5150 = vpop.f32.mrf.mxu0
    %v5151 = vadd.f32 %v4470, %v5150
    %v5152 = vpop.f32.mrf.mxu0
    %v5153 = vadd.f32 %v4474, %v5152
    %v5154 = vpop.f32.mrf.mxu0
    %v5155 = vpop.f32.mrf.mxu0
    %5156 = vdwg.mxu0
    %5157 = vmatprep.subr.bf16.mxu0 0
    %5158 = vmatpush1.bf16.msra.mxu0 0
    %5159 = vmatprep.subr.bf16.mxu0 0
    %5160 = vmatpush1.bf16.msra.mxu0 0
    %5161 = vmatprep.subr.bf16.mxu0 0
    %5162 = vmatpush1.bf16.msra.mxu0 0
    %5163 = vmatprep.subr.bf16.mxu0 0
    %5164 = vmatpush1.bf16.msra.mxu0 0
    %5165 = vmatprep.subr.bf16.mxu0 0
    %5166 = vmatpush1.bf16.msra.mxu0 0
    %5167 = vmatprep.subr.bf16.mxu0 0
    %5168 = vmatpush1.bf16.msra.mxu0 0
    %5169 = vmatprep.subr.bf16.mxu0 %v4786
    %5170 = vmatpush1.bf16.msra.mxu0 %v4785
    %5171 = vmatprep.subr.bf16.mxu0 %v4754
    %5172 = vmatpush1.bf16.msra.mxu0 %v4753
    %5173 = vmatprep.subr.bf16.mxu0 0
    %5174 = vmatpush2.bf16.msra.mxu0 0
    %5175 = vmatprep.subr.bf16.mxu0 0
    %5176 = vmatpush2.bf16.msra.mxu0 0
    %5177 = vmatprep.subr.bf16.mxu0 0
    %5178 = vmatpush2.bf16.msra.mxu0 0
    %5179 = vmatprep.subr.bf16.mxu0 0
    %5180 = vmatpush2.bf16.msra.mxu0 0
    %5181 = vmatprep.subr.bf16.mxu0 0
    %5182 = vmatpush2.bf16.msra.mxu0 0
    %5183 = vmatprep.subr.bf16.mxu0 0
    %5184 = vmatpush2.bf16.msra.mxu0 0
    %5185 = vmatprep.subr.bf16.mxu0 0
    %5186 = vmatpush2.bf16.msra.mxu0 0
    %5187 = vmatprep.subr.bf16.mxu0 0
    %5188 = vmatpush2.bf16.msra.mxu0 0
    %5189 = vmatprep.mubr.bf16.mxu0 0
    %5190 = vmatmul.mubr.bf16.gmra.mxu0 %v4868
    %v5191 = vpop.f32.mrf.mxu0
    %v5192 = vadd.f32 %v4478, %v5191
    %v5193 = vpop.f32.mrf.mxu0
    %v5194 = vadd.f32 %v4482, %v5193
    %v5195 = vpop.f32.mrf.mxu0
    %v5196 = vpop.f32.mrf.mxu0
    %5197 = vdwg.mxu0
    %5198 = vmatprep.subr.bf16.mxu0 0
    %5199 = vmatpush1.bf16.msra.mxu0 0
    %5200 = vmatprep.subr.bf16.mxu0 0
    %5201 = vmatpush1.bf16.msra.mxu0 0
    %5202 = vmatprep.subr.bf16.mxu0 0
    %5203 = vmatpush1.bf16.msra.mxu0 0
    %5204 = vmatprep.subr.bf16.mxu0 0
    %5205 = vmatpush1.bf16.msra.mxu0 0
    %5206 = vmatprep.subr.bf16.mxu0 0
    %5207 = vmatpush1.bf16.msra.mxu0 0
    %5208 = vmatprep.subr.bf16.mxu0 0
    %5209 = vmatpush1.bf16.msra.mxu0 0
    %5210 = vmatprep.subr.bf16.mxu0 %v4788
    %5211 = vmatpush1.bf16.msra.mxu0 %v4787
    %5212 = vmatprep.subr.bf16.mxu0 %v4756
    %5213 = vmatpush1.bf16.msra.mxu0 %v4755
    %5214 = vmatprep.subr.bf16.mxu0 0
    %5215 = vmatpush2.bf16.msra.mxu0 0
    %5216 = vmatprep.subr.bf16.mxu0 0
    %5217 = vmatpush2.bf16.msra.mxu0 0
    %5218 = vmatprep.subr.bf16.mxu0 0
    %5219 = vmatpush2.bf16.msra.mxu0 0
    %5220 = vmatprep.subr.bf16.mxu0 0
    %5221 = vmatpush2.bf16.msra.mxu0 0
    %5222 = vmatprep.subr.bf16.mxu0 0
    %5223 = vmatpush2.bf16.msra.mxu0 0
    %5224 = vmatprep.subr.bf16.mxu0 0
    %5225 = vmatpush2.bf16.msra.mxu0 0
    %5226 = vmatprep.subr.bf16.mxu0 0
    %5227 = vmatpush2.bf16.msra.mxu0 0
    %5228 = vmatprep.subr.bf16.mxu0 0
    %5229 = vmatpush2.bf16.msra.mxu0 0
    %5230 = vmatprep.mubr.bf16.mxu0 0
    %5231 = vmatmul.mubr.bf16.gmra.mxu0 %v4868
    %v5232 = vpop.f32.mrf.mxu0
    %v5233 = vadd.f32 %v4486, %v5232
    %v5234 = vpop.f32.mrf.mxu0
    %v5235 = vadd.f32 %v4490, %v5234
    %v5236 = vpop.f32.mrf.mxu0
    %v5237 = vpop.f32.mrf.mxu0
    %5238 = vdwg.mxu0
    %5239 = vmatprep.subr.bf16.mxu0 0
    %5240 = vmatpush1.bf16.msra.mxu0 0
    %5241 = vmatprep.subr.bf16.mxu0 0
    %5242 = vmatpush1.bf16.msra.mxu0 0
    %5243 = vmatprep.subr.bf16.mxu0 0
    %5244 = vmatpush1.bf16.msra.mxu0 0
    %5245 = vmatprep.subr.bf16.mxu0 0
    %5246 = vmatpush1.bf16.msra.mxu0 0
    %5247 = vmatprep.subr.bf16.mxu0 0
    %5248 = vmatpush1.bf16.msra.mxu0 0
    %5249 = vmatprep.subr.bf16.mxu0 0
    %5250 = vmatpush1.bf16.msra.mxu0 0
    %5251 = vmatprep.subr.bf16.mxu0 %v4790
    %5252 = vmatpush1.bf16.msra.mxu0 %v4789
    %5253 = vmatprep.subr.bf16.mxu0 %v4758
    %5254 = vmatpush1.bf16.msra.mxu0 %v4757
    %5255 = vmatprep.subr.bf16.mxu0 0
    %5256 = vmatpush2.bf16.msra.mxu0 0
    %5257 = vmatprep.subr.bf16.mxu0 0
    %5258 = vmatpush2.bf16.msra.mxu0 0
    %5259 = vmatprep.subr.bf16.mxu0 0
    %5260 = vmatpush2.bf16.msra.mxu0 0
    %5261 = vmatprep.subr.bf16.mxu0 0
    %5262 = vmatpush2.bf16.msra.mxu0 0
    %5263 = vmatprep.subr.bf16.mxu0 0
    %5264 = vmatpush2.bf16.msra.mxu0 0
    %5265 = vmatprep.subr.bf16.mxu0 0
    %5266 = vmatpush2.bf16.msra.mxu0 0
    %5267 = vmatprep.subr.bf16.mxu0 0
    %5268 = vmatpush2.bf16.msra.mxu0 0
    %5269 = vmatprep.subr.bf16.mxu0 0
    %5270 = vmatpush2.bf16.msra.mxu0 0
    %5271 = vmatprep.mubr.bf16.mxu0 0
    %5272 = vmatmul.mubr.bf16.gmra.mxu0 %v4868
    %v5273 = vpop.f32.mrf.mxu0
    %v5274 = vadd.f32 %v4494, %v5273
    %v5275 = vpop.f32.mrf.mxu0
    %v5276 = vadd.f32 %v4498, %v5275
    %v5277 = vpop.f32.mrf.mxu0
    %v5278 = vpop.f32.mrf.mxu0
    %5279 = vdwg.mxu0
    %5280 = vmatprep.subr.bf16.mxu0 0
    %5281 = vmatpush1.bf16.msra.mxu0 0
    %5282 = vmatprep.subr.bf16.mxu0 0
    %5283 = vmatpush1.bf16.msra.mxu0 0
    %5284 = vmatprep.subr.bf16.mxu0 0
    %5285 = vmatpush1.bf16.msra.mxu0 0
    %5286 = vmatprep.subr.bf16.mxu0 0
    %5287 = vmatpush1.bf16.msra.mxu0 0
    %5288 = vmatprep.subr.bf16.mxu0 0
    %5289 = vmatpush1.bf16.msra.mxu0 0
    %5290 = vmatprep.subr.bf16.mxu0 0
    %5291 = vmatpush1.bf16.msra.mxu0 0
    %5292 = vmatprep.subr.bf16.mxu0 %v4792
    %5293 = vmatpush1.bf16.msra.mxu0 %v4791
    %5294 = vmatprep.subr.bf16.mxu0 %v4760
    %5295 = vmatpush1.bf16.msra.mxu0 %v4759
    %5296 = vmatprep.subr.bf16.mxu0 0
    %5297 = vmatpush2.bf16.msra.mxu0 0
    %5298 = vmatprep.subr.bf16.mxu0 0
    %5299 = vmatpush2.bf16.msra.mxu0 0
    %5300 = vmatprep.subr.bf16.mxu0 0
    %5301 = vmatpush2.bf16.msra.mxu0 0
    %5302 = vmatprep.subr.bf16.mxu0 0
    %5303 = vmatpush2.bf16.msra.mxu0 0
    %5304 = vmatprep.subr.bf16.mxu0 0
    %5305 = vmatpush2.bf16.msra.mxu0 0
    %5306 = vmatprep.subr.bf16.mxu0 0
    %5307 = vmatpush2.bf16.msra.mxu0 0
    %5308 = vmatprep.subr.bf16.mxu0 0
    %5309 = vmatpush2.bf16.msra.mxu0 0
    %5310 = vmatprep.subr.bf16.mxu0 0
    %5311 = vmatpush2.bf16.msra.mxu0 0
    %5312 = vmatprep.mubr.bf16.mxu0 0
    %5313 = vmatmul.mubr.bf16.gmra.mxu0 %v4868
    %v5314 = vpop.f32.mrf.mxu0
    %v5315 = vadd.f32 %v4502, %v5314
    %v5316 = vpop.f32.mrf.mxu0
    %v5317 = vadd.f32 %v4506, %v5316
    %v5318 = vpop.f32.mrf.mxu0
    %v5319 = vpop.f32.mrf.mxu0
    %5320 = vdwg.mxu0
    %5321 = vmatprep.subr.bf16.mxu0 0
    %5322 = vmatpush1.bf16.msra.mxu0 0
    %5323 = vmatprep.subr.bf16.mxu0 0
    %5324 = vmatpush1.bf16.msra.mxu0 0
    %5325 = vmatprep.subr.bf16.mxu0 0
    %5326 = vmatpush1.bf16.msra.mxu0 0
    %5327 = vmatprep.subr.bf16.mxu0 0
    %5328 = vmatpush1.bf16.msra.mxu0 0
    %5329 = vmatprep.subr.bf16.mxu0 0
    %5330 = vmatpush1.bf16.msra.mxu0 0
    %5331 = vmatprep.subr.bf16.mxu0 0
    %5332 = vmatpush1.bf16.msra.mxu0 0
    %5333 = vmatprep.subr.bf16.mxu0 %v4794
    %5334 = vmatpush1.bf16.msra.mxu0 %v4793
    %5335 = vmatprep.subr.bf16.mxu0 %v4762
    %5336 = vmatpush1.bf16.msra.mxu0 %v4761
    %5337 = vmatprep.subr.bf16.mxu0 0
    %5338 = vmatpush2.bf16.msra.mxu0 0
    %5339 = vmatprep.subr.bf16.mxu0 0
    %5340 = vmatpush2.bf16.msra.mxu0 0
    %5341 = vmatprep.subr.bf16.mxu0 0
    %5342 = vmatpush2.bf16.msra.mxu0 0
    %5343 = vmatprep.subr.bf16.mxu0 0
    %5344 = vmatpush2.bf16.msra.mxu0 0
    %5345 = vmatprep.subr.bf16.mxu0 0
    %5346 = vmatpush2.bf16.msra.mxu0 0
    %5347 = vmatprep.subr.bf16.mxu0 0
    %5348 = vmatpush2.bf16.msra.mxu0 0
    %5349 = vmatprep.subr.bf16.mxu0 0
    %5350 = vmatpush2.bf16.msra.mxu0 0
    %5351 = vmatprep.subr.bf16.mxu0 0
    %5352 = vmatpush2.bf16.msra.mxu0 0
    %5353 = vmatprep.mubr.bf16.mxu0 0
    %5354 = vmatmul.mubr.bf16.gmra.mxu0 %v4868
    %v5355 = vpop.f32.mrf.mxu0
    %v5356 = vadd.f32 %v4510, %v5355
    %v5357 = vpop.f32.mrf.mxu0
    %v5358 = vadd.f32 %v4514, %v5357
    %v5359 = vpop.f32.mrf.mxu0
    %v5360 = vpop.f32.mrf.mxu0
    %5361 = vdwg.mxu0
    %5362 = vmatprep.subr.bf16.mxu0 0
    %5363 = vmatpush1.bf16.msra.mxu0 0
    %5364 = vmatprep.subr.bf16.mxu0 0
    %5365 = vmatpush1.bf16.msra.mxu0 0
    %5366 = vmatprep.subr.bf16.mxu0 0
    %5367 = vmatpush1.bf16.msra.mxu0 0
    %5368 = vmatprep.subr.bf16.mxu0 0
    %5369 = vmatpush1.bf16.msra.mxu0 0
    %5370 = vmatprep.subr.bf16.mxu0 0
    %5371 = vmatpush1.bf16.msra.mxu0 0
    %5372 = vmatprep.subr.bf16.mxu0 0
    %5373 = vmatpush1.bf16.msra.mxu0 0
    %5374 = vmatprep.subr.bf16.mxu0 %v4796
    %5375 = vmatpush1.bf16.msra.mxu0 %v4795
    %5376 = vmatprep.subr.bf16.mxu0 %v4764
    %5377 = vmatpush1.bf16.msra.mxu0 %v4763
    %5378 = vmatprep.subr.bf16.mxu0 0
    %5379 = vmatpush2.bf16.msra.mxu0 0
    %5380 = vmatprep.subr.bf16.mxu0 0
    %5381 = vmatpush2.bf16.msra.mxu0 0
    %5382 = vmatprep.subr.bf16.mxu0 0
    %5383 = vmatpush2.bf16.msra.mxu0 0
    %5384 = vmatprep.subr.bf16.mxu0 0
    %5385 = vmatpush2.bf16.msra.mxu0 0
    %5386 = vmatprep.subr.bf16.mxu0 0
    %5387 = vmatpush2.bf16.msra.mxu0 0
    %5388 = vmatprep.subr.bf16.mxu0 0
    %5389 = vmatpush2.bf16.msra.mxu0 0
    %5390 = vmatprep.subr.bf16.mxu0 0
    %5391 = vmatpush2.bf16.msra.mxu0 0
    %5392 = vmatprep.subr.bf16.mxu0 0
    %5393 = vmatpush2.bf16.msra.mxu0 0
    %5394 = vmatprep.mubr.bf16.mxu0 0
    %5395 = vmatmul.mubr.bf16.gmra.mxu0 %v4868
    %v5396 = vpop.f32.mrf.mxu0
    %v5397 = vadd.f32 %v4518, %v5396
    %v5398 = vpop.f32.mrf.mxu0
    %v5399 = vadd.f32 %v4522, %v5398
    %v5400 = vpop.f32.mrf.mxu0
    %v5401 = vpop.f32.mrf.mxu0
    %5402 = vdwg.mxu0
    %5403 = vmatprep.subr.bf16.mxu0 0
    %5404 = vmatpush1.bf16.msra.mxu0 0
    %5405 = vmatprep.subr.bf16.mxu0 0
    %5406 = vmatpush1.bf16.msra.mxu0 0
    %5407 = vmatprep.subr.bf16.mxu0 0
    %5408 = vmatpush1.bf16.msra.mxu0 0
    %5409 = vmatprep.subr.bf16.mxu0 0
    %5410 = vmatpush1.bf16.msra.mxu0 0
    %5411 = vmatprep.subr.bf16.mxu0 0
    %5412 = vmatpush1.bf16.msra.mxu0 0
    %5413 = vmatprep.subr.bf16.mxu0 0
    %5414 = vmatpush1.bf16.msra.mxu0 0
    %5415 = vmatprep.subr.bf16.mxu0 %v4798
    %5416 = vmatpush1.bf16.msra.mxu0 %v4797
    %5417 = vmatprep.subr.bf16.mxu0 %v4766
    %5418 = vmatpush1.bf16.msra.mxu0 %v4765
    %5419 = vmatprep.subr.bf16.mxu0 0
    %5420 = vmatpush2.bf16.msra.mxu0 0
    %5421 = vmatprep.subr.bf16.mxu0 0
    %5422 = vmatpush2.bf16.msra.mxu0 0
    %5423 = vmatprep.subr.bf16.mxu0 0
    %5424 = vmatpush2.bf16.msra.mxu0 0
    %5425 = vmatprep.subr.bf16.mxu0 0
    %5426 = vmatpush2.bf16.msra.mxu0 0
    %5427 = vmatprep.subr.bf16.mxu0 0
    %5428 = vmatpush2.bf16.msra.mxu0 0
    %5429 = vmatprep.subr.bf16.mxu0 0
    %5430 = vmatpush2.bf16.msra.mxu0 0
    %5431 = vmatprep.subr.bf16.mxu0 0
    %5432 = vmatpush2.bf16.msra.mxu0 0
    %5433 = vmatprep.subr.bf16.mxu0 0
    %5434 = vmatpush2.bf16.msra.mxu0 0
    %5435 = vmatprep.mubr.bf16.mxu0 0
    %5436 = vmatmul.mubr.bf16.gmra.mxu0 %v4868
    %v5437 = vpop.f32.mrf.mxu0
    %v5438 = vadd.f32 %v4526, %v5437
    %v5439 = vpop.f32.mrf.mxu0
    %v5440 = vadd.f32 %v4530, %v5439
    %v5441 = vpop.f32.mrf.mxu0
    %v5442 = vpop.f32.mrf.mxu0
    %5443 = vdwg.mxu0
    %5444 = vmatprep.subr.bf16.mxu0 0
    %5445 = vmatpush1.bf16.msra.mxu0 0
    %5446 = vmatprep.subr.bf16.mxu0 0
    %5447 = vmatpush1.bf16.msra.mxu0 0
    %5448 = vmatprep.subr.bf16.mxu0 0
    %5449 = vmatpush1.bf16.msra.mxu0 0
    %5450 = vmatprep.subr.bf16.mxu0 0
    %5451 = vmatpush1.bf16.msra.mxu0 0
    %5452 = vmatprep.subr.bf16.mxu0 0
    %5453 = vmatpush1.bf16.msra.mxu0 0
    %5454 = vmatprep.subr.bf16.mxu0 0
    %5455 = vmatpush1.bf16.msra.mxu0 0
    %5456 = vmatprep.subr.bf16.mxu0 %v4800
    %5457 = vmatpush1.bf16.msra.mxu0 %v4799
    %5458 = vmatprep.subr.bf16.mxu0 %v4768
    %5459 = vmatpush1.bf16.msra.mxu0 %v4767
    %5460 = vmatprep.subr.bf16.mxu0 0
    %5461 = vmatpush2.bf16.msra.mxu0 0
    %5462 = vmatprep.subr.bf16.mxu0 0
    %5463 = vmatpush2.bf16.msra.mxu0 0
    %5464 = vmatprep.subr.bf16.mxu0 0
    %5465 = vmatpush2.bf16.msra.mxu0 0
    %5466 = vmatprep.subr.bf16.mxu0 0
    %5467 = vmatpush2.bf16.msra.mxu0 0
    %5468 = vmatprep.subr.bf16.mxu0 0
    %5469 = vmatpush2.bf16.msra.mxu0 0
    %5470 = vmatprep.subr.bf16.mxu0 0
    %5471 = vmatpush2.bf16.msra.mxu0 0
    %5472 = vmatprep.subr.bf16.mxu0 0
    %5473 = vmatpush2.bf16.msra.mxu0 0
    %5474 = vmatprep.subr.bf16.mxu0 0
    %5475 = vmatpush2.bf16.msra.mxu0 0
    %5476 = vmatprep.mubr.bf16.mxu0 0
    %5477 = vmatmul.mubr.bf16.gmra.mxu0 %v4868
    %v5478 = vpop.f32.mrf.mxu0
    %v5479 = vadd.f32 %v4534, %v5478
    %v5480 = vpop.f32.mrf.mxu0
    %v5481 = vadd.f32 %v4538, %v5480
    %v5482 = vpop.f32.mrf.mxu0
    %v5483 = vpop.f32.mrf.mxu0
    %5484 = vdwg.mxu0
    %5485 = vmatprep.subr.bf16.mxu0 0
    %5486 = vmatpush1.bf16.msra.mxu0 0
    %5487 = vmatprep.subr.bf16.mxu0 0
    %5488 = vmatpush1.bf16.msra.mxu0 0
    %5489 = vmatprep.subr.bf16.mxu0 0
    %5490 = vmatpush1.bf16.msra.mxu0 0
    %5491 = vmatprep.subr.bf16.mxu0 0
    %5492 = vmatpush1.bf16.msra.mxu0 0
    %5493 = vmatprep.subr.bf16.mxu0 0
    %5494 = vmatpush1.bf16.msra.mxu0 0
    %5495 = vmatprep.subr.bf16.mxu0 0
    %5496 = vmatpush1.bf16.msra.mxu0 0
    %5497 = vmatprep.subr.bf16.mxu0 %v4802
    %5498 = vmatpush1.bf16.msra.mxu0 %v4801
    %5499 = vmatprep.subr.bf16.mxu0 %v4770
    %5500 = vmatpush1.bf16.msra.mxu0 %v4769
    %5501 = vmatprep.subr.bf16.mxu0 0
    %5502 = vmatpush2.bf16.msra.mxu0 0
    %5503 = vmatprep.subr.bf16.mxu0 0
    %5504 = vmatpush2.bf16.msra.mxu0 0
    %5505 = vmatprep.subr.bf16.mxu0 0
    %5506 = vmatpush2.bf16.msra.mxu0 0
    %5507 = vmatprep.subr.bf16.mxu0 0
    %5508 = vmatpush2.bf16.msra.mxu0 0
    %5509 = vmatprep.subr.bf16.mxu0 0
    %5510 = vmatpush2.bf16.msra.mxu0 0
    %5511 = vmatprep.subr.bf16.mxu0 0
    %5512 = vmatpush2.bf16.msra.mxu0 0
    %5513 = vmatprep.subr.bf16.mxu0 0
    %5514 = vmatpush2.bf16.msra.mxu0 0
    %5515 = vmatprep.subr.bf16.mxu0 0
    %5516 = vmatpush2.bf16.msra.mxu0 0
    %5517 = vmatprep.mubr.bf16.mxu0 0
    %5518 = vmatmul.mubr.bf16.gmra.mxu0 %v4868
    %v5519 = vpop.f32.mrf.mxu0
    %v5520 = vadd.f32 %v4542, %v5519
    %v5521 = vpop.f32.mrf.mxu0
    %v5522 = vadd.f32 %v4546, %v5521
    %v5523 = vpop.f32.mrf.mxu0
    %v5524 = vpop.f32.mrf.mxu0
    %5525 = vdwg.mxu0
    %v5526 = vmax.f32 %v4905, 0.0
    %v5527 = vmax.f32 %v4907, 0.0
    %v5528 = vmax.f32 %v4946, 0.0
    %v5529 = vmax.f32 %v4948, 0.0
    %v5530 = vmax.f32 %v4987, 0.0
    %v5531 = vmax.f32 %v4989, 0.0
    %v5532 = vmax.f32 %v5028, 0.0
    %v5533 = vmax.f32 %v5030, 0.0
    %v5534 = vmax.f32 %v5069, 0.0
    %v5535 = vmax.f32 %v5071, 0.0
    %v5536 = vmax.f32 %v5110, 0.0
    %v5537 = vmax.f32 %v5112, 0.0
    %v5538 = vmax.f32 %v5151, 0.0
    %v5539 = vmax.f32 %v5153, 0.0
    %v5540 = vmax.f32 %v5192, 0.0
    %v5541 = vmax.f32 %v5194, 0.0
    %v5542 = vmax.f32 %v5233, 0.0
    %v5543 = vmax.f32 %v5235, 0.0
    %v5544 = vmax.f32 %v5274, 0.0
    %v5545 = vmax.f32 %v5276, 0.0
    %v5546 = vmax.f32 %v5315, 0.0
    %v5547 = vmax.f32 %v5317, 0.0
    %v5548 = vmax.f32 %v5356, 0.0
    %v5549 = vmax.f32 %v5358, 0.0
    %v5550 = vmax.f32 %v5397, 0.0
    %v5551 = vmax.f32 %v5399, 0.0
    %v5552 = vmax.f32 %v5438, 0.0
    %v5553 = vmax.f32 %v5440, 0.0
    %v5554 = vmax.f32 %v5479, 0.0
    %v5555 = vmax.f32 %v5481, 0.0
    %v5556 = vmax.f32 %v5520, 0.0
    %v5557 = vmax.f32 %v5522, 0.0
    %v5558 = vpack.c.bf16 %v5526, %v5526
    %v5559 = vpack.c.bf16 %v5527, %v5527
    %v5560 = vpack.c.bf16 %v5528, %v5528
    %v5561 = vpack.c.bf16 %v5529, %v5529
    %v5562 = vpack.c.bf16 %v5530, %v5530
    %v5563 = vpack.c.bf16 %v5531, %v5531
    %v5564 = vpack.c.bf16 %v5532, %v5532
    %v5565 = vpack.c.bf16 %v5533, %v5533
    %v5566 = vpack.c.bf16 %v5534, %v5534
    %v5567 = vpack.c.bf16 %v5535, %v5535
    %v5568 = vpack.c.bf16 %v5536, %v5536
    %v5569 = vpack.c.bf16 %v5537, %v5537
    %v5570 = vpack.c.bf16 %v5538, %v5538
    %v5571 = vpack.c.bf16 %v5539, %v5539
    %v5572 = vpack.c.bf16 %v5540, %v5540
    %v5573 = vpack.c.bf16 %v5541, %v5541
    %v5574 = vpack.c.bf16 %v5542, %v5542
    %v5575 = vpack.c.bf16 %v5543, %v5543
    %v5576 = vpack.c.bf16 %v5544, %v5544
    %v5577 = vpack.c.bf16 %v5545, %v5545
    %v5578 = vpack.c.bf16 %v5546, %v5546
    %v5579 = vpack.c.bf16 %v5547, %v5547
    %v5580 = vpack.c.bf16 %v5548, %v5548
    %v5581 = vpack.c.bf16 %v5549, %v5549
    %v5582 = vpack.c.bf16 %v5550, %v5550
    %v5583 = vpack.c.bf16 %v5551, %v5551
    %v5584 = vpack.c.bf16 %v5552, %v5552
    %v5585 = vpack.c.bf16 %v5553, %v5553
    %v5586 = vpack.c.bf16 %v5554, %v5554
    %v5587 = vpack.c.bf16 %v5555, %v5555
    %v5588 = vpack.c.bf16 %v5556, %v5556
    %v5589 = vpack.c.bf16 %v5557, %v5557
    %v5590 = vld [vmem:[%s8] sm:$0xf]
    %v5591 = vld [vmem:[%s8 + $0x4] sm:$0xf]
    %v5592 = vld [vmem:[%s8 + $0x8] sm:$0xf]
    %v5593 = vld [vmem:[%s8 + $0xc] sm:$0xf]
    %v5594 = vld [vmem:[%s8 + $0x10] sm:$0xf]
    %v5595 = vld [vmem:[%s8 + $0x14] sm:$0xf]
    %v5596 = vld [vmem:[%s8 + $0x18] sm:$0xf]
    %v5597 = vld [vmem:[%s8 + $0x1c] sm:$0xf]
    %v5598 = vld [vmem:[%s8 + $0x20] sm:$0xf]
    %v5599 = vld [vmem:[%s8 + $0x24] sm:$0xf]
    %v5600 = vld [vmem:[%s8 + $0x28] sm:$0xf]
    %v5601 = vld [vmem:[%s8 + $0x2c] sm:$0xf]
    %v5602 = vld [vmem:[%s8 + $0x30] sm:$0xf]
    %v5603 = vld [vmem:[%s8 + $0x34] sm:$0xf]
    %v5604 = vld [vmem:[%s8 + $0x38] sm:$0xf]
    %v5605 = vld [vmem:[%s8 + $0x3c] sm:$0xf]
    %v5606 = vld [vmem:[%s8 + $0x40] sm:$0xf]
    %v5607 = vld [vmem:[%s8 + $0x44] sm:$0xf]
    %v5608 = vld [vmem:[%s8 + $0x48] sm:$0xf]
    %v5609 = vld [vmem:[%s8 + $0x4c] sm:$0xf]
    %v5610 = vld [vmem:[%s8 + $0x50] sm:$0xf]
    %v5611 = vld [vmem:[%s8 + $0x54] sm:$0xf]
    %v5612 = vld [vmem:[%s8 + $0x58] sm:$0xf]
    %v5613 = vld [vmem:[%s8 + $0x5c] sm:$0xf]
    %v5614 = vld [vmem:[%s8 + $0x60] sm:$0xf]
    %v5615 = vld [vmem:[%s8 + $0x64] sm:$0xf]
    %v5616 = vld [vmem:[%s8 + $0x68] sm:$0xf]
    %v5617 = vld [vmem:[%s8 + $0x6c] sm:$0xf]
    %v5618 = vld [vmem:[%s8 + $0x70] sm:$0xf]
    %v5619 = vld [vmem:[%s8 + $0x74] sm:$0xf]
    %v5620 = vld [vmem:[%s8 + $0x78] sm:$0xf]
    %v5621 = vld [vmem:[%s8 + $0x7c] sm:$0xf]
    %v5622 = vld [vmem:[%s8 + $0x80] sm:$0xf]
    %v5623 = vld [vmem:[%s8 + $0x84] sm:$0xf]
    %v5624 = vld [vmem:[%s8 + $0x88] sm:$0xf]
    %v5625 = vld [vmem:[%s8 + $0x8c] sm:$0xf]
    %v5626 = vld [vmem:[%s8 + $0x90] sm:$0xf]
    %v5627 = vld [vmem:[%s8 + $0x94] sm:$0xf]
    %v5628 = vld [vmem:[%s8 + $0x98] sm:$0xf]
    %v5629 = vld [vmem:[%s8 + $0x9c] sm:$0xf]
    %v5630 = vld [vmem:[%s8 + $0xa0] sm:$0xf]
    %v5631 = vld [vmem:[%s8 + $0xa4] sm:$0xf]
    %v5632 = vld [vmem:[%s8 + $0xa8] sm:$0xf]
    %v5633 = vld [vmem:[%s8 + $0xac] sm:$0xf]
    %v5634 = vld [vmem:[%s8 + $0xb0] sm:$0xf]
    %v5635 = vld [vmem:[%s8 + $0xb4] sm:$0xf]
    %v5636 = vld [vmem:[%s8 + $0xb8] sm:$0xf]
    %v5637 = vld [vmem:[%s8 + $0xbc] sm:$0xf]
    %v5638 = vld [vmem:[%s8 + $0xc0] sm:$0xf]
    %v5639 = vld [vmem:[%s8 + $0xc4] sm:$0xf]
    %v5640 = vld [vmem:[%s8 + $0xc8] sm:$0xf]
    %v5641 = vld [vmem:[%s8 + $0xcc] sm:$0xf]
    %v5642 = vld [vmem:[%s8 + $0xd0] sm:$0xf]
    %v5643 = vld [vmem:[%s8 + $0xd4] sm:$0xf]
    %v5644 = vld [vmem:[%s8 + $0xd8] sm:$0xf]
    %v5645 = vld [vmem:[%s8 + $0xdc] sm:$0xf]
    %v5646 = vld [vmem:[%s8 + $0xe0] sm:$0xf]
    %v5647 = vld [vmem:[%s8 + $0xe4] sm:$0xf]
    %v5648 = vld [vmem:[%s8 + $0xe8] sm:$0xf]
    %v5649 = vld [vmem:[%s8 + $0xec] sm:$0xf]
    %v5650 = vld [vmem:[%s8 + $0xf0] sm:$0xf]
    %v5651 = vld [vmem:[%s8 + $0xf4] sm:$0xf]
    %v5652 = vld [vmem:[%s8 + $0xf8] sm:$0xf]
    %v5653 = vld [vmem:[%s8 + $0xfc] sm:$0xf]
    %v5654 = vld [vmem:[%s8 + $0x100] sm:$0xf]
    %v5655 = vld [vmem:[%s8 + $0x104] sm:$0xf]
    %v5656 = vld [vmem:[%s8 + $0x108] sm:$0xf]
    %v5657 = vld [vmem:[%s8 + $0x10c] sm:$0xf]
    %v5658 = vld [vmem:[%s8 + $0x110] sm:$0xf]
    %v5659 = vld [vmem:[%s8 + $0x114] sm:$0xf]
    %v5660 = vld [vmem:[%s8 + $0x118] sm:$0xf]
    %v5661 = vld [vmem:[%s8 + $0x11c] sm:$0xf]
    %v5662 = vld [vmem:[%s8 + $0x120] sm:$0xf]
    %v5663 = vld [vmem:[%s8 + $0x124] sm:$0xf]
    %v5664 = vld [vmem:[%s8 + $0x128] sm:$0xf]
    %v5665 = vld [vmem:[%s8 + $0x12c] sm:$0xf]
    %v5666 = vld [vmem:[%s8 + $0x130] sm:$0xf]
    %v5667 = vld [vmem:[%s8 + $0x134] sm:$0xf]
    %v5668 = vld [vmem:[%s8 + $0x138] sm:$0xf]
    %v5669 = vld [vmem:[%s8 + $0x13c] sm:$0xf]
    %v5670 = vld [vmem:[%s8 + $0x140] sm:$0xf]
    %v5671 = vld [vmem:[%s8 + $0x144] sm:$0xf]
    %v5672 = vld [vmem:[%s8 + $0x148] sm:$0xf]
    %v5673 = vld [vmem:[%s8 + $0x14c] sm:$0xf]
    %v5674 = vld [vmem:[%s8 + $0x150] sm:$0xf]
    %v5675 = vld [vmem:[%s8 + $0x154] sm:$0xf]
    %v5676 = vld [vmem:[%s8 + $0x158] sm:$0xf]
    %v5677 = vld [vmem:[%s8 + $0x15c] sm:$0xf]
    %v5678 = vld [vmem:[%s8 + $0x160] sm:$0xf]
    %v5679 = vld [vmem:[%s8 + $0x164] sm:$0xf]
    %v5680 = vld [vmem:[%s8 + $0x168] sm:$0xf]
    %v5681 = vld [vmem:[%s8 + $0x16c] sm:$0xf]
    %v5682 = vld [vmem:[%s8 + $0x170] sm:$0xf]
    %v5683 = vld [vmem:[%s8 + $0x174] sm:$0xf]
    %v5684 = vld [vmem:[%s8 + $0x178] sm:$0xf]
    %v5685 = vld [vmem:[%s8 + $0x17c] sm:$0xf]
    %v5686 = vld [vmem:[%s8 + $0x180] sm:$0xf]
    %v5687 = vld [vmem:[%s8 + $0x184] sm:$0xf]
    %v5688 = vld [vmem:[%s8 + $0x188] sm:$0xf]
    %v5689 = vld [vmem:[%s8 + $0x18c] sm:$0xf]
    %v5690 = vld [vmem:[%s8 + $0x190] sm:$0xf]
    %v5691 = vld [vmem:[%s8 + $0x194] sm:$0xf]
    %v5692 = vld [vmem:[%s8 + $0x198] sm:$0xf]
    %v5693 = vld [vmem:[%s8 + $0x19c] sm:$0xf]
    %v5694 = vld [vmem:[%s8 + $0x1a0] sm:$0xf]
    %v5695 = vld [vmem:[%s8 + $0x1a4] sm:$0xf]
    %v5696 = vld [vmem:[%s8 + $0x1a8] sm:$0xf]
    %v5697 = vld [vmem:[%s8 + $0x1ac] sm:$0xf]
    %v5698 = vld [vmem:[%s8 + $0x1b0] sm:$0xf]
    %v5699 = vld [vmem:[%s8 + $0x1b4] sm:$0xf]
    %v5700 = vld [vmem:[%s8 + $0x1b8] sm:$0xf]
    %v5701 = vld [vmem:[%s8 + $0x1bc] sm:$0xf]
    %v5702 = vld [vmem:[%s8 + $0x1c0] sm:$0xf]
    %v5703 = vld [vmem:[%s8 + $0x1c4] sm:$0xf]
    %v5704 = vld [vmem:[%s8 + $0x1c8] sm:$0xf]
    %v5705 = vld [vmem:[%s8 + $0x1cc] sm:$0xf]
    %v5706 = vld [vmem:[%s8 + $0x1d0] sm:$0xf]
    %v5707 = vld [vmem:[%s8 + $0x1d4] sm:$0xf]
    %v5708 = vld [vmem:[%s8 + $0x1d8] sm:$0xf]
    %v5709 = vld [vmem:[%s8 + $0x1dc] sm:$0xf]
    %v5710 = vld [vmem:[%s8 + $0x1e0] sm:$0xf]
    %v5711 = vld [vmem:[%s8 + $0x1e4] sm:$0xf]
    %v5712 = vld [vmem:[%s8 + $0x1e8] sm:$0xf]
    %v5713 = vld [vmem:[%s8 + $0x1ec] sm:$0xf]
    %v5714 = vld [vmem:[%s8 + $0x1f0] sm:$0xf]
    %v5715 = vld [vmem:[%s8 + $0x1f4] sm:$0xf]
    %v5716 = vld [vmem:[%s8 + $0x1f8] sm:$0xf]
    %v5717 = vld [vmem:[%s8 + $0x1fc] sm:$0xf]
    %v5718 = vld [vmem:[%s8 + $0x200] sm:$0xf]
    %v5719 = vld [vmem:[%s8 + $0x204] sm:$0xf]
    %v5720 = vld [vmem:[%s8 + $0x208] sm:$0xf]
    %v5721 = vld [vmem:[%s8 + $0x20c] sm:$0xf]
    %v5722 = vld [vmem:[%s8 + $0x210] sm:$0xf]
    %v5723 = vld [vmem:[%s8 + $0x214] sm:$0xf]
    %v5724 = vld [vmem:[%s8 + $0x218] sm:$0xf]
    %v5725 = vld [vmem:[%s8 + $0x21c] sm:$0xf]
    %v5726 = vld [vmem:[%s8 + $0x220] sm:$0xf]
    %v5727 = vld [vmem:[%s8 + $0x224] sm:$0xf]
    %v5728 = vld [vmem:[%s8 + $0x228] sm:$0xf]
    %v5729 = vld [vmem:[%s8 + $0x22c] sm:$0xf]
    %v5730 = vld [vmem:[%s8 + $0x230] sm:$0xf]
    %v5731 = vld [vmem:[%s8 + $0x234] sm:$0xf]
    %v5732 = vld [vmem:[%s8 + $0x238] sm:$0xf]
    %v5733 = vld [vmem:[%s8 + $0x23c] sm:$0xf]
    %v5734 = vld [vmem:[%s8 + $0x240] sm:$0xf]
    %v5735 = vld [vmem:[%s8 + $0x244] sm:$0xf]
    %v5736 = vld [vmem:[%s8 + $0x248] sm:$0xf]
    %v5737 = vld [vmem:[%s8 + $0x24c] sm:$0xf]
    %v5738 = vld [vmem:[%s8 + $0x250] sm:$0xf]
    %v5739 = vld [vmem:[%s8 + $0x254] sm:$0xf]
    %v5740 = vld [vmem:[%s8 + $0x258] sm:$0xf]
    %v5741 = vld [vmem:[%s8 + $0x25c] sm:$0xf]
    %v5742 = vld [vmem:[%s8 + $0x260] sm:$0xf]
    %v5743 = vld [vmem:[%s8 + $0x264] sm:$0xf]
    %v5744 = vld [vmem:[%s8 + $0x268] sm:$0xf]
    %v5745 = vld [vmem:[%s8 + $0x26c] sm:$0xf]
    %v5746 = vld [vmem:[%s8 + $0x270] sm:$0xf]
    %v5747 = vld [vmem:[%s8 + $0x274] sm:$0xf]
    %v5748 = vld [vmem:[%s8 + $0x278] sm:$0xf]
    %v5749 = vld [vmem:[%s8 + $0x27c] sm:$0xf]
    %v5750 = vld [vmem:[%s8 + $0x280] sm:$0xf]
    %v5751 = vld [vmem:[%s8 + $0x284] sm:$0xf]
    %v5752 = vld [vmem:[%s8 + $0x288] sm:$0xf]
    %v5753 = vld [vmem:[%s8 + $0x28c] sm:$0xf]
    %v5754 = vld [vmem:[%s8 + $0x290] sm:$0xf]
    %v5755 = vld [vmem:[%s8 + $0x294] sm:$0xf]
    %v5756 = vld [vmem:[%s8 + $0x298] sm:$0xf]
    %v5757 = vld [vmem:[%s8 + $0x29c] sm:$0xf]
    %v5758 = vld [vmem:[%s8 + $0x2a0] sm:$0xf]
    %v5759 = vld [vmem:[%s8 + $0x2a4] sm:$0xf]
    %v5760 = vld [vmem:[%s8 + $0x2a8] sm:$0xf]
    %v5761 = vld [vmem:[%s8 + $0x2ac] sm:$0xf]
    %v5762 = vld [vmem:[%s8 + $0x2b0] sm:$0xf]
    %v5763 = vld [vmem:[%s8 + $0x2b4] sm:$0xf]
    %v5764 = vld [vmem:[%s8 + $0x2b8] sm:$0xf]
    %v5765 = vld [vmem:[%s8 + $0x2bc] sm:$0xf]
    %v5766 = vld [vmem:[%s8 + $0x2c0] sm:$0xf]
    %v5767 = vld [vmem:[%s8 + $0x2c4] sm:$0xf]
    %v5768 = vld [vmem:[%s8 + $0x2c8] sm:$0xf]
    %v5769 = vld [vmem:[%s8 + $0x2cc] sm:$0xf]
    %v5770 = vld [vmem:[%s8 + $0x2d0] sm:$0xf]
    %v5771 = vld [vmem:[%s8 + $0x2d4] sm:$0xf]
    %v5772 = vld [vmem:[%s8 + $0x2d8] sm:$0xf]
    %v5773 = vld [vmem:[%s8 + $0x2dc] sm:$0xf]
    %v5774 = vld [vmem:[%s8 + $0x2e0] sm:$0xf]
    %v5775 = vld [vmem:[%s8 + $0x2e4] sm:$0xf]
    %v5776 = vld [vmem:[%s8 + $0x2e8] sm:$0xf]
    %v5777 = vld [vmem:[%s8 + $0x2ec] sm:$0xf]
    %v5778 = vld [vmem:[%s8 + $0x2f0] sm:$0xf]
    %v5779 = vld [vmem:[%s8 + $0x2f4] sm:$0xf]
    %v5780 = vld [vmem:[%s8 + $0x2f8] sm:$0xf]
    %v5781 = vld [vmem:[%s8 + $0x2fc] sm:$0xf]
    %v5782 = vld [vmem:[%s8 + $0x300] sm:$0xf]
    %v5783 = vld [vmem:[%s8 + $0x304] sm:$0xf]
    %v5784 = vld [vmem:[%s8 + $0x308] sm:$0xf]
    %v5785 = vld [vmem:[%s8 + $0x30c] sm:$0xf]
    %v5786 = vld [vmem:[%s8 + $0x310] sm:$0xf]
    %v5787 = vld [vmem:[%s8 + $0x314] sm:$0xf]
    %v5788 = vld [vmem:[%s8 + $0x318] sm:$0xf]
    %v5789 = vld [vmem:[%s8 + $0x31c] sm:$0xf]
    %v5790 = vld [vmem:[%s8 + $0x320] sm:$0xf]
    %v5791 = vld [vmem:[%s8 + $0x324] sm:$0xf]
    %v5792 = vld [vmem:[%s8 + $0x328] sm:$0xf]
    %v5793 = vld [vmem:[%s8 + $0x32c] sm:$0xf]
    %v5794 = vld [vmem:[%s8 + $0x330] sm:$0xf]
    %v5795 = vld [vmem:[%s8 + $0x334] sm:$0xf]
    %v5796 = vld [vmem:[%s8 + $0x338] sm:$0xf]
    %v5797 = vld [vmem:[%s8 + $0x33c] sm:$0xf]
    %v5798 = vld [vmem:[%s8 + $0x340] sm:$0xf]
    %v5799 = vld [vmem:[%s8 + $0x344] sm:$0xf]
    %v5800 = vld [vmem:[%s8 + $0x348] sm:$0xf]
    %v5801 = vld [vmem:[%s8 + $0x34c] sm:$0xf]
    %v5802 = vld [vmem:[%s8 + $0x350] sm:$0xf]
    %v5803 = vld [vmem:[%s8 + $0x354] sm:$0xf]
    %v5804 = vld [vmem:[%s8 + $0x358] sm:$0xf]
    %v5805 = vld [vmem:[%s8 + $0x35c] sm:$0xf]
    %v5806 = vld [vmem:[%s8 + $0x360] sm:$0xf]
    %v5807 = vld [vmem:[%s8 + $0x364] sm:$0xf]
    %v5808 = vld [vmem:[%s8 + $0x368] sm:$0xf]
    %v5809 = vld [vmem:[%s8 + $0x36c] sm:$0xf]
    %v5810 = vld [vmem:[%s8 + $0x370] sm:$0xf]
    %v5811 = vld [vmem:[%s8 + $0x374] sm:$0xf]
    %v5812 = vld [vmem:[%s8 + $0x378] sm:$0xf]
    %v5813 = vld [vmem:[%s8 + $0x37c] sm:$0xf]
    %v5814 = vld [vmem:[%s8 + $0x380] sm:$0xf]
    %v5815 = vld [vmem:[%s8 + $0x384] sm:$0xf]
    %v5816 = vld [vmem:[%s8 + $0x388] sm:$0xf]
    %v5817 = vld [vmem:[%s8 + $0x38c] sm:$0xf]
    %v5818 = vld [vmem:[%s8 + $0x390] sm:$0xf]
    %v5819 = vld [vmem:[%s8 + $0x394] sm:$0xf]
    %v5820 = vld [vmem:[%s8 + $0x398] sm:$0xf]
    %v5821 = vld [vmem:[%s8 + $0x39c] sm:$0xf]
    %v5822 = vld [vmem:[%s8 + $0x3a0] sm:$0xf]
    %v5823 = vld [vmem:[%s8 + $0x3a4] sm:$0xf]
    %v5824 = vld [vmem:[%s8 + $0x3a8] sm:$0xf]
    %v5825 = vld [vmem:[%s8 + $0x3ac] sm:$0xf]
    %v5826 = vld [vmem:[%s8 + $0x3b0] sm:$0xf]
    %v5827 = vld [vmem:[%s8 + $0x3b4] sm:$0xf]
    %v5828 = vld [vmem:[%s8 + $0x3b8] sm:$0xf]
    %v5829 = vld [vmem:[%s8 + $0x3bc] sm:$0xf]
    %v5830 = vld [vmem:[%s8 + $0x3c0] sm:$0xf]
    %v5831 = vld [vmem:[%s8 + $0x3c4] sm:$0xf]
    %v5832 = vld [vmem:[%s8 + $0x3c8] sm:$0xf]
    %v5833 = vld [vmem:[%s8 + $0x3cc] sm:$0xf]
    %v5834 = vld [vmem:[%s8 + $0x3d0] sm:$0xf]
    %v5835 = vld [vmem:[%s8 + $0x3d4] sm:$0xf]
    %v5836 = vld [vmem:[%s8 + $0x3d8] sm:$0xf]
    %v5837 = vld [vmem:[%s8 + $0x3dc] sm:$0xf]
    %v5838 = vld [vmem:[%s8 + $0x3e0] sm:$0xf]
    %v5839 = vld [vmem:[%s8 + $0x3e4] sm:$0xf]
    %v5840 = vld [vmem:[%s8 + $0x3e8] sm:$0xf]
    %v5841 = vld [vmem:[%s8 + $0x3ec] sm:$0xf]
    %v5842 = vld [vmem:[%s8 + $0x3f0] sm:$0xf]
    %v5843 = vld [vmem:[%s8 + $0x3f4] sm:$0xf]
    %v5844 = vld [vmem:[%s8 + $0x3f8] sm:$0xf]
    %v5845 = vld [vmem:[%s8 + $0x3fc] sm:$0xf]
    %v5846 = vld [vmem:[%s8 + $0x400] sm:$0xf]
    %v5847 = vld [vmem:[%s8 + $0x404] sm:$0xf]
    %v5848 = vld [vmem:[%s8 + $0x408] sm:$0xf]
    %v5849 = vld [vmem:[%s8 + $0x40c] sm:$0xf]
    %v5850 = vld [vmem:[%s8 + $0x410] sm:$0xf]
    %v5851 = vld [vmem:[%s8 + $0x414] sm:$0xf]
    %v5852 = vld [vmem:[%s8 + $0x418] sm:$0xf]
    %v5853 = vld [vmem:[%s8 + $0x41c] sm:$0xf]
    %v5854 = vld [vmem:[%s8 + $0x420] sm:$0xf]
    %v5855 = vld [vmem:[%s8 + $0x424] sm:$0xf]
    %v5856 = vld [vmem:[%s8 + $0x428] sm:$0xf]
    %v5857 = vld [vmem:[%s8 + $0x42c] sm:$0xf]
    %v5858 = vld [vmem:[%s8 + $0x430] sm:$0xf]
    %v5859 = vld [vmem:[%s8 + $0x434] sm:$0xf]
    %v5860 = vld [vmem:[%s8 + $0x438] sm:$0xf]
    %v5861 = vld [vmem:[%s8 + $0x43c] sm:$0xf]
    %v5862 = vld [vmem:[%s8 + $0x440] sm:$0xf]
    %v5863 = vld [vmem:[%s8 + $0x444] sm:$0xf]
    %v5864 = vld [vmem:[%s8 + $0x448] sm:$0xf]
    %v5865 = vld [vmem:[%s8 + $0x44c] sm:$0xf]
    %v5866 = vld [vmem:[%s8 + $0x450] sm:$0xf]
    %v5867 = vld [vmem:[%s8 + $0x454] sm:$0xf]
    %v5868 = vld [vmem:[%s8 + $0x458] sm:$0xf]
    %v5869 = vld [vmem:[%s8 + $0x45c] sm:$0xf]
    %v5870 = vld [vmem:[%s8 + $0x460] sm:$0xf]
    %v5871 = vld [vmem:[%s8 + $0x464] sm:$0xf]
    %v5872 = vld [vmem:[%s8 + $0x468] sm:$0xf]
    %v5873 = vld [vmem:[%s8 + $0x46c] sm:$0xf]
    %v5874 = vld [vmem:[%s8 + $0x470] sm:$0xf]
    %v5875 = vld [vmem:[%s8 + $0x474] sm:$0xf]
    %v5876 = vld [vmem:[%s8 + $0x478] sm:$0xf]
    %v5877 = vld [vmem:[%s8 + $0x47c] sm:$0xf]
    %v5878 = vld [vmem:[%s8 + $0x480] sm:$0xf]
    %v5879 = vld [vmem:[%s8 + $0x484] sm:$0xf]
    %v5880 = vld [vmem:[%s8 + $0x488] sm:$0xf]
    %v5881 = vld [vmem:[%s8 + $0x48c] sm:$0xf]
    %v5882 = vld [vmem:[%s8 + $0x490] sm:$0xf]
    %v5883 = vld [vmem:[%s8 + $0x494] sm:$0xf]
    %v5884 = vld [vmem:[%s8 + $0x498] sm:$0xf]
    %v5885 = vld [vmem:[%s8 + $0x49c] sm:$0xf]
    %v5886 = vld [vmem:[%s8 + $0x4a0] sm:$0xf]
    %v5887 = vld [vmem:[%s8 + $0x4a4] sm:$0xf]
    %v5888 = vld [vmem:[%s8 + $0x4a8] sm:$0xf]
    %v5889 = vld [vmem:[%s8 + $0x4ac] sm:$0xf]
    %v5890 = vld [vmem:[%s8 + $0x4b0] sm:$0xf]
    %v5891 = vld [vmem:[%s8 + $0x4b4] sm:$0xf]
    %v5892 = vld [vmem:[%s8 + $0x4b8] sm:$0xf]
    %v5893 = vld [vmem:[%s8 + $0x4bc] sm:$0xf]
    %v5894 = vld [vmem:[%s8 + $0x4c0] sm:$0xf]
    %v5895 = vld [vmem:[%s8 + $0x4c4] sm:$0xf]
    %v5896 = vld [vmem:[%s8 + $0x4c8] sm:$0xf]
    %v5897 = vld [vmem:[%s8 + $0x4cc] sm:$0xf]
    %v5898 = vld [vmem:[%s8 + $0x4d0] sm:$0xf]
    %v5899 = vld [vmem:[%s8 + $0x4d4] sm:$0xf]
    %v5900 = vld [vmem:[%s8 + $0x4d8] sm:$0xf]
    %v5901 = vld [vmem:[%s8 + $0x4dc] sm:$0xf]
    %v5902 = vld [vmem:[%s8 + $0x4e0] sm:$0xf]
    %v5903 = vld [vmem:[%s8 + $0x4e4] sm:$0xf]
    %v5904 = vld [vmem:[%s8 + $0x4e8] sm:$0xf]
    %v5905 = vld [vmem:[%s8 + $0x4ec] sm:$0xf]
    %v5906 = vld [vmem:[%s8 + $0x4f0] sm:$0xf]
    %v5907 = vld [vmem:[%s8 + $0x4f4] sm:$0xf]
    %v5908 = vld [vmem:[%s8 + $0x4f8] sm:$0xf]
    %v5909 = vld [vmem:[%s8 + $0x4fc] sm:$0xf]
    %v5910 = vld [vmem:[%s8 + $0x500] sm:$0xf]
    %v5911 = vld [vmem:[%s8 + $0x504] sm:$0xf]
    %v5912 = vld [vmem:[%s8 + $0x508] sm:$0xf]
    %v5913 = vld [vmem:[%s8 + $0x50c] sm:$0xf]
    %v5914 = vld [vmem:[%s8 + $0x510] sm:$0xf]
    %v5915 = vld [vmem:[%s8 + $0x514] sm:$0xf]
    %v5916 = vld [vmem:[%s8 + $0x518] sm:$0xf]
    %v5917 = vld [vmem:[%s8 + $0x51c] sm:$0xf]
    %v5918 = vld [vmem:[%s8 + $0x520] sm:$0xf]
    %v5919 = vld [vmem:[%s8 + $0x524] sm:$0xf]
    %v5920 = vld [vmem:[%s8 + $0x528] sm:$0xf]
    %v5921 = vld [vmem:[%s8 + $0x52c] sm:$0xf]
    %v5922 = vld [vmem:[%s8 + $0x530] sm:$0xf]
    %v5923 = vld [vmem:[%s8 + $0x534] sm:$0xf]
    %v5924 = vld [vmem:[%s8 + $0x538] sm:$0xf]
    %v5925 = vld [vmem:[%s8 + $0x53c] sm:$0xf]
    %v5926 = vld [vmem:[%s8 + $0x540] sm:$0xf]
    %v5927 = vld [vmem:[%s8 + $0x544] sm:$0xf]
    %v5928 = vld [vmem:[%s8 + $0x548] sm:$0xf]
    %v5929 = vld [vmem:[%s8 + $0x54c] sm:$0xf]
    %v5930 = vld [vmem:[%s8 + $0x550] sm:$0xf]
    %v5931 = vld [vmem:[%s8 + $0x554] sm:$0xf]
    %v5932 = vld [vmem:[%s8 + $0x558] sm:$0xf]
    %v5933 = vld [vmem:[%s8 + $0x55c] sm:$0xf]
    %v5934 = vld [vmem:[%s8 + $0x560] sm:$0xf]
    %v5935 = vld [vmem:[%s8 + $0x564] sm:$0xf]
    %v5936 = vld [vmem:[%s8 + $0x568] sm:$0xf]
    %v5937 = vld [vmem:[%s8 + $0x56c] sm:$0xf]
    %v5938 = vld [vmem:[%s8 + $0x570] sm:$0xf]
    %v5939 = vld [vmem:[%s8 + $0x574] sm:$0xf]
    %v5940 = vld [vmem:[%s8 + $0x578] sm:$0xf]
    %v5941 = vld [vmem:[%s8 + $0x57c] sm:$0xf]
    %v5942 = vld [vmem:[%s8 + $0x580] sm:$0xf]
    %v5943 = vld [vmem:[%s8 + $0x584] sm:$0xf]
    %v5944 = vld [vmem:[%s8 + $0x588] sm:$0xf]
    %v5945 = vld [vmem:[%s8 + $0x58c] sm:$0xf]
    %v5946 = vld [vmem:[%s8 + $0x590] sm:$0xf]
    %v5947 = vld [vmem:[%s8 + $0x594] sm:$0xf]
    %v5948 = vld [vmem:[%s8 + $0x598] sm:$0xf]
    %v5949 = vld [vmem:[%s8 + $0x59c] sm:$0xf]
    %v5950 = vld [vmem:[%s8 + $0x5a0] sm:$0xf]
    %v5951 = vld [vmem:[%s8 + $0x5a4] sm:$0xf]
    %v5952 = vld [vmem:[%s8 + $0x5a8] sm:$0xf]
    %v5953 = vld [vmem:[%s8 + $0x5ac] sm:$0xf]
    %v5954 = vld [vmem:[%s8 + $0x5b0] sm:$0xf]
    %v5955 = vld [vmem:[%s8 + $0x5b4] sm:$0xf]
    %v5956 = vld [vmem:[%s8 + $0x5b8] sm:$0xf]
    %v5957 = vld [vmem:[%s8 + $0x5bc] sm:$0xf]
    %v5958 = vld [vmem:[%s8 + $0x5c0] sm:$0xf]
    %v5959 = vld [vmem:[%s8 + $0x5c4] sm:$0xf]
    %v5960 = vld [vmem:[%s8 + $0x5c8] sm:$0xf]
    %v5961 = vld [vmem:[%s8 + $0x5cc] sm:$0xf]
    %v5962 = vld [vmem:[%s8 + $0x5d0] sm:$0xf]
    %v5963 = vld [vmem:[%s8 + $0x5d4] sm:$0xf]
    %v5964 = vld [vmem:[%s8 + $0x5d8] sm:$0xf]
    %v5965 = vld [vmem:[%s8 + $0x5dc] sm:$0xf]
    %v5966 = vld [vmem:[%s8 + $0x5e0] sm:$0xf]
    %v5967 = vld [vmem:[%s8 + $0x5e4] sm:$0xf]
    %v5968 = vld [vmem:[%s8 + $0x5e8] sm:$0xf]
    %v5969 = vld [vmem:[%s8 + $0x5ec] sm:$0xf]
    %v5970 = vld [vmem:[%s8 + $0x5f0] sm:$0xf]
    %v5971 = vld [vmem:[%s8 + $0x5f4] sm:$0xf]
    %v5972 = vld [vmem:[%s8 + $0x5f8] sm:$0xf]
    %v5973 = vld [vmem:[%s8 + $0x5fc] sm:$0xf]
    %v5974 = vld [vmem:[%s8 + $0x600] sm:$0xf]
    %v5975 = vld [vmem:[%s8 + $0x604] sm:$0xf]
    %v5976 = vld [vmem:[%s8 + $0x608] sm:$0xf]
    %v5977 = vld [vmem:[%s8 + $0x60c] sm:$0xf]
    %v5978 = vld [vmem:[%s8 + $0x610] sm:$0xf]
    %v5979 = vld [vmem:[%s8 + $0x614] sm:$0xf]
    %v5980 = vld [vmem:[%s8 + $0x618] sm:$0xf]
    %v5981 = vld [vmem:[%s8 + $0x61c] sm:$0xf]
    %v5982 = vld [vmem:[%s8 + $0x620] sm:$0xf]
    %v5983 = vld [vmem:[%s8 + $0x624] sm:$0xf]
    %v5984 = vld [vmem:[%s8 + $0x628] sm:$0xf]
    %v5985 = vld [vmem:[%s8 + $0x62c] sm:$0xf]
    %v5986 = vld [vmem:[%s8 + $0x630] sm:$0xf]
    %v5987 = vld [vmem:[%s8 + $0x634] sm:$0xf]
    %v5988 = vld [vmem:[%s8 + $0x638] sm:$0xf]
    %v5989 = vld [vmem:[%s8 + $0x63c] sm:$0xf]
    %v5990 = vld [vmem:[%s8 + $0x640] sm:$0xf]
    %v5991 = vld [vmem:[%s8 + $0x644] sm:$0xf]
    %v5992 = vld [vmem:[%s8 + $0x648] sm:$0xf]
    %v5993 = vld [vmem:[%s8 + $0x64c] sm:$0xf]
    %v5994 = vld [vmem:[%s8 + $0x650] sm:$0xf]
    %v5995 = vld [vmem:[%s8 + $0x654] sm:$0xf]
    %v5996 = vld [vmem:[%s8 + $0x658] sm:$0xf]
    %v5997 = vld [vmem:[%s8 + $0x65c] sm:$0xf]
    %v5998 = vld [vmem:[%s8 + $0x660] sm:$0xf]
    %v5999 = vld [vmem:[%s8 + $0x664] sm:$0xf]
    %v6000 = vld [vmem:[%s8 + $0x668] sm:$0xf]
    %v6001 = vld [vmem:[%s8 + $0x66c] sm:$0xf]
    %v6002 = vld [vmem:[%s8 + $0x670] sm:$0xf]
    %v6003 = vld [vmem:[%s8 + $0x674] sm:$0xf]
    %v6004 = vld [vmem:[%s8 + $0x678] sm:$0xf]
    %v6005 = vld [vmem:[%s8 + $0x67c] sm:$0xf]
    %v6006 = vld [vmem:[%s8 + $0x680] sm:$0xf]
    %v6007 = vld [vmem:[%s8 + $0x684] sm:$0xf]
    %v6008 = vld [vmem:[%s8 + $0x688] sm:$0xf]
    %v6009 = vld [vmem:[%s8 + $0x68c] sm:$0xf]
    %v6010 = vld [vmem:[%s8 + $0x690] sm:$0xf]
    %v6011 = vld [vmem:[%s8 + $0x694] sm:$0xf]
    %v6012 = vld [vmem:[%s8 + $0x698] sm:$0xf]
    %v6013 = vld [vmem:[%s8 + $0x69c] sm:$0xf]
    %v6014 = vld [vmem:[%s8 + $0x6a0] sm:$0xf]
    %v6015 = vld [vmem:[%s8 + $0x6a4] sm:$0xf]
    %v6016 = vld [vmem:[%s8 + $0x6a8] sm:$0xf]
    %v6017 = vld [vmem:[%s8 + $0x6ac] sm:$0xf]
    %v6018 = vld [vmem:[%s8 + $0x6b0] sm:$0xf]
    %v6019 = vld [vmem:[%s8 + $0x6b4] sm:$0xf]
    %v6020 = vld [vmem:[%s8 + $0x6b8] sm:$0xf]
    %v6021 = vld [vmem:[%s8 + $0x6bc] sm:$0xf]
    %v6022 = vld [vmem:[%s8 + $0x6c0] sm:$0xf]
    %v6023 = vld [vmem:[%s8 + $0x6c4] sm:$0xf]
    %v6024 = vld [vmem:[%s8 + $0x6c8] sm:$0xf]
    %v6025 = vld [vmem:[%s8 + $0x6cc] sm:$0xf]
    %v6026 = vld [vmem:[%s8 + $0x6d0] sm:$0xf]
    %v6027 = vld [vmem:[%s8 + $0x6d4] sm:$0xf]
    %v6028 = vld [vmem:[%s8 + $0x6d8] sm:$0xf]
    %v6029 = vld [vmem:[%s8 + $0x6dc] sm:$0xf]
    %v6030 = vld [vmem:[%s8 + $0x6e0] sm:$0xf]
    %v6031 = vld [vmem:[%s8 + $0x6e4] sm:$0xf]
    %v6032 = vld [vmem:[%s8 + $0x6e8] sm:$0xf]
    %v6033 = vld [vmem:[%s8 + $0x6ec] sm:$0xf]
    %v6034 = vld [vmem:[%s8 + $0x6f0] sm:$0xf]
    %v6035 = vld [vmem:[%s8 + $0x6f4] sm:$0xf]
    %v6036 = vld [vmem:[%s8 + $0x6f8] sm:$0xf]
    %v6037 = vld [vmem:[%s8 + $0x6fc] sm:$0xf]
    %v6038 = vld [vmem:[%s8 + $0x700] sm:$0xf]
    %v6039 = vld [vmem:[%s8 + $0x704] sm:$0xf]
    %v6040 = vld [vmem:[%s8 + $0x708] sm:$0xf]
    %v6041 = vld [vmem:[%s8 + $0x70c] sm:$0xf]
    %v6042 = vld [vmem:[%s8 + $0x710] sm:$0xf]
    %v6043 = vld [vmem:[%s8 + $0x714] sm:$0xf]
    %v6044 = vld [vmem:[%s8 + $0x718] sm:$0xf]
    %v6045 = vld [vmem:[%s8 + $0x71c] sm:$0xf]
    %v6046 = vld [vmem:[%s8 + $0x720] sm:$0xf]
    %v6047 = vld [vmem:[%s8 + $0x724] sm:$0xf]
    %v6048 = vld [vmem:[%s8 + $0x728] sm:$0xf]
    %v6049 = vld [vmem:[%s8 + $0x72c] sm:$0xf]
    %v6050 = vld [vmem:[%s8 + $0x730] sm:$0xf]
    %v6051 = vld [vmem:[%s8 + $0x734] sm:$0xf]
    %v6052 = vld [vmem:[%s8 + $0x738] sm:$0xf]
    %v6053 = vld [vmem:[%s8 + $0x73c] sm:$0xf]
    %v6054 = vld [vmem:[%s8 + $0x740] sm:$0xf]
    %v6055 = vld [vmem:[%s8 + $0x744] sm:$0xf]
    %v6056 = vld [vmem:[%s8 + $0x748] sm:$0xf]
    %v6057 = vld [vmem:[%s8 + $0x74c] sm:$0xf]
    %v6058 = vld [vmem:[%s8 + $0x750] sm:$0xf]
    %v6059 = vld [vmem:[%s8 + $0x754] sm:$0xf]
    %v6060 = vld [vmem:[%s8 + $0x758] sm:$0xf]
    %v6061 = vld [vmem:[%s8 + $0x75c] sm:$0xf]
    %v6062 = vld [vmem:[%s8 + $0x760] sm:$0xf]
    %v6063 = vld [vmem:[%s8 + $0x764] sm:$0xf]
    %v6064 = vld [vmem:[%s8 + $0x768] sm:$0xf]
    %v6065 = vld [vmem:[%s8 + $0x76c] sm:$0xf]
    %v6066 = vld [vmem:[%s8 + $0x770] sm:$0xf]
    %v6067 = vld [vmem:[%s8 + $0x774] sm:$0xf]
    %v6068 = vld [vmem:[%s8 + $0x778] sm:$0xf]
    %v6069 = vld [vmem:[%s8 + $0x77c] sm:$0xf]
    %v6070 = vld [vmem:[%s8 + $0x780] sm:$0xf]
    %v6071 = vld [vmem:[%s8 + $0x784] sm:$0xf]
    %v6072 = vld [vmem:[%s8 + $0x788] sm:$0xf]
    %v6073 = vld [vmem:[%s8 + $0x78c] sm:$0xf]
    %v6074 = vld [vmem:[%s8 + $0x790] sm:$0xf]
    %v6075 = vld [vmem:[%s8 + $0x794] sm:$0xf]
    %v6076 = vld [vmem:[%s8 + $0x798] sm:$0xf]
    %v6077 = vld [vmem:[%s8 + $0x79c] sm:$0xf]
    %v6078 = vld [vmem:[%s8 + $0x7a0] sm:$0xf]
    %v6079 = vld [vmem:[%s8 + $0x7a4] sm:$0xf]
    %v6080 = vld [vmem:[%s8 + $0x7a8] sm:$0xf]
    %v6081 = vld [vmem:[%s8 + $0x7ac] sm:$0xf]
    %v6082 = vld [vmem:[%s8 + $0x7b0] sm:$0xf]
    %v6083 = vld [vmem:[%s8 + $0x7b4] sm:$0xf]
    %v6084 = vld [vmem:[%s8 + $0x7b8] sm:$0xf]
    %v6085 = vld [vmem:[%s8 + $0x7bc] sm:$0xf]
    %v6086 = vld [vmem:[%s8 + $0x7c0] sm:$0xf]
    %v6087 = vld [vmem:[%s8 + $0x7c4] sm:$0xf]
    %v6088 = vld [vmem:[%s8 + $0x7c8] sm:$0xf]
    %v6089 = vld [vmem:[%s8 + $0x7cc] sm:$0xf]
    %v6090 = vld [vmem:[%s8 + $0x7d0] sm:$0xf]
    %v6091 = vld [vmem:[%s8 + $0x7d4] sm:$0xf]
    %v6092 = vld [vmem:[%s8 + $0x7d8] sm:$0xf]
    %v6093 = vld [vmem:[%s8 + $0x7dc] sm:$0xf]
    %v6094 = vld [vmem:[%s8 + $0x7e0] sm:$0xf]
    %v6095 = vld [vmem:[%s8 + $0x7e4] sm:$0xf]
    %v6096 = vld [vmem:[%s8 + $0x7e8] sm:$0xf]
    %v6097 = vld [vmem:[%s8 + $0x7ec] sm:$0xf]
    %v6098 = vld [vmem:[%s8 + $0x7f0] sm:$0xf]
    %v6099 = vld [vmem:[%s8 + $0x7f4] sm:$0xf]
    %v6100 = vld [vmem:[%s8 + $0x7f8] sm:$0xf]
    %v6101 = vld [vmem:[%s8 + $0x7fc] sm:$0xf]
    %v6102 = vld [vmem:[%s9] sm:$0x1]
    %v6103 = vunpack.c.l.bf16 %v6102
    %v6104 = vlaneseq
    %v6105 = vshrl.u32 %v6104, 7
    %v6106 = vsub.s32 0, %v6105
    %v6107 = vrot.slane %v6103, %v6106
    %v6620 = vunpack.c.l.b16 %v5590
    %v6621 = vunpack.c.l.b16 %v5591
    %v6622 = vunpack.c.l.b16 %v5592
    %v6623 = vunpack.c.l.b16 %v5593
    %v6624 = vunpack.c.l.b16 %v5594
    %v6625 = vunpack.c.l.b16 %v5595
    %v6626 = vunpack.c.l.b16 %v5596
    %v6627 = vunpack.c.l.b16 %v5597
    %v6628 = vunpack.c.l.b16 %v5598
    %v6629 = vunpack.c.l.b16 %v5599
    %v6630 = vunpack.c.l.b16 %v5600
    %v6631 = vunpack.c.l.b16 %v5601
    %v6632 = vunpack.c.l.b16 %v5602
    %v6633 = vunpack.c.l.b16 %v5603
    %v6634 = vunpack.c.l.b16 %v5604
    %v6635 = vunpack.c.l.b16 %v5605
    %v6636 = vunpack.c.l.b16 %v5606
    %v6637 = vunpack.c.l.b16 %v5607
    %v6638 = vunpack.c.l.b16 %v5608
    %v6639 = vunpack.c.l.b16 %v5609
    %v6640 = vunpack.c.l.b16 %v5610
    %v6641 = vunpack.c.l.b16 %v5611
    %v6642 = vunpack.c.l.b16 %v5612
    %v6643 = vunpack.c.l.b16 %v5613
    %v6644 = vunpack.c.l.b16 %v5614
    %v6645 = vunpack.c.l.b16 %v5615
    %v6646 = vunpack.c.l.b16 %v5616
    %v6647 = vunpack.c.l.b16 %v5617
    %v6648 = vunpack.c.l.b16 %v5618
    %v6649 = vunpack.c.l.b16 %v5619
    %v6650 = vunpack.c.l.b16 %v5620
    %v6651 = vunpack.c.l.b16 %v5621
    %v6652 = vunpack.c.l.b16 %v5622
    %v6653 = vunpack.c.l.b16 %v5623
    %v6654 = vunpack.c.l.b16 %v5624
    %v6655 = vunpack.c.l.b16 %v5625
    %v6656 = vunpack.c.l.b16 %v5626
    %v6657 = vunpack.c.l.b16 %v5627
    %v6658 = vunpack.c.l.b16 %v5628
    %v6659 = vunpack.c.l.b16 %v5629
    %v6660 = vunpack.c.l.b16 %v5630
    %v6661 = vunpack.c.l.b16 %v5631
    %v6662 = vunpack.c.l.b16 %v5632
    %v6663 = vunpack.c.l.b16 %v5633
    %v6664 = vunpack.c.l.b16 %v5634
    %v6665 = vunpack.c.l.b16 %v5635
    %v6666 = vunpack.c.l.b16 %v5636
    %v6667 = vunpack.c.l.b16 %v5637
    %v6668 = vunpack.c.l.b16 %v5638
    %v6669 = vunpack.c.l.b16 %v5639
    %v6670 = vunpack.c.l.b16 %v5640
    %v6671 = vunpack.c.l.b16 %v5641
    %v6672 = vunpack.c.l.b16 %v5642
    %v6673 = vunpack.c.l.b16 %v5643
    %v6674 = vunpack.c.l.b16 %v5644
    %v6675 = vunpack.c.l.b16 %v5645
    %v6676 = vunpack.c.l.b16 %v5646
    %v6677 = vunpack.c.l.b16 %v5647
    %v6678 = vunpack.c.l.b16 %v5648
    %v6679 = vunpack.c.l.b16 %v5649
    %v6680 = vunpack.c.l.b16 %v5650
    %v6681 = vunpack.c.l.b16 %v5651
    %v6682 = vunpack.c.l.b16 %v5652
    %v6683 = vunpack.c.l.b16 %v5653
    %v6684 = vunpack.c.l.b16 %v5654
    %v6685 = vunpack.c.l.b16 %v5655
    %v6686 = vunpack.c.l.b16 %v5656
    %v6687 = vunpack.c.l.b16 %v5657
    %v6688 = vunpack.c.l.b16 %v5658
    %v6689 = vunpack.c.l.b16 %v5659
    %v6690 = vunpack.c.l.b16 %v5660
    %v6691 = vunpack.c.l.b16 %v5661
    %v6692 = vunpack.c.l.b16 %v5662
    %v6693 = vunpack.c.l.b16 %v5663
    %v6694 = vunpack.c.l.b16 %v5664
    %v6695 = vunpack.c.l.b16 %v5665
    %v6696 = vunpack.c.l.b16 %v5666
    %v6697 = vunpack.c.l.b16 %v5667
    %v6698 = vunpack.c.l.b16 %v5668
    %v6699 = vunpack.c.l.b16 %v5669
    %v6700 = vunpack.c.l.b16 %v5670
    %v6701 = vunpack.c.l.b16 %v5671
    %v6702 = vunpack.c.l.b16 %v5672
    %v6703 = vunpack.c.l.b16 %v5673
    %v6704 = vunpack.c.l.b16 %v5674
    %v6705 = vunpack.c.l.b16 %v5675
    %v6706 = vunpack.c.l.b16 %v5676
    %v6707 = vunpack.c.l.b16 %v5677
    %v6708 = vunpack.c.l.b16 %v5678
    %v6709 = vunpack.c.l.b16 %v5679
    %v6710 = vunpack.c.l.b16 %v5680
    %v6711 = vunpack.c.l.b16 %v5681
    %v6712 = vunpack.c.l.b16 %v5682
    %v6713 = vunpack.c.l.b16 %v5683
    %v6714 = vunpack.c.l.b16 %v5684
    %v6715 = vunpack.c.l.b16 %v5685
    %v6716 = vunpack.c.l.b16 %v5686
    %v6717 = vunpack.c.l.b16 %v5687
    %v6718 = vunpack.c.l.b16 %v5688
    %v6719 = vunpack.c.l.b16 %v5689
    %v6720 = vunpack.c.l.b16 %v5690
    %v6721 = vunpack.c.l.b16 %v5691
    %v6722 = vunpack.c.l.b16 %v5692
    %v6723 = vunpack.c.l.b16 %v5693
    %v6724 = vunpack.c.l.b16 %v5694
    %v6725 = vunpack.c.l.b16 %v5695
    %v6726 = vunpack.c.l.b16 %v5696
    %v6727 = vunpack.c.l.b16 %v5697
    %v6728 = vunpack.c.l.b16 %v5698
    %v6729 = vunpack.c.l.b16 %v5699
    %v6730 = vunpack.c.l.b16 %v5700
    %v6731 = vunpack.c.l.b16 %v5701
    %v6732 = vunpack.c.l.b16 %v5702
    %v6733 = vunpack.c.l.b16 %v5703
    %v6734 = vunpack.c.l.b16 %v5704
    %v6735 = vunpack.c.l.b16 %v5705
    %v6736 = vunpack.c.l.b16 %v5706
    %v6737 = vunpack.c.l.b16 %v5707
    %v6738 = vunpack.c.l.b16 %v5708
    %v6739 = vunpack.c.l.b16 %v5709
    %v6740 = vunpack.c.l.b16 %v5710
    %v6741 = vunpack.c.l.b16 %v5711
    %v6742 = vunpack.c.l.b16 %v5712
    %v6743 = vunpack.c.l.b16 %v5713
    %v6744 = vunpack.c.l.b16 %v5714
    %v6745 = vunpack.c.l.b16 %v5715
    %v6746 = vunpack.c.l.b16 %v5716
    %v6747 = vunpack.c.l.b16 %v5717
    %v6748 = vunpack.c.l.b16 %v5718
    %v6749 = vunpack.c.l.b16 %v5719
    %v6750 = vunpack.c.l.b16 %v5720
    %v6751 = vunpack.c.l.b16 %v5721
    %v6752 = vunpack.c.l.b16 %v5722
    %v6753 = vunpack.c.l.b16 %v5723
    %v6754 = vunpack.c.l.b16 %v5724
    %v6755 = vunpack.c.l.b16 %v5725
    %v6756 = vunpack.c.l.b16 %v5726
    %v6757 = vunpack.c.l.b16 %v5727
    %v6758 = vunpack.c.l.b16 %v5728
    %v6759 = vunpack.c.l.b16 %v5729
    %v6760 = vunpack.c.l.b16 %v5730
    %v6761 = vunpack.c.l.b16 %v5731
    %v6762 = vunpack.c.l.b16 %v5732
    %v6763 = vunpack.c.l.b16 %v5733
    %v6764 = vunpack.c.l.b16 %v5734
    %v6765 = vunpack.c.l.b16 %v5735
    %v6766 = vunpack.c.l.b16 %v5736
    %v6767 = vunpack.c.l.b16 %v5737
    %v6768 = vunpack.c.l.b16 %v5738
    %v6769 = vunpack.c.l.b16 %v5739
    %v6770 = vunpack.c.l.b16 %v5740
    %v6771 = vunpack.c.l.b16 %v5741
    %v6772 = vunpack.c.l.b16 %v5742
    %v6773 = vunpack.c.l.b16 %v5743
    %v6774 = vunpack.c.l.b16 %v5744
    %v6775 = vunpack.c.l.b16 %v5745
    %v6776 = vunpack.c.l.b16 %v5746
    %v6777 = vunpack.c.l.b16 %v5747
    %v6778 = vunpack.c.l.b16 %v5748
    %v6779 = vunpack.c.l.b16 %v5749
    %v6780 = vunpack.c.l.b16 %v5750
    %v6781 = vunpack.c.l.b16 %v5751
    %v6782 = vunpack.c.l.b16 %v5752
    %v6783 = vunpack.c.l.b16 %v5753
    %v6784 = vunpack.c.l.b16 %v5754
    %v6785 = vunpack.c.l.b16 %v5755
    %v6786 = vunpack.c.l.b16 %v5756
    %v6787 = vunpack.c.l.b16 %v5757
    %v6788 = vunpack.c.l.b16 %v5758
    %v6789 = vunpack.c.l.b16 %v5759
    %v6790 = vunpack.c.l.b16 %v5760
    %v6791 = vunpack.c.l.b16 %v5761
    %v6792 = vunpack.c.l.b16 %v5762
    %v6793 = vunpack.c.l.b16 %v5763
    %v6794 = vunpack.c.l.b16 %v5764
    %v6795 = vunpack.c.l.b16 %v5765
    %v6796 = vunpack.c.l.b16 %v5766
    %v6797 = vunpack.c.l.b16 %v5767
    %v6798 = vunpack.c.l.b16 %v5768
    %v6799 = vunpack.c.l.b16 %v5769
    %v6800 = vunpack.c.l.b16 %v5770
    %v6801 = vunpack.c.l.b16 %v5771
    %v6802 = vunpack.c.l.b16 %v5772
    %v6803 = vunpack.c.l.b16 %v5773
    %v6804 = vunpack.c.l.b16 %v5774
    %v6805 = vunpack.c.l.b16 %v5775
    %v6806 = vunpack.c.l.b16 %v5776
    %v6807 = vunpack.c.l.b16 %v5777
    %v6808 = vunpack.c.l.b16 %v5778
    %v6809 = vunpack.c.l.b16 %v5779
    %v6810 = vunpack.c.l.b16 %v5780
    %v6811 = vunpack.c.l.b16 %v5781
    %v6812 = vunpack.c.l.b16 %v5782
    %v6813 = vunpack.c.l.b16 %v5783
    %v6814 = vunpack.c.l.b16 %v5784
    %v6815 = vunpack.c.l.b16 %v5785
    %v6816 = vunpack.c.l.b16 %v5786
    %v6817 = vunpack.c.l.b16 %v5787
    %v6818 = vunpack.c.l.b16 %v5788
    %v6819 = vunpack.c.l.b16 %v5789
    %v6820 = vunpack.c.l.b16 %v5790
    %v6821 = vunpack.c.l.b16 %v5791
    %v6822 = vunpack.c.l.b16 %v5792
    %v6823 = vunpack.c.l.b16 %v5793
    %v6824 = vunpack.c.l.b16 %v5794
    %v6825 = vunpack.c.l.b16 %v5795
    %v6826 = vunpack.c.l.b16 %v5796
    %v6827 = vunpack.c.l.b16 %v5797
    %v6828 = vunpack.c.l.b16 %v5798
    %v6829 = vunpack.c.l.b16 %v5799
    %v6830 = vunpack.c.l.b16 %v5800
    %v6831 = vunpack.c.l.b16 %v5801
    %v6832 = vunpack.c.l.b16 %v5802
    %v6833 = vunpack.c.l.b16 %v5803
    %v6834 = vunpack.c.l.b16 %v5804
    %v6835 = vunpack.c.l.b16 %v5805
    %v6836 = vunpack.c.l.b16 %v5806
    %v6837 = vunpack.c.l.b16 %v5807
    %v6838 = vunpack.c.l.b16 %v5808
    %v6839 = vunpack.c.l.b16 %v5809
    %v6840 = vunpack.c.l.b16 %v5810
    %v6841 = vunpack.c.l.b16 %v5811
    %v6842 = vunpack.c.l.b16 %v5812
    %v6843 = vunpack.c.l.b16 %v5813
    %v6844 = vunpack.c.l.b16 %v5814
    %v6845 = vunpack.c.l.b16 %v5815
    %v6846 = vunpack.c.l.b16 %v5816
    %v6847 = vunpack.c.l.b16 %v5817
    %v6848 = vunpack.c.l.b16 %v5818
    %v6849 = vunpack.c.l.b16 %v5819
    %v6850 = vunpack.c.l.b16 %v5820
    %v6851 = vunpack.c.l.b16 %v5821
    %v6852 = vunpack.c.l.b16 %v5822
    %v6853 = vunpack.c.l.b16 %v5823
    %v6854 = vunpack.c.l.b16 %v5824
    %v6855 = vunpack.c.l.b16 %v5825
    %v6856 = vunpack.c.l.b16 %v5826
    %v6857 = vunpack.c.l.b16 %v5827
    %v6858 = vunpack.c.l.b16 %v5828
    %v6859 = vunpack.c.l.b16 %v5829
    %v6860 = vunpack.c.l.b16 %v5830
    %v6861 = vunpack.c.l.b16 %v5831
    %v6862 = vunpack.c.l.b16 %v5832
    %v6863 = vunpack.c.l.b16 %v5833
    %v6864 = vunpack.c.l.b16 %v5834
    %v6865 = vunpack.c.l.b16 %v5835
    %v6866 = vunpack.c.l.b16 %v5836
    %v6867 = vunpack.c.l.b16 %v5837
    %v6868 = vunpack.c.l.b16 %v5838
    %v6869 = vunpack.c.l.b16 %v5839
    %v6870 = vunpack.c.l.b16 %v5840
    %v6871 = vunpack.c.l.b16 %v5841
    %v6872 = vunpack.c.l.b16 %v5842
    %v6873 = vunpack.c.l.b16 %v5843
    %v6874 = vunpack.c.l.b16 %v5844
    %v6875 = vunpack.c.l.b16 %v5845
    %v6876 = vunpack.c.l.b16 %v5846
    %v6877 = vunpack.c.l.b16 %v5847
    %v6878 = vunpack.c.l.b16 %v5848
    %v6879 = vunpack.c.l.b16 %v5849
    %v6880 = vunpack.c.l.b16 %v5850
    %v6881 = vunpack.c.l.b16 %v5851
    %v6882 = vunpack.c.l.b16 %v5852
    %v6883 = vunpack.c.l.b16 %v5853
    %v6884 = vunpack.c.l.b16 %v5854
    %v6885 = vunpack.c.l.b16 %v5855
    %v6886 = vunpack.c.l.b16 %v5856
    %v6887 = vunpack.c.l.b16 %v5857
    %v6888 = vunpack.c.l.b16 %v5858
    %v6889 = vunpack.c.l.b16 %v5859
    %v6890 = vunpack.c.l.b16 %v5860
    %v6891 = vunpack.c.l.b16 %v5861
    %v6892 = vunpack.c.l.b16 %v5862
    %v6893 = vunpack.c.l.b16 %v5863
    %v6894 = vunpack.c.l.b16 %v5864
    %v6895 = vunpack.c.l.b16 %v5865
    %v6896 = vunpack.c.l.b16 %v5866
    %v6897 = vunpack.c.l.b16 %v5867
    %v6898 = vunpack.c.l.b16 %v5868
    %v6899 = vunpack.c.l.b16 %v5869
    %v6900 = vunpack.c.l.b16 %v5870
    %v6901 = vunpack.c.l.b16 %v5871
    %v6902 = vunpack.c.l.b16 %v5872
    %v6903 = vunpack.c.l.b16 %v5873
    %v6904 = vunpack.c.l.b16 %v5874
    %v6905 = vunpack.c.l.b16 %v5875
    %v6906 = vunpack.c.l.b16 %v5876
    %v6907 = vunpack.c.l.b16 %v5877
    %v6908 = vunpack.c.l.b16 %v5878
    %v6909 = vunpack.c.l.b16 %v5879
    %v6910 = vunpack.c.l.b16 %v5880
    %v6911 = vunpack.c.l.b16 %v5881
    %v6912 = vunpack.c.l.b16 %v5882
    %v6913 = vunpack.c.l.b16 %v5883
    %v6914 = vunpack.c.l.b16 %v5884
    %v6915 = vunpack.c.l.b16 %v5885
    %v6916 = vunpack.c.l.b16 %v5886
    %v6917 = vunpack.c.l.b16 %v5887
    %v6918 = vunpack.c.l.b16 %v5888
    %v6919 = vunpack.c.l.b16 %v5889
    %v6920 = vunpack.c.l.b16 %v5890
    %v6921 = vunpack.c.l.b16 %v5891
    %v6922 = vunpack.c.l.b16 %v5892
    %v6923 = vunpack.c.l.b16 %v5893
    %v6924 = vunpack.c.l.b16 %v5894
    %v6925 = vunpack.c.l.b16 %v5895
    %v6926 = vunpack.c.l.b16 %v5896
    %v6927 = vunpack.c.l.b16 %v5897
    %v6928 = vunpack.c.l.b16 %v5898
    %v6929 = vunpack.c.l.b16 %v5899
    %v6930 = vunpack.c.l.b16 %v5900
    %v6931 = vunpack.c.l.b16 %v5901
    %v6932 = vunpack.c.l.b16 %v5902
    %v6933 = vunpack.c.l.b16 %v5903
    %v6934 = vunpack.c.l.b16 %v5904
    %v6935 = vunpack.c.l.b16 %v5905
    %v6936 = vunpack.c.l.b16 %v5906
    %v6937 = vunpack.c.l.b16 %v5907
    %v6938 = vunpack.c.l.b16 %v5908
    %v6939 = vunpack.c.l.b16 %v5909
    %v6940 = vunpack.c.l.b16 %v5910
    %v6941 = vunpack.c.l.b16 %v5911
    %v6942 = vunpack.c.l.b16 %v5912
    %v6943 = vunpack.c.l.b16 %v5913
    %v6944 = vunpack.c.l.b16 %v5914
    %v6945 = vunpack.c.l.b16 %v5915
    %v6946 = vunpack.c.l.b16 %v5916
    %v6947 = vunpack.c.l.b16 %v5917
    %v6948 = vunpack.c.l.b16 %v5918
    %v6949 = vunpack.c.l.b16 %v5919
    %v6950 = vunpack.c.l.b16 %v5920
    %v6951 = vunpack.c.l.b16 %v5921
    %v6952 = vunpack.c.l.b16 %v5922
    %v6953 = vunpack.c.l.b16 %v5923
    %v6954 = vunpack.c.l.b16 %v5924
    %v6955 = vunpack.c.l.b16 %v5925
    %v6956 = vunpack.c.l.b16 %v5926
    %v6957 = vunpack.c.l.b16 %v5927
    %v6958 = vunpack.c.l.b16 %v5928
    %v6959 = vunpack.c.l.b16 %v5929
    %v6960 = vunpack.c.l.b16 %v5930
    %v6961 = vunpack.c.l.b16 %v5931
    %v6962 = vunpack.c.l.b16 %v5932
    %v6963 = vunpack.c.l.b16 %v5933
    %v6964 = vunpack.c.l.b16 %v5934
    %v6965 = vunpack.c.l.b16 %v5935
    %v6966 = vunpack.c.l.b16 %v5936
    %v6967 = vunpack.c.l.b16 %v5937
    %v6968 = vunpack.c.l.b16 %v5938
    %v6969 = vunpack.c.l.b16 %v5939
    %v6970 = vunpack.c.l.b16 %v5940
    %v6971 = vunpack.c.l.b16 %v5941
    %v6972 = vunpack.c.l.b16 %v5942
    %v6973 = vunpack.c.l.b16 %v5943
    %v6974 = vunpack.c.l.b16 %v5944
    %v6975 = vunpack.c.l.b16 %v5945
    %v6976 = vunpack.c.l.b16 %v5946
    %v6977 = vunpack.c.l.b16 %v5947
    %v6978 = vunpack.c.l.b16 %v5948
    %v6979 = vunpack.c.l.b16 %v5949
    %v6980 = vunpack.c.l.b16 %v5950
    %v6981 = vunpack.c.l.b16 %v5951
    %v6982 = vunpack.c.l.b16 %v5952
    %v6983 = vunpack.c.l.b16 %v5953
    %v6984 = vunpack.c.l.b16 %v5954
    %v6985 = vunpack.c.l.b16 %v5955
    %v6986 = vunpack.c.l.b16 %v5956
    %v6987 = vunpack.c.l.b16 %v5957
    %v6988 = vunpack.c.l.b16 %v5958
    %v6989 = vunpack.c.l.b16 %v5959
    %v6990 = vunpack.c.l.b16 %v5960
    %v6991 = vunpack.c.l.b16 %v5961
    %v6992 = vunpack.c.l.b16 %v5962
    %v6993 = vunpack.c.l.b16 %v5963
    %v6994 = vunpack.c.l.b16 %v5964
    %v6995 = vunpack.c.l.b16 %v5965
    %v6996 = vunpack.c.l.b16 %v5966
    %v6997 = vunpack.c.l.b16 %v5967
    %v6998 = vunpack.c.l.b16 %v5968
    %v6999 = vunpack.c.l.b16 %v5969
    %v7000 = vunpack.c.l.b16 %v5970
    %v7001 = vunpack.c.l.b16 %v5971
    %v7002 = vunpack.c.l.b16 %v5972
    %v7003 = vunpack.c.l.b16 %v5973
    %v7004 = vunpack.c.l.b16 %v5974
    %v7005 = vunpack.c.l.b16 %v5975
    %v7006 = vunpack.c.l.b16 %v5976
    %v7007 = vunpack.c.l.b16 %v5977
    %v7008 = vunpack.c.l.b16 %v5978
    %v7009 = vunpack.c.l.b16 %v5979
    %v7010 = vunpack.c.l.b16 %v5980
    %v7011 = vunpack.c.l.b16 %v5981
    %v7012 = vunpack.c.l.b16 %v5982
    %v7013 = vunpack.c.l.b16 %v5983
    %v7014 = vunpack.c.l.b16 %v5984
    %v7015 = vunpack.c.l.b16 %v5985
    %v7016 = vunpack.c.l.b16 %v5986
    %v7017 = vunpack.c.l.b16 %v5987
    %v7018 = vunpack.c.l.b16 %v5988
    %v7019 = vunpack.c.l.b16 %v5989
    %v7020 = vunpack.c.l.b16 %v5990
    %v7021 = vunpack.c.l.b16 %v5991
    %v7022 = vunpack.c.l.b16 %v5992
    %v7023 = vunpack.c.l.b16 %v5993
    %v7024 = vunpack.c.l.b16 %v5994
    %v7025 = vunpack.c.l.b16 %v5995
    %v7026 = vunpack.c.l.b16 %v5996
    %v7027 = vunpack.c.l.b16 %v5997
    %v7028 = vunpack.c.l.b16 %v5998
    %v7029 = vunpack.c.l.b16 %v5999
    %v7030 = vunpack.c.l.b16 %v6000
    %v7031 = vunpack.c.l.b16 %v6001
    %v7032 = vunpack.c.l.b16 %v6002
    %v7033 = vunpack.c.l.b16 %v6003
    %v7034 = vunpack.c.l.b16 %v6004
    %v7035 = vunpack.c.l.b16 %v6005
    %v7036 = vunpack.c.l.b16 %v6006
    %v7037 = vunpack.c.l.b16 %v6007
    %v7038 = vunpack.c.l.b16 %v6008
    %v7039 = vunpack.c.l.b16 %v6009
    %v7040 = vunpack.c.l.b16 %v6010
    %v7041 = vunpack.c.l.b16 %v6011
    %v7042 = vunpack.c.l.b16 %v6012
    %v7043 = vunpack.c.l.b16 %v6013
    %v7044 = vunpack.c.l.b16 %v6014
    %v7045 = vunpack.c.l.b16 %v6015
    %v7046 = vunpack.c.l.b16 %v6016
    %v7047 = vunpack.c.l.b16 %v6017
    %v7048 = vunpack.c.l.b16 %v6018
    %v7049 = vunpack.c.l.b16 %v6019
    %v7050 = vunpack.c.l.b16 %v6020
    %v7051 = vunpack.c.l.b16 %v6021
    %v7052 = vunpack.c.l.b16 %v6022
    %v7053 = vunpack.c.l.b16 %v6023
    %v7054 = vunpack.c.l.b16 %v6024
    %v7055 = vunpack.c.l.b16 %v6025
    %v7056 = vunpack.c.l.b16 %v6026
    %v7057 = vunpack.c.l.b16 %v6027
    %v7058 = vunpack.c.l.b16 %v6028
    %v7059 = vunpack.c.l.b16 %v6029
    %v7060 = vunpack.c.l.b16 %v6030
    %v7061 = vunpack.c.l.b16 %v6031
    %v7062 = vunpack.c.l.b16 %v6032
    %v7063 = vunpack.c.l.b16 %v6033
    %v7064 = vunpack.c.l.b16 %v6034
    %v7065 = vunpack.c.l.b16 %v6035
    %v7066 = vunpack.c.l.b16 %v6036
    %v7067 = vunpack.c.l.b16 %v6037
    %v7068 = vunpack.c.l.b16 %v6038
    %v7069 = vunpack.c.l.b16 %v6039
    %v7070 = vunpack.c.l.b16 %v6040
    %v7071 = vunpack.c.l.b16 %v6041
    %v7072 = vunpack.c.l.b16 %v6042
    %v7073 = vunpack.c.l.b16 %v6043
    %v7074 = vunpack.c.l.b16 %v6044
    %v7075 = vunpack.c.l.b16 %v6045
    %v7076 = vunpack.c.l.b16 %v6046
    %v7077 = vunpack.c.l.b16 %v6047
    %v7078 = vunpack.c.l.b16 %v6048
    %v7079 = vunpack.c.l.b16 %v6049
    %v7080 = vunpack.c.l.b16 %v6050
    %v7081 = vunpack.c.l.b16 %v6051
    %v7082 = vunpack.c.l.b16 %v6052
    %v7083 = vunpack.c.l.b16 %v6053
    %v7084 = vunpack.c.l.b16 %v6054
    %v7085 = vunpack.c.l.b16 %v6055
    %v7086 = vunpack.c.l.b16 %v6056
    %v7087 = vunpack.c.l.b16 %v6057
    %v7088 = vunpack.c.l.b16 %v6058
    %v7089 = vunpack.c.l.b16 %v6059
    %v7090 = vunpack.c.l.b16 %v6060
    %v7091 = vunpack.c.l.b16 %v6061
    %v7092 = vunpack.c.l.b16 %v6062
    %v7093 = vunpack.c.l.b16 %v6063
    %v7094 = vunpack.c.l.b16 %v6064
    %v7095 = vunpack.c.l.b16 %v6065
    %v7096 = vunpack.c.l.b16 %v6066
    %v7097 = vunpack.c.l.b16 %v6067
    %v7098 = vunpack.c.l.b16 %v6068
    %v7099 = vunpack.c.l.b16 %v6069
    %v7100 = vunpack.c.l.b16 %v6070
    %v7101 = vunpack.c.l.b16 %v6071
    %v7102 = vunpack.c.l.b16 %v6072
    %v7103 = vunpack.c.l.b16 %v6073
    %v7104 = vunpack.c.l.b16 %v6074
    %v7105 = vunpack.c.l.b16 %v6075
    %v7106 = vunpack.c.l.b16 %v6076
    %v7107 = vunpack.c.l.b16 %v6077
    %v7108 = vunpack.c.l.b16 %v6078
    %v7109 = vunpack.c.l.b16 %v6079
    %v7110 = vunpack.c.l.b16 %v6080
    %v7111 = vunpack.c.l.b16 %v6081
    %v7112 = vunpack.c.l.b16 %v6082
    %v7113 = vunpack.c.l.b16 %v6083
    %v7114 = vunpack.c.l.b16 %v6084
    %v7115 = vunpack.c.l.b16 %v6085
    %v7116 = vunpack.c.l.b16 %v6086
    %v7117 = vunpack.c.l.b16 %v6087
    %v7118 = vunpack.c.l.b16 %v6088
    %v7119 = vunpack.c.l.b16 %v6089
    %v7120 = vunpack.c.l.b16 %v6090
    %v7121 = vunpack.c.l.b16 %v6091
    %v7122 = vunpack.c.l.b16 %v6092
    %v7123 = vunpack.c.l.b16 %v6093
    %v7124 = vunpack.c.l.b16 %v6094
    %v7125 = vunpack.c.l.b16 %v6095
    %v7126 = vunpack.c.l.b16 %v6096
    %v7127 = vunpack.c.l.b16 %v6097
    %v7128 = vunpack.c.l.b16 %v6098
    %v7129 = vunpack.c.l.b16 %v6099
    %v7130 = vunpack.c.l.b16 %v6100
    %v7131 = vunpack.c.l.b16 %v6101
    %v7132 = vpack.c.b16 %v6621, %v6620
    %v7133 = vpack.c.b16 %v6623, %v6622
    %v7134 = vpack.c.b16 %v6625, %v6624
    %v7135 = vpack.c.b16 %v6627, %v6626
    %v7136 = vpack.c.b16 %v6629, %v6628
    %v7137 = vpack.c.b16 %v6631, %v6630
    %v7138 = vpack.c.b16 %v6633, %v6632
    %v7139 = vpack.c.b16 %v6635, %v6634
    %v7140 = vpack.c.b16 %v6637, %v6636
    %v7141 = vpack.c.b16 %v6639, %v6638
    %v7142 = vpack.c.b16 %v6641, %v6640
    %v7143 = vpack.c.b16 %v6643, %v6642
    %v7144 = vpack.c.b16 %v6645, %v6644
    %v7145 = vpack.c.b16 %v6647, %v6646
    %v7146 = vpack.c.b16 %v6649, %v6648
    %v7147 = vpack.c.b16 %v6651, %v6650
    %v7148 = vpack.c.b16 %v6653, %v6652
    %v7149 = vpack.c.b16 %v6655, %v6654
    %v7150 = vpack.c.b16 %v6657, %v6656
    %v7151 = vpack.c.b16 %v6659, %v6658
    %v7152 = vpack.c.b16 %v6661, %v6660
    %v7153 = vpack.c.b16 %v6663, %v6662
    %v7154 = vpack.c.b16 %v6665, %v6664
    %v7155 = vpack.c.b16 %v6667, %v6666
    %v7156 = vpack.c.b16 %v6669, %v6668
    %v7157 = vpack.c.b16 %v6671, %v6670
    %v7158 = vpack.c.b16 %v6673, %v6672
    %v7159 = vpack.c.b16 %v6675, %v6674
    %v7160 = vpack.c.b16 %v6677, %v6676
    %v7161 = vpack.c.b16 %v6679, %v6678
    %v7162 = vpack.c.b16 %v6681, %v6680
    %v7163 = vpack.c.b16 %v6683, %v6682
    %v7164 = vpack.c.b16 %v6685, %v6684
    %v7165 = vpack.c.b16 %v6687, %v6686
    %v7166 = vpack.c.b16 %v6689, %v6688
    %v7167 = vpack.c.b16 %v6691, %v6690
    %v7168 = vpack.c.b16 %v6693, %v6692
    %v7169 = vpack.c.b16 %v6695, %v6694
    %v7170 = vpack.c.b16 %v6697, %v6696
    %v7171 = vpack.c.b16 %v6699, %v6698
    %v7172 = vpack.c.b16 %v6701, %v6700
    %v7173 = vpack.c.b16 %v6703, %v6702
    %v7174 = vpack.c.b16 %v6705, %v6704
    %v7175 = vpack.c.b16 %v6707, %v6706
    %v7176 = vpack.c.b16 %v6709, %v6708
    %v7177 = vpack.c.b16 %v6711, %v6710
    %v7178 = vpack.c.b16 %v6713, %v6712
    %v7179 = vpack.c.b16 %v6715, %v6714
    %v7180 = vpack.c.b16 %v6717, %v6716
    %v7181 = vpack.c.b16 %v6719, %v6718
    %v7182 = vpack.c.b16 %v6721, %v6720
    %v7183 = vpack.c.b16 %v6723, %v6722
    %v7184 = vpack.c.b16 %v6725, %v6724
    %v7185 = vpack.c.b16 %v6727, %v6726
    %v7186 = vpack.c.b16 %v6729, %v6728
    %v7187 = vpack.c.b16 %v6731, %v6730
    %v7188 = vpack.c.b16 %v6733, %v6732
    %v7189 = vpack.c.b16 %v6735, %v6734
    %v7190 = vpack.c.b16 %v6737, %v6736
    %v7191 = vpack.c.b16 %v6739, %v6738
    %v7192 = vpack.c.b16 %v6741, %v6740
    %v7193 = vpack.c.b16 %v6743, %v6742
    %v7194 = vpack.c.b16 %v6745, %v6744
    %v7195 = vpack.c.b16 %v6747, %v6746
    %v7196 = vpack.c.b16 %v6749, %v6748
    %v7197 = vpack.c.b16 %v6751, %v6750
    %v7198 = vpack.c.b16 %v6753, %v6752
    %v7199 = vpack.c.b16 %v6755, %v6754
    %v7200 = vpack.c.b16 %v6757, %v6756
    %v7201 = vpack.c.b16 %v6759, %v6758
    %v7202 = vpack.c.b16 %v6761, %v6760
    %v7203 = vpack.c.b16 %v6763, %v6762
    %v7204 = vpack.c.b16 %v6765, %v6764
    %v7205 = vpack.c.b16 %v6767, %v6766
    %v7206 = vpack.c.b16 %v6769, %v6768
    %v7207 = vpack.c.b16 %v6771, %v6770
    %v7208 = vpack.c.b16 %v6773, %v6772
    %v7209 = vpack.c.b16 %v6775, %v6774
    %v7210 = vpack.c.b16 %v6777, %v6776
    %v7211 = vpack.c.b16 %v6779, %v6778
    %v7212 = vpack.c.b16 %v6781, %v6780
    %v7213 = vpack.c.b16 %v6783, %v6782
    %v7214 = vpack.c.b16 %v6785, %v6784
    %v7215 = vpack.c.b16 %v6787, %v6786
    %v7216 = vpack.c.b16 %v6789, %v6788
    %v7217 = vpack.c.b16 %v6791, %v6790
    %v7218 = vpack.c.b16 %v6793, %v6792
    %v7219 = vpack.c.b16 %v6795, %v6794
    %v7220 = vpack.c.b16 %v6797, %v6796
    %v7221 = vpack.c.b16 %v6799, %v6798
    %v7222 = vpack.c.b16 %v6801, %v6800
    %v7223 = vpack.c.b16 %v6803, %v6802
    %v7224 = vpack.c.b16 %v6805, %v6804
    %v7225 = vpack.c.b16 %v6807, %v6806
    %v7226 = vpack.c.b16 %v6809, %v6808
    %v7227 = vpack.c.b16 %v6811, %v6810
    %v7228 = vpack.c.b16 %v6813, %v6812
    %v7229 = vpack.c.b16 %v6815, %v6814
    %v7230 = vpack.c.b16 %v6817, %v6816
    %v7231 = vpack.c.b16 %v6819, %v6818
    %v7232 = vpack.c.b16 %v6821, %v6820
    %v7233 = vpack.c.b16 %v6823, %v6822
    %v7234 = vpack.c.b16 %v6825, %v6824
    %v7235 = vpack.c.b16 %v6827, %v6826
    %v7236 = vpack.c.b16 %v6829, %v6828
    %v7237 = vpack.c.b16 %v6831, %v6830
    %v7238 = vpack.c.b16 %v6833, %v6832
    %v7239 = vpack.c.b16 %v6835, %v6834
    %v7240 = vpack.c.b16 %v6837, %v6836
    %v7241 = vpack.c.b16 %v6839, %v6838
    %v7242 = vpack.c.b16 %v6841, %v6840
    %v7243 = vpack.c.b16 %v6843, %v6842
    %v7244 = vpack.c.b16 %v6845, %v6844
    %v7245 = vpack.c.b16 %v6847, %v6846
    %v7246 = vpack.c.b16 %v6849, %v6848
    %v7247 = vpack.c.b16 %v6851, %v6850
    %v7248 = vpack.c.b16 %v6853, %v6852
    %v7249 = vpack.c.b16 %v6855, %v6854
    %v7250 = vpack.c.b16 %v6857, %v6856
    %v7251 = vpack.c.b16 %v6859, %v6858
    %v7252 = vpack.c.b16 %v6861, %v6860
    %v7253 = vpack.c.b16 %v6863, %v6862
    %v7254 = vpack.c.b16 %v6865, %v6864
    %v7255 = vpack.c.b16 %v6867, %v6866
    %v7256 = vpack.c.b16 %v6869, %v6868
    %v7257 = vpack.c.b16 %v6871, %v6870
    %v7258 = vpack.c.b16 %v6873, %v6872
    %v7259 = vpack.c.b16 %v6875, %v6874
    %v7260 = vpack.c.b16 %v6877, %v6876
    %v7261 = vpack.c.b16 %v6879, %v6878
    %v7262 = vpack.c.b16 %v6881, %v6880
    %v7263 = vpack.c.b16 %v6883, %v6882
    %v7264 = vpack.c.b16 %v6885, %v6884
    %v7265 = vpack.c.b16 %v6887, %v6886
    %v7266 = vpack.c.b16 %v6889, %v6888
    %v7267 = vpack.c.b16 %v6891, %v6890
    %v7268 = vpack.c.b16 %v6893, %v6892
    %v7269 = vpack.c.b16 %v6895, %v6894
    %v7270 = vpack.c.b16 %v6897, %v6896
    %v7271 = vpack.c.b16 %v6899, %v6898
    %v7272 = vpack.c.b16 %v6901, %v6900
    %v7273 = vpack.c.b16 %v6903, %v6902
    %v7274 = vpack.c.b16 %v6905, %v6904
    %v7275 = vpack.c.b16 %v6907, %v6906
    %v7276 = vpack.c.b16 %v6909, %v6908
    %v7277 = vpack.c.b16 %v6911, %v6910
    %v7278 = vpack.c.b16 %v6913, %v6912
    %v7279 = vpack.c.b16 %v6915, %v6914
    %v7280 = vpack.c.b16 %v6917, %v6916
    %v7281 = vpack.c.b16 %v6919, %v6918
    %v7282 = vpack.c.b16 %v6921, %v6920
    %v7283 = vpack.c.b16 %v6923, %v6922
    %v7284 = vpack.c.b16 %v6925, %v6924
    %v7285 = vpack.c.b16 %v6927, %v6926
    %v7286 = vpack.c.b16 %v6929, %v6928
    %v7287 = vpack.c.b16 %v6931, %v6930
    %v7288 = vpack.c.b16 %v6933, %v6932
    %v7289 = vpack.c.b16 %v6935, %v6934
    %v7290 = vpack.c.b16 %v6937, %v6936
    %v7291 = vpack.c.b16 %v6939, %v6938
    %v7292 = vpack.c.b16 %v6941, %v6940
    %v7293 = vpack.c.b16 %v6943, %v6942
    %v7294 = vpack.c.b16 %v6945, %v6944
    %v7295 = vpack.c.b16 %v6947, %v6946
    %v7296 = vpack.c.b16 %v6949, %v6948
    %v7297 = vpack.c.b16 %v6951, %v6950
    %v7298 = vpack.c.b16 %v6953, %v6952
    %v7299 = vpack.c.b16 %v6955, %v6954
    %v7300 = vpack.c.b16 %v6957, %v6956
    %v7301 = vpack.c.b16 %v6959, %v6958
    %v7302 = vpack.c.b16 %v6961, %v6960
    %v7303 = vpack.c.b16 %v6963, %v6962
    %v7304 = vpack.c.b16 %v6965, %v6964
    %v7305 = vpack.c.b16 %v6967, %v6966
    %v7306 = vpack.c.b16 %v6969, %v6968
    %v7307 = vpack.c.b16 %v6971, %v6970
    %v7308 = vpack.c.b16 %v6973, %v6972
    %v7309 = vpack.c.b16 %v6975, %v6974
    %v7310 = vpack.c.b16 %v6977, %v6976
    %v7311 = vpack.c.b16 %v6979, %v6978
    %v7312 = vpack.c.b16 %v6981, %v6980
    %v7313 = vpack.c.b16 %v6983, %v6982
    %v7314 = vpack.c.b16 %v6985, %v6984
    %v7315 = vpack.c.b16 %v6987, %v6986
    %v7316 = vpack.c.b16 %v6989, %v6988
    %v7317 = vpack.c.b16 %v6991, %v6990
    %v7318 = vpack.c.b16 %v6993, %v6992
    %v7319 = vpack.c.b16 %v6995, %v6994
    %v7320 = vpack.c.b16 %v6997, %v6996
    %v7321 = vpack.c.b16 %v6999, %v6998
    %v7322 = vpack.c.b16 %v7001, %v7000
    %v7323 = vpack.c.b16 %v7003, %v7002
    %v7324 = vpack.c.b16 %v7005, %v7004
    %v7325 = vpack.c.b16 %v7007, %v7006
    %v7326 = vpack.c.b16 %v7009, %v7008
    %v7327 = vpack.c.b16 %v7011, %v7010
    %v7328 = vpack.c.b16 %v7013, %v7012
    %v7329 = vpack.c.b16 %v7015, %v7014
    %v7330 = vpack.c.b16 %v7017, %v7016
    %v7331 = vpack.c.b16 %v7019, %v7018
    %v7332 = vpack.c.b16 %v7021, %v7020
    %v7333 = vpack.c.b16 %v7023, %v7022
    %v7334 = vpack.c.b16 %v7025, %v7024
    %v7335 = vpack.c.b16 %v7027, %v7026
    %v7336 = vpack.c.b16 %v7029, %v7028
    %v7337 = vpack.c.b16 %v7031, %v7030
    %v7338 = vpack.c.b16 %v7033, %v7032
    %v7339 = vpack.c.b16 %v7035, %v7034
    %v7340 = vpack.c.b16 %v7037, %v7036
    %v7341 = vpack.c.b16 %v7039, %v7038
    %v7342 = vpack.c.b16 %v7041, %v7040
    %v7343 = vpack.c.b16 %v7043, %v7042
    %v7344 = vpack.c.b16 %v7045, %v7044
    %v7345 = vpack.c.b16 %v7047, %v7046
    %v7346 = vpack.c.b16 %v7049, %v7048
    %v7347 = vpack.c.b16 %v7051, %v7050
    %v7348 = vpack.c.b16 %v7053, %v7052
    %v7349 = vpack.c.b16 %v7055, %v7054
    %v7350 = vpack.c.b16 %v7057, %v7056
    %v7351 = vpack.c.b16 %v7059, %v7058
    %v7352 = vpack.c.b16 %v7061, %v7060
    %v7353 = vpack.c.b16 %v7063, %v7062
    %v7354 = vpack.c.b16 %v7065, %v7064
    %v7355 = vpack.c.b16 %v7067, %v7066
    %v7356 = vpack.c.b16 %v7069, %v7068
    %v7357 = vpack.c.b16 %v7071, %v7070
    %v7358 = vpack.c.b16 %v7073, %v7072
    %v7359 = vpack.c.b16 %v7075, %v7074
    %v7360 = vpack.c.b16 %v7077, %v7076
    %v7361 = vpack.c.b16 %v7079, %v7078
    %v7362 = vpack.c.b16 %v7081, %v7080
    %v7363 = vpack.c.b16 %v7083, %v7082
    %v7364 = vpack.c.b16 %v7085, %v7084
    %v7365 = vpack.c.b16 %v7087, %v7086
    %v7366 = vpack.c.b16 %v7089, %v7088
    %v7367 = vpack.c.b16 %v7091, %v7090
    %v7368 = vpack.c.b16 %v7093, %v7092
    %v7369 = vpack.c.b16 %v7095, %v7094
    %v7370 = vpack.c.b16 %v7097, %v7096
    %v7371 = vpack.c.b16 %v7099, %v7098
    %v7372 = vpack.c.b16 %v7101, %v7100
    %v7373 = vpack.c.b16 %v7103, %v7102
    %v7374 = vpack.c.b16 %v7105, %v7104
    %v7375 = vpack.c.b16 %v7107, %v7106
    %v7376 = vpack.c.b16 %v7109, %v7108
    %v7377 = vpack.c.b16 %v7111, %v7110
    %v7378 = vpack.c.b16 %v7113, %v7112
    %v7379 = vpack.c.b16 %v7115, %v7114
    %v7380 = vpack.c.b16 %v7117, %v7116
    %v7381 = vpack.c.b16 %v7119, %v7118
    %v7382 = vpack.c.b16 %v7121, %v7120
    %v7383 = vpack.c.b16 %v7123, %v7122
    %v7384 = vpack.c.b16 %v7125, %v7124
    %v7385 = vpack.c.b16 %v7127, %v7126
    %v7386 = vpack.c.b16 %v7129, %v7128
    %v7387 = vpack.c.b16 %v7131, %v7130
    %7644 = vmatprep.subr.bf16.mxu0 0
    %7645 = vmatpush1.bf16.msra.mxu0 %v7139
    %7646 = vmatprep.subr.bf16.mxu0 0
    %7647 = vmatpush1.bf16.msra.mxu0 %v7138
    %7648 = vmatprep.subr.bf16.mxu0 0
    %7649 = vmatpush1.bf16.msra.mxu0 %v7137
    %7650 = vmatprep.subr.bf16.mxu0 0
    %7651 = vmatpush1.bf16.msra.mxu0 %v7136
    %7652 = vmatprep.subr.bf16.mxu0 0
    %7653 = vmatpush1.bf16.msra.mxu0 %v7135
    %7654 = vmatprep.subr.bf16.mxu0 0
    %7655 = vmatpush1.bf16.msra.mxu0 %v7134
    %7656 = vmatprep.subr.bf16.mxu0 0
    %7657 = vmatpush1.bf16.msra.mxu0 %v7133
    %7658 = vmatprep.subr.bf16.mxu0 0
    %7659 = vmatpush1.bf16.msra.mxu0 %v7132
    %7660 = vmatprep.subr.bf16.mxu0 0
    %7661 = vmatpush2.bf16.msra.mxu0 %v7147
    %7662 = vmatprep.subr.bf16.mxu0 0
    %7663 = vmatpush2.bf16.msra.mxu0 %v7146
    %7664 = vmatprep.subr.bf16.mxu0 0
    %7665 = vmatpush2.bf16.msra.mxu0 %v7145
    %7666 = vmatprep.subr.bf16.mxu0 0
    %7667 = vmatpush2.bf16.msra.mxu0 %v7144
    %7668 = vmatprep.subr.bf16.mxu0 0
    %7669 = vmatpush2.bf16.msra.mxu0 %v7143
    %7670 = vmatprep.subr.bf16.mxu0 0
    %7671 = vmatpush2.bf16.msra.mxu0 %v7142
    %7672 = vmatprep.subr.bf16.mxu0 0
    %7673 = vmatpush2.bf16.msra.mxu0 %v7141
    %7674 = vmatprep.subr.bf16.mxu0 0
    %7675 = vmatpush2.bf16.msra.mxu0 %v7140
    %7676 = vmatprep.mubr.bf16.mxu0 %v5559
    %7677 = vmatmul.mubr.bf16.gmra.mxu0 %v5558
    %v7678 = vpop.f32.mrf.mxu0
    %v7679 = vadd.f32 %v6107, %v7678
    %v7680 = vpop.f32.mrf.mxu0
    %v7681 = vpop.f32.mrf.mxu0
    %v7682 = vpop.f32.mrf.mxu0
    %7683 = vdwg.mxu0
    %7684 = vmatprep.subr.bf16.mxu0 0
    %7685 = vmatpush1.bf16.msra.mxu0 %v7155
    %7686 = vmatprep.subr.bf16.mxu0 0
    %7687 = vmatpush1.bf16.msra.mxu0 %v7154
    %7688 = vmatprep.subr.bf16.mxu0 0
    %7689 = vmatpush1.bf16.msra.mxu0 %v7153
    %7690 = vmatprep.subr.bf16.mxu0 0
    %7691 = vmatpush1.bf16.msra.mxu0 %v7152
    %7692 = vmatprep.subr.bf16.mxu0 0
    %7693 = vmatpush1.bf16.msra.mxu0 %v7151
    %7694 = vmatprep.subr.bf16.mxu0 0
    %7695 = vmatpush1.bf16.msra.mxu0 %v7150
    %7696 = vmatprep.subr.bf16.mxu0 0
    %7697 = vmatpush1.bf16.msra.mxu0 %v7149
    %7698 = vmatprep.subr.bf16.mxu0 0
    %7699 = vmatpush1.bf16.msra.mxu0 %v7148
    %7700 = vmatprep.subr.bf16.mxu0 0
    %7701 = vmatpush2.bf16.msra.mxu0 %v7163
    %7702 = vmatprep.subr.bf16.mxu0 0
    %7703 = vmatpush2.bf16.msra.mxu0 %v7162
    %7704 = vmatprep.subr.bf16.mxu0 0
    %7705 = vmatpush2.bf16.msra.mxu0 %v7161
    %7706 = vmatprep.subr.bf16.mxu0 0
    %7707 = vmatpush2.bf16.msra.mxu0 %v7160
    %7708 = vmatprep.subr.bf16.mxu0 0
    %7709 = vmatpush2.bf16.msra.mxu0 %v7159
    %7710 = vmatprep.subr.bf16.mxu0 0
    %7711 = vmatpush2.bf16.msra.mxu0 %v7158
    %7712 = vmatprep.subr.bf16.mxu0 0
    %7713 = vmatpush2.bf16.msra.mxu0 %v7157
    %7714 = vmatprep.subr.bf16.mxu0 0
    %7715 = vmatpush2.bf16.msra.mxu0 %v7156
    %7716 = vmatprep.mubr.bf16.mxu0 %v5561
    %7717 = vmatmul.mubr.bf16.gmra.mxu0 %v5560
    %v7718 = vpop.f32.mrf.mxu0
    %v7719 = vadd.f32 %v7679, %v7718
    %v7720 = vpop.f32.mrf.mxu0
    %v7721 = vpop.f32.mrf.mxu0
    %v7722 = vpop.f32.mrf.mxu0
    %7723 = vdwg.mxu0
    %7724 = vmatprep.subr.bf16.mxu0 0
    %7725 = vmatpush1.bf16.msra.mxu0 %v7171
    %7726 = vmatprep.subr.bf16.mxu0 0
    %7727 = vmatpush1.bf16.msra.mxu0 %v7170
    %7728 = vmatprep.subr.bf16.mxu0 0
    %7729 = vmatpush1.bf16.msra.mxu0 %v7169
    %7730 = vmatprep.subr.bf16.mxu0 0
    %7731 = vmatpush1.bf16.msra.mxu0 %v7168
    %7732 = vmatprep.subr.bf16.mxu0 0
    %7733 = vmatpush1.bf16.msra.mxu0 %v7167
    %7734 = vmatprep.subr.bf16.mxu0 0
    %7735 = vmatpush1.bf16.msra.mxu0 %v7166
    %7736 = vmatprep.subr.bf16.mxu0 0
    %7737 = vmatpush1.bf16.msra.mxu0 %v7165
    %7738 = vmatprep.subr.bf16.mxu0 0
    %7739 = vmatpush1.bf16.msra.mxu0 %v7164
    %7740 = vmatprep.subr.bf16.mxu0 0
    %7741 = vmatpush2.bf16.msra.mxu0 %v7179
    %7742 = vmatprep.subr.bf16.mxu0 0
    %7743 = vmatpush2.bf16.msra.mxu0 %v7178
    %7744 = vmatprep.subr.bf16.mxu0 0
    %7745 = vmatpush2.bf16.msra.mxu0 %v7177
    %7746 = vmatprep.subr.bf16.mxu0 0
    %7747 = vmatpush2.bf16.msra.mxu0 %v7176
    %7748 = vmatprep.subr.bf16.mxu0 0
    %7749 = vmatpush2.bf16.msra.mxu0 %v7175
    %7750 = vmatprep.subr.bf16.mxu0 0
    %7751 = vmatpush2.bf16.msra.mxu0 %v7174
    %7752 = vmatprep.subr.bf16.mxu0 0
    %7753 = vmatpush2.bf16.msra.mxu0 %v7173
    %7754 = vmatprep.subr.bf16.mxu0 0
    %7755 = vmatpush2.bf16.msra.mxu0 %v7172
    %7756 = vmatprep.mubr.bf16.mxu0 %v5563
    %7757 = vmatmul.mubr.bf16.gmra.mxu0 %v5562
    %v7758 = vpop.f32.mrf.mxu0
    %v7759 = vadd.f32 %v7719, %v7758
    %v7760 = vpop.f32.mrf.mxu0
    %v7761 = vpop.f32.mrf.mxu0
    %v7762 = vpop.f32.mrf.mxu0
    %7763 = vdwg.mxu0
    %7764 = vmatprep.subr.bf16.mxu0 0
    %7765 = vmatpush1.bf16.msra.mxu0 %v7187
    %7766 = vmatprep.subr.bf16.mxu0 0
    %7767 = vmatpush1.bf16.msra.mxu0 %v7186
    %7768 = vmatprep.subr.bf16.mxu0 0
    %7769 = vmatpush1.bf16.msra.mxu0 %v7185
    %7770 = vmatprep.subr.bf16.mxu0 0
    %7771 = vmatpush1.bf16.msra.mxu0 %v7184
    %7772 = vmatprep.subr.bf16.mxu0 0
    %7773 = vmatpush1.bf16.msra.mxu0 %v7183
    %7774 = vmatprep.subr.bf16.mxu0 0
    %7775 = vmatpush1.bf16.msra.mxu0 %v7182
    %7776 = vmatprep.subr.bf16.mxu0 0
    %7777 = vmatpush1.bf16.msra.mxu0 %v7181
    %7778 = vmatprep.subr.bf16.mxu0 0
    %7779 = vmatpush1.bf16.msra.mxu0 %v7180
    %7780 = vmatprep.subr.bf16.mxu0 0
    %7781 = vmatpush2.bf16.msra.mxu0 %v7195
    %7782 = vmatprep.subr.bf16.mxu0 0
    %7783 = vmatpush2.bf16.msra.mxu0 %v7194
    %7784 = vmatprep.subr.bf16.mxu0 0
    %7785 = vmatpush2.bf16.msra.mxu0 %v7193
    %7786 = vmatprep.subr.bf16.mxu0 0
    %7787 = vmatpush2.bf16.msra.mxu0 %v7192
    %7788 = vmatprep.subr.bf16.mxu0 0
    %7789 = vmatpush2.bf16.msra.mxu0 %v7191
    %7790 = vmatprep.subr.bf16.mxu0 0
    %7791 = vmatpush2.bf16.msra.mxu0 %v7190
    %7792 = vmatprep.subr.bf16.mxu0 0
    %7793 = vmatpush2.bf16.msra.mxu0 %v7189
    %7794 = vmatprep.subr.bf16.mxu0 0
    %7795 = vmatpush2.bf16.msra.mxu0 %v7188
    %7796 = vmatprep.mubr.bf16.mxu0 %v5565
    %7797 = vmatmul.mubr.bf16.gmra.mxu0 %v5564
    %v7798 = vpop.f32.mrf.mxu0
    %v7799 = vadd.f32 %v7759, %v7798
    %v7800 = vpop.f32.mrf.mxu0
    %v7801 = vpop.f32.mrf.mxu0
    %v7802 = vpop.f32.mrf.mxu0
    %7803 = vdwg.mxu0
    %7804 = vmatprep.subr.bf16.mxu0 0
    %7805 = vmatpush1.bf16.msra.mxu0 %v7203
    %7806 = vmatprep.subr.bf16.mxu0 0
    %7807 = vmatpush1.bf16.msra.mxu0 %v7202
    %7808 = vmatprep.subr.bf16.mxu0 0
    %7809 = vmatpush1.bf16.msra.mxu0 %v7201
    %7810 = vmatprep.subr.bf16.mxu0 0
    %7811 = vmatpush1.bf16.msra.mxu0 %v7200
    %7812 = vmatprep.subr.bf16.mxu0 0
    %7813 = vmatpush1.bf16.msra.mxu0 %v7199
    %7814 = vmatprep.subr.bf16.mxu0 0
    %7815 = vmatpush1.bf16.msra.mxu0 %v7198
    %7816 = vmatprep.subr.bf16.mxu0 0
    %7817 = vmatpush1.bf16.msra.mxu0 %v7197
    %7818 = vmatprep.subr.bf16.mxu0 0
    %7819 = vmatpush1.bf16.msra.mxu0 %v7196
    %7820 = vmatprep.subr.bf16.mxu0 0
    %7821 = vmatpush2.bf16.msra.mxu0 %v7211
    %7822 = vmatprep.subr.bf16.mxu0 0
    %7823 = vmatpush2.bf16.msra.mxu0 %v7210
    %7824 = vmatprep.subr.bf16.mxu0 0
    %7825 = vmatpush2.bf16.msra.mxu0 %v7209
    %7826 = vmatprep.subr.bf16.mxu0 0
    %7827 = vmatpush2.bf16.msra.mxu0 %v7208
    %7828 = vmatprep.subr.bf16.mxu0 0
    %7829 = vmatpush2.bf16.msra.mxu0 %v7207
    %7830 = vmatprep.subr.bf16.mxu0 0
    %7831 = vmatpush2.bf16.msra.mxu0 %v7206
    %7832 = vmatprep.subr.bf16.mxu0 0
    %7833 = vmatpush2.bf16.msra.mxu0 %v7205
    %7834 = vmatprep.subr.bf16.mxu0 0
    %7835 = vmatpush2.bf16.msra.mxu0 %v7204
    %7836 = vmatprep.mubr.bf16.mxu0 %v5567
    %7837 = vmatmul.mubr.bf16.gmra.mxu0 %v5566
    %v7838 = vpop.f32.mrf.mxu0
    %v7839 = vadd.f32 %v7799, %v7838
    %v7840 = vpop.f32.mrf.mxu0
    %v7841 = vpop.f32.mrf.mxu0
    %v7842 = vpop.f32.mrf.mxu0
    %7843 = vdwg.mxu0
    %7844 = vmatprep.subr.bf16.mxu0 0
    %7845 = vmatpush1.bf16.msra.mxu0 %v7219
    %7846 = vmatprep.subr.bf16.mxu0 0
    %7847 = vmatpush1.bf16.msra.mxu0 %v7218
    %7848 = vmatprep.subr.bf16.mxu0 0
    %7849 = vmatpush1.bf16.msra.mxu0 %v7217
    %7850 = vmatprep.subr.bf16.mxu0 0
    %7851 = vmatpush1.bf16.msra.mxu0 %v7216
    %7852 = vmatprep.subr.bf16.mxu0 0
    %7853 = vmatpush1.bf16.msra.mxu0 %v7215
    %7854 = vmatprep.subr.bf16.mxu0 0
    %7855 = vmatpush1.bf16.msra.mxu0 %v7214
    %7856 = vmatprep.subr.bf16.mxu0 0
    %7857 = vmatpush1.bf16.msra.mxu0 %v7213
    %7858 = vmatprep.subr.bf16.mxu0 0
    %7859 = vmatpush1.bf16.msra.mxu0 %v7212
    %7860 = vmatprep.subr.bf16.mxu0 0
    %7861 = vmatpush2.bf16.msra.mxu0 %v7227
    %7862 = vmatprep.subr.bf16.mxu0 0
    %7863 = vmatpush2.bf16.msra.mxu0 %v7226
    %7864 = vmatprep.subr.bf16.mxu0 0
    %7865 = vmatpush2.bf16.msra.mxu0 %v7225
    %7866 = vmatprep.subr.bf16.mxu0 0
    %7867 = vmatpush2.bf16.msra.mxu0 %v7224
    %7868 = vmatprep.subr.bf16.mxu0 0
    %7869 = vmatpush2.bf16.msra.mxu0 %v7223
    %7870 = vmatprep.subr.bf16.mxu0 0
    %7871 = vmatpush2.bf16.msra.mxu0 %v7222
    %7872 = vmatprep.subr.bf16.mxu0 0
    %7873 = vmatpush2.bf16.msra.mxu0 %v7221
    %7874 = vmatprep.subr.bf16.mxu0 0
    %7875 = vmatpush2.bf16.msra.mxu0 %v7220
    %7876 = vmatprep.mubr.bf16.mxu0 %v5569
    %7877 = vmatmul.mubr.bf16.gmra.mxu0 %v5568
    %v7878 = vpop.f32.mrf.mxu0
    %v7879 = vadd.f32 %v7839, %v7878
    %v7880 = vpop.f32.mrf.mxu0
    %v7881 = vpop.f32.mrf.mxu0
    %v7882 = vpop.f32.mrf.mxu0
    %7883 = vdwg.mxu0
    %7884 = vmatprep.subr.bf16.mxu0 0
    %7885 = vmatpush1.bf16.msra.mxu0 %v7235
    %7886 = vmatprep.subr.bf16.mxu0 0
    %7887 = vmatpush1.bf16.msra.mxu0 %v7234
    %7888 = vmatprep.subr.bf16.mxu0 0
    %7889 = vmatpush1.bf16.msra.mxu0 %v7233
    %7890 = vmatprep.subr.bf16.mxu0 0
    %7891 = vmatpush1.bf16.msra.mxu0 %v7232
    %7892 = vmatprep.subr.bf16.mxu0 0
    %7893 = vmatpush1.bf16.msra.mxu0 %v7231
    %7894 = vmatprep.subr.bf16.mxu0 0
    %7895 = vmatpush1.bf16.msra.mxu0 %v7230
    %7896 = vmatprep.subr.bf16.mxu0 0
    %7897 = vmatpush1.bf16.msra.mxu0 %v7229
    %7898 = vmatprep.subr.bf16.mxu0 0
    %7899 = vmatpush1.bf16.msra.mxu0 %v7228
    %7900 = vmatprep.subr.bf16.mxu0 0
    %7901 = vmatpush2.bf16.msra.mxu0 %v7243
    %7902 = vmatprep.subr.bf16.mxu0 0
    %7903 = vmatpush2.bf16.msra.mxu0 %v7242
    %7904 = vmatprep.subr.bf16.mxu0 0
    %7905 = vmatpush2.bf16.msra.mxu0 %v7241
    %7906 = vmatprep.subr.bf16.mxu0 0
    %7907 = vmatpush2.bf16.msra.mxu0 %v7240
    %7908 = vmatprep.subr.bf16.mxu0 0
    %7909 = vmatpush2.bf16.msra.mxu0 %v7239
    %7910 = vmatprep.subr.bf16.mxu0 0
    %7911 = vmatpush2.bf16.msra.mxu0 %v7238
    %7912 = vmatprep.subr.bf16.mxu0 0
    %7913 = vmatpush2.bf16.msra.mxu0 %v7237
    %7914 = vmatprep.subr.bf16.mxu0 0
    %7915 = vmatpush2.bf16.msra.mxu0 %v7236
    %7916 = vmatprep.mubr.bf16.mxu0 %v5571
    %7917 = vmatmul.mubr.bf16.gmra.mxu0 %v5570
    %v7918 = vpop.f32.mrf.mxu0
    %v7919 = vadd.f32 %v7879, %v7918
    %v7920 = vpop.f32.mrf.mxu0
    %v7921 = vpop.f32.mrf.mxu0
    %v7922 = vpop.f32.mrf.mxu0
    %7923 = vdwg.mxu0
    %7924 = vmatprep.subr.bf16.mxu0 0
    %7925 = vmatpush1.bf16.msra.mxu0 %v7251
    %7926 = vmatprep.subr.bf16.mxu0 0
    %7927 = vmatpush1.bf16.msra.mxu0 %v7250
    %7928 = vmatprep.subr.bf16.mxu0 0
    %7929 = vmatpush1.bf16.msra.mxu0 %v7249
    %7930 = vmatprep.subr.bf16.mxu0 0
    %7931 = vmatpush1.bf16.msra.mxu0 %v7248
    %7932 = vmatprep.subr.bf16.mxu0 0
    %7933 = vmatpush1.bf16.msra.mxu0 %v7247
    %7934 = vmatprep.subr.bf16.mxu0 0
    %7935 = vmatpush1.bf16.msra.mxu0 %v7246
    %7936 = vmatprep.subr.bf16.mxu0 0
    %7937 = vmatpush1.bf16.msra.mxu0 %v7245
    %7938 = vmatprep.subr.bf16.mxu0 0
    %7939 = vmatpush1.bf16.msra.mxu0 %v7244
    %7940 = vmatprep.subr.bf16.mxu0 0
    %7941 = vmatpush2.bf16.msra.mxu0 %v7259
    %7942 = vmatprep.subr.bf16.mxu0 0
    %7943 = vmatpush2.bf16.msra.mxu0 %v7258
    %7944 = vmatprep.subr.bf16.mxu0 0
    %7945 = vmatpush2.bf16.msra.mxu0 %v7257
    %7946 = vmatprep.subr.bf16.mxu0 0
    %7947 = vmatpush2.bf16.msra.mxu0 %v7256
    %7948 = vmatprep.subr.bf16.mxu0 0
    %7949 = vmatpush2.bf16.msra.mxu0 %v7255
    %7950 = vmatprep.subr.bf16.mxu0 0
    %7951 = vmatpush2.bf16.msra.mxu0 %v7254
    %7952 = vmatprep.subr.bf16.mxu0 0
    %7953 = vmatpush2.bf16.msra.mxu0 %v7253
    %7954 = vmatprep.subr.bf16.mxu0 0
    %7955 = vmatpush2.bf16.msra.mxu0 %v7252
    %7956 = vmatprep.mubr.bf16.mxu0 %v5573
    %7957 = vmatmul.mubr.bf16.gmra.mxu0 %v5572
    %v7958 = vpop.f32.mrf.mxu0
    %v7959 = vadd.f32 %v7919, %v7958
    %v7960 = vpop.f32.mrf.mxu0
    %v7961 = vpop.f32.mrf.mxu0
    %v7962 = vpop.f32.mrf.mxu0
    %7963 = vdwg.mxu0
    %7964 = vmatprep.subr.bf16.mxu0 0
    %7965 = vmatpush1.bf16.msra.mxu0 %v7267
    %7966 = vmatprep.subr.bf16.mxu0 0
    %7967 = vmatpush1.bf16.msra.mxu0 %v7266
    %7968 = vmatprep.subr.bf16.mxu0 0
    %7969 = vmatpush1.bf16.msra.mxu0 %v7265
    %7970 = vmatprep.subr.bf16.mxu0 0
    %7971 = vmatpush1.bf16.msra.mxu0 %v7264
    %7972 = vmatprep.subr.bf16.mxu0 0
    %7973 = vmatpush1.bf16.msra.mxu0 %v7263
    %7974 = vmatprep.subr.bf16.mxu0 0
    %7975 = vmatpush1.bf16.msra.mxu0 %v7262
    %7976 = vmatprep.subr.bf16.mxu0 0
    %7977 = vmatpush1.bf16.msra.mxu0 %v7261
    %7978 = vmatprep.subr.bf16.mxu0 0
    %7979 = vmatpush1.bf16.msra.mxu0 %v7260
    %7980 = vmatprep.subr.bf16.mxu0 0
    %7981 = vmatpush2.bf16.msra.mxu0 %v7275
    %7982 = vmatprep.subr.bf16.mxu0 0
    %7983 = vmatpush2.bf16.msra.mxu0 %v7274
    %7984 = vmatprep.subr.bf16.mxu0 0
    %7985 = vmatpush2.bf16.msra.mxu0 %v7273
    %7986 = vmatprep.subr.bf16.mxu0 0
    %7987 = vmatpush2.bf16.msra.mxu0 %v7272
    %7988 = vmatprep.subr.bf16.mxu0 0
    %7989 = vmatpush2.bf16.msra.mxu0 %v7271
    %7990 = vmatprep.subr.bf16.mxu0 0
    %7991 = vmatpush2.bf16.msra.mxu0 %v7270
    %7992 = vmatprep.subr.bf16.mxu0 0
    %7993 = vmatpush2.bf16.msra.mxu0 %v7269
    %7994 = vmatprep.subr.bf16.mxu0 0
    %7995 = vmatpush2.bf16.msra.mxu0 %v7268
    %7996 = vmatprep.mubr.bf16.mxu0 %v5575
    %7997 = vmatmul.mubr.bf16.gmra.mxu0 %v5574
    %v7998 = vpop.f32.mrf.mxu0
    %v7999 = vadd.f32 %v7959, %v7998
    %v8000 = vpop.f32.mrf.mxu0
    %v8001 = vpop.f32.mrf.mxu0
    %v8002 = vpop.f32.mrf.mxu0
    %8003 = vdwg.mxu0
    %8004 = vmatprep.subr.bf16.mxu0 0
    %8005 = vmatpush1.bf16.msra.mxu0 %v7283
    %8006 = vmatprep.subr.bf16.mxu0 0
    %8007 = vmatpush1.bf16.msra.mxu0 %v7282
    %8008 = vmatprep.subr.bf16.mxu0 0
    %8009 = vmatpush1.bf16.msra.mxu0 %v7281
    %8010 = vmatprep.subr.bf16.mxu0 0
    %8011 = vmatpush1.bf16.msra.mxu0 %v7280
    %8012 = vmatprep.subr.bf16.mxu0 0
    %8013 = vmatpush1.bf16.msra.mxu0 %v7279
    %8014 = vmatprep.subr.bf16.mxu0 0
    %8015 = vmatpush1.bf16.msra.mxu0 %v7278
    %8016 = vmatprep.subr.bf16.mxu0 0
    %8017 = vmatpush1.bf16.msra.mxu0 %v7277
    %8018 = vmatprep.subr.bf16.mxu0 0
    %8019 = vmatpush1.bf16.msra.mxu0 %v7276
    %8020 = vmatprep.subr.bf16.mxu0 0
    %8021 = vmatpush2.bf16.msra.mxu0 %v7291
    %8022 = vmatprep.subr.bf16.mxu0 0
    %8023 = vmatpush2.bf16.msra.mxu0 %v7290
    %8024 = vmatprep.subr.bf16.mxu0 0
    %8025 = vmatpush2.bf16.msra.mxu0 %v7289
    %8026 = vmatprep.subr.bf16.mxu0 0
    %8027 = vmatpush2.bf16.msra.mxu0 %v7288
    %8028 = vmatprep.subr.bf16.mxu0 0
    %8029 = vmatpush2.bf16.msra.mxu0 %v7287
    %8030 = vmatprep.subr.bf16.mxu0 0
    %8031 = vmatpush2.bf16.msra.mxu0 %v7286
    %8032 = vmatprep.subr.bf16.mxu0 0
    %8033 = vmatpush2.bf16.msra.mxu0 %v7285
    %8034 = vmatprep.subr.bf16.mxu0 0
    %8035 = vmatpush2.bf16.msra.mxu0 %v7284
    %8036 = vmatprep.mubr.bf16.mxu0 %v5577
    %8037 = vmatmul.mubr.bf16.gmra.mxu0 %v5576
    %v8038 = vpop.f32.mrf.mxu0
    %v8039 = vadd.f32 %v7999, %v8038
    %v8040 = vpop.f32.mrf.mxu0
    %v8041 = vpop.f32.mrf.mxu0
    %v8042 = vpop.f32.mrf.mxu0
    %8043 = vdwg.mxu0
    %8044 = vmatprep.subr.bf16.mxu0 0
    %8045 = vmatpush1.bf16.msra.mxu0 %v7299
    %8046 = vmatprep.subr.bf16.mxu0 0
    %8047 = vmatpush1.bf16.msra.mxu0 %v7298
    %8048 = vmatprep.subr.bf16.mxu0 0
    %8049 = vmatpush1.bf16.msra.mxu0 %v7297
    %8050 = vmatprep.subr.bf16.mxu0 0
    %8051 = vmatpush1.bf16.msra.mxu0 %v7296
    %8052 = vmatprep.subr.bf16.mxu0 0
    %8053 = vmatpush1.bf16.msra.mxu0 %v7295
    %8054 = vmatprep.subr.bf16.mxu0 0
    %8055 = vmatpush1.bf16.msra.mxu0 %v7294
    %8056 = vmatprep.subr.bf16.mxu0 0
    %8057 = vmatpush1.bf16.msra.mxu0 %v7293
    %8058 = vmatprep.subr.bf16.mxu0 0
    %8059 = vmatpush1.bf16.msra.mxu0 %v7292
    %8060 = vmatprep.subr.bf16.mxu0 0
    %8061 = vmatpush2.bf16.msra.mxu0 %v7307
    %8062 = vmatprep.subr.bf16.mxu0 0
    %8063 = vmatpush2.bf16.msra.mxu0 %v7306
    %8064 = vmatprep.subr.bf16.mxu0 0
    %8065 = vmatpush2.bf16.msra.mxu0 %v7305
    %8066 = vmatprep.subr.bf16.mxu0 0
    %8067 = vmatpush2.bf16.msra.mxu0 %v7304
    %8068 = vmatprep.subr.bf16.mxu0 0
    %8069 = vmatpush2.bf16.msra.mxu0 %v7303
    %8070 = vmatprep.subr.bf16.mxu0 0
    %8071 = vmatpush2.bf16.msra.mxu0 %v7302
    %8072 = vmatprep.subr.bf16.mxu0 0
    %8073 = vmatpush2.bf16.msra.mxu0 %v7301
    %8074 = vmatprep.subr.bf16.mxu0 0
    %8075 = vmatpush2.bf16.msra.mxu0 %v7300
    %8076 = vmatprep.mubr.bf16.mxu0 %v5579
    %8077 = vmatmul.mubr.bf16.gmra.mxu0 %v5578
    %v8078 = vpop.f32.mrf.mxu0
    %v8079 = vadd.f32 %v8039, %v8078
    %v8080 = vpop.f32.mrf.mxu0
    %v8081 = vpop.f32.mrf.mxu0
    %v8082 = vpop.f32.mrf.mxu0
    %8083 = vdwg.mxu0
    %8084 = vmatprep.subr.bf16.mxu0 0
    %8085 = vmatpush1.bf16.msra.mxu0 %v7315
    %8086 = vmatprep.subr.bf16.mxu0 0
    %8087 = vmatpush1.bf16.msra.mxu0 %v7314
    %8088 = vmatprep.subr.bf16.mxu0 0
    %8089 = vmatpush1.bf16.msra.mxu0 %v7313
    %8090 = vmatprep.subr.bf16.mxu0 0
    %8091 = vmatpush1.bf16.msra.mxu0 %v7312
    %8092 = vmatprep.subr.bf16.mxu0 0
    %8093 = vmatpush1.bf16.msra.mxu0 %v7311
    %8094 = vmatprep.subr.bf16.mxu0 0
    %8095 = vmatpush1.bf16.msra.mxu0 %v7310
    %8096 = vmatprep.subr.bf16.mxu0 0
    %8097 = vmatpush1.bf16.msra.mxu0 %v7309
    %8098 = vmatprep.subr.bf16.mxu0 0
    %8099 = vmatpush1.bf16.msra.mxu0 %v7308
    %8100 = vmatprep.subr.bf16.mxu0 0
    %8101 = vmatpush2.bf16.msra.mxu0 %v7323
    %8102 = vmatprep.subr.bf16.mxu0 0
    %8103 = vmatpush2.bf16.msra.mxu0 %v7322
    %8104 = vmatprep.subr.bf16.mxu0 0
    %8105 = vmatpush2.bf16.msra.mxu0 %v7321
    %8106 = vmatprep.subr.bf16.mxu0 0
    %8107 = vmatpush2.bf16.msra.mxu0 %v7320
    %8108 = vmatprep.subr.bf16.mxu0 0
    %8109 = vmatpush2.bf16.msra.mxu0 %v7319
    %8110 = vmatprep.subr.bf16.mxu0 0
    %8111 = vmatpush2.bf16.msra.mxu0 %v7318
    %8112 = vmatprep.subr.bf16.mxu0 0
    %8113 = vmatpush2.bf16.msra.mxu0 %v7317
    %8114 = vmatprep.subr.bf16.mxu0 0
    %8115 = vmatpush2.bf16.msra.mxu0 %v7316
    %8116 = vmatprep.mubr.bf16.mxu0 %v5581
    %8117 = vmatmul.mubr.bf16.gmra.mxu0 %v5580
    %v8118 = vpop.f32.mrf.mxu0
    %v8119 = vadd.f32 %v8079, %v8118
    %v8120 = vpop.f32.mrf.mxu0
    %v8121 = vpop.f32.mrf.mxu0
    %v8122 = vpop.f32.mrf.mxu0
    %8123 = vdwg.mxu0
    %8124 = vmatprep.subr.bf16.mxu0 0
    %8125 = vmatpush1.bf16.msra.mxu0 %v7331
    %8126 = vmatprep.subr.bf16.mxu0 0
    %8127 = vmatpush1.bf16.msra.mxu0 %v7330
    %8128 = vmatprep.subr.bf16.mxu0 0
    %8129 = vmatpush1.bf16.msra.mxu0 %v7329
    %8130 = vmatprep.subr.bf16.mxu0 0
    %8131 = vmatpush1.bf16.msra.mxu0 %v7328
    %8132 = vmatprep.subr.bf16.mxu0 0
    %8133 = vmatpush1.bf16.msra.mxu0 %v7327
    %8134 = vmatprep.subr.bf16.mxu0 0
    %8135 = vmatpush1.bf16.msra.mxu0 %v7326
    %8136 = vmatprep.subr.bf16.mxu0 0
    %8137 = vmatpush1.bf16.msra.mxu0 %v7325
    %8138 = vmatprep.subr.bf16.mxu0 0
    %8139 = vmatpush1.bf16.msra.mxu0 %v7324
    %8140 = vmatprep.subr.bf16.mxu0 0
    %8141 = vmatpush2.bf16.msra.mxu0 %v7339
    %8142 = vmatprep.subr.bf16.mxu0 0
    %8143 = vmatpush2.bf16.msra.mxu0 %v7338
    %8144 = vmatprep.subr.bf16.mxu0 0
    %8145 = vmatpush2.bf16.msra.mxu0 %v7337
    %8146 = vmatprep.subr.bf16.mxu0 0
    %8147 = vmatpush2.bf16.msra.mxu0 %v7336
    %8148 = vmatprep.subr.bf16.mxu0 0
    %8149 = vmatpush2.bf16.msra.mxu0 %v7335
    %8150 = vmatprep.subr.bf16.mxu0 0
    %8151 = vmatpush2.bf16.msra.mxu0 %v7334
    %8152 = vmatprep.subr.bf16.mxu0 0
    %8153 = vmatpush2.bf16.msra.mxu0 %v7333
    %8154 = vmatprep.subr.bf16.mxu0 0
    %8155 = vmatpush2.bf16.msra.mxu0 %v7332
    %8156 = vmatprep.mubr.bf16.mxu0 %v5583
    %8157 = vmatmul.mubr.bf16.gmra.mxu0 %v5582
    %v8158 = vpop.f32.mrf.mxu0
    %v8159 = vadd.f32 %v8119, %v8158
    %v8160 = vpop.f32.mrf.mxu0
    %v8161 = vpop.f32.mrf.mxu0
    %v8162 = vpop.f32.mrf.mxu0
    %8163 = vdwg.mxu0
    %8164 = vmatprep.subr.bf16.mxu0 0
    %8165 = vmatpush1.bf16.msra.mxu0 %v7347
    %8166 = vmatprep.subr.bf16.mxu0 0
    %8167 = vmatpush1.bf16.msra.mxu0 %v7346
    %8168 = vmatprep.subr.bf16.mxu0 0
    %8169 = vmatpush1.bf16.msra.mxu0 %v7345
    %8170 = vmatprep.subr.bf16.mxu0 0
    %8171 = vmatpush1.bf16.msra.mxu0 %v7344
    %8172 = vmatprep.subr.bf16.mxu0 0
    %8173 = vmatpush1.bf16.msra.mxu0 %v7343
    %8174 = vmatprep.subr.bf16.mxu0 0
    %8175 = vmatpush1.bf16.msra.mxu0 %v7342
    %8176 = vmatprep.subr.bf16.mxu0 0
    %8177 = vmatpush1.bf16.msra.mxu0 %v7341
    %8178 = vmatprep.subr.bf16.mxu0 0
    %8179 = vmatpush1.bf16.msra.mxu0 %v7340
    %8180 = vmatprep.subr.bf16.mxu0 0
    %8181 = vmatpush2.bf16.msra.mxu0 %v7355
    %8182 = vmatprep.subr.bf16.mxu0 0
    %8183 = vmatpush2.bf16.msra.mxu0 %v7354
    %8184 = vmatprep.subr.bf16.mxu0 0
    %8185 = vmatpush2.bf16.msra.mxu0 %v7353
    %8186 = vmatprep.subr.bf16.mxu0 0
    %8187 = vmatpush2.bf16.msra.mxu0 %v7352
    %8188 = vmatprep.subr.bf16.mxu0 0
    %8189 = vmatpush2.bf16.msra.mxu0 %v7351
    %8190 = vmatprep.subr.bf16.mxu0 0
    %8191 = vmatpush2.bf16.msra.mxu0 %v7350
    %8192 = vmatprep.subr.bf16.mxu0 0
    %8193 = vmatpush2.bf16.msra.mxu0 %v7349
    %8194 = vmatprep.subr.bf16.mxu0 0
    %8195 = vmatpush2.bf16.msra.mxu0 %v7348
    %8196 = vmatprep.mubr.bf16.mxu0 %v5585
    %8197 = vmatmul.mubr.bf16.gmra.mxu0 %v5584
    %v8198 = vpop.f32.mrf.mxu0
    %v8199 = vadd.f32 %v8159, %v8198
    %v8200 = vpop.f32.mrf.mxu0
    %v8201 = vpop.f32.mrf.mxu0
    %v8202 = vpop.f32.mrf.mxu0
    %8203 = vdwg.mxu0
    %8204 = vmatprep.subr.bf16.mxu0 0
    %8205 = vmatpush1.bf16.msra.mxu0 %v7363
    %8206 = vmatprep.subr.bf16.mxu0 0
    %8207 = vmatpush1.bf16.msra.mxu0 %v7362
    %8208 = vmatprep.subr.bf16.mxu0 0
    %8209 = vmatpush1.bf16.msra.mxu0 %v7361
    %8210 = vmatprep.subr.bf16.mxu0 0
    %8211 = vmatpush1.bf16.msra.mxu0 %v7360
    %8212 = vmatprep.subr.bf16.mxu0 0
    %8213 = vmatpush1.bf16.msra.mxu0 %v7359
    %8214 = vmatprep.subr.bf16.mxu0 0
    %8215 = vmatpush1.bf16.msra.mxu0 %v7358
    %8216 = vmatprep.subr.bf16.mxu0 0
    %8217 = vmatpush1.bf16.msra.mxu0 %v7357
    %8218 = vmatprep.subr.bf16.mxu0 0
    %8219 = vmatpush1.bf16.msra.mxu0 %v7356
    %8220 = vmatprep.subr.bf16.mxu0 0
    %8221 = vmatpush2.bf16.msra.mxu0 %v7371
    %8222 = vmatprep.subr.bf16.mxu0 0
    %8223 = vmatpush2.bf16.msra.mxu0 %v7370
    %8224 = vmatprep.subr.bf16.mxu0 0
    %8225 = vmatpush2.bf16.msra.mxu0 %v7369
    %8226 = vmatprep.subr.bf16.mxu0 0
    %8227 = vmatpush2.bf16.msra.mxu0 %v7368
    %8228 = vmatprep.subr.bf16.mxu0 0
    %8229 = vmatpush2.bf16.msra.mxu0 %v7367
    %8230 = vmatprep.subr.bf16.mxu0 0
    %8231 = vmatpush2.bf16.msra.mxu0 %v7366
    %8232 = vmatprep.subr.bf16.mxu0 0
    %8233 = vmatpush2.bf16.msra.mxu0 %v7365
    %8234 = vmatprep.subr.bf16.mxu0 0
    %8235 = vmatpush2.bf16.msra.mxu0 %v7364
    %8236 = vmatprep.mubr.bf16.mxu0 %v5587
    %8237 = vmatmul.mubr.bf16.gmra.mxu0 %v5586
    %v8238 = vpop.f32.mrf.mxu0
    %v8239 = vadd.f32 %v8199, %v8238
    %v8240 = vpop.f32.mrf.mxu0
    %v8241 = vpop.f32.mrf.mxu0
    %v8242 = vpop.f32.mrf.mxu0
    %8243 = vdwg.mxu0
    %8244 = vmatprep.subr.bf16.mxu0 0
    %8245 = vmatpush1.bf16.msra.mxu0 %v7379
    %8246 = vmatprep.subr.bf16.mxu0 0
    %8247 = vmatpush1.bf16.msra.mxu0 %v7378
    %8248 = vmatprep.subr.bf16.mxu0 0
    %8249 = vmatpush1.bf16.msra.mxu0 %v7377
    %8250 = vmatprep.subr.bf16.mxu0 0
    %8251 = vmatpush1.bf16.msra.mxu0 %v7376
    %8252 = vmatprep.subr.bf16.mxu0 0
    %8253 = vmatpush1.bf16.msra.mxu0 %v7375
    %8254 = vmatprep.subr.bf16.mxu0 0
    %8255 = vmatpush1.bf16.msra.mxu0 %v7374
    %8256 = vmatprep.subr.bf16.mxu0 0
    %8257 = vmatpush1.bf16.msra.mxu0 %v7373
    %8258 = vmatprep.subr.bf16.mxu0 0
    %8259 = vmatpush1.bf16.msra.mxu0 %v7372
    %8260 = vmatprep.subr.bf16.mxu0 0
    %8261 = vmatpush2.bf16.msra.mxu0 %v7387
    %8262 = vmatprep.subr.bf16.mxu0 0
    %8263 = vmatpush2.bf16.msra.mxu0 %v7386
    %8264 = vmatprep.subr.bf16.mxu0 0
    %8265 = vmatpush2.bf16.msra.mxu0 %v7385
    %8266 = vmatprep.subr.bf16.mxu0 0
    %8267 = vmatpush2.bf16.msra.mxu0 %v7384
    %8268 = vmatprep.subr.bf16.mxu0 0
    %8269 = vmatpush2.bf16.msra.mxu0 %v7383
    %8270 = vmatprep.subr.bf16.mxu0 0
    %8271 = vmatpush2.bf16.msra.mxu0 %v7382
    %8272 = vmatprep.subr.bf16.mxu0 0
    %8273 = vmatpush2.bf16.msra.mxu0 %v7381
    %8274 = vmatprep.subr.bf16.mxu0 0
    %8275 = vmatpush2.bf16.msra.mxu0 %v7380
    %8276 = vmatprep.mubr.bf16.mxu0 %v5589
    %8277 = vmatmul.mubr.bf16.gmra.mxu0 %v5588
    %v8278 = vpop.f32.mrf.mxu0
    %v8279 = vadd.f32 %v8239, %v8278
    %v8280 = vpop.f32.mrf.mxu0
    %v8281 = vpop.f32.mrf.mxu0
    %v8282 = vpop.f32.mrf.mxu0
    %8283 = vdwg.mxu0
    %vm8284 = vcmask 523264
    %8285 = vst.msk [vmem:[#allocation7] sm:$0xff] %vm8284, %v8279
    // Predicated region
    $region42: #{tpu_custom_call.1} parent=1 // pred_check
      _
    $region43: #{tpu_custom_call.1} parent=1 // pred_check_branch
      %8287 = sbr.rel (0) target = $region45
    $region44: #{tpu_custom_call.1} parent=1 // pred_region
      %s8289 = ssub.s32 128, 128
      %8290 = vsyncadd [#allocation3], %s8289
      %s8292 = sshll.u32 [#allocation2], 4
      %s8293 = int_to_ptr.vmem [resolvable:$true] %s8292
      %8295 = dma.vmem_to_hbm [thread:$0]  %s8293, 128, %s10, [#allocation3]
    $region45: #{tpu_custom_call.1} parent=1 // pred_fallthru
      _
    // Predicated region
    $region46: #{tpu_custom_call.1} parent=1 // pred_check
      _
    $region47: #{tpu_custom_call.1} parent=1 // pred_check_branch
      %8297 = sbr.rel (0) target = $region49
    $region48: #{tpu_custom_call.1} parent=1 // pred_region
      %s8299 = ssub.s32 128, 128
      %8300 = vsyncadd [#allocation5], %s8299
      %s8302 = sshll.u32 [#allocation4], 4
      %s8303 = int_to_ptr.vmem [resolvable:$true] %s8302
      %8305 = dma.vmem_to_hbm [thread:$0]  %s8303, 128, %s11, [#allocation5]
    $region49: #{tpu_custom_call.1} parent=1 // pred_fallthru
      _
    // Predicated region
    $region50: #{tpu_custom_call.1} parent=1 // pred_check
      _
    $region51: #{tpu_custom_call.1} parent=1 // pred_check_branch
      %8307 = sbr.rel (0) target = $region53
    $region52: #{tpu_custom_call.1} parent=1 // pred_region
      %s8309 = ssub.s32 128, 128
      %8310 = vsyncadd [#allocation5], %s8309
      %s8312 = sshll.u32 [#allocation6], 4
      %s8313 = int_to_ptr.vmem [resolvable:$true] %s8312
      %8315 = dma.vmem_to_hbm [thread:$0]  %s8313, 128, %s12, [#allocation5]
    $region53: #{tpu_custom_call.1} parent=1 // pred_fallthru
      _
    // Predicated region
    $region54: #{tpu_custom_call.1} parent=1 // pred_check
      _
    $region55: #{tpu_custom_call.1} parent=1 // pred_check_branch
      %8317 = sbr.rel (0) target = $region57
    $region56: #{tpu_custom_call.1} parent=1 // pred_region
      %s8319 = ssub.s32 128, 128
      %8320 = vsyncadd [#allocation8], %s8319
      %s8322 = sshll.u32 [#allocation7], 4
      %s8323 = int_to_ptr.vmem [resolvable:$true] %s8322
      %8325 = dma.vmem_to_hbm [thread:$0]  %s8323, 128, %s13, [#allocation8]
    $region57: #{tpu_custom_call.1} parent=1 // pred_fallthru
      _
    // Predicated region
    $region58: #{tpu_custom_call.1} parent=1 // pred_check
      _
    $region59: #{tpu_custom_call.1} parent=1 // pred_check_branch
      %8327 = sbr.rel (0) target = $region61
    $region60: #{tpu_custom_call.1} parent=1 // pred_region
      %8328 = dma.done [#allocation3], 128
    $region61: #{tpu_custom_call.1} parent=1 // pred_fallthru
      _
    // Predicated region
    $region62: #{tpu_custom_call.1} parent=1 // pred_check
      _
    $region63: #{tpu_custom_call.1} parent=1 // pred_check_branch
      %8330 = sbr.rel (0) target = $region65
    $region64: #{tpu_custom_call.1} parent=1 // pred_region
      %8331 = dma.done [#allocation5], 128
    $region65: #{tpu_custom_call.1} parent=1 // pred_fallthru
      _
    // Predicated region
    $region66: #{tpu_custom_call.1} parent=1 // pred_check
      _
    $region67: #{tpu_custom_call.1} parent=1 // pred_check_branch
      %8333 = sbr.rel (0) target = $region69
    $region68: #{tpu_custom_call.1} parent=1 // pred_region
      %8334 = dma.done [#allocation5], 128
    $region69: #{tpu_custom_call.1} parent=1 // pred_fallthru
      _
    // Predicated region
    $region70: #{tpu_custom_call.1} parent=1 // pred_check
      _
    $region71: #{tpu_custom_call.1} parent=1 // pred_check_branch
      %8336 = sbr.rel (0) target = $region73
    $region72: #{tpu_custom_call.1} parent=1 // pred_region
      %8337 = dma.done [#allocation8], 128
    $region73: #{tpu_custom_call.1} parent=1 // pred_fallthru
      _
    %8338 = vsyncpa [#allocation3], 1
    %8339 = vsyncpa [#allocation5], 1
    %8340 = vsyncpa [#allocation8], 1

</llo_original>
